<compile_context>
chip_gen: v7x
topology: tpu7x:2x2x1
jax: 0.10.0
libtpu: 0.0.40
codegen_flags: <defaults>
</compile_context>

<pallas_src>
import functools

import jax
import jax.numpy as jnp
from jax import lax
from jax.experimental import pallas as pl
from jax.experimental.pallas import tpu as pltpu


def _layer_norm(x, gamma, beta, eps):
    """LayerNorm exactly as the reference module (unbiased std, eps on std)."""
    d = x.shape[-1]
    mean = jnp.mean(x, axis=-1, keepdims=True)
    c = x - mean
    var_unbiased = jnp.sum(c * c, axis=-1, keepdims=True) * (1.0 / (d - 1))
    std = jnp.sqrt(var_unbiased)
    inv = pl.reciprocal(std + eps, approx=True)       # EUP slot, frees VALU
    return gamma * (c * inv) + beta


def _encoder_layer_kernel(
    x_ref,       # (TL*B, E)   input rows, row-major over (tgt_len, bsz), f32
    mask_ref,    # (TL, B)     attention mask (0 => masked-out key), f32
    wqkv_ref,    # (E, 3E)     fused Q|K|V projection weight, bf16
    bqkv_ref,    # (1, 3E)     fused Q|K|V bias, f32
    wo_ref,      # (E, E)      output projection weight, bf16
    wffn_ref,    # (E, E)      pre-composed FFN weight (W1 @ W2), bf16
    vec_ref,     # (6, E)      rows: bo, ln1_g, ln1_b, ln2_g, ln2_b, ffn_b, f32
    o_ref,       # (TL*B, E)
    *,
    n_heads: int,
    eps: float,
    head_batched: bool,
):
    f32 = jnp.float32
    bf16 = jnp.bfloat16
    x = x_ref[...].astype(f32)                        # (rows, E)
    tl, bsz = mask_ref.shape
    rows, e = x.shape
    hd = e // n_heads
    # Reference scales Q by hd**-0.5 AND divides scores by sqrt(hd): net 1/hd.
    scale = 1.0 / hd
    neg_big = jnp.float32(-1e9)

    vecs = vec_ref[...]                               # (6, E) f32
    bo, g1, s1, g2, s2, bffn = (vecs[i:i + 1, :] for i in range(6))

    # ---- sublayer[0]: LN1 -> multi-head attention over the bsz axis ---------
    xn = _layer_norm(x, g1, s1, eps)

    # Fused (rows, E) x (E, 3E) bf16 projection, f32 accumulation.
    qkv = jnp.dot(xn.astype(bf16), wqkv_ref[...],
                  preferred_element_type=f32) + bqkv_ref[...]
    q, k, v = qkv[:, :e], qkv[:, e:2 * e], qkv[:, 2 * e:]   # 128-aligned splits

    if head_batched:
        # All heads in one batched dot_general: batch dims (l, h), no per-head
        # lane slices and no lane concat.
        q4 = q.reshape(tl, bsz, n_heads, hd)
        k4 = k.reshape(tl, bsz, n_heads, hd)
        v4 = v.reshape(tl, bsz, n_heads, hd)
        # s[l, h, q, k]
        s = lax.dot_general(q4, k4, (((3,), (3,)), ((0, 2), (0, 2))),
                            preferred_element_type=f32) * scale
        key_masked = (mask_ref[...] == 0.0)[:, None, None, :]   # (tl,1,1,B)
        s = jnp.where(key_masked, neg_big, s)
        s = s - jnp.max(s, axis=-1, keepdims=True)
        p = jnp.exp(s)
        p = p * pl.reciprocal(jnp.sum(p, axis=-1, keepdims=True), approx=True)
        # ctx[l, h, q, d]
        ctx = lax.dot_general(p, v4, (((3,), (1,)), ((0, 1), (0, 2))),
                              preferred_element_type=f32)
        # Output projection: accumulate per-head (rows, hd) @ (hd, E) products.
        # ctx[:, h] is a cheap major-dim slice and the wo row slices are
        # sublane-aligned, so no lane-dim relayout is needed anywhere.
        wo = wo_ref[...]
        proj = None
        for h in range(n_heads):
            ctx_h = ctx[:, h, :, :].reshape(rows, hd).astype(bf16)
            contrib = jnp.dot(ctx_h, wo[h * hd:(h + 1) * hd, :],
                              preferred_element_type=f32)
            proj = contrib if proj is None else proj + contrib
        attn = proj + bo
    else:
        # Fallback (always lowers): per-head lane slices + lane concat.
        q3 = q.reshape(tl, bsz, e)
        k3 = k.reshape(tl, bsz, e)
        v3 = v.reshape(tl, bsz, e)
        key_masked = (mask_ref[...] == 0.0)[:, None, :]          # (tl,1,B)
        head_outs = []
        for h in range(n_heads):
            lo, hi = h * hd, (h + 1) * hd
            qh, kh, vh = q3[:, :, lo:hi], k3[:, :, lo:hi], v3[:, :, lo:hi]
            s = jnp.einsum("lqd,lkd->lqk", qh, kh,
                           preferred_element_type=f32) * scale
            s = jnp.where(key_masked, neg_big, s)
            s = s - jnp.max(s, axis=-1, keepdims=True)
            p = jnp.exp(s)
            p = p * pl.reciprocal(jnp.sum(p, axis=-1, keepdims=True),
                                  approx=True)
            head_outs.append(jnp.einsum("lqk,lkd->lqd", p, vh,
                                        preferred_element_type=f32))
        attn2 = jnp.concatenate(head_outs, axis=-1).reshape(rows, e)
        attn = jnp.dot(attn2.astype(bf16), wo_ref[...],
                       preferred_element_type=f32) + bo

    x1 = x + attn            # residual (dropout == identity in eval mode)

    # ---- sublayer[1]: LN2 -> pre-composed affine FFN -> residual ------------
    yn = _layer_norm(x1, g2, s2, eps)
    h2 = jnp.dot(yn.astype(bf16), wffn_ref[...],
                 preferred_element_type=f32) + bffn

    o_ref[...] = (x1 + h2).astype(o_ref.dtype)


def _pick_l_tile(seq_len, bsz, target_rows=1024):
    """Largest tgt_len tile whose flattened row block satisfies Pallas'
    (8, 128) block rules and is near the HBM-roofline sweet spot, preferring an
    even grid length (so ("parallel",) can split across v7x's two TCs)."""
    valid = [t for t in range(1, seq_len + 1)
             if seq_len % t == 0
             and (t == seq_len or (t % 8 == 0 and (t * bsz) % 8 == 0))]
    fitting = [t for t in valid if t * bsz <= target_rows] or [min(valid)]
    best = max(fitting)
    even = [t for t in fitting if (seq_len // t) % 2 == 0]
    if even and 2 * max(even) >= best:   # even grid costs at most half a tile
        return max(even)
    return best


def _vmem_limit_bytes(row_block, embed_dim, weight_bytes):
    """Size-derived scoped-VMEM cap: double-buffered x/out row blocks +
    (double-buffered) resident weights + a generous allowance for in-kernel
    f32 intermediates, clamped to [32 MiB, 48 MiB] so it stays well below
    v7x's 64 MiB physical VMEM (v5e/v6e have 128 MiB)."""
    io = 2 * 2 * row_block * embed_dim * 4
    interm = 12 * row_block * embed_dim * 4
    need = io + 2 * weight_bytes + interm + (4 << 20)
    return int(min(max(need, 32 << 20), 48 << 20))


def encoder_layer_forward(x, mask, params, *, n_heads, eps=1e-6,
                          l_tile=None, target_rows=1024, head_batched=None):
    """x: (tgt_len, bsz, E) f32; mask: (tgt_len, bsz) (0 = masked key) or None."""
    L, B, E = x.shape
    assert E % n_heads == 0, "in_dim must be divisible by n_heads"
    assert E % 128 == 0, "in_dim should be a multiple of the 128-lane width"
    rows = L * B

    if mask is None:
        mask = jnp.ones((L, B), dtype=jnp.float32)
    mask = mask.astype(jnp.float32)

    if l_tile is None:
        l_tile = _pick_l_tile(L, B, target_rows)
    assert L % l_tile == 0
    row_block = l_tile * B

    hi = jax.lax.Precision.HIGHEST
    f32, bf16 = jnp.float32, jnp.bfloat16

    # --- host-side parameter packing / pre-composition -----------------------
    wqkv = jnp.concatenate([params["wq"], params["wk"], params["wv"]],
                           axis=1).astype(bf16)                        # (E, 3E)
    bqkv = jnp.concatenate([params["bq"], params["bk"], params["bv"]]
                           ).reshape(1, 3 * E).astype(f32)             # (1, 3E)
    wo = params["wo"].astype(bf16)                                     # (E, E)
    # FFN has no activation -> affine -> pre-compose into a single matmul.
    wffn = jnp.dot(params["w1"], params["w2"], precision=hi).astype(bf16)
    bffn = jnp.dot(params["b1"], params["w2"], precision=hi) + params["b2"]
    # Pack the small (E,)-vectors into one array (fewer constant inputs).
    vecs = jnp.stack([params["bo"], params["ln1_g"], params["ln1_b"],
                      params["ln2_g"], params["ln2_b"], bffn]).astype(f32)

    x2 = x.reshape(rows, E).astype(f32)
    inputs = (x2, mask, wqkv, bqkv, wo, wffn, vecs)

    row_map = lambda i: (i, 0)
    const_map = lambda i: (0, 0)
    in_specs = [
        pl.BlockSpec((row_block, E), row_map),    # x rows
        pl.BlockSpec((l_tile, B), row_map),       # mask rows
        pl.BlockSpec(wqkv.shape, const_map),
        pl.BlockSpec(bqkv.shape, const_map),
        pl.BlockSpec(wo.shape, const_map),
        pl.BlockSpec(wffn.shape, const_map),
        pl.BlockSpec(vecs.shape, const_map),
    ]
    # NOTE: at large E, pipeline_mode=pl.Buffered(1) on the constant specs would
    # also cut the second (wasted) weight buffer; irrelevant at E=128.

    weight_bytes = sum(int(a.size) * a.dtype.itemsize for a in inputs[2:])
    vmem_limit = _vmem_limit_bytes(row_block, E, weight_bytes)

    def build(batched):
        kernel = functools.partial(_encoder_layer_kernel, n_heads=n_heads,
                                   eps=eps, head_batched=batched)
        return pl.pallas_call(
            kernel,
            out_shape=jax.ShapeDtypeStruct((rows, E), x.dtype),
            grid=(L // l_tile,),
            in_specs=in_specs,
            out_specs=pl.BlockSpec((row_block, E), row_map),
            compiler_params=pltpu.CompilerParams(
                # Row slabs are fully independent -> shard across TensorCores.
                dimension_semantics=("parallel",),
                vmem_limit_bytes=vmem_limit,
            ),
        )

    if head_batched is None:
        try:
            out = build(True)(*inputs)
        except Exception:
            # Mosaic on some versions cannot lower two-batch-dim dot_general /
            # lane-splitting reshapes; fall back to the per-head formulation.
            out = build(False)(*inputs)
    else:
        out = build(head_batched)(*inputs)

    return out.reshape(L, B, E)


def _encoder_layer_reference(x, mask, p, *, n_heads, eps=1e-6):
    """Pure-JAX mirror of the PyTorch EncoderLayer forward (eval mode)."""
    L, B, E = x.shape
    hd = E // n_heads

    def ln(v, g, s):
        m = v.mean(-1, keepdims=True)
        c = v - m
        std = jnp.sqrt((c * c).sum(-1, keepdims=True) / (E - 1))
        return g * c / (std + eps) + s

    def split_heads(t):
        return t.reshape(L, B, n_heads, hd).transpose(0, 2, 1, 3)  # (L,H,B,hd)

    xn = ln(x, p["ln1_g"], p["ln1_b"])
    q = split_heads(xn @ p["wq"] + p["bq"]) * (hd ** -0.5)
    k = split_heads(xn @ p["wk"] + p["bk"])
    v = split_heads(xn @ p["wv"] + p["bv"])
    s = jnp.einsum("lhqd,lhkd->lhqk", q, k) / jnp.sqrt(jnp.float32(hd))
    s = jnp.where((mask == 0)[:, None, None, :], -1e9, s)
    a = jax.nn.softmax(s, axis=-1)
    o = jnp.einsum("lhqk,lhkd->lhqd", a, v).transpose(0, 2, 1, 3).reshape(L, B, E)
    x1 = x + (o @ p["wo"] + p["bo"])
    yn = ln(x1, p["ln2_g"], p["ln2_b"])
    return x1 + ((yn @ p["w1"] + p["b1"]) @ p["w2"] + p["b2"])


if __name__ == "__main__":
    # Small deterministic example: tgt_len=8, bsz=8, in_dim=128, 4 heads.
    L, B, E, H = 8, 8, 128, 4
    key = jax.random.PRNGKey(0)
    keys = jax.random.split(key, 8)

    x = jax.random.normal(keys[0], (L, B, E), dtype=jnp.float32)
    # Mask: 0 = masked-out key position (last bsz element never attended to).
    mask = jnp.ones((L, B), dtype=jnp.float32).at[:, -1].set(0.0)

    def linear_params(k, fan_in, fan_out):
        kw, kb = jax.random.split(k)
        lim = fan_in ** -0.5
        w = jax.random.uniform(kw, (fan_in, fan_out), jnp.float32, -lim, lim)
        b = jax.random.uniform(kb, (fan_out,), jnp.float32, -lim, lim)
        return w, b

    wq, bq = linear_params(keys[1], E, E)
    wk, bk = linear_params(keys[2], E, E)
    wv, bv = linear_params(keys[3], E, E)
    wo, bo = linear_params(keys[4], E, E)
    w1, b1 = linear_params(keys[5], E, 2 * E)
    w2, b2 = linear_params(keys[6], 2 * E, E)

    params = dict(
        wq=wq, bq=bq, wk=wk, bk=bk, wv=wv, bv=bv, wo=wo, bo=bo,
        ln1_g=jnp.ones((E,), jnp.float32), ln1_b=jnp.zeros((E,), jnp.float32),
        ln2_g=jnp.ones((E,), jnp.float32), ln2_b=jnp.zeros((E,), jnp.float32),
        w1=w1, b1=b1, w2=w2, b2=b2,
    )

    out = encoder_layer_forward(x, mask, params, n_heads=H)
    out = jax.block_until_ready(out)

    assert out.shape == (L, B, E)
    assert bool(jnp.all(jnp.isfinite(out)))

    # Sanity check vs. a pure-JAX reference (loose tolerance: bf16 MXU operands,
    # approx reciprocals and the pre-composed FFN perturb numerics slightly).
    with jax.default_matmul_precision("highest"):
        ref = _encoder_layer_reference(x, mask, params, n_heads=H)
    max_err = float(jnp.max(jnp.abs(out - ref)))
    assert max_err < 5e-2, f"mismatch vs reference: {max_err}"

    print("KERNEL_OK")
</pallas_src>

<mosaic_0001>
module attributes {stable_mosaic.version = 11 : i64} {
  func.func @_encoder_layer_kernel(%arg0: i32, %arg1: memref<64x128xf32, #tpu.memory_space<vmem>>, %arg2: memref<8x8xf32, #tpu.memory_space<vmem>>, %arg3: memref<128x384xbf16, #tpu.memory_space<vmem>>, %arg4: memref<1x384xf32, #tpu.memory_space<vmem>>, %arg5: memref<128x128xbf16, #tpu.memory_space<vmem>>, %arg6: memref<128x128xbf16, #tpu.memory_space<vmem>>, %arg7: memref<6x128xf32, #tpu.memory_space<vmem>>, %arg8: memref<64x128xf32, #tpu.memory_space<vmem>>) attributes {dimension_semantics = [#tpu.dimension_semantics<parallel>], iteration_bounds = array<i64: 1>, scalar_prefetch = 0 : i64, scratch_operands = 0 : i64, tpu.core_type = #tpu.core_type<tc>, window_params = [{transform_indices = @transform_0, window_bounds = array<i64: 64, 128>}, {transform_indices = @transform_1, window_bounds = array<i64: 8, 8>}, {pipeline_mode = #tpu.pipeline_mode<synchronous>, transform_indices = @transform_2, window_bounds = array<i64: 128, 384>}, {pipeline_mode = #tpu.pipeline_mode<synchronous>, transform_indices = @transform_3, window_bounds = array<i64: 1, 384>}, {pipeline_mode = #tpu.pipeline_mode<synchronous>, transform_indices = @transform_4, window_bounds = array<i64: 128, 128>}, {pipeline_mode = #tpu.pipeline_mode<synchronous>, transform_indices = @transform_5, window_bounds = array<i64: 128, 128>}, {pipeline_mode = #tpu.pipeline_mode<synchronous>, transform_indices = @transform_6, window_bounds = array<i64: 6, 128>}, {transform_indices = @transform_7, window_bounds = array<i64: 64, 128>}]} {
    %c0 = arith.constant 0 : index
    %c0_0 = arith.constant 0 : index
    %0 = vector.load %arg1[%c0, %c0_0] : memref<64x128xf32, #tpu.memory_space<vmem>>, vector<64x128xf32>
    %c0_1 = arith.constant 0 : index
    %c0_2 = arith.constant 0 : index
    %1 = vector.load %arg7[%c0_1, %c0_2] : memref<6x128xf32, #tpu.memory_space<vmem>>, vector<6x128xf32>
    %2 = vector.extract_strided_slice %1 {offsets = [0, 0], sizes = [1, 128], strides = [1, 1]} : vector<6x128xf32> to vector<1x128xf32>
    %3 = vector.extract_strided_slice %1 {offsets = [1, 0], sizes = [1, 128], strides = [1, 1]} : vector<6x128xf32> to vector<1x128xf32>
    %4 = vector.extract_strided_slice %1 {offsets = [2, 0], sizes = [1, 128], strides = [1, 1]} : vector<6x128xf32> to vector<1x128xf32>
    %5 = vector.extract_strided_slice %1 {offsets = [3, 0], sizes = [1, 128], strides = [1, 1]} : vector<6x128xf32> to vector<1x128xf32>
    %6 = vector.extract_strided_slice %1 {offsets = [4, 0], sizes = [1, 128], strides = [1, 1]} : vector<6x128xf32> to vector<1x128xf32>
    %7 = vector.extract_strided_slice %1 {offsets = [5, 0], sizes = [1, 128], strides = [1, 1]} : vector<6x128xf32> to vector<1x128xf32>
    %cst = arith.constant dense<0.000000e+00> : vector<64xf32>
    %8 = vector.multi_reduction <add>, %0, %cst [1] : vector<64x128xf32> to vector<64xf32>
    %9 = vector.shape_cast %8 : vector<64xf32> to vector<64x1xf32>
    %cst_3 = arith.constant 1.280000e+02 : f32
    %10 = vector.broadcast %cst_3 : f32 to vector<64x1xf32>
    %11 = arith.divf %9, %10 : vector<64x1xf32>
    %12 = vector.broadcast %11 : vector<64x1xf32> to vector<64x128xf32>
    %13 = arith.subf %0, %12 : vector<64x128xf32>
    %14 = arith.mulf %13, %13 : vector<64x128xf32>
    %cst_4 = arith.constant dense<0.000000e+00> : vector<64xf32>
    %15 = vector.multi_reduction <add>, %14, %cst_4 [1] : vector<64x128xf32> to vector<64xf32>
    %16 = vector.shape_cast %15 : vector<64xf32> to vector<64x1xf32>
    %cst_5 = arith.constant 0.00787401571 : f32
    %17 = vector.broadcast %cst_5 : f32 to vector<64x1xf32>
    %18 = arith.mulf %16, %17 : vector<64x1xf32>
    %19 = math.sqrt %18 : vector<64x1xf32>
    %cst_6 = arith.constant 9.99999997E-7 : f32
    %20 = vector.broadcast %cst_6 : f32 to vector<64x1xf32>
    %21 = arith.addf %19, %20 : vector<64x1xf32>
    %22 = tpu.reciprocal %21 {approx = true} : vector<64x1xf32> -> vector<64x1xf32>
    %23 = vector.broadcast %22 : vector<64x1xf32> to vector<64x128xf32>
    %24 = arith.mulf %13, %23 : vector<64x128xf32>
    %25 = vector.broadcast %3 : vector<1x128xf32> to vector<64x128xf32>
    %26 = arith.mulf %25, %24 : vector<64x128xf32>
    %27 = vector.broadcast %4 : vector<1x128xf32> to vector<64x128xf32>
    %28 = arith.addf %26, %27 : vector<64x128xf32>
    %29 = arith.truncf %28 : vector<64x128xf32> to vector<64x128xbf16>
    %c0_7 = arith.constant 0 : index
    %c0_8 = arith.constant 0 : index
    %30 = vector.load %arg3[%c0_7, %c0_8] : memref<128x384xbf16, #tpu.memory_space<vmem>>, vector<128x384xbf16>
    %cst_9 = arith.constant dense<0.000000e+00> : vector<64x384xf32>
    %31 = tpu.matmul %29, %30, %cst_9 {dimension_numbers = #tpu.dot_dimension_numbers<[1], [0], [0], [1], [0, 0, 1, 1], [], []>} : vector<64x128xbf16>, vector<128x384xbf16>, vector<64x384xf32> -> vector<64x384xf32>
    %c0_10 = arith.constant 0 : index
    %c0_11 = arith.constant 0 : index
    %32 = vector.load %arg4[%c0_10, %c0_11] : memref<1x384xf32, #tpu.memory_space<vmem>>, vector<1x384xf32>
    %33 = vector.broadcast %32 : vector<1x384xf32> to vector<64x384xf32>
    %34 = arith.addf %31, %33 : vector<64x384xf32>
    %35 = vector.extract_strided_slice %34 {offsets = [0, 0], sizes = [64, 128], strides = [1, 1]} : vector<64x384xf32> to vector<64x128xf32>
    %36 = vector.extract_strided_slice %34 {offsets = [0, 128], sizes = [64, 128], strides = [1, 1]} : vector<64x384xf32> to vector<64x128xf32>
    %37 = vector.extract_strided_slice %34 {offsets = [0, 256], sizes = [64, 128], strides = [1, 1]} : vector<64x384xf32> to vector<64x128xf32>
    %38 = vector.shape_cast %35 : vector<64x128xf32> to vector<8x8x128xf32>
    %39 = vector.shape_cast %36 : vector<64x128xf32> to vector<8x8x128xf32>
    %40 = vector.shape_cast %37 : vector<64x128xf32> to vector<8x8x128xf32>
    %c0_12 = arith.constant 0 : index
    %c0_13 = arith.constant 0 : index
    %41 = vector.load %arg2[%c0_12, %c0_13] : memref<8x8xf32, #tpu.memory_space<vmem>>, vector<8x8xf32>
    %cst_14 = arith.constant 0.000000e+00 : f32
    %42 = vector.broadcast %cst_14 : f32 to vector<8x8xf32>
    %43 = arith.cmpf oeq, %41, %42 : vector<8x8xf32>
    %44 = vector.shape_cast %43 : vector<8x8xi1> to vector<8x1x8xi1>
    %45 = vector.extract_strided_slice %38 {offsets = [0, 0, 0], sizes = [8, 8, 32], strides = [1, 1, 1]} : vector<8x8x128xf32> to vector<8x8x32xf32>
    %46 = vector.extract_strided_slice %39 {offsets = [0, 0, 0], sizes = [8, 8, 32], strides = [1, 1, 1]} : vector<8x8x128xf32> to vector<8x8x32xf32>
    %47 = vector.extract_strided_slice %40 {offsets = [0, 0, 0], sizes = [8, 8, 32], strides = [1, 1, 1]} : vector<8x8x128xf32> to vector<8x8x32xf32>
    "tpu.trace_start"() <{level = 10 : i32, message = "lqd,lkd->lqk"}> : () -> ()
    %cst_15 = arith.constant dense<0.000000e+00> : vector<8x8x8xf32>
    %48 = tpu.matmul %45, %46, %cst_15 {dimension_numbers = #tpu.dot_dimension_numbers<[2], [2], [1], [1], [0, 0, 0, 1, 1, 1], [0], [0]>} : vector<8x8x32xf32>, vector<8x8x32xf32>, vector<8x8x8xf32> -> vector<8x8x8xf32>
    "tpu.trace_stop"() : () -> ()
    %cst_16 = arith.constant 3.125000e-02 : f32
    %49 = vector.broadcast %cst_16 : f32 to vector<8x8x8xf32>
    %50 = arith.mulf %48, %49 : vector<8x8x8xf32>
    %cst_17 = arith.constant -1.000000e+09 : f32
    %51 = vector.shape_cast %44 : vector<8x1x8xi1> to vector<8x1x8xi1>
    %52 = vector.broadcast %51 : vector<8x1x8xi1> to vector<8x8x8xi1>
    %53 = vector.broadcast %cst_17 : f32 to vector<8x8x8xf32>
    %54 = arith.select %52, %53, %50 : vector<8x8x8xi1>, vector<8x8x8xf32>
    %cst_18 = arith.constant dense<0xFF800000> : vector<8x8xf32>
    %55 = vector.multi_reduction <maximumf>, %54, %cst_18 [2] : vector<8x8x8xf32> to vector<8x8xf32>
    %56 = vector.shape_cast %55 : vector<8x8xf32> to vector<8x8x1xf32>
    %57 = vector.broadcast %56 : vector<8x8x1xf32> to vector<8x8x8xf32>
    %58 = arith.subf %54, %57 : vector<8x8x8xf32>
    %59 = math.exp %58 : vector<8x8x8xf32>
    %cst_19 = arith.constant dense<0.000000e+00> : vector<8x8xf32>
    %60 = vector.multi_reduction <add>, %59, %cst_19 [2] : vector<8x8x8xf32> to vector<8x8xf32>
    %61 = vector.shape_cast %60 : vector<8x8xf32> to vector<8x8x1xf32>
    %62 = tpu.reciprocal %61 {approx = true} : vector<8x8x1xf32> -> vector<8x8x1xf32>
    %63 = vector.broadcast %62 : vector<8x8x1xf32> to vector<8x8x8xf32>
    %64 = arith.mulf %59, %63 : vector<8x8x8xf32>
    "tpu.trace_start"() <{level = 10 : i32, message = "lqk,lkd->lqd"}> : () -> ()
    %cst_20 = arith.constant dense<0.000000e+00> : vector<8x8x32xf32>
    %65 = tpu.matmul %64, %47, %cst_20 {dimension_numbers = #tpu.dot_dimension_numbers<[2], [1], [1], [2], [0, 0, 0, 1, 1, 2], [0], [0]>} : vector<8x8x8xf32>, vector<8x8x32xf32>, vector<8x8x32xf32> -> vector<8x8x32xf32>
    "tpu.trace_stop"() : () -> ()
    %66 = vector.extract_strided_slice %38 {offsets = [0, 0, 32], sizes = [8, 8, 32], strides = [1, 1, 1]} : vector<8x8x128xf32> to vector<8x8x32xf32>
    %67 = vector.extract_strided_slice %39 {offsets = [0, 0, 32], sizes = [8, 8, 32], strides = [1, 1, 1]} : vector<8x8x128xf32> to vector<8x8x32xf32>
    %68 = vector.extract_strided_slice %40 {offsets = [0, 0, 32], sizes = [8, 8, 32], strides = [1, 1, 1]} : vector<8x8x128xf32> to vector<8x8x32xf32>
    "tpu.trace_start"() <{level = 10 : i32, message = "lqd,lkd->lqk"}> : () -> ()
    %cst_21 = arith.constant dense<0.000000e+00> : vector<8x8x8xf32>
    %69 = tpu.matmul %66, %67, %cst_21 {dimension_numbers = #tpu.dot_dimension_numbers<[2], [2], [1], [1], [0, 0, 0, 1, 1, 1], [0], [0]>} : vector<8x8x32xf32>, vector<8x8x32xf32>, vector<8x8x8xf32> -> vector<8x8x8xf32>
    "tpu.trace_stop"() : () -> ()
    %cst_22 = arith.constant 3.125000e-02 : f32
    %70 = vector.broadcast %cst_22 : f32 to vector<8x8x8xf32>
    %71 = arith.mulf %69, %70 : vector<8x8x8xf32>
    %cst_23 = arith.constant -1.000000e+09 : f32
    %72 = vector.shape_cast %44 : vector<8x1x8xi1> to vector<8x1x8xi1>
    %73 = vector.broadcast %72 : vector<8x1x8xi1> to vector<8x8x8xi1>
    %74 = vector.broadcast %cst_23 : f32 to vector<8x8x8xf32>
    %75 = arith.select %73, %74, %71 : vector<8x8x8xi1>, vector<8x8x8xf32>
    %cst_24 = arith.constant dense<0xFF800000> : vector<8x8xf32>
    %76 = vector.multi_reduction <maximumf>, %75, %cst_24 [2] : vector<8x8x8xf32> to vector<8x8xf32>
    %77 = vector.shape_cast %76 : vector<8x8xf32> to vector<8x8x1xf32>
    %78 = vector.broadcast %77 : vector<8x8x1xf32> to vector<8x8x8xf32>
    %79 = arith.subf %75, %78 : vector<8x8x8xf32>
    %80 = math.exp %79 : vector<8x8x8xf32>
    %cst_25 = arith.constant dense<0.000000e+00> : vector<8x8xf32>
    %81 = vector.multi_reduction <add>, %80, %cst_25 [2] : vector<8x8x8xf32> to vector<8x8xf32>
    %82 = vector.shape_cast %81 : vector<8x8xf32> to vector<8x8x1xf32>
    %83 = tpu.reciprocal %82 {approx = true} : vector<8x8x1xf32> -> vector<8x8x1xf32>
    %84 = vector.broadcast %83 : vector<8x8x1xf32> to vector<8x8x8xf32>
    %85 = arith.mulf %80, %84 : vector<8x8x8xf32>
    "tpu.trace_start"() <{level = 10 : i32, message = "lqk,lkd->lqd"}> : () -> ()
    %cst_26 = arith.constant dense<0.000000e+00> : vector<8x8x32xf32>
    %86 = tpu.matmul %85, %68, %cst_26 {dimension_numbers = #tpu.dot_dimension_numbers<[2], [1], [1], [2], [0, 0, 0, 1, 1, 2], [0], [0]>} : vector<8x8x8xf32>, vector<8x8x32xf32>, vector<8x8x32xf32> -> vector<8x8x32xf32>
    "tpu.trace_stop"() : () -> ()
    %87 = vector.extract_strided_slice %38 {offsets = [0, 0, 64], sizes = [8, 8, 32], strides = [1, 1, 1]} : vector<8x8x128xf32> to vector<8x8x32xf32>
    %88 = vector.extract_strided_slice %39 {offsets = [0, 0, 64], sizes = [8, 8, 32], strides = [1, 1, 1]} : vector<8x8x128xf32> to vector<8x8x32xf32>
    %89 = vector.extract_strided_slice %40 {offsets = [0, 0, 64], sizes = [8, 8, 32], strides = [1, 1, 1]} : vector<8x8x128xf32> to vector<8x8x32xf32>
    "tpu.trace_start"() <{level = 10 : i32, message = "lqd,lkd->lqk"}> : () -> ()
    %cst_27 = arith.constant dense<0.000000e+00> : vector<8x8x8xf32>
    %90 = tpu.matmul %87, %88, %cst_27 {dimension_numbers = #tpu.dot_dimension_numbers<[2], [2], [1], [1], [0, 0, 0, 1, 1, 1], [0], [0]>} : vector<8x8x32xf32>, vector<8x8x32xf32>, vector<8x8x8xf32> -> vector<8x8x8xf32>
    "tpu.trace_stop"() : () -> ()
    %cst_28 = arith.constant 3.125000e-02 : f32
    %91 = vector.broadcast %cst_28 : f32 to vector<8x8x8xf32>
    %92 = arith.mulf %90, %91 : vector<8x8x8xf32>
    %cst_29 = arith.constant -1.000000e+09 : f32
    %93 = vector.shape_cast %44 : vector<8x1x8xi1> to vector<8x1x8xi1>
    %94 = vector.broadcast %93 : vector<8x1x8xi1> to vector<8x8x8xi1>
    %95 = vector.broadcast %cst_29 : f32 to vector<8x8x8xf32>
    %96 = arith.select %94, %95, %92 : vector<8x8x8xi1>, vector<8x8x8xf32>
    %cst_30 = arith.constant dense<0xFF800000> : vector<8x8xf32>
    %97 = vector.multi_reduction <maximumf>, %96, %cst_30 [2] : vector<8x8x8xf32> to vector<8x8xf32>
    %98 = vector.shape_cast %97 : vector<8x8xf32> to vector<8x8x1xf32>
    %99 = vector.broadcast %98 : vector<8x8x1xf32> to vector<8x8x8xf32>
    %100 = arith.subf %96, %99 : vector<8x8x8xf32>
    %101 = math.exp %100 : vector<8x8x8xf32>
    %cst_31 = arith.constant dense<0.000000e+00> : vector<8x8xf32>
    %102 = vector.multi_reduction <add>, %101, %cst_31 [2] : vector<8x8x8xf32> to vector<8x8xf32>
    %103 = vector.shape_cast %102 : vector<8x8xf32> to vector<8x8x1xf32>
    %104 = tpu.reciprocal %103 {approx = true} : vector<8x8x1xf32> -> vector<8x8x1xf32>
    %105 = vector.broadcast %104 : vector<8x8x1xf32> to vector<8x8x8xf32>
    %106 = arith.mulf %101, %105 : vector<8x8x8xf32>
    "tpu.trace_start"() <{level = 10 : i32, message = "lqk,lkd->lqd"}> : () -> ()
    %cst_32 = arith.constant dense<0.000000e+00> : vector<8x8x32xf32>
    %107 = tpu.matmul %106, %89, %cst_32 {dimension_numbers = #tpu.dot_dimension_numbers<[2], [1], [1], [2], [0, 0, 0, 1, 1, 2], [0], [0]>} : vector<8x8x8xf32>, vector<8x8x32xf32>, vector<8x8x32xf32> -> vector<8x8x32xf32>
    "tpu.trace_stop"() : () -> ()
    %108 = vector.extract_strided_slice %38 {offsets = [0, 0, 96], sizes = [8, 8, 32], strides = [1, 1, 1]} : vector<8x8x128xf32> to vector<8x8x32xf32>
    %109 = vector.extract_strided_slice %39 {offsets = [0, 0, 96], sizes = [8, 8, 32], strides = [1, 1, 1]} : vector<8x8x128xf32> to vector<8x8x32xf32>
    %110 = vector.extract_strided_slice %40 {offsets = [0, 0, 96], sizes = [8, 8, 32], strides = [1, 1, 1]} : vector<8x8x128xf32> to vector<8x8x32xf32>
    "tpu.trace_start"() <{level = 10 : i32, message = "lqd,lkd->lqk"}> : () -> ()
    %cst_33 = arith.constant dense<0.000000e+00> : vector<8x8x8xf32>
    %111 = tpu.matmul %108, %109, %cst_33 {dimension_numbers = #tpu.dot_dimension_numbers<[2], [2], [1], [1], [0, 0, 0, 1, 1, 1], [0], [0]>} : vector<8x8x32xf32>, vector<8x8x32xf32>, vector<8x8x8xf32> -> vector<8x8x8xf32>
    "tpu.trace_stop"() : () -> ()
    %cst_34 = arith.constant 3.125000e-02 : f32
    %112 = vector.broadcast %cst_34 : f32 to vector<8x8x8xf32>
    %113 = arith.mulf %111, %112 : vector<8x8x8xf32>
    %cst_35 = arith.constant -1.000000e+09 : f32
    %114 = vector.shape_cast %44 : vector<8x1x8xi1> to vector<8x1x8xi1>
    %115 = vector.broadcast %114 : vector<8x1x8xi1> to vector<8x8x8xi1>
    %116 = vector.broadcast %cst_35 : f32 to vector<8x8x8xf32>
    %117 = arith.select %115, %116, %113 : vector<8x8x8xi1>, vector<8x8x8xf32>
    %cst_36 = arith.constant dense<0xFF800000> : vector<8x8xf32>
    %118 = vector.multi_reduction <maximumf>, %117, %cst_36 [2] : vector<8x8x8xf32> to vector<8x8xf32>
    %119 = vector.shape_cast %118 : vector<8x8xf32> to vector<8x8x1xf32>
    %120 = vector.broadcast %119 : vector<8x8x1xf32> to vector<8x8x8xf32>
    %121 = arith.subf %117, %120 : vector<8x8x8xf32>
    %122 = math.exp %121 : vector<8x8x8xf32>
    %cst_37 = arith.constant dense<0.000000e+00> : vector<8x8xf32>
    %123 = vector.multi_reduction <add>, %122, %cst_37 [2] : vector<8x8x8xf32> to vector<8x8xf32>
    %124 = vector.shape_cast %123 : vector<8x8xf32> to vector<8x8x1xf32>
    %125 = tpu.reciprocal %124 {approx = true} : vector<8x8x1xf32> -> vector<8x8x1xf32>
    %126 = vector.broadcast %125 : vector<8x8x1xf32> to vector<8x8x8xf32>
    %127 = arith.mulf %122, %126 : vector<8x8x8xf32>
    "tpu.trace_start"() <{level = 10 : i32, message = "lqk,lkd->lqd"}> : () -> ()
    %cst_38 = arith.constant dense<0.000000e+00> : vector<8x8x32xf32>
    %128 = tpu.matmul %127, %110, %cst_38 {dimension_numbers = #tpu.dot_dimension_numbers<[2], [1], [1], [2], [0, 0, 0, 1, 1, 2], [0], [0]>} : vector<8x8x8xf32>, vector<8x8x32xf32>, vector<8x8x32xf32> -> vector<8x8x32xf32>
    "tpu.trace_stop"() : () -> ()
    %129 = tpu.concatenate %65, %86, %107, %128 in 2 : vector<8x8x32xf32>, vector<8x8x32xf32>, vector<8x8x32xf32>, vector<8x8x32xf32> -> vector<8x8x128xf32>
    %130 = vector.shape_cast %129 : vector<8x8x128xf32> to vector<64x128xf32>
    %131 = arith.truncf %130 : vector<64x128xf32> to vector<64x128xbf16>
    %c0_39 = arith.constant 0 : index
    %c0_40 = arith.constant 0 : index
    %132 = vector.load %arg5[%c0_39, %c0_40] : memref<128x128xbf16, #tpu.memory_space<vmem>>, vector<128x128xbf16>
    %cst_41 = arith.constant dense<0.000000e+00> : vector<64x128xf32>
    %133 = tpu.matmul %131, %132, %cst_41 {dimension_numbers = #tpu.dot_dimension_numbers<[1], [0], [0], [1], [0, 0, 1, 1], [], []>} : vector<64x128xbf16>, vector<128x128xbf16>, vector<64x128xf32> -> vector<64x128xf32>
    %134 = vector.broadcast %2 : vector<1x128xf32> to vector<64x128xf32>
    %135 = arith.addf %133, %134 : vector<64x128xf32>
    %136 = arith.addf %0, %135 : vector<64x128xf32>
    %cst_42 = arith.constant dense<0.000000e+00> : vector<64xf32>
    %137 = vector.multi_reduction <add>, %136, %cst_42 [1] : vector<64x128xf32> to vector<64xf32>
    %138 = vector.shape_cast %137 : vector<64xf32> to vector<64x1xf32>
    %cst_43 = arith.constant 1.280000e+02 : f32
    %139 = vector.broadcast %cst_43 : f32 to vector<64x1xf32>
    %140 = arith.divf %138, %139 : vector<64x1xf32>
    %141 = vector.broadcast %140 : vector<64x1xf32> to vector<64x128xf32>
    %142 = arith.subf %136, %141 : vector<64x128xf32>
    %143 = arith.mulf %142, %142 : vector<64x128xf32>
    %cst_44 = arith.constant dense<0.000000e+00> : vector<64xf32>
    %144 = vector.multi_reduction <add>, %143, %cst_44 [1] : vector<64x128xf32> to vector<64xf32>
    %145 = vector.shape_cast %144 : vector<64xf32> to vector<64x1xf32>
    %cst_45 = arith.constant 0.00787401571 : f32
    %146 = vector.broadcast %cst_45 : f32 to vector<64x1xf32>
    %147 = arith.mulf %145, %146 : vector<64x1xf32>
    %148 = math.sqrt %147 : vector<64x1xf32>
    %cst_46 = arith.constant 9.99999997E-7 : f32
    %149 = vector.broadcast %cst_46 : f32 to vector<64x1xf32>
    %150 = arith.addf %148, %149 : vector<64x1xf32>
    %151 = tpu.reciprocal %150 {approx = true} : vector<64x1xf32> -> vector<64x1xf32>
    %152 = vector.broadcast %151 : vector<64x1xf32> to vector<64x128xf32>
    %153 = arith.mulf %142, %152 : vector<64x128xf32>
    %154 = vector.broadcast %5 : vector<1x128xf32> to vector<64x128xf32>
    %155 = arith.mulf %154, %153 : vector<64x128xf32>
    %156 = vector.broadcast %6 : vector<1x128xf32> to vector<64x128xf32>
    %157 = arith.addf %155, %156 : vector<64x128xf32>
    %158 = arith.truncf %157 : vector<64x128xf32> to vector<64x128xbf16>
    %c0_47 = arith.constant 0 : index
    %c0_48 = arith.constant 0 : index
    %159 = vector.load %arg6[%c0_47, %c0_48] : memref<128x128xbf16, #tpu.memory_space<vmem>>, vector<128x128xbf16>
    %cst_49 = arith.constant dense<0.000000e+00> : vector<64x128xf32>
    %160 = tpu.matmul %158, %159, %cst_49 {dimension_numbers = #tpu.dot_dimension_numbers<[1], [0], [0], [1], [0, 0, 1, 1], [], []>} : vector<64x128xbf16>, vector<128x128xbf16>, vector<64x128xf32> -> vector<64x128xf32>
    %161 = vector.broadcast %7 : vector<1x128xf32> to vector<64x128xf32>
    %162 = arith.addf %160, %161 : vector<64x128xf32>
    %163 = arith.addf %136, %162 : vector<64x128xf32>
    %c0_50 = arith.constant 0 : index
    %c0_51 = arith.constant 0 : index
    %164 = vector.load %arg8[%c0_50, %c0_51] : memref<64x128xf32, #tpu.memory_space<vmem>>, vector<64x128xf32>
    tpu.vector_store %arg8[%c0_50, %c0_51], %163 {strides = array<i32>} : memref<64x128xf32, #tpu.memory_space<vmem>>, vector<64x128xf32>,
    return
  }
  func.func @transform_0(%arg0: i32) -> (i32, i32) {
    %c0_i32 = arith.constant 0 : i32
    %c0_i32_0 = arith.constant 0 : i32
    return %arg0, %c0_i32 : i32, i32
  }
  func.func @transform_1(%arg0: i32) -> (i32, i32) {
    %c0_i32 = arith.constant 0 : i32
    %c0_i32_0 = arith.constant 0 : i32
    return %arg0, %c0_i32 : i32, i32
  }
  func.func @transform_2(%arg0: i32) -> (i32, i32) {
    %c0_i32 = arith.constant 0 : i32
    %c0_i32_0 = arith.constant 0 : i32
    %c0_i32_1 = arith.constant 0 : i32
    return %c0_i32, %c0_i32_0 : i32, i32
  }
  func.func @transform_3(%arg0: i32) -> (i32, i32) {
    %c0_i32 = arith.constant 0 : i32
    %c0_i32_0 = arith.constant 0 : i32
    %c0_i32_1 = arith.constant 0 : i32
    return %c0_i32, %c0_i32_0 : i32, i32
  }
  func.func @transform_4(%arg0: i32) -> (i32, i32) {
    %c0_i32 = arith.constant 0 : i32
    %c0_i32_0 = arith.constant 0 : i32
    %c0_i32_1 = arith.constant 0 : i32
    return %c0_i32, %c0_i32_0 : i32, i32
  }
  func.func @transform_5(%arg0: i32) -> (i32, i32) {
    %c0_i32 = arith.constant 0 : i32
    %c0_i32_0 = arith.constant 0 : i32
    %c0_i32_1 = arith.constant 0 : i32
    return %c0_i32, %c0_i32_0 : i32, i32
  }
  func.func @transform_6(%arg0: i32) -> (i32, i32) {
    %c0_i32 = arith.constant 0 : i32
    %c0_i32_0 = arith.constant 0 : i32
    %c0_i32_1 = arith.constant 0 : i32
    return %c0_i32, %c0_i32_0 : i32, i32
  }
  func.func @transform_7(%arg0: i32) -> (i32, i32) {
    %c0_i32 = arith.constant 0 : i32
    %c0_i32_0 = arith.constant 0 : i32
    return %arg0, %c0_i32 : i32, i32
  }
}

</mosaic_0001>

<llo_original>
// kernel: tpu_custom_call.1
$region0: #{tpu_custom_call.1}
  #allocation0 [shape = 'u32[]', space=smem, size = 0x4, offset = 0x4, fixed_abs, tag = 'smem constant byte address 0x4 - core index']
  #allocation1 [shape = 'u32[144,128]{1,0:T(1,128)}', space=vmem, size = 0x12000, scoped, tag = 'internal scratch']
  %s0 = inlined_call_operand.hbm [shape: f32[64,128], index: 0, kind: input, shape index: {}]
  %s1 = inlined_call_operand.hbm [shape: f32[8,8], index: 1, kind: input, shape index: {}]
  %s2 = inlined_call_operand.hbm [shape: bf16[128,384], index: 2, kind: input, shape index: {}]
  %s3 = inlined_call_operand.vmem [shape: f32[1,384], index: 3, kind: input, shape index: {}]
  %s4 = inlined_call_operand.hbm [shape: bf16[128,128], index: 4, kind: input, shape index: {}]
  %s5 = inlined_call_operand.hbm [shape: bf16[128,128], index: 5, kind: input, shape index: {}]
  %s6 = inlined_call_operand.vmem [shape: f32[6,128], index: 6, kind: input, shape index: {}]
  %s7 = inlined_call_operand.hbm [shape: f32[64,128], index: 7, kind: output, shape index: {}]
  %s8 = sld [smem:[#allocation0]]
  $region58: #{tpu_custom_call.1} parent=0
    _
  %s10 = ssub.s32 1, %s8
  %s11 = scalar_select 0, %s10, %s8
  $region1: #{tpu_custom_call.1} parent=0
    #allocation2 [shape = 'u8[32768]{0}', space=vmem, size = 0x8000, scoped, tag = 'input window, operand 0, single buffered']
    #allocation3 [shape = 's32[1]{0}', space=sflag, size = 0x4, scoped, tag = 'scoped memory for tpu_custom_call.1']
    #allocation4 [shape = 's32[1]{0}', space=sflag, size = 0x4, scoped, tag = 'scoped memory for tpu_custom_call.1']
    #allocation5 [shape = 'u8[4096]{0}', space=vmem, size = 0x1000, scoped, tag = 'input window, operand 1, single buffered']
    #allocation6 [shape = 's32[1]{0}', space=sflag, size = 0x4, scoped, tag = 'scoped memory for tpu_custom_call.1']
    #allocation7 [shape = 'u8[98304]{0}', space=vmem, size = 0x18000, scoped, tag = 'input window, operand 2, single buffered']
    #allocation8 [shape = 'u8[32768]{0}', space=vmem, size = 0x8000, scoped, tag = 'input window, operand 4, single buffered']
    #allocation9 [shape = 's32[1]{0}', space=sflag, size = 0x4, scoped, tag = 'scoped memory for tpu_custom_call.1']
    #allocation10 [shape = 'u8[32768]{0}', space=vmem, size = 0x8000, scoped, tag = 'input window, operand 5, single buffered']
    #allocation11 [shape = 'u8[32768]{0}', space=vmem, size = 0x8000, scoped, tag = 'output window, operand 0, single buffered']
    %12 = vsyncpa [#allocation3], 0
    %13 = vsyncpa [#allocation6], 0
    %14 = vsyncpa [#allocation9], 0
    %15 = vsyncpa [#allocation4], 0
    // Predicated region
    $region2: #{tpu_custom_call.1} parent=1 // pred_check
      _
    $region3: #{tpu_custom_call.1} parent=1 // pred_check_branch
      %17 = sbr.rel (0) target = $region5
    $region4: #{tpu_custom_call.1} parent=1 // pred_region
      %s19 = ssub.s32 1024, 1024
      %20 = vsyncadd [#allocation3], %s19
      %s21 = sshll.u32 [#allocation2], 4
      %s22 = int_to_ptr.vmem [resolvable:$true] %s21
      %27 = dma.hbm_to_vmem [thread:$0]  %s0, 1024, %s22, [#allocation3], 128, 128, 8
    $region5: #{tpu_custom_call.1} parent=1 // pred_fallthru
      _
    // Predicated region
    $region6: #{tpu_custom_call.1} parent=1 // pred_check
      _
    $region7: #{tpu_custom_call.1} parent=1 // pred_check_branch
      %29 = sbr.rel (0) target = $region9
    $region8: #{tpu_custom_call.1} parent=1 // pred_region
      %s31 = ssub.s32 128, 128
      %32 = vsyncadd [#allocation6], %s31
      %s34 = sshll.u32 [#allocation5], 4
      %s35 = int_to_ptr.vmem [resolvable:$true] %s34
      %37 = dma.hbm_to_vmem [thread:$0]  %s1, 128, %s35, [#allocation6]
    $region9: #{tpu_custom_call.1} parent=1 // pred_fallthru
      _
    // Predicated region
    $region10: #{tpu_custom_call.1} parent=1 // pred_check
      _
    $region11: #{tpu_custom_call.1} parent=1 // pred_check_branch
      %39 = sbr.rel (0) target = $region13
    $region12: #{tpu_custom_call.1} parent=1 // pred_region
      %s41 = ssub.s32 3072, 3072
      %42 = vsyncadd [#allocation6], %s41
      %s43 = sshll.u32 [#allocation7], 4
      %s44 = int_to_ptr.vmem [resolvable:$true] %s43
      %49 = dma.hbm_to_vmem [thread:$0]  %s2, 3072, %s44, [#allocation6], 192, 192, 12
    $region13: #{tpu_custom_call.1} parent=1 // pred_fallthru
      _
    // Predicated region
    $region14: #{tpu_custom_call.1} parent=1 // pred_check
      _
    $region15: #{tpu_custom_call.1} parent=1 // pred_check_branch
      %51 = sbr.rel (0) target = $region17
    $region16: #{tpu_custom_call.1} parent=1 // pred_region
      _
    $region17: #{tpu_custom_call.1} parent=1 // pred_fallthru
      _
    // Predicated region
    $region18: #{tpu_custom_call.1} parent=1 // pred_check
      _
    $region19: #{tpu_custom_call.1} parent=1 // pred_check_branch
      %53 = sbr.rel (0) target = $region21
    $region20: #{tpu_custom_call.1} parent=1 // pred_region
      %s55 = ssub.s32 1024, 1024
      %56 = vsyncadd [#allocation9], %s55
      %s57 = sshll.u32 [#allocation8], 4
      %s58 = int_to_ptr.vmem [resolvable:$true] %s57
      %63 = dma.hbm_to_vmem [thread:$0]  %s4, 1024, %s58, [#allocation9], 64, 64, 4
    $region21: #{tpu_custom_call.1} parent=1 // pred_fallthru
      _
    // Predicated region
    $region22: #{tpu_custom_call.1} parent=1 // pred_check
      _
    $region23: #{tpu_custom_call.1} parent=1 // pred_check_branch
      %65 = sbr.rel (0) target = $region25
    $region24: #{tpu_custom_call.1} parent=1 // pred_region
      %s67 = ssub.s32 1024, 1024
      %68 = vsyncadd [#allocation9], %s67
      %s69 = sshll.u32 [#allocation10], 4
      %s70 = int_to_ptr.vmem [resolvable:$true] %s69
      %75 = dma.hbm_to_vmem [thread:$0]  %s5, 1024, %s70, [#allocation9], 64, 64, 4
    $region25: #{tpu_custom_call.1} parent=1 // pred_fallthru
      _
    // Predicated region
    $region26: #{tpu_custom_call.1} parent=1 // pred_check
      _
    $region27: #{tpu_custom_call.1} parent=1 // pred_check_branch
      %77 = sbr.rel (0) target = $region29
    $region28: #{tpu_custom_call.1} parent=1 // pred_region
      _
    $region29: #{tpu_custom_call.1} parent=1 // pred_fallthru
      _
    // Predicated region
    $region30: #{tpu_custom_call.1} parent=1 // pred_check
      _
    $region31: #{tpu_custom_call.1} parent=1 // pred_check_branch
      %79 = sbr.rel (0) target = $region33
    $region32: #{tpu_custom_call.1} parent=1 // pred_region
      %80 = dma.done [#allocation3], 1024
    $region33: #{tpu_custom_call.1} parent=1 // pred_fallthru
      _
    // Predicated region
    $region34: #{tpu_custom_call.1} parent=1 // pred_check
      _
    $region35: #{tpu_custom_call.1} parent=1 // pred_check_branch
      %82 = sbr.rel (0) target = $region37
    $region36: #{tpu_custom_call.1} parent=1 // pred_region
      %83 = dma.done [#allocation6], 128
    $region37: #{tpu_custom_call.1} parent=1 // pred_fallthru
      _
    // Predicated region
    $region38: #{tpu_custom_call.1} parent=1 // pred_check
      _
    $region39: #{tpu_custom_call.1} parent=1 // pred_check_branch
      %85 = sbr.rel (0) target = $region41
    $region40: #{tpu_custom_call.1} parent=1 // pred_region
      %86 = dma.done [#allocation6], 3072
    $region41: #{tpu_custom_call.1} parent=1 // pred_fallthru
      _
    // Predicated region
    $region42: #{tpu_custom_call.1} parent=1 // pred_check
      _
    $region43: #{tpu_custom_call.1} parent=1 // pred_check_branch
      %88 = sbr.rel (0) target = $region45
    $region44: #{tpu_custom_call.1} parent=1 // pred_region
      %89 = dma.done [#allocation9], 1024
    $region45: #{tpu_custom_call.1} parent=1 // pred_fallthru
      _
    // Predicated region
    $region46: #{tpu_custom_call.1} parent=1 // pred_check
      _
    $region47: #{tpu_custom_call.1} parent=1 // pred_check_branch
      %91 = sbr.rel (0) target = $region49
    $region48: #{tpu_custom_call.1} parent=1 // pred_region
      %92 = dma.done [#allocation9], 1024
    $region49: #{tpu_custom_call.1} parent=1 // pred_fallthru
      _
    %v94 = vld [vmem:[#allocation2] sm:$0xff]
    %v95 = vld [vmem:[#allocation2 + $0x8] sm:$0xff]
    %v96 = vld [vmem:[#allocation2 + $0x10] sm:$0xff]
    %v97 = vld [vmem:[#allocation2 + $0x18] sm:$0xff]
    %v98 = vld [vmem:[#allocation2 + $0x20] sm:$0xff]
    %v99 = vld [vmem:[#allocation2 + $0x28] sm:$0xff]
    %v100 = vld [vmem:[#allocation2 + $0x30] sm:$0xff]
    %v101 = vld [vmem:[#allocation2 + $0x38] sm:$0xff]
    %v102 = vld [vmem:[%s6] sm:$0x3f]
    %103 = vadd.xlane.f32.xlu0 %v94
    %v104 = vpop.xlane.xlu0 %103
    %105 = vadd.xlane.f32.xlu0 %v95
    %v106 = vpop.xlane.xlu0 %105
    %107 = vadd.xlane.f32.xlu0 %v96
    %v108 = vpop.xlane.xlu0 %107
    %109 = vadd.xlane.f32.xlu0 %v97
    %v110 = vpop.xlane.xlu0 %109
    %111 = vadd.xlane.f32.xlu0 %v98
    %v112 = vpop.xlane.xlu0 %111
    %113 = vadd.xlane.f32.xlu0 %v99
    %v114 = vpop.xlane.xlu0 %113
    %115 = vadd.xlane.f32.xlu0 %v100
    %v116 = vpop.xlane.xlu0 %115
    %117 = vadd.xlane.f32.xlu0 %v101
    %v118 = vpop.xlane.xlu0 %117
    %v119 = vrcp.pop 128.0
    %v120 = vmul.f32 %v104, %v119
    %v121 = vmul.f32 %v106, %v119
    %v122 = vmul.f32 %v108, %v119
    %v123 = vmul.f32 %v110, %v119
    %v124 = vmul.f32 %v112, %v119
    %v125 = vmul.f32 %v114, %v119
    %v126 = vmul.f32 %v116, %v119
    %v127 = vmul.f32 %v118, %v119
    %v128 = vsub.f32 %v94, %v120
    %v129 = vsub.f32 %v95, %v121
    %v130 = vsub.f32 %v96, %v122
    %v131 = vsub.f32 %v97, %v123
    %v132 = vsub.f32 %v98, %v124
    %v133 = vsub.f32 %v99, %v125
    %v134 = vsub.f32 %v100, %v126
    %v135 = vsub.f32 %v101, %v127
    %v136 = vmul.f32 %v128, %v128
    %v137 = vmul.f32 %v129, %v129
    %v138 = vmul.f32 %v130, %v130
    %v139 = vmul.f32 %v131, %v131
    %v140 = vmul.f32 %v132, %v132
    %v141 = vmul.f32 %v133, %v133
    %v142 = vmul.f32 %v134, %v134
    %v143 = vmul.f32 %v135, %v135
    %144 = vadd.xlane.f32.xlu0 %v136
    %v145 = vpop.xlane.xlu0 %144
    %146 = vadd.xlane.f32.xlu0 %v137
    %v147 = vpop.xlane.xlu0 %146
    %148 = vadd.xlane.f32.xlu0 %v138
    %v149 = vpop.xlane.xlu0 %148
    %150 = vadd.xlane.f32.xlu0 %v139
    %v151 = vpop.xlane.xlu0 %150
    %152 = vadd.xlane.f32.xlu0 %v140
    %v153 = vpop.xlane.xlu0 %152
    %154 = vadd.xlane.f32.xlu0 %v141
    %v155 = vpop.xlane.xlu0 %154
    %156 = vadd.xlane.f32.xlu0 %v142
    %v157 = vpop.xlane.xlu0 %156
    %158 = vadd.xlane.f32.xlu0 %v143
    %v159 = vpop.xlane.xlu0 %158
    %v160 = vmul.f32 %v145, 0.007874016
    %v161 = vmul.f32 %v147, 0.007874016
    %v162 = vmul.f32 %v149, 0.007874016
    %v163 = vmul.f32 %v151, 0.007874016
    %v164 = vmul.f32 %v153, 0.007874016
    %v165 = vmul.f32 %v155, 0.007874016
    %v166 = vmul.f32 %v157, 0.007874016
    %v167 = vmul.f32 %v159, 0.007874016
    %v168 = vrsqrt.pop %v160
    %v169 = vmul.f32 %v160, %v168
    %vm170 = vcmp.eq.f32.partialorder %v160, inf
    %v171 = vsel %vm170, %v160, %v169
    %vm172 = vcmp.eq.f32.partialorder %v160, 0.0
    %v173 = vand.u32 %v160, 2147483648
    %v174 = vsel %vm172, %v173, %v171
    %v175 = vrsqrt.pop %v161
    %v176 = vmul.f32 %v161, %v175
    %vm177 = vcmp.eq.f32.partialorder %v161, inf
    %v178 = vsel %vm177, %v161, %v176
    %vm179 = vcmp.eq.f32.partialorder %v161, 0.0
    %v180 = vand.u32 %v161, 2147483648
    %v181 = vsel %vm179, %v180, %v178
    %v182 = vrsqrt.pop %v162
    %v183 = vmul.f32 %v162, %v182
    %vm184 = vcmp.eq.f32.partialorder %v162, inf
    %v185 = vsel %vm184, %v162, %v183
    %vm186 = vcmp.eq.f32.partialorder %v162, 0.0
    %v187 = vand.u32 %v162, 2147483648
    %v188 = vsel %vm186, %v187, %v185
    %v189 = vrsqrt.pop %v163
    %v190 = vmul.f32 %v163, %v189
    %vm191 = vcmp.eq.f32.partialorder %v163, inf
    %v192 = vsel %vm191, %v163, %v190
    %vm193 = vcmp.eq.f32.partialorder %v163, 0.0
    %v194 = vand.u32 %v163, 2147483648
    %v195 = vsel %vm193, %v194, %v192
    %v196 = vrsqrt.pop %v164
    %v197 = vmul.f32 %v164, %v196
    %vm198 = vcmp.eq.f32.partialorder %v164, inf
    %v199 = vsel %vm198, %v164, %v197
    %vm200 = vcmp.eq.f32.partialorder %v164, 0.0
    %v201 = vand.u32 %v164, 2147483648
    %v202 = vsel %vm200, %v201, %v199
    %v203 = vrsqrt.pop %v165
    %v204 = vmul.f32 %v165, %v203
    %vm205 = vcmp.eq.f32.partialorder %v165, inf
    %v206 = vsel %vm205, %v165, %v204
    %vm207 = vcmp.eq.f32.partialorder %v165, 0.0
    %v208 = vand.u32 %v165, 2147483648
    %v209 = vsel %vm207, %v208, %v206
    %v210 = vrsqrt.pop %v166
    %v211 = vmul.f32 %v166, %v210
    %vm212 = vcmp.eq.f32.partialorder %v166, inf
    %v213 = vsel %vm212, %v166, %v211
    %vm214 = vcmp.eq.f32.partialorder %v166, 0.0
    %v215 = vand.u32 %v166, 2147483648
    %v216 = vsel %vm214, %v215, %v213
    %v217 = vrsqrt.pop %v167
    %v218 = vmul.f32 %v167, %v217
    %vm219 = vcmp.eq.f32.partialorder %v167, inf
    %v220 = vsel %vm219, %v167, %v218
    %vm221 = vcmp.eq.f32.partialorder %v167, 0.0
    %v222 = vand.u32 %v167, 2147483648
    %v223 = vsel %vm221, %v222, %v220
    %v224 = vadd.f32 %v174, 1e-06
    %v225 = vadd.f32 %v181, 1e-06
    %v226 = vadd.f32 %v188, 1e-06
    %v227 = vadd.f32 %v195, 1e-06
    %v228 = vadd.f32 %v202, 1e-06
    %v229 = vadd.f32 %v209, 1e-06
    %v230 = vadd.f32 %v216, 1e-06
    %v231 = vadd.f32 %v223, 1e-06
    %v232 = vrcp.pop %v224
    %v233 = vrcp.pop %v225
    %v234 = vrcp.pop %v226
    %v235 = vrcp.pop %v227
    %v236 = vrcp.pop %v228
    %v237 = vrcp.pop %v229
    %v238 = vrcp.pop %v230
    %v239 = vrcp.pop %v231
    %v240 = vmul.f32 %v128, %v232
    %v241 = vmul.f32 %v129, %v233
    %v242 = vmul.f32 %v130, %v234
    %v243 = vmul.f32 %v131, %v235
    %v244 = vmul.f32 %v132, %v236
    %v245 = vmul.f32 %v133, %v237
    %v246 = vmul.f32 %v134, %v238
    %v247 = vmul.f32 %v135, %v239
    %v248 = vlaneseq
    %v249 = vshrl.u32 %v248, 7
    %v250 = vsub.s32 1, %v249
    %v251 = vrot.slane %v102, %v250
    %v252 = vmul.f32 %v251, %v240
    %v253 = vmul.f32 %v251, %v241
    %v254 = vmul.f32 %v251, %v242
    %v255 = vmul.f32 %v251, %v243
    %v256 = vmul.f32 %v251, %v244
    %v257 = vmul.f32 %v251, %v245
    %v258 = vmul.f32 %v251, %v246
    %v259 = vmul.f32 %v251, %v247
    %v260 = vlaneseq
    %v261 = vshrl.u32 %v260, 7
    %v262 = vsub.s32 2, %v261
    %v263 = vrot.slane %v102, %v262
    %v264 = vadd.f32 %v252, %v263
    %v265 = vadd.f32 %v253, %v263
    %v266 = vadd.f32 %v254, %v263
    %v267 = vadd.f32 %v255, %v263
    %v268 = vadd.f32 %v256, %v263
    %v269 = vadd.f32 %v257, %v263
    %v270 = vadd.f32 %v258, %v263
    %v271 = vadd.f32 %v259, %v263
    %v272 = vpack.c.bf16 %v265, %v264
    %v273 = vpack.c.bf16 %v267, %v266
    %v274 = vpack.c.bf16 %v269, %v268
    %v275 = vpack.c.bf16 %v271, %v270
    %v276 = vld [vmem:[#allocation7] sm:$0xff]
    %v277 = vld [vmem:[#allocation7 + $0x8] sm:$0xf]
    %v278 = vld [vmem:[#allocation7 + $0xc] sm:$0xff]
    %v279 = vld [vmem:[#allocation7 + $0x14] sm:$0xf]
    %v280 = vld [vmem:[#allocation7 + $0x18] sm:$0xff]
    %v281 = vld [vmem:[#allocation7 + $0x20] sm:$0xf]
    %v282 = vld [vmem:[#allocation7 + $0x24] sm:$0xff]
    %v283 = vld [vmem:[#allocation7 + $0x2c] sm:$0xf]
    %v284 = vld [vmem:[#allocation7 + $0x30] sm:$0xff]
    %v285 = vld [vmem:[#allocation7 + $0x38] sm:$0xf]
    %v286 = vld [vmem:[#allocation7 + $0x3c] sm:$0xff]
    %v287 = vld [vmem:[#allocation7 + $0x44] sm:$0xf]
    %v288 = vld [vmem:[#allocation7 + $0x48] sm:$0xff]
    %v289 = vld [vmem:[#allocation7 + $0x50] sm:$0xf]
    %v290 = vld [vmem:[#allocation7 + $0x54] sm:$0xff]
    %v291 = vld [vmem:[#allocation7 + $0x5c] sm:$0xf]
    %v292 = vld [vmem:[#allocation7 + $0x60] sm:$0xff]
    %v293 = vld [vmem:[#allocation7 + $0x68] sm:$0xf]
    %v294 = vld [vmem:[#allocation7 + $0x6c] sm:$0xff]
    %v295 = vld [vmem:[#allocation7 + $0x74] sm:$0xf]
    %v296 = vld [vmem:[#allocation7 + $0x78] sm:$0xff]
    %v297 = vld [vmem:[#allocation7 + $0x80] sm:$0xf]
    %v298 = vld [vmem:[#allocation7 + $0x84] sm:$0xff]
    %v299 = vld [vmem:[#allocation7 + $0x8c] sm:$0xf]
    %v300 = vld [vmem:[#allocation7 + $0x90] sm:$0xff]
    %v301 = vld [vmem:[#allocation7 + $0x98] sm:$0xf]
    %v302 = vld [vmem:[#allocation7 + $0x9c] sm:$0xff]
    %v303 = vld [vmem:[#allocation7 + $0xa4] sm:$0xf]
    %v304 = vld [vmem:[#allocation7 + $0xa8] sm:$0xff]
    %v305 = vld [vmem:[#allocation7 + $0xb0] sm:$0xf]
    %v306 = vld [vmem:[#allocation7 + $0xb4] sm:$0xff]
    %v307 = vld [vmem:[#allocation7 + $0xbc] sm:$0xf]
    %v308 = vld [vmem:[%s3] sm:$0x7]
    %v310 = vlaneseq
    %v311 = vshrl.u32 %v310, 7
    %v312 = vsub.s32 0, %v311
    %v313 = vrot.slane %v308, %v312
    %v314 = vlaneseq
    %v315 = vshrl.u32 %v314, 7
    %v316 = vsub.s32 1, %v315
    %v317 = vrot.slane %v308, %v316
    %v318 = vlaneseq
    %v319 = vshrl.u32 %v318, 7
    %v320 = vsub.s32 2, %v319
    %v321 = vrot.slane %v308, %v320
    %v357 = vunpack.c.l.b16 %v276
    %v358 = vunpack.c.h.b16 %v276
    %v359 = vunpack.c.l.b16 %v277
    %v360 = vunpack.c.l.b16 %v278
    %v361 = vunpack.c.h.b16 %v278
    %v362 = vunpack.c.l.b16 %v279
    %v363 = vunpack.c.l.b16 %v280
    %v364 = vunpack.c.h.b16 %v280
    %v365 = vunpack.c.l.b16 %v281
    %v366 = vunpack.c.l.b16 %v282
    %v367 = vunpack.c.h.b16 %v282
    %v368 = vunpack.c.l.b16 %v283
    %v369 = vunpack.c.l.b16 %v284
    %v370 = vunpack.c.h.b16 %v284
    %v371 = vunpack.c.l.b16 %v285
    %v372 = vunpack.c.l.b16 %v286
    %v373 = vunpack.c.h.b16 %v286
    %v374 = vunpack.c.l.b16 %v287
    %v375 = vunpack.c.l.b16 %v288
    %v376 = vunpack.c.h.b16 %v288
    %v377 = vunpack.c.l.b16 %v289
    %v378 = vunpack.c.l.b16 %v290
    %v379 = vunpack.c.h.b16 %v290
    %v380 = vunpack.c.l.b16 %v291
    %v381 = vunpack.c.l.b16 %v292
    %v382 = vunpack.c.h.b16 %v292
    %v383 = vunpack.c.l.b16 %v293
    %v384 = vunpack.c.l.b16 %v294
    %v385 = vunpack.c.h.b16 %v294
    %v386 = vunpack.c.l.b16 %v295
    %v387 = vunpack.c.l.b16 %v296
    %v388 = vunpack.c.h.b16 %v296
    %v389 = vunpack.c.l.b16 %v297
    %v390 = vunpack.c.l.b16 %v298
    %v391 = vunpack.c.h.b16 %v298
    %v392 = vunpack.c.l.b16 %v299
    %v393 = vunpack.c.l.b16 %v300
    %v394 = vunpack.c.h.b16 %v300
    %v395 = vunpack.c.l.b16 %v301
    %v396 = vunpack.c.l.b16 %v302
    %v397 = vunpack.c.h.b16 %v302
    %v398 = vunpack.c.l.b16 %v303
    %v399 = vunpack.c.l.b16 %v304
    %v400 = vunpack.c.h.b16 %v304
    %v401 = vunpack.c.l.b16 %v305
    %v402 = vunpack.c.l.b16 %v306
    %v403 = vunpack.c.h.b16 %v306
    %v404 = vunpack.c.l.b16 %v307
    %v405 = vpack.c.b16 %v360, %v357
    %v406 = vpack.c.b16 %v361, %v358
    %v407 = vpack.c.b16 %v362, %v359
    %v408 = vpack.c.b16 %v366, %v363
    %v409 = vpack.c.b16 %v367, %v364
    %v410 = vpack.c.b16 %v368, %v365
    %v411 = vpack.c.b16 %v372, %v369
    %v412 = vpack.c.b16 %v373, %v370
    %v413 = vpack.c.b16 %v374, %v371
    %v414 = vpack.c.b16 %v378, %v375
    %v415 = vpack.c.b16 %v379, %v376
    %v416 = vpack.c.b16 %v380, %v377
    %v417 = vpack.c.b16 %v384, %v381
    %v418 = vpack.c.b16 %v385, %v382
    %v419 = vpack.c.b16 %v386, %v383
    %v420 = vpack.c.b16 %v390, %v387
    %v421 = vpack.c.b16 %v391, %v388
    %v422 = vpack.c.b16 %v392, %v389
    %v423 = vpack.c.b16 %v396, %v393
    %v424 = vpack.c.b16 %v397, %v394
    %v425 = vpack.c.b16 %v398, %v395
    %v426 = vpack.c.b16 %v402, %v399
    %v427 = vpack.c.b16 %v403, %v400
    %v428 = vpack.c.b16 %v404, %v401
    %453 = vmatprep.subr.bf16.mxu0 %v406
    %454 = vmatpush1.bf16.msra.mxu0 %v405
    %455 = vmatprep.subr.bf16.mxu0 %v409
    %456 = vmatpush1.bf16.msra.mxu0 %v408
    %457 = vmatprep.subr.bf16.mxu0 %v412
    %458 = vmatpush1.bf16.msra.mxu0 %v411
    %459 = vmatprep.subr.bf16.mxu0 %v415
    %460 = vmatpush1.bf16.msra.mxu0 %v414
    %461 = vmatprep.subr.bf16.mxu0 %v418
    %462 = vmatpush1.bf16.msra.mxu0 %v417
    %463 = vmatprep.subr.bf16.mxu0 %v421
    %464 = vmatpush1.bf16.msra.mxu0 %v420
    %465 = vmatprep.subr.bf16.mxu0 %v424
    %466 = vmatpush1.bf16.msra.mxu0 %v423
    %467 = vmatprep.subr.bf16.mxu0 %v427
    %468 = vmatpush1.bf16.msra.mxu0 %v426
    %469 = vmatprep.subr.bf16.mxu0 0
    %470 = vmatpush1.bf16.msra.mxu0 0
    %471 = vmatprep.subr.bf16.mxu0 0
    %472 = vmatpush1.bf16.msra.mxu0 0
    %473 = vmatprep.subr.bf16.mxu0 0
    %474 = vmatpush1.bf16.msra.mxu0 0
    %475 = vmatprep.subr.bf16.mxu0 0
    %476 = vmatpush1.bf16.msra.mxu0 0
    %477 = vmatprep.subr.bf16.mxu0 0
    %478 = vmatpush1.bf16.msra.mxu0 0
    %479 = vmatprep.subr.bf16.mxu0 0
    %480 = vmatpush1.bf16.msra.mxu0 0
    %481 = vmatprep.subr.bf16.mxu0 0
    %482 = vmatpush1.bf16.msra.mxu0 0
    %483 = vmatprep.subr.bf16.mxu0 0
    %484 = vmatpush1.bf16.msra.mxu0 0
    %485 = vmatprep.mubr.bf16.mxu0 0
    %486 = vmatmul.mubr.bf16.gmra.mrb[0].mxu0 %v272
    %v487 = vpop.f32.mrb[0].mxu0
    %v488 = vadd.f32 %v313, %v487
    %v489 = vpop.f32.mrb[0].mxu0
    %v490 = vadd.f32 %v317, %v489
    %v491 = vpop.f32.mrb[0].mxu0
    %v492 = vadd.f32 %v313, %v491
    %v493 = vpop.f32.mrb[0].mxu0
    %v494 = vadd.f32 %v317, %v493
    %495 = vmatprep.mubr.bf16.mxu0 0
    %496 = vmatmul.mubr.bf16.gmra.mrb[0].mxu0 %v273
    %v497 = vpop.f32.mrb[0].mxu0
    %v498 = vadd.f32 %v313, %v497
    %v499 = vpop.f32.mrb[0].mxu0
    %v500 = vadd.f32 %v317, %v499
    %v501 = vpop.f32.mrb[0].mxu0
    %v502 = vadd.f32 %v313, %v501
    %v503 = vpop.f32.mrb[0].mxu0
    %v504 = vadd.f32 %v317, %v503
    %505 = vmatprep.mubr.bf16.mxu0 0
    %506 = vmatmul.mubr.bf16.gmra.mrb[0].mxu0 %v274
    %v507 = vpop.f32.mrb[0].mxu0
    %v508 = vadd.f32 %v313, %v507
    %v509 = vpop.f32.mrb[0].mxu0
    %v510 = vadd.f32 %v317, %v509
    %v511 = vpop.f32.mrb[0].mxu0
    %v512 = vadd.f32 %v313, %v511
    %v513 = vpop.f32.mrb[0].mxu0
    %v514 = vadd.f32 %v317, %v513
    %515 = vmatprep.mubr.bf16.mxu0 0
    %516 = vmatmul.mubr.bf16.gmra.mrb[0].mxu0 %v275
    %v517 = vpop.f32.mrb[0].mxu0
    %v518 = vadd.f32 %v313, %v517
    %v519 = vpop.f32.mrb[0].mxu0
    %v520 = vadd.f32 %v317, %v519
    %v521 = vpop.f32.mrb[0].mxu0
    %v522 = vadd.f32 %v313, %v521
    %v523 = vpop.f32.mrb[0].mxu0
    %v524 = vadd.f32 %v317, %v523
    %525 = vdwg.mxu0
    %526 = vmatprep.subr.bf16.mxu0 0
    %527 = vmatpush1.bf16.msra.mxu0 %v407
    %528 = vmatprep.subr.bf16.mxu0 0
    %529 = vmatpush1.bf16.msra.mxu0 %v410
    %530 = vmatprep.subr.bf16.mxu0 0
    %531 = vmatpush1.bf16.msra.mxu0 %v413
    %532 = vmatprep.subr.bf16.mxu0 0
    %533 = vmatpush1.bf16.msra.mxu0 %v416
    %534 = vmatprep.subr.bf16.mxu0 0
    %535 = vmatpush1.bf16.msra.mxu0 %v419
    %536 = vmatprep.subr.bf16.mxu0 0
    %537 = vmatpush1.bf16.msra.mxu0 %v422
    %538 = vmatprep.subr.bf16.mxu0 0
    %539 = vmatpush1.bf16.msra.mxu0 %v425
    %540 = vmatprep.subr.bf16.mxu0 0
    %541 = vmatpush1.bf16.msra.mxu0 %v428
    %542 = vmatprep.subr.bf16.mxu0 0
    %543 = vmatpush1.bf16.msra.mxu0 0
    %544 = vmatprep.subr.bf16.mxu0 0
    %545 = vmatpush1.bf16.msra.mxu0 0
    %546 = vmatprep.subr.bf16.mxu0 0
    %547 = vmatpush1.bf16.msra.mxu0 0
    %548 = vmatprep.subr.bf16.mxu0 0
    %549 = vmatpush1.bf16.msra.mxu0 0
    %550 = vmatprep.subr.bf16.mxu0 0
    %551 = vmatpush1.bf16.msra.mxu0 0
    %552 = vmatprep.subr.bf16.mxu0 0
    %553 = vmatpush1.bf16.msra.mxu0 0
    %554 = vmatprep.subr.bf16.mxu0 0
    %555 = vmatpush1.bf16.msra.mxu0 0
    %556 = vmatprep.subr.bf16.mxu0 0
    %557 = vmatpush1.bf16.msra.mxu0 0
    %558 = vmatprep.mubr.bf16.mxu0 0
    %559 = vmatmul.mubr.bf16.gmra.mrb[0].mxu0 %v272
    %v560 = vpop.f32.mrb[0].mxu0
    %v561 = vadd.f32 %v321, %v560
    %v562 = vpop.f32.mrb[0].mxu0
    %v563 = vpop.f32.mrb[0].mxu0
    %v564 = vadd.f32 %v321, %v563
    %v565 = vpop.f32.mrb[0].mxu0
    %566 = vmatprep.mubr.bf16.mxu0 0
    %567 = vmatmul.mubr.bf16.gmra.mrb[0].mxu0 %v273
    %v568 = vpop.f32.mrb[0].mxu0
    %v569 = vadd.f32 %v321, %v568
    %v570 = vpop.f32.mrb[0].mxu0
    %v571 = vpop.f32.mrb[0].mxu0
    %v572 = vadd.f32 %v321, %v571
    %v573 = vpop.f32.mrb[0].mxu0
    %574 = vmatprep.mubr.bf16.mxu0 0
    %575 = vmatmul.mubr.bf16.gmra.mrb[0].mxu0 %v274
    %v576 = vpop.f32.mrb[0].mxu0
    %v577 = vadd.f32 %v321, %v576
    %v578 = vpop.f32.mrb[0].mxu0
    %v579 = vpop.f32.mrb[0].mxu0
    %v580 = vadd.f32 %v321, %v579
    %v581 = vpop.f32.mrb[0].mxu0
    %582 = vmatprep.mubr.bf16.mxu0 0
    %583 = vmatmul.mubr.bf16.gmra.mrb[0].mxu0 %v275
    %v584 = vpop.f32.mrb[0].mxu0
    %v585 = vadd.f32 %v321, %v584
    %v586 = vpop.f32.mrb[0].mxu0
    %v587 = vpop.f32.mrb[0].mxu0
    %v588 = vadd.f32 %v321, %v587
    %v589 = vpop.f32.mrb[0].mxu0
    %590 = vdwg.mxu0
    %v591 = vld [vmem:[#allocation5] sm:$0xff]
    %vm592 = vcmp.eq.f32.partialorder %v591, 0.0
    %v593 = vsel %vm592, 1, 0
    %v594 = vcombine.high %v593, %v593
    %v596 = vunpack.c.l.s4 1966171168
    %v597 = vunpack.c.0.s8 %v596
    %v598 = vlaneseq
    %v599 = vshrl.u32 %v598, 7
    %v600 = vsub.s32 %v597, %v599
    %v601 = vrot.slane %v593, %v600
    %v603 = vunpack.c.l.s4 1966171168
    %v604 = vunpack.c.0.s8 %v603
    %v605 = vlaneseq
    %v606 = vshrl.u32 %v605, 7
    %v607 = vsub.s32 %v604, %v606
    %v608 = vrot.slane %v594, %v607
    %v609 = vcombine.high %v601, %v601
    %v610 = vcombine.high %v608, %v608
    %v612 = vunpack.c.l.s4 1966171168
    %v613 = vunpack.c.0.s8 %v612
    %v614 = vlaneseq
    %v615 = vshrl.u32 %v614, 7
    %v616 = vsub.s32 %v613, %v615
    %v617 = vrot.slane %v601, %v616
    %v619 = vunpack.c.l.s4 1966171168
    %v620 = vunpack.c.0.s8 %v619
    %v621 = vlaneseq
    %v622 = vshrl.u32 %v621, 7
    %v623 = vsub.s32 %v620, %v622
    %v624 = vrot.slane %v608, %v623
    %v626 = vunpack.c.l.s4 1966171168
    %v627 = vunpack.c.0.s8 %v626
    %v628 = vlaneseq
    %v629 = vshrl.u32 %v628, 7
    %v630 = vsub.s32 %v627, %v629
    %v631 = vrot.slane %v609, %v630
    %v633 = vunpack.c.l.s4 1966171168
    %v634 = vunpack.c.0.s8 %v633
    %v635 = vlaneseq
    %v636 = vshrl.u32 %v635, 7
    %v637 = vsub.s32 %v634, %v636
    %v638 = vrot.slane %v610, %v637
    %v639 = vcombine.high %v617, %v617
    %v640 = vcombine.high %v624, %v624
    %v641 = vcombine.high %v631, %v631
    %v642 = vcombine.high %v638, %v638
    %vm643 = vcmp.ne.s32.totalorder %v617, 0
    %vm644 = vcmp.ne.s32.totalorder %v631, 0
    %vm645 = vcmp.ne.s32.totalorder %v639, 0
    %vm646 = vcmp.ne.s32.totalorder %v641, 0
    %vm647 = vcmp.ne.s32.totalorder %v624, 0
    %vm648 = vcmp.ne.s32.totalorder %v638, 0
    %vm649 = vcmp.ne.s32.totalorder %v640, 0
    %vm650 = vcmp.ne.s32.totalorder %v642, 0
    %vm651 = vcmask 261120
    %v653 = vsel %vm651, %v488, 0
    %v656 = vsel %vm651, %v490, 0
    %658 = vmatprep.subr.mxu0 0.0
    %659 = vmatpush1.xpose.msra.mxu0 %v656
    %660 = vmatprep.subr.mxu0 0.0
    %661 = vmatpush1.xpose.msra.mxu0 0.0
    %662 = vmatprep.subr.mxu0 0.0
    %663 = vmatpush1.xpose.msra.mxu0 0.0
    %664 = vmatprep.subr.mxu0 0.0
    %665 = vmatpush1.xpose.msra.mxu0 0.0
    %666 = vmatprep.subr.mxu0 0.0
    %667 = vmatpush1.xpose.msra.mxu0 0.0
    %668 = vmatprep.subr.mxu0 0.0
    %669 = vmatpush1.xpose.msra.mxu0 0.0
    %670 = vmatprep.subr.mxu0 0.0
    %671 = vmatpush1.xpose.msra.mxu0 0.0
    %672 = vmatprep.subr.mxu0 0.0
    %673 = vmatpush1.xpose.msra.mxu0 0.0
    %674 = vmatprep.subr.mxu0 0.0
    %675 = vmatpush1.xpose.msra.mxu0 0.0
    %676 = vmatprep.subr.mxu0 0.0
    %677 = vmatpush1.xpose.msra.mxu0 0.0
    %678 = vmatprep.subr.mxu0 0.0
    %679 = vmatpush1.xpose.msra.mxu0 0.0
    %680 = vmatprep.subr.mxu0 0.0
    %681 = vmatpush1.xpose.msra.mxu0 0.0
    %682 = vmatprep.subr.mxu0 0.0
    %683 = vmatpush1.xpose.msra.mxu0 0.0
    %684 = vmatprep.subr.mxu0 0.0
    %685 = vmatpush1.xpose.msra.mxu0 0.0
    %686 = vmatprep.subr.mxu0 0.0
    %687 = vmatpush1.xpose.msra.mxu0 0.0
    %688 = vmatprep.subr.mxu0 0.0
    %689 = vmatpush1.xpose.msra.mxu0 0.0
    %690 = vmatprep.subr.mxu0 0.0
    %691 = vmatpush1.xpose.msra.mxu0 0.0
    %692 = vmatprep.subr.mxu0 0.0
    %693 = vmatpush1.xpose.msra.mxu0 0.0
    %694 = vmatprep.subr.mxu0 0.0
    %695 = vmatpush1.xpose.msra.mxu0 0.0
    %696 = vmatprep.subr.mxu0 0.0
    %697 = vmatpush1.xpose.msra.mxu0 0.0
    %698 = vmatprep.subr.mxu0 0.0
    %699 = vmatpush1.xpose.msra.mxu0 0.0
    %700 = vmatprep.subr.mxu0 0.0
    %701 = vmatpush1.xpose.msra.mxu0 0.0
    %702 = vmatprep.subr.mxu0 0.0
    %703 = vmatpush1.xpose.msra.mxu0 0.0
    %704 = vmatprep.subr.mxu0 0.0
    %705 = vmatpush1.xpose.msra.mxu0 0.0
    %706 = vmatprep.subr.mxu0 0.0
    %707 = vmatpush1.xpose.msra.mxu0 0.0
    %708 = vmatprep.subr.mxu0 0.0
    %709 = vmatpush1.xpose.msra.mxu0 0.0
    %710 = vmatprep.subr.mxu0 0.0
    %711 = vmatpush1.xpose.msra.mxu0 0.0
    %712 = vmatprep.subr.mxu0 0.0
    %713 = vmatpush1.xpose.msra.mxu0 0.0
    %714 = vmatprep.subr.mxu0 0.0
    %715 = vmatpush1.xpose.msra.mxu0 0.0
    %716 = vmatprep.subr.mxu0 0.0
    %717 = vmatpush1.xpose.msra.mxu0 0.0
    %718 = vmatprep.subr.mxu0 0.0
    %719 = vmatpush1.xpose.msra.mxu0 0.0
    %720 = vmatprep.subr.mxu0 0.0
    %721 = vmatpush1.xpose.msra.mxu0 0.0
    %722 = vmatprep.mubr.f32.mxu0 0.0
    %723 = vmatmul.mubr.f32.gmra.mrb[0].mxu0 %v653
    %v724 = vpop.f32.mrb[0].mxu0
    %v725 = vadd.f32 0.0, %v724
    %v726 = vpop.f32.mrb[0].mxu0
    %727 = vdwg.mxu0
    %v729 = vsel %vm651, %v492, 0
    %v732 = vsel %vm651, %v494, 0
    %734 = vmatprep.subr.mxu0 0.0
    %735 = vmatpush1.xpose.msra.mxu0 %v732
    %736 = vmatprep.subr.mxu0 0.0
    %737 = vmatpush1.xpose.msra.mxu0 0.0
    %738 = vmatprep.subr.mxu0 0.0
    %739 = vmatpush1.xpose.msra.mxu0 0.0
    %740 = vmatprep.subr.mxu0 0.0
    %741 = vmatpush1.xpose.msra.mxu0 0.0
    %742 = vmatprep.subr.mxu0 0.0
    %743 = vmatpush1.xpose.msra.mxu0 0.0
    %744 = vmatprep.subr.mxu0 0.0
    %745 = vmatpush1.xpose.msra.mxu0 0.0
    %746 = vmatprep.subr.mxu0 0.0
    %747 = vmatpush1.xpose.msra.mxu0 0.0
    %748 = vmatprep.subr.mxu0 0.0
    %749 = vmatpush1.xpose.msra.mxu0 0.0
    %750 = vmatprep.subr.mxu0 0.0
    %751 = vmatpush1.xpose.msra.mxu0 0.0
    %752 = vmatprep.subr.mxu0 0.0
    %753 = vmatpush1.xpose.msra.mxu0 0.0
    %754 = vmatprep.subr.mxu0 0.0
    %755 = vmatpush1.xpose.msra.mxu0 0.0
    %756 = vmatprep.subr.mxu0 0.0
    %757 = vmatpush1.xpose.msra.mxu0 0.0
    %758 = vmatprep.subr.mxu0 0.0
    %759 = vmatpush1.xpose.msra.mxu0 0.0
    %760 = vmatprep.subr.mxu0 0.0
    %761 = vmatpush1.xpose.msra.mxu0 0.0
    %762 = vmatprep.subr.mxu0 0.0
    %763 = vmatpush1.xpose.msra.mxu0 0.0
    %764 = vmatprep.subr.mxu0 0.0
    %765 = vmatpush1.xpose.msra.mxu0 0.0
    %766 = vmatprep.subr.mxu0 0.0
    %767 = vmatpush1.xpose.msra.mxu0 0.0
    %768 = vmatprep.subr.mxu0 0.0
    %769 = vmatpush1.xpose.msra.mxu0 0.0
    %770 = vmatprep.subr.mxu0 0.0
    %771 = vmatpush1.xpose.msra.mxu0 0.0
    %772 = vmatprep.subr.mxu0 0.0
    %773 = vmatpush1.xpose.msra.mxu0 0.0
    %774 = vmatprep.subr.mxu0 0.0
    %775 = vmatpush1.xpose.msra.mxu0 0.0
    %776 = vmatprep.subr.mxu0 0.0
    %777 = vmatpush1.xpose.msra.mxu0 0.0
    %778 = vmatprep.subr.mxu0 0.0
    %779 = vmatpush1.xpose.msra.mxu0 0.0
    %780 = vmatprep.subr.mxu0 0.0
    %781 = vmatpush1.xpose.msra.mxu0 0.0
    %782 = vmatprep.subr.mxu0 0.0
    %783 = vmatpush1.xpose.msra.mxu0 0.0
    %784 = vmatprep.subr.mxu0 0.0
    %785 = vmatpush1.xpose.msra.mxu0 0.0
    %786 = vmatprep.subr.mxu0 0.0
    %787 = vmatpush1.xpose.msra.mxu0 0.0
    %788 = vmatprep.subr.mxu0 0.0
    %789 = vmatpush1.xpose.msra.mxu0 0.0
    %790 = vmatprep.subr.mxu0 0.0
    %791 = vmatpush1.xpose.msra.mxu0 0.0
    %792 = vmatprep.subr.mxu0 0.0
    %793 = vmatpush1.xpose.msra.mxu0 0.0
    %794 = vmatprep.subr.mxu0 0.0
    %795 = vmatpush1.xpose.msra.mxu0 0.0
    %796 = vmatprep.subr.mxu0 0.0
    %797 = vmatpush1.xpose.msra.mxu0 0.0
    %798 = vmatprep.mubr.f32.mxu0 0.0
    %799 = vmatmul.mubr.f32.gmra.mrb[0].mxu0 %v729
    %v800 = vpop.f32.mrb[0].mxu0
    %v801 = vadd.f32 0.0, %v800
    %v802 = vpop.f32.mrb[0].mxu0
    %803 = vdwg.mxu0
    %v805 = vsel %vm651, %v498, 0
    %v808 = vsel %vm651, %v500, 0
    %810 = vmatprep.subr.mxu0 0.0
    %811 = vmatpush1.xpose.msra.mxu0 %v808
    %812 = vmatprep.subr.mxu0 0.0
    %813 = vmatpush1.xpose.msra.mxu0 0.0
    %814 = vmatprep.subr.mxu0 0.0
    %815 = vmatpush1.xpose.msra.mxu0 0.0
    %816 = vmatprep.subr.mxu0 0.0
    %817 = vmatpush1.xpose.msra.mxu0 0.0
    %818 = vmatprep.subr.mxu0 0.0
    %819 = vmatpush1.xpose.msra.mxu0 0.0
    %820 = vmatprep.subr.mxu0 0.0
    %821 = vmatpush1.xpose.msra.mxu0 0.0
    %822 = vmatprep.subr.mxu0 0.0
    %823 = vmatpush1.xpose.msra.mxu0 0.0
    %824 = vmatprep.subr.mxu0 0.0
    %825 = vmatpush1.xpose.msra.mxu0 0.0
    %826 = vmatprep.subr.mxu0 0.0
    %827 = vmatpush1.xpose.msra.mxu0 0.0
    %828 = vmatprep.subr.mxu0 0.0
    %829 = vmatpush1.xpose.msra.mxu0 0.0
    %830 = vmatprep.subr.mxu0 0.0
    %831 = vmatpush1.xpose.msra.mxu0 0.0
    %832 = vmatprep.subr.mxu0 0.0
    %833 = vmatpush1.xpose.msra.mxu0 0.0
    %834 = vmatprep.subr.mxu0 0.0
    %835 = vmatpush1.xpose.msra.mxu0 0.0
    %836 = vmatprep.subr.mxu0 0.0
    %837 = vmatpush1.xpose.msra.mxu0 0.0
    %838 = vmatprep.subr.mxu0 0.0
    %839 = vmatpush1.xpose.msra.mxu0 0.0
    %840 = vmatprep.subr.mxu0 0.0
    %841 = vmatpush1.xpose.msra.mxu0 0.0
    %842 = vmatprep.subr.mxu0 0.0
    %843 = vmatpush1.xpose.msra.mxu0 0.0
    %844 = vmatprep.subr.mxu0 0.0
    %845 = vmatpush1.xpose.msra.mxu0 0.0
    %846 = vmatprep.subr.mxu0 0.0
    %847 = vmatpush1.xpose.msra.mxu0 0.0
    %848 = vmatprep.subr.mxu0 0.0
    %849 = vmatpush1.xpose.msra.mxu0 0.0
    %850 = vmatprep.subr.mxu0 0.0
    %851 = vmatpush1.xpose.msra.mxu0 0.0
    %852 = vmatprep.subr.mxu0 0.0
    %853 = vmatpush1.xpose.msra.mxu0 0.0
    %854 = vmatprep.subr.mxu0 0.0
    %855 = vmatpush1.xpose.msra.mxu0 0.0
    %856 = vmatprep.subr.mxu0 0.0
    %857 = vmatpush1.xpose.msra.mxu0 0.0
    %858 = vmatprep.subr.mxu0 0.0
    %859 = vmatpush1.xpose.msra.mxu0 0.0
    %860 = vmatprep.subr.mxu0 0.0
    %861 = vmatpush1.xpose.msra.mxu0 0.0
    %862 = vmatprep.subr.mxu0 0.0
    %863 = vmatpush1.xpose.msra.mxu0 0.0
    %864 = vmatprep.subr.mxu0 0.0
    %865 = vmatpush1.xpose.msra.mxu0 0.0
    %866 = vmatprep.subr.mxu0 0.0
    %867 = vmatpush1.xpose.msra.mxu0 0.0
    %868 = vmatprep.subr.mxu0 0.0
    %869 = vmatpush1.xpose.msra.mxu0 0.0
    %870 = vmatprep.subr.mxu0 0.0
    %871 = vmatpush1.xpose.msra.mxu0 0.0
    %872 = vmatprep.subr.mxu0 0.0
    %873 = vmatpush1.xpose.msra.mxu0 0.0
    %874 = vmatprep.mubr.f32.mxu0 0.0
    %875 = vmatmul.mubr.f32.gmra.mrb[0].mxu0 %v805
    %v876 = vpop.f32.mrb[0].mxu0
    %v877 = vadd.f32 0.0, %v876
    %v878 = vpop.f32.mrb[0].mxu0
    %879 = vdwg.mxu0
    %v881 = vsel %vm651, %v502, 0
    %v884 = vsel %vm651, %v504, 0
    %886 = vmatprep.subr.mxu0 0.0
    %887 = vmatpush1.xpose.msra.mxu0 %v884
    %888 = vmatprep.subr.mxu0 0.0
    %889 = vmatpush1.xpose.msra.mxu0 0.0
    %890 = vmatprep.subr.mxu0 0.0
    %891 = vmatpush1.xpose.msra.mxu0 0.0
    %892 = vmatprep.subr.mxu0 0.0
    %893 = vmatpush1.xpose.msra.mxu0 0.0
    %894 = vmatprep.subr.mxu0 0.0
    %895 = vmatpush1.xpose.msra.mxu0 0.0
    %896 = vmatprep.subr.mxu0 0.0
    %897 = vmatpush1.xpose.msra.mxu0 0.0
    %898 = vmatprep.subr.mxu0 0.0
    %899 = vmatpush1.xpose.msra.mxu0 0.0
    %900 = vmatprep.subr.mxu0 0.0
    %901 = vmatpush1.xpose.msra.mxu0 0.0
    %902 = vmatprep.subr.mxu0 0.0
    %903 = vmatpush1.xpose.msra.mxu0 0.0
    %904 = vmatprep.subr.mxu0 0.0
    %905 = vmatpush1.xpose.msra.mxu0 0.0
    %906 = vmatprep.subr.mxu0 0.0
    %907 = vmatpush1.xpose.msra.mxu0 0.0
    %908 = vmatprep.subr.mxu0 0.0
    %909 = vmatpush1.xpose.msra.mxu0 0.0
    %910 = vmatprep.subr.mxu0 0.0
    %911 = vmatpush1.xpose.msra.mxu0 0.0
    %912 = vmatprep.subr.mxu0 0.0
    %913 = vmatpush1.xpose.msra.mxu0 0.0
    %914 = vmatprep.subr.mxu0 0.0
    %915 = vmatpush1.xpose.msra.mxu0 0.0
    %916 = vmatprep.subr.mxu0 0.0
    %917 = vmatpush1.xpose.msra.mxu0 0.0
    %918 = vmatprep.subr.mxu0 0.0
    %919 = vmatpush1.xpose.msra.mxu0 0.0
    %920 = vmatprep.subr.mxu0 0.0
    %921 = vmatpush1.xpose.msra.mxu0 0.0
    %922 = vmatprep.subr.mxu0 0.0
    %923 = vmatpush1.xpose.msra.mxu0 0.0
    %924 = vmatprep.subr.mxu0 0.0
    %925 = vmatpush1.xpose.msra.mxu0 0.0
    %926 = vmatprep.subr.mxu0 0.0
    %927 = vmatpush1.xpose.msra.mxu0 0.0
    %928 = vmatprep.subr.mxu0 0.0
    %929 = vmatpush1.xpose.msra.mxu0 0.0
    %930 = vmatprep.subr.mxu0 0.0
    %931 = vmatpush1.xpose.msra.mxu0 0.0
    %932 = vmatprep.subr.mxu0 0.0
    %933 = vmatpush1.xpose.msra.mxu0 0.0
    %934 = vmatprep.subr.mxu0 0.0
    %935 = vmatpush1.xpose.msra.mxu0 0.0
    %936 = vmatprep.subr.mxu0 0.0
    %937 = vmatpush1.xpose.msra.mxu0 0.0
    %938 = vmatprep.subr.mxu0 0.0
    %939 = vmatpush1.xpose.msra.mxu0 0.0
    %940 = vmatprep.subr.mxu0 0.0
    %941 = vmatpush1.xpose.msra.mxu0 0.0
    %942 = vmatprep.subr.mxu0 0.0
    %943 = vmatpush1.xpose.msra.mxu0 0.0
    %944 = vmatprep.subr.mxu0 0.0
    %945 = vmatpush1.xpose.msra.mxu0 0.0
    %946 = vmatprep.subr.mxu0 0.0
    %947 = vmatpush1.xpose.msra.mxu0 0.0
    %948 = vmatprep.subr.mxu0 0.0
    %949 = vmatpush1.xpose.msra.mxu0 0.0
    %950 = vmatprep.mubr.f32.mxu0 0.0
    %951 = vmatmul.mubr.f32.gmra.mrb[0].mxu0 %v881
    %v952 = vpop.f32.mrb[0].mxu0
    %v953 = vadd.f32 0.0, %v952
    %v954 = vpop.f32.mrb[0].mxu0
    %955 = vdwg.mxu0
    %v957 = vsel %vm651, %v508, 0
    %v960 = vsel %vm651, %v510, 0
    %962 = vmatprep.subr.mxu0 0.0
    %963 = vmatpush1.xpose.msra.mxu0 %v960
    %964 = vmatprep.subr.mxu0 0.0
    %965 = vmatpush1.xpose.msra.mxu0 0.0
    %966 = vmatprep.subr.mxu0 0.0
    %967 = vmatpush1.xpose.msra.mxu0 0.0
    %968 = vmatprep.subr.mxu0 0.0
    %969 = vmatpush1.xpose.msra.mxu0 0.0
    %970 = vmatprep.subr.mxu0 0.0
    %971 = vmatpush1.xpose.msra.mxu0 0.0
    %972 = vmatprep.subr.mxu0 0.0
    %973 = vmatpush1.xpose.msra.mxu0 0.0
    %974 = vmatprep.subr.mxu0 0.0
    %975 = vmatpush1.xpose.msra.mxu0 0.0
    %976 = vmatprep.subr.mxu0 0.0
    %977 = vmatpush1.xpose.msra.mxu0 0.0
    %978 = vmatprep.subr.mxu0 0.0
    %979 = vmatpush1.xpose.msra.mxu0 0.0
    %980 = vmatprep.subr.mxu0 0.0
    %981 = vmatpush1.xpose.msra.mxu0 0.0
    %982 = vmatprep.subr.mxu0 0.0
    %983 = vmatpush1.xpose.msra.mxu0 0.0
    %984 = vmatprep.subr.mxu0 0.0
    %985 = vmatpush1.xpose.msra.mxu0 0.0
    %986 = vmatprep.subr.mxu0 0.0
    %987 = vmatpush1.xpose.msra.mxu0 0.0
    %988 = vmatprep.subr.mxu0 0.0
    %989 = vmatpush1.xpose.msra.mxu0 0.0
    %990 = vmatprep.subr.mxu0 0.0
    %991 = vmatpush1.xpose.msra.mxu0 0.0
    %992 = vmatprep.subr.mxu0 0.0
    %993 = vmatpush1.xpose.msra.mxu0 0.0
    %994 = vmatprep.subr.mxu0 0.0
    %995 = vmatpush1.xpose.msra.mxu0 0.0
    %996 = vmatprep.subr.mxu0 0.0
    %997 = vmatpush1.xpose.msra.mxu0 0.0
    %998 = vmatprep.subr.mxu0 0.0
    %999 = vmatpush1.xpose.msra.mxu0 0.0
    %1000 = vmatprep.subr.mxu0 0.0
    %1001 = vmatpush1.xpose.msra.mxu0 0.0
    %1002 = vmatprep.subr.mxu0 0.0
    %1003 = vmatpush1.xpose.msra.mxu0 0.0
    %1004 = vmatprep.subr.mxu0 0.0
    %1005 = vmatpush1.xpose.msra.mxu0 0.0
    %1006 = vmatprep.subr.mxu0 0.0
    %1007 = vmatpush1.xpose.msra.mxu0 0.0
    %1008 = vmatprep.subr.mxu0 0.0
    %1009 = vmatpush1.xpose.msra.mxu0 0.0
    %1010 = vmatprep.subr.mxu0 0.0
    %1011 = vmatpush1.xpose.msra.mxu0 0.0
    %1012 = vmatprep.subr.mxu0 0.0
    %1013 = vmatpush1.xpose.msra.mxu0 0.0
    %1014 = vmatprep.subr.mxu0 0.0
    %1015 = vmatpush1.xpose.msra.mxu0 0.0
    %1016 = vmatprep.subr.mxu0 0.0
    %1017 = vmatpush1.xpose.msra.mxu0 0.0
    %1018 = vmatprep.subr.mxu0 0.0
    %1019 = vmatpush1.xpose.msra.mxu0 0.0
    %1020 = vmatprep.subr.mxu0 0.0
    %1021 = vmatpush1.xpose.msra.mxu0 0.0
    %1022 = vmatprep.subr.mxu0 0.0
    %1023 = vmatpush1.xpose.msra.mxu0 0.0
    %1024 = vmatprep.subr.mxu0 0.0
    %1025 = vmatpush1.xpose.msra.mxu0 0.0
    %1026 = vmatprep.mubr.f32.mxu0 0.0
    %1027 = vmatmul.mubr.f32.gmra.mrb[0].mxu0 %v957
    %v1028 = vpop.f32.mrb[0].mxu0
    %v1029 = vadd.f32 0.0, %v1028
    %v1030 = vpop.f32.mrb[0].mxu0
    %1031 = vdwg.mxu0
    %v1033 = vsel %vm651, %v512, 0
    %v1036 = vsel %vm651, %v514, 0
    %1038 = vmatprep.subr.mxu0 0.0
    %1039 = vmatpush1.xpose.msra.mxu0 %v1036
    %1040 = vmatprep.subr.mxu0 0.0
    %1041 = vmatpush1.xpose.msra.mxu0 0.0
    %1042 = vmatprep.subr.mxu0 0.0
    %1043 = vmatpush1.xpose.msra.mxu0 0.0
    %1044 = vmatprep.subr.mxu0 0.0
    %1045 = vmatpush1.xpose.msra.mxu0 0.0
    %1046 = vmatprep.subr.mxu0 0.0
    %1047 = vmatpush1.xpose.msra.mxu0 0.0
    %1048 = vmatprep.subr.mxu0 0.0
    %1049 = vmatpush1.xpose.msra.mxu0 0.0
    %1050 = vmatprep.subr.mxu0 0.0
    %1051 = vmatpush1.xpose.msra.mxu0 0.0
    %1052 = vmatprep.subr.mxu0 0.0
    %1053 = vmatpush1.xpose.msra.mxu0 0.0
    %1054 = vmatprep.subr.mxu0 0.0
    %1055 = vmatpush1.xpose.msra.mxu0 0.0
    %1056 = vmatprep.subr.mxu0 0.0
    %1057 = vmatpush1.xpose.msra.mxu0 0.0
    %1058 = vmatprep.subr.mxu0 0.0
    %1059 = vmatpush1.xpose.msra.mxu0 0.0
    %1060 = vmatprep.subr.mxu0 0.0
    %1061 = vmatpush1.xpose.msra.mxu0 0.0
    %1062 = vmatprep.subr.mxu0 0.0
    %1063 = vmatpush1.xpose.msra.mxu0 0.0
    %1064 = vmatprep.subr.mxu0 0.0
    %1065 = vmatpush1.xpose.msra.mxu0 0.0
    %1066 = vmatprep.subr.mxu0 0.0
    %1067 = vmatpush1.xpose.msra.mxu0 0.0
    %1068 = vmatprep.subr.mxu0 0.0
    %1069 = vmatpush1.xpose.msra.mxu0 0.0
    %1070 = vmatprep.subr.mxu0 0.0
    %1071 = vmatpush1.xpose.msra.mxu0 0.0
    %1072 = vmatprep.subr.mxu0 0.0
    %1073 = vmatpush1.xpose.msra.mxu0 0.0
    %1074 = vmatprep.subr.mxu0 0.0
    %1075 = vmatpush1.xpose.msra.mxu0 0.0
    %1076 = vmatprep.subr.mxu0 0.0
    %1077 = vmatpush1.xpose.msra.mxu0 0.0
    %1078 = vmatprep.subr.mxu0 0.0
    %1079 = vmatpush1.xpose.msra.mxu0 0.0
    %1080 = vmatprep.subr.mxu0 0.0
    %1081 = vmatpush1.xpose.msra.mxu0 0.0
    %1082 = vmatprep.subr.mxu0 0.0
    %1083 = vmatpush1.xpose.msra.mxu0 0.0
    %1084 = vmatprep.subr.mxu0 0.0
    %1085 = vmatpush1.xpose.msra.mxu0 0.0
    %1086 = vmatprep.subr.mxu0 0.0
    %1087 = vmatpush1.xpose.msra.mxu0 0.0
    %1088 = vmatprep.subr.mxu0 0.0
    %1089 = vmatpush1.xpose.msra.mxu0 0.0
    %1090 = vmatprep.subr.mxu0 0.0
    %1091 = vmatpush1.xpose.msra.mxu0 0.0
    %1092 = vmatprep.subr.mxu0 0.0
    %1093 = vmatpush1.xpose.msra.mxu0 0.0
    %1094 = vmatprep.subr.mxu0 0.0
    %1095 = vmatpush1.xpose.msra.mxu0 0.0
    %1096 = vmatprep.subr.mxu0 0.0
    %1097 = vmatpush1.xpose.msra.mxu0 0.0
    %1098 = vmatprep.subr.mxu0 0.0
    %1099 = vmatpush1.xpose.msra.mxu0 0.0
    %1100 = vmatprep.subr.mxu0 0.0
    %1101 = vmatpush1.xpose.msra.mxu0 0.0
    %1102 = vmatprep.mubr.f32.mxu0 0.0
    %1103 = vmatmul.mubr.f32.gmra.mrb[0].mxu0 %v1033
    %v1104 = vpop.f32.mrb[0].mxu0
    %v1105 = vadd.f32 0.0, %v1104
    %v1106 = vpop.f32.mrb[0].mxu0
    %1107 = vdwg.mxu0
    %v1109 = vsel %vm651, %v518, 0
    %v1112 = vsel %vm651, %v520, 0
    %1114 = vmatprep.subr.mxu0 0.0
    %1115 = vmatpush1.xpose.msra.mxu0 %v1112
    %1116 = vmatprep.subr.mxu0 0.0
    %1117 = vmatpush1.xpose.msra.mxu0 0.0
    %1118 = vmatprep.subr.mxu0 0.0
    %1119 = vmatpush1.xpose.msra.mxu0 0.0
    %1120 = vmatprep.subr.mxu0 0.0
    %1121 = vmatpush1.xpose.msra.mxu0 0.0
    %1122 = vmatprep.subr.mxu0 0.0
    %1123 = vmatpush1.xpose.msra.mxu0 0.0
    %1124 = vmatprep.subr.mxu0 0.0
    %1125 = vmatpush1.xpose.msra.mxu0 0.0
    %1126 = vmatprep.subr.mxu0 0.0
    %1127 = vmatpush1.xpose.msra.mxu0 0.0
    %1128 = vmatprep.subr.mxu0 0.0
    %1129 = vmatpush1.xpose.msra.mxu0 0.0
    %1130 = vmatprep.subr.mxu0 0.0
    %1131 = vmatpush1.xpose.msra.mxu0 0.0
    %1132 = vmatprep.subr.mxu0 0.0
    %1133 = vmatpush1.xpose.msra.mxu0 0.0
    %1134 = vmatprep.subr.mxu0 0.0
    %1135 = vmatpush1.xpose.msra.mxu0 0.0
    %1136 = vmatprep.subr.mxu0 0.0
    %1137 = vmatpush1.xpose.msra.mxu0 0.0
    %1138 = vmatprep.subr.mxu0 0.0
    %1139 = vmatpush1.xpose.msra.mxu0 0.0
    %1140 = vmatprep.subr.mxu0 0.0
    %1141 = vmatpush1.xpose.msra.mxu0 0.0
    %1142 = vmatprep.subr.mxu0 0.0
    %1143 = vmatpush1.xpose.msra.mxu0 0.0
    %1144 = vmatprep.subr.mxu0 0.0
    %1145 = vmatpush1.xpose.msra.mxu0 0.0
    %1146 = vmatprep.subr.mxu0 0.0
    %1147 = vmatpush1.xpose.msra.mxu0 0.0
    %1148 = vmatprep.subr.mxu0 0.0
    %1149 = vmatpush1.xpose.msra.mxu0 0.0
    %1150 = vmatprep.subr.mxu0 0.0
    %1151 = vmatpush1.xpose.msra.mxu0 0.0
    %1152 = vmatprep.subr.mxu0 0.0
    %1153 = vmatpush1.xpose.msra.mxu0 0.0
    %1154 = vmatprep.subr.mxu0 0.0
    %1155 = vmatpush1.xpose.msra.mxu0 0.0
    %1156 = vmatprep.subr.mxu0 0.0
    %1157 = vmatpush1.xpose.msra.mxu0 0.0
    %1158 = vmatprep.subr.mxu0 0.0
    %1159 = vmatpush1.xpose.msra.mxu0 0.0
    %1160 = vmatprep.subr.mxu0 0.0
    %1161 = vmatpush1.xpose.msra.mxu0 0.0
    %1162 = vmatprep.subr.mxu0 0.0
    %1163 = vmatpush1.xpose.msra.mxu0 0.0
    %1164 = vmatprep.subr.mxu0 0.0
    %1165 = vmatpush1.xpose.msra.mxu0 0.0
    %1166 = vmatprep.subr.mxu0 0.0
    %1167 = vmatpush1.xpose.msra.mxu0 0.0
    %1168 = vmatprep.subr.mxu0 0.0
    %1169 = vmatpush1.xpose.msra.mxu0 0.0
    %1170 = vmatprep.subr.mxu0 0.0
    %1171 = vmatpush1.xpose.msra.mxu0 0.0
    %1172 = vmatprep.subr.mxu0 0.0
    %1173 = vmatpush1.xpose.msra.mxu0 0.0
    %1174 = vmatprep.subr.mxu0 0.0
    %1175 = vmatpush1.xpose.msra.mxu0 0.0
    %1176 = vmatprep.subr.mxu0 0.0
    %1177 = vmatpush1.xpose.msra.mxu0 0.0
    %1178 = vmatprep.mubr.f32.mxu0 0.0
    %1179 = vmatmul.mubr.f32.gmra.mrb[0].mxu0 %v1109
    %v1180 = vpop.f32.mrb[0].mxu0
    %v1181 = vadd.f32 0.0, %v1180
    %v1182 = vpop.f32.mrb[0].mxu0
    %1183 = vdwg.mxu0
    %v1185 = vsel %vm651, %v522, 0
    %v1188 = vsel %vm651, %v524, 0
    %1190 = vmatprep.subr.mxu0 0.0
    %1191 = vmatpush1.xpose.msra.mxu0 %v1188
    %1192 = vmatprep.subr.mxu0 0.0
    %1193 = vmatpush1.xpose.msra.mxu0 0.0
    %1194 = vmatprep.subr.mxu0 0.0
    %1195 = vmatpush1.xpose.msra.mxu0 0.0
    %1196 = vmatprep.subr.mxu0 0.0
    %1197 = vmatpush1.xpose.msra.mxu0 0.0
    %1198 = vmatprep.subr.mxu0 0.0
    %1199 = vmatpush1.xpose.msra.mxu0 0.0
    %1200 = vmatprep.subr.mxu0 0.0
    %1201 = vmatpush1.xpose.msra.mxu0 0.0
    %1202 = vmatprep.subr.mxu0 0.0
    %1203 = vmatpush1.xpose.msra.mxu0 0.0
    %1204 = vmatprep.subr.mxu0 0.0
    %1205 = vmatpush1.xpose.msra.mxu0 0.0
    %1206 = vmatprep.subr.mxu0 0.0
    %1207 = vmatpush1.xpose.msra.mxu0 0.0
    %1208 = vmatprep.subr.mxu0 0.0
    %1209 = vmatpush1.xpose.msra.mxu0 0.0
    %1210 = vmatprep.subr.mxu0 0.0
    %1211 = vmatpush1.xpose.msra.mxu0 0.0
    %1212 = vmatprep.subr.mxu0 0.0
    %1213 = vmatpush1.xpose.msra.mxu0 0.0
    %1214 = vmatprep.subr.mxu0 0.0
    %1215 = vmatpush1.xpose.msra.mxu0 0.0
    %1216 = vmatprep.subr.mxu0 0.0
    %1217 = vmatpush1.xpose.msra.mxu0 0.0
    %1218 = vmatprep.subr.mxu0 0.0
    %1219 = vmatpush1.xpose.msra.mxu0 0.0
    %1220 = vmatprep.subr.mxu0 0.0
    %1221 = vmatpush1.xpose.msra.mxu0 0.0
    %1222 = vmatprep.subr.mxu0 0.0
    %1223 = vmatpush1.xpose.msra.mxu0 0.0
    %1224 = vmatprep.subr.mxu0 0.0
    %1225 = vmatpush1.xpose.msra.mxu0 0.0
    %1226 = vmatprep.subr.mxu0 0.0
    %1227 = vmatpush1.xpose.msra.mxu0 0.0
    %1228 = vmatprep.subr.mxu0 0.0
    %1229 = vmatpush1.xpose.msra.mxu0 0.0
    %1230 = vmatprep.subr.mxu0 0.0
    %1231 = vmatpush1.xpose.msra.mxu0 0.0
    %1232 = vmatprep.subr.mxu0 0.0
    %1233 = vmatpush1.xpose.msra.mxu0 0.0
    %1234 = vmatprep.subr.mxu0 0.0
    %1235 = vmatpush1.xpose.msra.mxu0 0.0
    %1236 = vmatprep.subr.mxu0 0.0
    %1237 = vmatpush1.xpose.msra.mxu0 0.0
    %1238 = vmatprep.subr.mxu0 0.0
    %1239 = vmatpush1.xpose.msra.mxu0 0.0
    %1240 = vmatprep.subr.mxu0 0.0
    %1241 = vmatpush1.xpose.msra.mxu0 0.0
    %1242 = vmatprep.subr.mxu0 0.0
    %1243 = vmatpush1.xpose.msra.mxu0 0.0
    %1244 = vmatprep.subr.mxu0 0.0
    %1245 = vmatpush1.xpose.msra.mxu0 0.0
    %1246 = vmatprep.subr.mxu0 0.0
    %1247 = vmatpush1.xpose.msra.mxu0 0.0
    %1248 = vmatprep.subr.mxu0 0.0
    %1249 = vmatpush1.xpose.msra.mxu0 0.0
    %1250 = vmatprep.subr.mxu0 0.0
    %1251 = vmatpush1.xpose.msra.mxu0 0.0
    %1252 = vmatprep.subr.mxu0 0.0
    %1253 = vmatpush1.xpose.msra.mxu0 0.0
    %1254 = vmatprep.mubr.f32.mxu0 0.0
    %1255 = vmatmul.mubr.f32.gmra.mrb[0].mxu0 %v1185
    %v1256 = vpop.f32.mrb[0].mxu0
    %v1257 = vadd.f32 0.0, %v1256
    %v1258 = vpop.f32.mrb[0].mxu0
    %1259 = vdwg.mxu0
    %v1260 = vmul.f32 %v725, 0.03125
    %v1261 = vmul.f32 %v801, 0.03125
    %v1262 = vmul.f32 %v877, 0.03125
    %v1263 = vmul.f32 %v953, 0.03125
    %v1264 = vmul.f32 %v1029, 0.03125
    %v1265 = vmul.f32 %v1105, 0.03125
    %v1266 = vmul.f32 %v1181, 0.03125
    %v1267 = vmul.f32 %v1257, 0.03125
    %v1268 = vsel %vm643, 1, 0
    %v1269 = vsel %vm644, 1, 0
    %v1270 = vsel %vm645, 1, 0
    %v1271 = vsel %vm646, 1, 0
    %v1272 = vsel %vm647, 1, 0
    %v1273 = vsel %vm648, 1, 0
    %v1274 = vsel %vm649, 1, 0
    %v1275 = vsel %vm650, 1, 0
    %v1276 = vlaneseq
    %v1277 = vshrl.u32 %v1276, 7
    %v1278 = vsub.s32 0, %v1277
    %v1279 = vrot.slane %v1268, %v1278
    %v1280 = vlaneseq
    %v1281 = vshrl.u32 %v1280, 7
    %v1282 = vsub.s32 0, %v1281
    %v1283 = vrot.slane %v1269, %v1282
    %v1284 = vlaneseq
    %v1285 = vshrl.u32 %v1284, 7
    %v1286 = vsub.s32 0, %v1285
    %v1287 = vrot.slane %v1270, %v1286
    %v1288 = vlaneseq
    %v1289 = vshrl.u32 %v1288, 7
    %v1290 = vsub.s32 0, %v1289
    %v1291 = vrot.slane %v1271, %v1290
    %v1292 = vlaneseq
    %v1293 = vshrl.u32 %v1292, 7
    %v1294 = vsub.s32 0, %v1293
    %v1295 = vrot.slane %v1272, %v1294
    %v1296 = vlaneseq
    %v1297 = vshrl.u32 %v1296, 7
    %v1298 = vsub.s32 0, %v1297
    %v1299 = vrot.slane %v1273, %v1298
    %v1300 = vlaneseq
    %v1301 = vshrl.u32 %v1300, 7
    %v1302 = vsub.s32 0, %v1301
    %v1303 = vrot.slane %v1274, %v1302
    %v1304 = vlaneseq
    %v1305 = vshrl.u32 %v1304, 7
    %v1306 = vsub.s32 0, %v1305
    %v1307 = vrot.slane %v1275, %v1306
    %vm1308 = vcmp.eq.s32.totalorder %v1279, 1
    %vm1309 = vcmp.eq.s32.totalorder %v1283, 1
    %vm1310 = vcmp.eq.s32.totalorder %v1287, 1
    %vm1311 = vcmp.eq.s32.totalorder %v1291, 1
    %vm1312 = vcmp.eq.s32.totalorder %v1295, 1
    %vm1313 = vcmp.eq.s32.totalorder %v1299, 1
    %vm1314 = vcmp.eq.s32.totalorder %v1303, 1
    %vm1315 = vcmp.eq.s32.totalorder %v1307, 1
    %v1316 = vsel %vm1308, -1e+09, %v1260
    %v1317 = vsel %vm1309, -1e+09, %v1261
    %v1318 = vsel %vm1310, -1e+09, %v1262
    %v1319 = vsel %vm1311, -1e+09, %v1263
    %v1320 = vsel %vm1312, -1e+09, %v1264
    %v1321 = vsel %vm1313, -1e+09, %v1265
    %v1322 = vsel %vm1314, -1e+09, %v1266
    %v1323 = vsel %vm1315, -1e+09, %v1267
    %vm1324 = vcmask 64512
    %v1325 = vsel %vm1324, %v1316, -inf
    %1326 = vmax.xlane.f32.xlu0 %v1325
    %v1327 = vpop.xlane.xlu0 %1326
    %v1328 = vsel %vm1324, %v1317, -inf
    %1329 = vmax.xlane.f32.xlu0 %v1328
    %v1330 = vpop.xlane.xlu0 %1329
    %v1331 = vsel %vm1324, %v1318, -inf
    %1332 = vmax.xlane.f32.xlu0 %v1331
    %v1333 = vpop.xlane.xlu0 %1332
    %v1334 = vsel %vm1324, %v1319, -inf
    %1335 = vmax.xlane.f32.xlu0 %v1334
    %v1336 = vpop.xlane.xlu0 %1335
    %v1337 = vsel %vm1324, %v1320, -inf
    %1338 = vmax.xlane.f32.xlu0 %v1337
    %v1339 = vpop.xlane.xlu0 %1338
    %v1340 = vsel %vm1324, %v1321, -inf
    %1341 = vmax.xlane.f32.xlu0 %v1340
    %v1342 = vpop.xlane.xlu0 %1341
    %v1343 = vsel %vm1324, %v1322, -inf
    %1344 = vmax.xlane.f32.xlu0 %v1343
    %v1345 = vpop.xlane.xlu0 %1344
    %v1346 = vsel %vm1324, %v1323, -inf
    %1347 = vmax.xlane.f32.xlu0 %v1346
    %v1348 = vpop.xlane.xlu0 %1347
    %v1349 = vsub.f32 %v1316, %v1327
    %v1350 = vsub.f32 %v1317, %v1330
    %v1351 = vsub.f32 %v1318, %v1333
    %v1352 = vsub.f32 %v1319, %v1336
    %v1353 = vsub.f32 %v1320, %v1339
    %v1354 = vsub.f32 %v1321, %v1342
    %v1355 = vsub.f32 %v1322, %v1345
    %v1356 = vsub.f32 %v1323, %v1348
    %v1357 = vmul.f32 %v1349, 1.442695
    %v1358 = vpow.pop %v1357
    %v1359 = vmul.f32 %v1350, 1.442695
    %v1360 = vpow.pop %v1359
    %v1361 = vmul.f32 %v1351, 1.442695
    %v1362 = vpow.pop %v1361
    %v1363 = vmul.f32 %v1352, 1.442695
    %v1364 = vpow.pop %v1363
    %v1365 = vmul.f32 %v1353, 1.442695
    %v1366 = vpow.pop %v1365
    %v1367 = vmul.f32 %v1354, 1.442695
    %v1368 = vpow.pop %v1367
    %v1369 = vmul.f32 %v1355, 1.442695
    %v1370 = vpow.pop %v1369
    %v1371 = vmul.f32 %v1356, 1.442695
    %v1372 = vpow.pop %v1371
    %v1373 = vsel %vm1324, %v1358, 0.0
    %1374 = vadd.xlane.f32.xlu0 %v1373
    %v1375 = vpop.xlane.xlu0 %1374
    %v1376 = vsel %vm1324, %v1360, 0.0
    %1377 = vadd.xlane.f32.xlu0 %v1376
    %v1378 = vpop.xlane.xlu0 %1377
    %v1379 = vsel %vm1324, %v1362, 0.0
    %1380 = vadd.xlane.f32.xlu0 %v1379
    %v1381 = vpop.xlane.xlu0 %1380
    %v1382 = vsel %vm1324, %v1364, 0.0
    %1383 = vadd.xlane.f32.xlu0 %v1382
    %v1384 = vpop.xlane.xlu0 %1383
    %v1385 = vsel %vm1324, %v1366, 0.0
    %1386 = vadd.xlane.f32.xlu0 %v1385
    %v1387 = vpop.xlane.xlu0 %1386
    %v1388 = vsel %vm1324, %v1368, 0.0
    %1389 = vadd.xlane.f32.xlu0 %v1388
    %v1390 = vpop.xlane.xlu0 %1389
    %v1391 = vsel %vm1324, %v1370, 0.0
    %1392 = vadd.xlane.f32.xlu0 %v1391
    %v1393 = vpop.xlane.xlu0 %1392
    %v1394 = vsel %vm1324, %v1372, 0.0
    %1395 = vadd.xlane.f32.xlu0 %v1394
    %v1396 = vpop.xlane.xlu0 %1395
    %v1397 = vrcp.pop %v1375
    %v1398 = vrcp.pop %v1378
    %v1399 = vrcp.pop %v1381
    %v1400 = vrcp.pop %v1384
    %v1401 = vrcp.pop %v1387
    %v1402 = vrcp.pop %v1390
    %v1403 = vrcp.pop %v1393
    %v1404 = vrcp.pop %v1396
    %v1405 = vmul.f32 %v1358, %v1397
    %v1406 = vmul.f32 %v1360, %v1398
    %v1407 = vmul.f32 %v1362, %v1399
    %v1408 = vmul.f32 %v1364, %v1400
    %v1409 = vmul.f32 %v1366, %v1401
    %v1410 = vmul.f32 %v1368, %v1402
    %v1411 = vmul.f32 %v1370, %v1403
    %v1412 = vmul.f32 %v1372, %v1404
    %v1414 = vsel %vm1324, %v1405, 0
    %1416 = vmatprep.subr.mxu0 0.0
    %1417 = vmatpush1.msra.mxu0 %v561
    %1418 = vmatprep.subr.mxu0 0.0
    %1419 = vmatpush1.msra.mxu0 0.0
    %1420 = vmatprep.subr.mxu0 0.0
    %1421 = vmatpush1.msra.mxu0 0.0
    %1422 = vmatprep.subr.mxu0 0.0
    %1423 = vmatpush1.msra.mxu0 0.0
    %1424 = vmatprep.subr.mxu0 0.0
    %1425 = vmatpush1.msra.mxu0 0.0
    %1426 = vmatprep.subr.mxu0 0.0
    %1427 = vmatpush1.msra.mxu0 0.0
    %1428 = vmatprep.subr.mxu0 0.0
    %1429 = vmatpush1.msra.mxu0 0.0
    %1430 = vmatprep.subr.mxu0 0.0
    %1431 = vmatpush1.msra.mxu0 0.0
    %1432 = vmatprep.subr.mxu0 0.0
    %1433 = vmatpush1.msra.mxu0 0.0
    %1434 = vmatprep.subr.mxu0 0.0
    %1435 = vmatpush1.msra.mxu0 0.0
    %1436 = vmatprep.subr.mxu0 0.0
    %1437 = vmatpush1.msra.mxu0 0.0
    %1438 = vmatprep.subr.mxu0 0.0
    %1439 = vmatpush1.msra.mxu0 0.0
    %1440 = vmatprep.subr.mxu0 0.0
    %1441 = vmatpush1.msra.mxu0 0.0
    %1442 = vmatprep.subr.mxu0 0.0
    %1443 = vmatpush1.msra.mxu0 0.0
    %1444 = vmatprep.subr.mxu0 0.0
    %1445 = vmatpush1.msra.mxu0 0.0
    %1446 = vmatprep.subr.mxu0 0.0
    %1447 = vmatpush1.msra.mxu0 0.0
    %1448 = vmatprep.subr.mxu0 0.0
    %1449 = vmatpush1.msra.mxu0 0.0
    %1450 = vmatprep.subr.mxu0 0.0
    %1451 = vmatpush1.msra.mxu0 0.0
    %1452 = vmatprep.subr.mxu0 0.0
    %1453 = vmatpush1.msra.mxu0 0.0
    %1454 = vmatprep.subr.mxu0 0.0
    %1455 = vmatpush1.msra.mxu0 0.0
    %1456 = vmatprep.subr.mxu0 0.0
    %1457 = vmatpush1.msra.mxu0 0.0
    %1458 = vmatprep.subr.mxu0 0.0
    %1459 = vmatpush1.msra.mxu0 0.0
    %1460 = vmatprep.subr.mxu0 0.0
    %1461 = vmatpush1.msra.mxu0 0.0
    %1462 = vmatprep.subr.mxu0 0.0
    %1463 = vmatpush1.msra.mxu0 0.0
    %1464 = vmatprep.subr.mxu0 0.0
    %1465 = vmatpush1.msra.mxu0 0.0
    %1466 = vmatprep.subr.mxu0 0.0
    %1467 = vmatpush1.msra.mxu0 0.0
    %1468 = vmatprep.subr.mxu0 0.0
    %1469 = vmatpush1.msra.mxu0 0.0
    %1470 = vmatprep.subr.mxu0 0.0
    %1471 = vmatpush1.msra.mxu0 0.0
    %1472 = vmatprep.subr.mxu0 0.0
    %1473 = vmatpush1.msra.mxu0 0.0
    %1474 = vmatprep.subr.mxu0 0.0
    %1475 = vmatpush1.msra.mxu0 0.0
    %1476 = vmatprep.subr.mxu0 0.0
    %1477 = vmatpush1.msra.mxu0 0.0
    %1478 = vmatprep.subr.mxu0 0.0
    %1479 = vmatpush1.msra.mxu0 0.0
    %1480 = vmatprep.mubr.f32.mxu0 0.0
    %1481 = vmatmul.mubr.f32.gmra.mrb[0].mxu0 %v1414
    %v1482 = vpop.f32.mrb[0].mxu0
    %v1483 = vadd.f32 0.0, %v1482
    %v1484 = vpop.f32.mrb[0].mxu0
    %1485 = vdwg.mxu0
    %v1487 = vsel %vm1324, %v1406, 0
    %1489 = vmatprep.subr.mxu0 0.0
    %1490 = vmatpush1.msra.mxu0 %v564
    %1491 = vmatprep.subr.mxu0 0.0
    %1492 = vmatpush1.msra.mxu0 0.0
    %1493 = vmatprep.subr.mxu0 0.0
    %1494 = vmatpush1.msra.mxu0 0.0
    %1495 = vmatprep.subr.mxu0 0.0
    %1496 = vmatpush1.msra.mxu0 0.0
    %1497 = vmatprep.subr.mxu0 0.0
    %1498 = vmatpush1.msra.mxu0 0.0
    %1499 = vmatprep.subr.mxu0 0.0
    %1500 = vmatpush1.msra.mxu0 0.0
    %1501 = vmatprep.subr.mxu0 0.0
    %1502 = vmatpush1.msra.mxu0 0.0
    %1503 = vmatprep.subr.mxu0 0.0
    %1504 = vmatpush1.msra.mxu0 0.0
    %1505 = vmatprep.subr.mxu0 0.0
    %1506 = vmatpush1.msra.mxu0 0.0
    %1507 = vmatprep.subr.mxu0 0.0
    %1508 = vmatpush1.msra.mxu0 0.0
    %1509 = vmatprep.subr.mxu0 0.0
    %1510 = vmatpush1.msra.mxu0 0.0
    %1511 = vmatprep.subr.mxu0 0.0
    %1512 = vmatpush1.msra.mxu0 0.0
    %1513 = vmatprep.subr.mxu0 0.0
    %1514 = vmatpush1.msra.mxu0 0.0
    %1515 = vmatprep.subr.mxu0 0.0
    %1516 = vmatpush1.msra.mxu0 0.0
    %1517 = vmatprep.subr.mxu0 0.0
    %1518 = vmatpush1.msra.mxu0 0.0
    %1519 = vmatprep.subr.mxu0 0.0
    %1520 = vmatpush1.msra.mxu0 0.0
    %1521 = vmatprep.subr.mxu0 0.0
    %1522 = vmatpush1.msra.mxu0 0.0
    %1523 = vmatprep.subr.mxu0 0.0
    %1524 = vmatpush1.msra.mxu0 0.0
    %1525 = vmatprep.subr.mxu0 0.0
    %1526 = vmatpush1.msra.mxu0 0.0
    %1527 = vmatprep.subr.mxu0 0.0
    %1528 = vmatpush1.msra.mxu0 0.0
    %1529 = vmatprep.subr.mxu0 0.0
    %1530 = vmatpush1.msra.mxu0 0.0
    %1531 = vmatprep.subr.mxu0 0.0
    %1532 = vmatpush1.msra.mxu0 0.0
    %1533 = vmatprep.subr.mxu0 0.0
    %1534 = vmatpush1.msra.mxu0 0.0
    %1535 = vmatprep.subr.mxu0 0.0
    %1536 = vmatpush1.msra.mxu0 0.0
    %1537 = vmatprep.subr.mxu0 0.0
    %1538 = vmatpush1.msra.mxu0 0.0
    %1539 = vmatprep.subr.mxu0 0.0
    %1540 = vmatpush1.msra.mxu0 0.0
    %1541 = vmatprep.subr.mxu0 0.0
    %1542 = vmatpush1.msra.mxu0 0.0
    %1543 = vmatprep.subr.mxu0 0.0
    %1544 = vmatpush1.msra.mxu0 0.0
    %1545 = vmatprep.subr.mxu0 0.0
    %1546 = vmatpush1.msra.mxu0 0.0
    %1547 = vmatprep.subr.mxu0 0.0
    %1548 = vmatpush1.msra.mxu0 0.0
    %1549 = vmatprep.subr.mxu0 0.0
    %1550 = vmatpush1.msra.mxu0 0.0
    %1551 = vmatprep.subr.mxu0 0.0
    %1552 = vmatpush1.msra.mxu0 0.0
    %1553 = vmatprep.mubr.f32.mxu0 0.0
    %1554 = vmatmul.mubr.f32.gmra.mrb[0].mxu0 %v1487
    %v1555 = vpop.f32.mrb[0].mxu0
    %v1556 = vadd.f32 0.0, %v1555
    %v1557 = vpop.f32.mrb[0].mxu0
    %1558 = vdwg.mxu0
    %v1560 = vsel %vm1324, %v1407, 0
    %1562 = vmatprep.subr.mxu0 0.0
    %1563 = vmatpush1.msra.mxu0 %v569
    %1564 = vmatprep.subr.mxu0 0.0
    %1565 = vmatpush1.msra.mxu0 0.0
    %1566 = vmatprep.subr.mxu0 0.0
    %1567 = vmatpush1.msra.mxu0 0.0
    %1568 = vmatprep.subr.mxu0 0.0
    %1569 = vmatpush1.msra.mxu0 0.0
    %1570 = vmatprep.subr.mxu0 0.0
    %1571 = vmatpush1.msra.mxu0 0.0
    %1572 = vmatprep.subr.mxu0 0.0
    %1573 = vmatpush1.msra.mxu0 0.0
    %1574 = vmatprep.subr.mxu0 0.0
    %1575 = vmatpush1.msra.mxu0 0.0
    %1576 = vmatprep.subr.mxu0 0.0
    %1577 = vmatpush1.msra.mxu0 0.0
    %1578 = vmatprep.subr.mxu0 0.0
    %1579 = vmatpush1.msra.mxu0 0.0
    %1580 = vmatprep.subr.mxu0 0.0
    %1581 = vmatpush1.msra.mxu0 0.0
    %1582 = vmatprep.subr.mxu0 0.0
    %1583 = vmatpush1.msra.mxu0 0.0
    %1584 = vmatprep.subr.mxu0 0.0
    %1585 = vmatpush1.msra.mxu0 0.0
    %1586 = vmatprep.subr.mxu0 0.0
    %1587 = vmatpush1.msra.mxu0 0.0
    %1588 = vmatprep.subr.mxu0 0.0
    %1589 = vmatpush1.msra.mxu0 0.0
    %1590 = vmatprep.subr.mxu0 0.0
    %1591 = vmatpush1.msra.mxu0 0.0
    %1592 = vmatprep.subr.mxu0 0.0
    %1593 = vmatpush1.msra.mxu0 0.0
    %1594 = vmatprep.subr.mxu0 0.0
    %1595 = vmatpush1.msra.mxu0 0.0
    %1596 = vmatprep.subr.mxu0 0.0
    %1597 = vmatpush1.msra.mxu0 0.0
    %1598 = vmatprep.subr.mxu0 0.0
    %1599 = vmatpush1.msra.mxu0 0.0
    %1600 = vmatprep.subr.mxu0 0.0
    %1601 = vmatpush1.msra.mxu0 0.0
    %1602 = vmatprep.subr.mxu0 0.0
    %1603 = vmatpush1.msra.mxu0 0.0
    %1604 = vmatprep.subr.mxu0 0.0
    %1605 = vmatpush1.msra.mxu0 0.0
    %1606 = vmatprep.subr.mxu0 0.0
    %1607 = vmatpush1.msra.mxu0 0.0
    %1608 = vmatprep.subr.mxu0 0.0
    %1609 = vmatpush1.msra.mxu0 0.0
    %1610 = vmatprep.subr.mxu0 0.0
    %1611 = vmatpush1.msra.mxu0 0.0
    %1612 = vmatprep.subr.mxu0 0.0
    %1613 = vmatpush1.msra.mxu0 0.0
    %1614 = vmatprep.subr.mxu0 0.0
    %1615 = vmatpush1.msra.mxu0 0.0
    %1616 = vmatprep.subr.mxu0 0.0
    %1617 = vmatpush1.msra.mxu0 0.0
    %1618 = vmatprep.subr.mxu0 0.0
    %1619 = vmatpush1.msra.mxu0 0.0
    %1620 = vmatprep.subr.mxu0 0.0
    %1621 = vmatpush1.msra.mxu0 0.0
    %1622 = vmatprep.subr.mxu0 0.0
    %1623 = vmatpush1.msra.mxu0 0.0
    %1624 = vmatprep.subr.mxu0 0.0
    %1625 = vmatpush1.msra.mxu0 0.0
    %1626 = vmatprep.mubr.f32.mxu0 0.0
    %1627 = vmatmul.mubr.f32.gmra.mrb[0].mxu0 %v1560
    %v1628 = vpop.f32.mrb[0].mxu0
    %v1629 = vadd.f32 0.0, %v1628
    %v1630 = vpop.f32.mrb[0].mxu0
    %1631 = vdwg.mxu0
    %v1633 = vsel %vm1324, %v1408, 0
    %1635 = vmatprep.subr.mxu0 0.0
    %1636 = vmatpush1.msra.mxu0 %v572
    %1637 = vmatprep.subr.mxu0 0.0
    %1638 = vmatpush1.msra.mxu0 0.0
    %1639 = vmatprep.subr.mxu0 0.0
    %1640 = vmatpush1.msra.mxu0 0.0
    %1641 = vmatprep.subr.mxu0 0.0
    %1642 = vmatpush1.msra.mxu0 0.0
    %1643 = vmatprep.subr.mxu0 0.0
    %1644 = vmatpush1.msra.mxu0 0.0
    %1645 = vmatprep.subr.mxu0 0.0
    %1646 = vmatpush1.msra.mxu0 0.0
    %1647 = vmatprep.subr.mxu0 0.0
    %1648 = vmatpush1.msra.mxu0 0.0
    %1649 = vmatprep.subr.mxu0 0.0
    %1650 = vmatpush1.msra.mxu0 0.0
    %1651 = vmatprep.subr.mxu0 0.0
    %1652 = vmatpush1.msra.mxu0 0.0
    %1653 = vmatprep.subr.mxu0 0.0
    %1654 = vmatpush1.msra.mxu0 0.0
    %1655 = vmatprep.subr.mxu0 0.0
    %1656 = vmatpush1.msra.mxu0 0.0
    %1657 = vmatprep.subr.mxu0 0.0
    %1658 = vmatpush1.msra.mxu0 0.0
    %1659 = vmatprep.subr.mxu0 0.0
    %1660 = vmatpush1.msra.mxu0 0.0
    %1661 = vmatprep.subr.mxu0 0.0
    %1662 = vmatpush1.msra.mxu0 0.0
    %1663 = vmatprep.subr.mxu0 0.0
    %1664 = vmatpush1.msra.mxu0 0.0
    %1665 = vmatprep.subr.mxu0 0.0
    %1666 = vmatpush1.msra.mxu0 0.0
    %1667 = vmatprep.subr.mxu0 0.0
    %1668 = vmatpush1.msra.mxu0 0.0
    %1669 = vmatprep.subr.mxu0 0.0
    %1670 = vmatpush1.msra.mxu0 0.0
    %1671 = vmatprep.subr.mxu0 0.0
    %1672 = vmatpush1.msra.mxu0 0.0
    %1673 = vmatprep.subr.mxu0 0.0
    %1674 = vmatpush1.msra.mxu0 0.0
    %1675 = vmatprep.subr.mxu0 0.0
    %1676 = vmatpush1.msra.mxu0 0.0
    %1677 = vmatprep.subr.mxu0 0.0
    %1678 = vmatpush1.msra.mxu0 0.0
    %1679 = vmatprep.subr.mxu0 0.0
    %1680 = vmatpush1.msra.mxu0 0.0
    %1681 = vmatprep.subr.mxu0 0.0
    %1682 = vmatpush1.msra.mxu0 0.0
    %1683 = vmatprep.subr.mxu0 0.0
    %1684 = vmatpush1.msra.mxu0 0.0
    %1685 = vmatprep.subr.mxu0 0.0
    %1686 = vmatpush1.msra.mxu0 0.0
    %1687 = vmatprep.subr.mxu0 0.0
    %1688 = vmatpush1.msra.mxu0 0.0
    %1689 = vmatprep.subr.mxu0 0.0
    %1690 = vmatpush1.msra.mxu0 0.0
    %1691 = vmatprep.subr.mxu0 0.0
    %1692 = vmatpush1.msra.mxu0 0.0
    %1693 = vmatprep.subr.mxu0 0.0
    %1694 = vmatpush1.msra.mxu0 0.0
    %1695 = vmatprep.subr.mxu0 0.0
    %1696 = vmatpush1.msra.mxu0 0.0
    %1697 = vmatprep.subr.mxu0 0.0
    %1698 = vmatpush1.msra.mxu0 0.0
    %1699 = vmatprep.mubr.f32.mxu0 0.0
    %1700 = vmatmul.mubr.f32.gmra.mrb[0].mxu0 %v1633
    %v1701 = vpop.f32.mrb[0].mxu0
    %v1702 = vadd.f32 0.0, %v1701
    %v1703 = vpop.f32.mrb[0].mxu0
    %1704 = vdwg.mxu0
    %v1706 = vsel %vm1324, %v1409, 0
    %1708 = vmatprep.subr.mxu0 0.0
    %1709 = vmatpush1.msra.mxu0 %v577
    %1710 = vmatprep.subr.mxu0 0.0
    %1711 = vmatpush1.msra.mxu0 0.0
    %1712 = vmatprep.subr.mxu0 0.0
    %1713 = vmatpush1.msra.mxu0 0.0
    %1714 = vmatprep.subr.mxu0 0.0
    %1715 = vmatpush1.msra.mxu0 0.0
    %1716 = vmatprep.subr.mxu0 0.0
    %1717 = vmatpush1.msra.mxu0 0.0
    %1718 = vmatprep.subr.mxu0 0.0
    %1719 = vmatpush1.msra.mxu0 0.0
    %1720 = vmatprep.subr.mxu0 0.0
    %1721 = vmatpush1.msra.mxu0 0.0
    %1722 = vmatprep.subr.mxu0 0.0
    %1723 = vmatpush1.msra.mxu0 0.0
    %1724 = vmatprep.subr.mxu0 0.0
    %1725 = vmatpush1.msra.mxu0 0.0
    %1726 = vmatprep.subr.mxu0 0.0
    %1727 = vmatpush1.msra.mxu0 0.0
    %1728 = vmatprep.subr.mxu0 0.0
    %1729 = vmatpush1.msra.mxu0 0.0
    %1730 = vmatprep.subr.mxu0 0.0
    %1731 = vmatpush1.msra.mxu0 0.0
    %1732 = vmatprep.subr.mxu0 0.0
    %1733 = vmatpush1.msra.mxu0 0.0
    %1734 = vmatprep.subr.mxu0 0.0
    %1735 = vmatpush1.msra.mxu0 0.0
    %1736 = vmatprep.subr.mxu0 0.0
    %1737 = vmatpush1.msra.mxu0 0.0
    %1738 = vmatprep.subr.mxu0 0.0
    %1739 = vmatpush1.msra.mxu0 0.0
    %1740 = vmatprep.subr.mxu0 0.0
    %1741 = vmatpush1.msra.mxu0 0.0
    %1742 = vmatprep.subr.mxu0 0.0
    %1743 = vmatpush1.msra.mxu0 0.0
    %1744 = vmatprep.subr.mxu0 0.0
    %1745 = vmatpush1.msra.mxu0 0.0
    %1746 = vmatprep.subr.mxu0 0.0
    %1747 = vmatpush1.msra.mxu0 0.0
    %1748 = vmatprep.subr.mxu0 0.0
    %1749 = vmatpush1.msra.mxu0 0.0
    %1750 = vmatprep.subr.mxu0 0.0
    %1751 = vmatpush1.msra.mxu0 0.0
    %1752 = vmatprep.subr.mxu0 0.0
    %1753 = vmatpush1.msra.mxu0 0.0
    %1754 = vmatprep.subr.mxu0 0.0
    %1755 = vmatpush1.msra.mxu0 0.0
    %1756 = vmatprep.subr.mxu0 0.0
    %1757 = vmatpush1.msra.mxu0 0.0
    %1758 = vmatprep.subr.mxu0 0.0
    %1759 = vmatpush1.msra.mxu0 0.0
    %1760 = vmatprep.subr.mxu0 0.0
    %1761 = vmatpush1.msra.mxu0 0.0
    %1762 = vmatprep.subr.mxu0 0.0
    %1763 = vmatpush1.msra.mxu0 0.0
    %1764 = vmatprep.subr.mxu0 0.0
    %1765 = vmatpush1.msra.mxu0 0.0
    %1766 = vmatprep.subr.mxu0 0.0
    %1767 = vmatpush1.msra.mxu0 0.0
    %1768 = vmatprep.subr.mxu0 0.0
    %1769 = vmatpush1.msra.mxu0 0.0
    %1770 = vmatprep.subr.mxu0 0.0
    %1771 = vmatpush1.msra.mxu0 0.0
    %1772 = vmatprep.mubr.f32.mxu0 0.0
    %1773 = vmatmul.mubr.f32.gmra.mrb[0].mxu0 %v1706
    %v1774 = vpop.f32.mrb[0].mxu0
    %v1775 = vadd.f32 0.0, %v1774
    %v1776 = vpop.f32.mrb[0].mxu0
    %1777 = vdwg.mxu0
    %v1779 = vsel %vm1324, %v1410, 0
    %1781 = vmatprep.subr.mxu0 0.0
    %1782 = vmatpush1.msra.mxu0 %v580
    %1783 = vmatprep.subr.mxu0 0.0
    %1784 = vmatpush1.msra.mxu0 0.0
    %1785 = vmatprep.subr.mxu0 0.0
    %1786 = vmatpush1.msra.mxu0 0.0
    %1787 = vmatprep.subr.mxu0 0.0
    %1788 = vmatpush1.msra.mxu0 0.0
    %1789 = vmatprep.subr.mxu0 0.0
    %1790 = vmatpush1.msra.mxu0 0.0
    %1791 = vmatprep.subr.mxu0 0.0
    %1792 = vmatpush1.msra.mxu0 0.0
    %1793 = vmatprep.subr.mxu0 0.0
    %1794 = vmatpush1.msra.mxu0 0.0
    %1795 = vmatprep.subr.mxu0 0.0
    %1796 = vmatpush1.msra.mxu0 0.0
    %1797 = vmatprep.subr.mxu0 0.0
    %1798 = vmatpush1.msra.mxu0 0.0
    %1799 = vmatprep.subr.mxu0 0.0
    %1800 = vmatpush1.msra.mxu0 0.0
    %1801 = vmatprep.subr.mxu0 0.0
    %1802 = vmatpush1.msra.mxu0 0.0
    %1803 = vmatprep.subr.mxu0 0.0
    %1804 = vmatpush1.msra.mxu0 0.0
    %1805 = vmatprep.subr.mxu0 0.0
    %1806 = vmatpush1.msra.mxu0 0.0
    %1807 = vmatprep.subr.mxu0 0.0
    %1808 = vmatpush1.msra.mxu0 0.0
    %1809 = vmatprep.subr.mxu0 0.0
    %1810 = vmatpush1.msra.mxu0 0.0
    %1811 = vmatprep.subr.mxu0 0.0
    %1812 = vmatpush1.msra.mxu0 0.0
    %1813 = vmatprep.subr.mxu0 0.0
    %1814 = vmatpush1.msra.mxu0 0.0
    %1815 = vmatprep.subr.mxu0 0.0
    %1816 = vmatpush1.msra.mxu0 0.0
    %1817 = vmatprep.subr.mxu0 0.0
    %1818 = vmatpush1.msra.mxu0 0.0
    %1819 = vmatprep.subr.mxu0 0.0
    %1820 = vmatpush1.msra.mxu0 0.0
    %1821 = vmatprep.subr.mxu0 0.0
    %1822 = vmatpush1.msra.mxu0 0.0
    %1823 = vmatprep.subr.mxu0 0.0
    %1824 = vmatpush1.msra.mxu0 0.0
    %1825 = vmatprep.subr.mxu0 0.0
    %1826 = vmatpush1.msra.mxu0 0.0
    %1827 = vmatprep.subr.mxu0 0.0
    %1828 = vmatpush1.msra.mxu0 0.0
    %1829 = vmatprep.subr.mxu0 0.0
    %1830 = vmatpush1.msra.mxu0 0.0
    %1831 = vmatprep.subr.mxu0 0.0
    %1832 = vmatpush1.msra.mxu0 0.0
    %1833 = vmatprep.subr.mxu0 0.0
    %1834 = vmatpush1.msra.mxu0 0.0
    %1835 = vmatprep.subr.mxu0 0.0
    %1836 = vmatpush1.msra.mxu0 0.0
    %1837 = vmatprep.subr.mxu0 0.0
    %1838 = vmatpush1.msra.mxu0 0.0
    %1839 = vmatprep.subr.mxu0 0.0
    %1840 = vmatpush1.msra.mxu0 0.0
    %1841 = vmatprep.subr.mxu0 0.0
    %1842 = vmatpush1.msra.mxu0 0.0
    %1843 = vmatprep.subr.mxu0 0.0
    %1844 = vmatpush1.msra.mxu0 0.0
    %1845 = vmatprep.mubr.f32.mxu0 0.0
    %1846 = vmatmul.mubr.f32.gmra.mrb[0].mxu0 %v1779
    %v1847 = vpop.f32.mrb[0].mxu0
    %v1848 = vadd.f32 0.0, %v1847
    %v1849 = vpop.f32.mrb[0].mxu0
    %1850 = vdwg.mxu0
    %v1852 = vsel %vm1324, %v1411, 0
    %1854 = vmatprep.subr.mxu0 0.0
    %1855 = vmatpush1.msra.mxu0 %v585
    %1856 = vmatprep.subr.mxu0 0.0
    %1857 = vmatpush1.msra.mxu0 0.0
    %1858 = vmatprep.subr.mxu0 0.0
    %1859 = vmatpush1.msra.mxu0 0.0
    %1860 = vmatprep.subr.mxu0 0.0
    %1861 = vmatpush1.msra.mxu0 0.0
    %1862 = vmatprep.subr.mxu0 0.0
    %1863 = vmatpush1.msra.mxu0 0.0
    %1864 = vmatprep.subr.mxu0 0.0
    %1865 = vmatpush1.msra.mxu0 0.0
    %1866 = vmatprep.subr.mxu0 0.0
    %1867 = vmatpush1.msra.mxu0 0.0
    %1868 = vmatprep.subr.mxu0 0.0
    %1869 = vmatpush1.msra.mxu0 0.0
    %1870 = vmatprep.subr.mxu0 0.0
    %1871 = vmatpush1.msra.mxu0 0.0
    %1872 = vmatprep.subr.mxu0 0.0
    %1873 = vmatpush1.msra.mxu0 0.0
    %1874 = vmatprep.subr.mxu0 0.0
    %1875 = vmatpush1.msra.mxu0 0.0
    %1876 = vmatprep.subr.mxu0 0.0
    %1877 = vmatpush1.msra.mxu0 0.0
    %1878 = vmatprep.subr.mxu0 0.0
    %1879 = vmatpush1.msra.mxu0 0.0
    %1880 = vmatprep.subr.mxu0 0.0
    %1881 = vmatpush1.msra.mxu0 0.0
    %1882 = vmatprep.subr.mxu0 0.0
    %1883 = vmatpush1.msra.mxu0 0.0
    %1884 = vmatprep.subr.mxu0 0.0
    %1885 = vmatpush1.msra.mxu0 0.0
    %1886 = vmatprep.subr.mxu0 0.0
    %1887 = vmatpush1.msra.mxu0 0.0
    %1888 = vmatprep.subr.mxu0 0.0
    %1889 = vmatpush1.msra.mxu0 0.0
    %1890 = vmatprep.subr.mxu0 0.0
    %1891 = vmatpush1.msra.mxu0 0.0
    %1892 = vmatprep.subr.mxu0 0.0
    %1893 = vmatpush1.msra.mxu0 0.0
    %1894 = vmatprep.subr.mxu0 0.0
    %1895 = vmatpush1.msra.mxu0 0.0
    %1896 = vmatprep.subr.mxu0 0.0
    %1897 = vmatpush1.msra.mxu0 0.0
    %1898 = vmatprep.subr.mxu0 0.0
    %1899 = vmatpush1.msra.mxu0 0.0
    %1900 = vmatprep.subr.mxu0 0.0
    %1901 = vmatpush1.msra.mxu0 0.0
    %1902 = vmatprep.subr.mxu0 0.0
    %1903 = vmatpush1.msra.mxu0 0.0
    %1904 = vmatprep.subr.mxu0 0.0
    %1905 = vmatpush1.msra.mxu0 0.0
    %1906 = vmatprep.subr.mxu0 0.0
    %1907 = vmatpush1.msra.mxu0 0.0
    %1908 = vmatprep.subr.mxu0 0.0
    %1909 = vmatpush1.msra.mxu0 0.0
    %1910 = vmatprep.subr.mxu0 0.0
    %1911 = vmatpush1.msra.mxu0 0.0
    %1912 = vmatprep.subr.mxu0 0.0
    %1913 = vmatpush1.msra.mxu0 0.0
    %1914 = vmatprep.subr.mxu0 0.0
    %1915 = vmatpush1.msra.mxu0 0.0
    %1916 = vmatprep.subr.mxu0 0.0
    %1917 = vmatpush1.msra.mxu0 0.0
    %1918 = vmatprep.mubr.f32.mxu0 0.0
    %1919 = vmatmul.mubr.f32.gmra.mrb[0].mxu0 %v1852
    %v1920 = vpop.f32.mrb[0].mxu0
    %v1921 = vadd.f32 0.0, %v1920
    %v1922 = vpop.f32.mrb[0].mxu0
    %1923 = vdwg.mxu0
    %v1925 = vsel %vm1324, %v1412, 0
    %1927 = vmatprep.subr.mxu0 0.0
    %1928 = vmatpush1.msra.mxu0 %v588
    %1929 = vmatprep.subr.mxu0 0.0
    %1930 = vmatpush1.msra.mxu0 0.0
    %1931 = vmatprep.subr.mxu0 0.0
    %1932 = vmatpush1.msra.mxu0 0.0
    %1933 = vmatprep.subr.mxu0 0.0
    %1934 = vmatpush1.msra.mxu0 0.0
    %1935 = vmatprep.subr.mxu0 0.0
    %1936 = vmatpush1.msra.mxu0 0.0
    %1937 = vmatprep.subr.mxu0 0.0
    %1938 = vmatpush1.msra.mxu0 0.0
    %1939 = vmatprep.subr.mxu0 0.0
    %1940 = vmatpush1.msra.mxu0 0.0
    %1941 = vmatprep.subr.mxu0 0.0
    %1942 = vmatpush1.msra.mxu0 0.0
    %1943 = vmatprep.subr.mxu0 0.0
    %1944 = vmatpush1.msra.mxu0 0.0
    %1945 = vmatprep.subr.mxu0 0.0
    %1946 = vmatpush1.msra.mxu0 0.0
    %1947 = vmatprep.subr.mxu0 0.0
    %1948 = vmatpush1.msra.mxu0 0.0
    %1949 = vmatprep.subr.mxu0 0.0
    %1950 = vmatpush1.msra.mxu0 0.0
    %1951 = vmatprep.subr.mxu0 0.0
    %1952 = vmatpush1.msra.mxu0 0.0
    %1953 = vmatprep.subr.mxu0 0.0
    %1954 = vmatpush1.msra.mxu0 0.0
    %1955 = vmatprep.subr.mxu0 0.0
    %1956 = vmatpush1.msra.mxu0 0.0
    %1957 = vmatprep.subr.mxu0 0.0
    %1958 = vmatpush1.msra.mxu0 0.0
    %1959 = vmatprep.subr.mxu0 0.0
    %1960 = vmatpush1.msra.mxu0 0.0
    %1961 = vmatprep.subr.mxu0 0.0
    %1962 = vmatpush1.msra.mxu0 0.0
    %1963 = vmatprep.subr.mxu0 0.0
    %1964 = vmatpush1.msra.mxu0 0.0
    %1965 = vmatprep.subr.mxu0 0.0
    %1966 = vmatpush1.msra.mxu0 0.0
    %1967 = vmatprep.subr.mxu0 0.0
    %1968 = vmatpush1.msra.mxu0 0.0
    %1969 = vmatprep.subr.mxu0 0.0
    %1970 = vmatpush1.msra.mxu0 0.0
    %1971 = vmatprep.subr.mxu0 0.0
    %1972 = vmatpush1.msra.mxu0 0.0
    %1973 = vmatprep.subr.mxu0 0.0
    %1974 = vmatpush1.msra.mxu0 0.0
    %1975 = vmatprep.subr.mxu0 0.0
    %1976 = vmatpush1.msra.mxu0 0.0
    %1977 = vmatprep.subr.mxu0 0.0
    %1978 = vmatpush1.msra.mxu0 0.0
    %1979 = vmatprep.subr.mxu0 0.0
    %1980 = vmatpush1.msra.mxu0 0.0
    %1981 = vmatprep.subr.mxu0 0.0
    %1982 = vmatpush1.msra.mxu0 0.0
    %1983 = vmatprep.subr.mxu0 0.0
    %1984 = vmatpush1.msra.mxu0 0.0
    %1985 = vmatprep.subr.mxu0 0.0
    %1986 = vmatpush1.msra.mxu0 0.0
    %1987 = vmatprep.subr.mxu0 0.0
    %1988 = vmatpush1.msra.mxu0 0.0
    %1989 = vmatprep.subr.mxu0 0.0
    %1990 = vmatpush1.msra.mxu0 0.0
    %1991 = vmatprep.mubr.f32.mxu0 0.0
    %1992 = vmatmul.mubr.f32.gmra.mrb[0].mxu0 %v1925
    %v1993 = vpop.f32.mrb[0].mxu0
    %v1994 = vadd.f32 0.0, %v1993
    %v1995 = vpop.f32.mrb[0].mxu0
    %1996 = vdwg.mxu0
    %1997 = vrot.lane.b32.xlu0 %v488, 96
    %v1998 = vpop.permute.xlu0 %1997
    %1999 = vrot.lane.b32.xlu0 %v490, 96
    %v2000 = vpop.permute.xlu0 %1999
    %v2001 = vsel %vm651, %v1998, 0
    %v2003 = vsel %vm651, %v2000, 0
    %2005 = vmatprep.subr.mxu0 0.0
    %2006 = vmatpush1.xpose.msra.mxu0 %v2003
    %2007 = vmatprep.subr.mxu0 0.0
    %2008 = vmatpush1.xpose.msra.mxu0 0.0
    %2009 = vmatprep.subr.mxu0 0.0
    %2010 = vmatpush1.xpose.msra.mxu0 0.0
    %2011 = vmatprep.subr.mxu0 0.0
    %2012 = vmatpush1.xpose.msra.mxu0 0.0
    %2013 = vmatprep.subr.mxu0 0.0
    %2014 = vmatpush1.xpose.msra.mxu0 0.0
    %2015 = vmatprep.subr.mxu0 0.0
    %2016 = vmatpush1.xpose.msra.mxu0 0.0
    %2017 = vmatprep.subr.mxu0 0.0
    %2018 = vmatpush1.xpose.msra.mxu0 0.0
    %2019 = vmatprep.subr.mxu0 0.0
    %2020 = vmatpush1.xpose.msra.mxu0 0.0
    %2021 = vmatprep.subr.mxu0 0.0
    %2022 = vmatpush1.xpose.msra.mxu0 0.0
    %2023 = vmatprep.subr.mxu0 0.0
    %2024 = vmatpush1.xpose.msra.mxu0 0.0
    %2025 = vmatprep.subr.mxu0 0.0
    %2026 = vmatpush1.xpose.msra.mxu0 0.0
    %2027 = vmatprep.subr.mxu0 0.0
    %2028 = vmatpush1.xpose.msra.mxu0 0.0
    %2029 = vmatprep.subr.mxu0 0.0
    %2030 = vmatpush1.xpose.msra.mxu0 0.0
    %2031 = vmatprep.subr.mxu0 0.0
    %2032 = vmatpush1.xpose.msra.mxu0 0.0
    %2033 = vmatprep.subr.mxu0 0.0
    %2034 = vmatpush1.xpose.msra.mxu0 0.0
    %2035 = vmatprep.subr.mxu0 0.0
    %2036 = vmatpush1.xpose.msra.mxu0 0.0
    %2037 = vmatprep.subr.mxu0 0.0
    %2038 = vmatpush1.xpose.msra.mxu0 0.0
    %2039 = vmatprep.subr.mxu0 0.0
    %2040 = vmatpush1.xpose.msra.mxu0 0.0
    %2041 = vmatprep.subr.mxu0 0.0
    %2042 = vmatpush1.xpose.msra.mxu0 0.0
    %2043 = vmatprep.subr.mxu0 0.0
    %2044 = vmatpush1.xpose.msra.mxu0 0.0
    %2045 = vmatprep.subr.mxu0 0.0
    %2046 = vmatpush1.xpose.msra.mxu0 0.0
    %2047 = vmatprep.subr.mxu0 0.0
    %2048 = vmatpush1.xpose.msra.mxu0 0.0
    %2049 = vmatprep.subr.mxu0 0.0
    %2050 = vmatpush1.xpose.msra.mxu0 0.0
    %2051 = vmatprep.subr.mxu0 0.0
    %2052 = vmatpush1.xpose.msra.mxu0 0.0
    %2053 = vmatprep.subr.mxu0 0.0
    %2054 = vmatpush1.xpose.msra.mxu0 0.0
    %2055 = vmatprep.subr.mxu0 0.0
    %2056 = vmatpush1.xpose.msra.mxu0 0.0
    %2057 = vmatprep.subr.mxu0 0.0
    %2058 = vmatpush1.xpose.msra.mxu0 0.0
    %2059 = vmatprep.subr.mxu0 0.0
    %2060 = vmatpush1.xpose.msra.mxu0 0.0
    %2061 = vmatprep.subr.mxu0 0.0
    %2062 = vmatpush1.xpose.msra.mxu0 0.0
    %2063 = vmatprep.subr.mxu0 0.0
    %2064 = vmatpush1.xpose.msra.mxu0 0.0
    %2065 = vmatprep.subr.mxu0 0.0
    %2066 = vmatpush1.xpose.msra.mxu0 0.0
    %2067 = vmatprep.subr.mxu0 0.0
    %2068 = vmatpush1.xpose.msra.mxu0 0.0
    %2069 = vmatprep.mubr.f32.mxu0 0.0
    %2070 = vmatmul.mubr.f32.gmra.mrb[0].mxu0 %v2001
    %v2071 = vpop.f32.mrb[0].mxu0
    %v2072 = vadd.f32 0.0, %v2071
    %v2073 = vpop.f32.mrb[0].mxu0
    %2074 = vdwg.mxu0
    %2075 = vrot.lane.b32.xlu0 %v492, 96
    %v2076 = vpop.permute.xlu0 %2075
    %2077 = vrot.lane.b32.xlu0 %v494, 96
    %v2078 = vpop.permute.xlu0 %2077
    %v2079 = vsel %vm651, %v2076, 0
    %v2081 = vsel %vm651, %v2078, 0
    %2083 = vmatprep.subr.mxu0 0.0
    %2084 = vmatpush1.xpose.msra.mxu0 %v2081
    %2085 = vmatprep.subr.mxu0 0.0
    %2086 = vmatpush1.xpose.msra.mxu0 0.0
    %2087 = vmatprep.subr.mxu0 0.0
    %2088 = vmatpush1.xpose.msra.mxu0 0.0
    %2089 = vmatprep.subr.mxu0 0.0
    %2090 = vmatpush1.xpose.msra.mxu0 0.0
    %2091 = vmatprep.subr.mxu0 0.0
    %2092 = vmatpush1.xpose.msra.mxu0 0.0
    %2093 = vmatprep.subr.mxu0 0.0
    %2094 = vmatpush1.xpose.msra.mxu0 0.0
    %2095 = vmatprep.subr.mxu0 0.0
    %2096 = vmatpush1.xpose.msra.mxu0 0.0
    %2097 = vmatprep.subr.mxu0 0.0
    %2098 = vmatpush1.xpose.msra.mxu0 0.0
    %2099 = vmatprep.subr.mxu0 0.0
    %2100 = vmatpush1.xpose.msra.mxu0 0.0
    %2101 = vmatprep.subr.mxu0 0.0
    %2102 = vmatpush1.xpose.msra.mxu0 0.0
    %2103 = vmatprep.subr.mxu0 0.0
    %2104 = vmatpush1.xpose.msra.mxu0 0.0
    %2105 = vmatprep.subr.mxu0 0.0
    %2106 = vmatpush1.xpose.msra.mxu0 0.0
    %2107 = vmatprep.subr.mxu0 0.0
    %2108 = vmatpush1.xpose.msra.mxu0 0.0
    %2109 = vmatprep.subr.mxu0 0.0
    %2110 = vmatpush1.xpose.msra.mxu0 0.0
    %2111 = vmatprep.subr.mxu0 0.0
    %2112 = vmatpush1.xpose.msra.mxu0 0.0
    %2113 = vmatprep.subr.mxu0 0.0
    %2114 = vmatpush1.xpose.msra.mxu0 0.0
    %2115 = vmatprep.subr.mxu0 0.0
    %2116 = vmatpush1.xpose.msra.mxu0 0.0
    %2117 = vmatprep.subr.mxu0 0.0
    %2118 = vmatpush1.xpose.msra.mxu0 0.0
    %2119 = vmatprep.subr.mxu0 0.0
    %2120 = vmatpush1.xpose.msra.mxu0 0.0
    %2121 = vmatprep.subr.mxu0 0.0
    %2122 = vmatpush1.xpose.msra.mxu0 0.0
    %2123 = vmatprep.subr.mxu0 0.0
    %2124 = vmatpush1.xpose.msra.mxu0 0.0
    %2125 = vmatprep.subr.mxu0 0.0
    %2126 = vmatpush1.xpose.msra.mxu0 0.0
    %2127 = vmatprep.subr.mxu0 0.0
    %2128 = vmatpush1.xpose.msra.mxu0 0.0
    %2129 = vmatprep.subr.mxu0 0.0
    %2130 = vmatpush1.xpose.msra.mxu0 0.0
    %2131 = vmatprep.subr.mxu0 0.0
    %2132 = vmatpush1.xpose.msra.mxu0 0.0
    %2133 = vmatprep.subr.mxu0 0.0
    %2134 = vmatpush1.xpose.msra.mxu0 0.0
    %2135 = vmatprep.subr.mxu0 0.0
    %2136 = vmatpush1.xpose.msra.mxu0 0.0
    %2137 = vmatprep.subr.mxu0 0.0
    %2138 = vmatpush1.xpose.msra.mxu0 0.0
    %2139 = vmatprep.subr.mxu0 0.0
    %2140 = vmatpush1.xpose.msra.mxu0 0.0
    %2141 = vmatprep.subr.mxu0 0.0
    %2142 = vmatpush1.xpose.msra.mxu0 0.0
    %2143 = vmatprep.subr.mxu0 0.0
    %2144 = vmatpush1.xpose.msra.mxu0 0.0
    %2145 = vmatprep.subr.mxu0 0.0
    %2146 = vmatpush1.xpose.msra.mxu0 0.0
    %2147 = vmatprep.mubr.f32.mxu0 0.0
    %2148 = vmatmul.mubr.f32.gmra.mrb[0].mxu0 %v2079
    %v2149 = vpop.f32.mrb[0].mxu0
    %v2150 = vadd.f32 0.0, %v2149
    %v2151 = vpop.f32.mrb[0].mxu0
    %2152 = vdwg.mxu0
    %2153 = vrot.lane.b32.xlu0 %v498, 96
    %v2154 = vpop.permute.xlu0 %2153
    %2155 = vrot.lane.b32.xlu0 %v500, 96
    %v2156 = vpop.permute.xlu0 %2155
    %v2157 = vsel %vm651, %v2154, 0
    %v2159 = vsel %vm651, %v2156, 0
    %2161 = vmatprep.subr.mxu0 0.0
    %2162 = vmatpush1.xpose.msra.mxu0 %v2159
    %2163 = vmatprep.subr.mxu0 0.0
    %2164 = vmatpush1.xpose.msra.mxu0 0.0
    %2165 = vmatprep.subr.mxu0 0.0
    %2166 = vmatpush1.xpose.msra.mxu0 0.0
    %2167 = vmatprep.subr.mxu0 0.0
    %2168 = vmatpush1.xpose.msra.mxu0 0.0
    %2169 = vmatprep.subr.mxu0 0.0
    %2170 = vmatpush1.xpose.msra.mxu0 0.0
    %2171 = vmatprep.subr.mxu0 0.0
    %2172 = vmatpush1.xpose.msra.mxu0 0.0
    %2173 = vmatprep.subr.mxu0 0.0
    %2174 = vmatpush1.xpose.msra.mxu0 0.0
    %2175 = vmatprep.subr.mxu0 0.0
    %2176 = vmatpush1.xpose.msra.mxu0 0.0
    %2177 = vmatprep.subr.mxu0 0.0
    %2178 = vmatpush1.xpose.msra.mxu0 0.0
    %2179 = vmatprep.subr.mxu0 0.0
    %2180 = vmatpush1.xpose.msra.mxu0 0.0
    %2181 = vmatprep.subr.mxu0 0.0
    %2182 = vmatpush1.xpose.msra.mxu0 0.0
    %2183 = vmatprep.subr.mxu0 0.0
    %2184 = vmatpush1.xpose.msra.mxu0 0.0
    %2185 = vmatprep.subr.mxu0 0.0
    %2186 = vmatpush1.xpose.msra.mxu0 0.0
    %2187 = vmatprep.subr.mxu0 0.0
    %2188 = vmatpush1.xpose.msra.mxu0 0.0
    %2189 = vmatprep.subr.mxu0 0.0
    %2190 = vmatpush1.xpose.msra.mxu0 0.0
    %2191 = vmatprep.subr.mxu0 0.0
    %2192 = vmatpush1.xpose.msra.mxu0 0.0
    %2193 = vmatprep.subr.mxu0 0.0
    %2194 = vmatpush1.xpose.msra.mxu0 0.0
    %2195 = vmatprep.subr.mxu0 0.0
    %2196 = vmatpush1.xpose.msra.mxu0 0.0
    %2197 = vmatprep.subr.mxu0 0.0
    %2198 = vmatpush1.xpose.msra.mxu0 0.0
    %2199 = vmatprep.subr.mxu0 0.0
    %2200 = vmatpush1.xpose.msra.mxu0 0.0
    %2201 = vmatprep.subr.mxu0 0.0
    %2202 = vmatpush1.xpose.msra.mxu0 0.0
    %2203 = vmatprep.subr.mxu0 0.0
    %2204 = vmatpush1.xpose.msra.mxu0 0.0
    %2205 = vmatprep.subr.mxu0 0.0
    %2206 = vmatpush1.xpose.msra.mxu0 0.0
    %2207 = vmatprep.subr.mxu0 0.0
    %2208 = vmatpush1.xpose.msra.mxu0 0.0
    %2209 = vmatprep.subr.mxu0 0.0
    %2210 = vmatpush1.xpose.msra.mxu0 0.0
    %2211 = vmatprep.subr.mxu0 0.0
    %2212 = vmatpush1.xpose.msra.mxu0 0.0
    %2213 = vmatprep.subr.mxu0 0.0
    %2214 = vmatpush1.xpose.msra.mxu0 0.0
    %2215 = vmatprep.subr.mxu0 0.0
    %2216 = vmatpush1.xpose.msra.mxu0 0.0
    %2217 = vmatprep.subr.mxu0 0.0
    %2218 = vmatpush1.xpose.msra.mxu0 0.0
    %2219 = vmatprep.subr.mxu0 0.0
    %2220 = vmatpush1.xpose.msra.mxu0 0.0
    %2221 = vmatprep.subr.mxu0 0.0
    %2222 = vmatpush1.xpose.msra.mxu0 0.0
    %2223 = vmatprep.subr.mxu0 0.0
    %2224 = vmatpush1.xpose.msra.mxu0 0.0
    %2225 = vmatprep.mubr.f32.mxu0 0.0
    %2226 = vmatmul.mubr.f32.gmra.mrb[0].mxu0 %v2157
    %v2227 = vpop.f32.mrb[0].mxu0
    %v2228 = vadd.f32 0.0, %v2227
    %v2229 = vpop.f32.mrb[0].mxu0
    %2230 = vdwg.mxu0
    %2231 = vrot.lane.b32.xlu0 %v502, 96
    %v2232 = vpop.permute.xlu0 %2231
    %2233 = vrot.lane.b32.xlu0 %v504, 96
    %v2234 = vpop.permute.xlu0 %2233
    %v2235 = vsel %vm651, %v2232, 0
    %v2237 = vsel %vm651, %v2234, 0
    %2239 = vmatprep.subr.mxu0 0.0
    %2240 = vmatpush1.xpose.msra.mxu0 %v2237
    %2241 = vmatprep.subr.mxu0 0.0
    %2242 = vmatpush1.xpose.msra.mxu0 0.0
    %2243 = vmatprep.subr.mxu0 0.0
    %2244 = vmatpush1.xpose.msra.mxu0 0.0
    %2245 = vmatprep.subr.mxu0 0.0
    %2246 = vmatpush1.xpose.msra.mxu0 0.0
    %2247 = vmatprep.subr.mxu0 0.0
    %2248 = vmatpush1.xpose.msra.mxu0 0.0
    %2249 = vmatprep.subr.mxu0 0.0
    %2250 = vmatpush1.xpose.msra.mxu0 0.0
    %2251 = vmatprep.subr.mxu0 0.0
    %2252 = vmatpush1.xpose.msra.mxu0 0.0
    %2253 = vmatprep.subr.mxu0 0.0
    %2254 = vmatpush1.xpose.msra.mxu0 0.0
    %2255 = vmatprep.subr.mxu0 0.0
    %2256 = vmatpush1.xpose.msra.mxu0 0.0
    %2257 = vmatprep.subr.mxu0 0.0
    %2258 = vmatpush1.xpose.msra.mxu0 0.0
    %2259 = vmatprep.subr.mxu0 0.0
    %2260 = vmatpush1.xpose.msra.mxu0 0.0
    %2261 = vmatprep.subr.mxu0 0.0
    %2262 = vmatpush1.xpose.msra.mxu0 0.0
    %2263 = vmatprep.subr.mxu0 0.0
    %2264 = vmatpush1.xpose.msra.mxu0 0.0
    %2265 = vmatprep.subr.mxu0 0.0
    %2266 = vmatpush1.xpose.msra.mxu0 0.0
    %2267 = vmatprep.subr.mxu0 0.0
    %2268 = vmatpush1.xpose.msra.mxu0 0.0
    %2269 = vmatprep.subr.mxu0 0.0
    %2270 = vmatpush1.xpose.msra.mxu0 0.0
    %2271 = vmatprep.subr.mxu0 0.0
    %2272 = vmatpush1.xpose.msra.mxu0 0.0
    %2273 = vmatprep.subr.mxu0 0.0
    %2274 = vmatpush1.xpose.msra.mxu0 0.0
    %2275 = vmatprep.subr.mxu0 0.0
    %2276 = vmatpush1.xpose.msra.mxu0 0.0
    %2277 = vmatprep.subr.mxu0 0.0
    %2278 = vmatpush1.xpose.msra.mxu0 0.0
    %2279 = vmatprep.subr.mxu0 0.0
    %2280 = vmatpush1.xpose.msra.mxu0 0.0
    %2281 = vmatprep.subr.mxu0 0.0
    %2282 = vmatpush1.xpose.msra.mxu0 0.0
    %2283 = vmatprep.subr.mxu0 0.0
    %2284 = vmatpush1.xpose.msra.mxu0 0.0
    %2285 = vmatprep.subr.mxu0 0.0
    %2286 = vmatpush1.xpose.msra.mxu0 0.0
    %2287 = vmatprep.subr.mxu0 0.0
    %2288 = vmatpush1.xpose.msra.mxu0 0.0
    %2289 = vmatprep.subr.mxu0 0.0
    %2290 = vmatpush1.xpose.msra.mxu0 0.0
    %2291 = vmatprep.subr.mxu0 0.0
    %2292 = vmatpush1.xpose.msra.mxu0 0.0
    %2293 = vmatprep.subr.mxu0 0.0
    %2294 = vmatpush1.xpose.msra.mxu0 0.0
    %2295 = vmatprep.subr.mxu0 0.0
    %2296 = vmatpush1.xpose.msra.mxu0 0.0
    %2297 = vmatprep.subr.mxu0 0.0
    %2298 = vmatpush1.xpose.msra.mxu0 0.0
    %2299 = vmatprep.subr.mxu0 0.0
    %2300 = vmatpush1.xpose.msra.mxu0 0.0
    %2301 = vmatprep.subr.mxu0 0.0
    %2302 = vmatpush1.xpose.msra.mxu0 0.0
    %2303 = vmatprep.mubr.f32.mxu0 0.0
    %2304 = vmatmul.mubr.f32.gmra.mrb[0].mxu0 %v2235
    %v2305 = vpop.f32.mrb[0].mxu0
    %v2306 = vadd.f32 0.0, %v2305
    %v2307 = vpop.f32.mrb[0].mxu0
    %2308 = vdwg.mxu0
    %2309 = vrot.lane.b32.xlu0 %v508, 96
    %v2310 = vpop.permute.xlu0 %2309
    %2311 = vrot.lane.b32.xlu0 %v510, 96
    %v2312 = vpop.permute.xlu0 %2311
    %v2313 = vsel %vm651, %v2310, 0
    %v2315 = vsel %vm651, %v2312, 0
    %2317 = vmatprep.subr.mxu0 0.0
    %2318 = vmatpush1.xpose.msra.mxu0 %v2315
    %2319 = vmatprep.subr.mxu0 0.0
    %2320 = vmatpush1.xpose.msra.mxu0 0.0
    %2321 = vmatprep.subr.mxu0 0.0
    %2322 = vmatpush1.xpose.msra.mxu0 0.0
    %2323 = vmatprep.subr.mxu0 0.0
    %2324 = vmatpush1.xpose.msra.mxu0 0.0
    %2325 = vmatprep.subr.mxu0 0.0
    %2326 = vmatpush1.xpose.msra.mxu0 0.0
    %2327 = vmatprep.subr.mxu0 0.0
    %2328 = vmatpush1.xpose.msra.mxu0 0.0
    %2329 = vmatprep.subr.mxu0 0.0
    %2330 = vmatpush1.xpose.msra.mxu0 0.0
    %2331 = vmatprep.subr.mxu0 0.0
    %2332 = vmatpush1.xpose.msra.mxu0 0.0
    %2333 = vmatprep.subr.mxu0 0.0
    %2334 = vmatpush1.xpose.msra.mxu0 0.0
    %2335 = vmatprep.subr.mxu0 0.0
    %2336 = vmatpush1.xpose.msra.mxu0 0.0
    %2337 = vmatprep.subr.mxu0 0.0
    %2338 = vmatpush1.xpose.msra.mxu0 0.0
    %2339 = vmatprep.subr.mxu0 0.0
    %2340 = vmatpush1.xpose.msra.mxu0 0.0
    %2341 = vmatprep.subr.mxu0 0.0
    %2342 = vmatpush1.xpose.msra.mxu0 0.0
    %2343 = vmatprep.subr.mxu0 0.0
    %2344 = vmatpush1.xpose.msra.mxu0 0.0
    %2345 = vmatprep.subr.mxu0 0.0
    %2346 = vmatpush1.xpose.msra.mxu0 0.0
    %2347 = vmatprep.subr.mxu0 0.0
    %2348 = vmatpush1.xpose.msra.mxu0 0.0
    %2349 = vmatprep.subr.mxu0 0.0
    %2350 = vmatpush1.xpose.msra.mxu0 0.0
    %2351 = vmatprep.subr.mxu0 0.0
    %2352 = vmatpush1.xpose.msra.mxu0 0.0
    %2353 = vmatprep.subr.mxu0 0.0
    %2354 = vmatpush1.xpose.msra.mxu0 0.0
    %2355 = vmatprep.subr.mxu0 0.0
    %2356 = vmatpush1.xpose.msra.mxu0 0.0
    %2357 = vmatprep.subr.mxu0 0.0
    %2358 = vmatpush1.xpose.msra.mxu0 0.0
    %2359 = vmatprep.subr.mxu0 0.0
    %2360 = vmatpush1.xpose.msra.mxu0 0.0
    %2361 = vmatprep.subr.mxu0 0.0
    %2362 = vmatpush1.xpose.msra.mxu0 0.0
    %2363 = vmatprep.subr.mxu0 0.0
    %2364 = vmatpush1.xpose.msra.mxu0 0.0
    %2365 = vmatprep.subr.mxu0 0.0
    %2366 = vmatpush1.xpose.msra.mxu0 0.0
    %2367 = vmatprep.subr.mxu0 0.0
    %2368 = vmatpush1.xpose.msra.mxu0 0.0
    %2369 = vmatprep.subr.mxu0 0.0
    %2370 = vmatpush1.xpose.msra.mxu0 0.0
    %2371 = vmatprep.subr.mxu0 0.0
    %2372 = vmatpush1.xpose.msra.mxu0 0.0
    %2373 = vmatprep.subr.mxu0 0.0
    %2374 = vmatpush1.xpose.msra.mxu0 0.0
    %2375 = vmatprep.subr.mxu0 0.0
    %2376 = vmatpush1.xpose.msra.mxu0 0.0
    %2377 = vmatprep.subr.mxu0 0.0
    %2378 = vmatpush1.xpose.msra.mxu0 0.0
    %2379 = vmatprep.subr.mxu0 0.0
    %2380 = vmatpush1.xpose.msra.mxu0 0.0
    %2381 = vmatprep.mubr.f32.mxu0 0.0
    %2382 = vmatmul.mubr.f32.gmra.mrb[0].mxu0 %v2313
    %v2383 = vpop.f32.mrb[0].mxu0
    %v2384 = vadd.f32 0.0, %v2383
    %v2385 = vpop.f32.mrb[0].mxu0
    %2386 = vdwg.mxu0
    %2387 = vrot.lane.b32.xlu0 %v512, 96
    %v2388 = vpop.permute.xlu0 %2387
    %2389 = vrot.lane.b32.xlu0 %v514, 96
    %v2390 = vpop.permute.xlu0 %2389
    %v2391 = vsel %vm651, %v2388, 0
    %v2393 = vsel %vm651, %v2390, 0
    %2395 = vmatprep.subr.mxu0 0.0
    %2396 = vmatpush1.xpose.msra.mxu0 %v2393
    %2397 = vmatprep.subr.mxu0 0.0
    %2398 = vmatpush1.xpose.msra.mxu0 0.0
    %2399 = vmatprep.subr.mxu0 0.0
    %2400 = vmatpush1.xpose.msra.mxu0 0.0
    %2401 = vmatprep.subr.mxu0 0.0
    %2402 = vmatpush1.xpose.msra.mxu0 0.0
    %2403 = vmatprep.subr.mxu0 0.0
    %2404 = vmatpush1.xpose.msra.mxu0 0.0
    %2405 = vmatprep.subr.mxu0 0.0
    %2406 = vmatpush1.xpose.msra.mxu0 0.0
    %2407 = vmatprep.subr.mxu0 0.0
    %2408 = vmatpush1.xpose.msra.mxu0 0.0
    %2409 = vmatprep.subr.mxu0 0.0
    %2410 = vmatpush1.xpose.msra.mxu0 0.0
    %2411 = vmatprep.subr.mxu0 0.0
    %2412 = vmatpush1.xpose.msra.mxu0 0.0
    %2413 = vmatprep.subr.mxu0 0.0
    %2414 = vmatpush1.xpose.msra.mxu0 0.0
    %2415 = vmatprep.subr.mxu0 0.0
    %2416 = vmatpush1.xpose.msra.mxu0 0.0
    %2417 = vmatprep.subr.mxu0 0.0
    %2418 = vmatpush1.xpose.msra.mxu0 0.0
    %2419 = vmatprep.subr.mxu0 0.0
    %2420 = vmatpush1.xpose.msra.mxu0 0.0
    %2421 = vmatprep.subr.mxu0 0.0
    %2422 = vmatpush1.xpose.msra.mxu0 0.0
    %2423 = vmatprep.subr.mxu0 0.0
    %2424 = vmatpush1.xpose.msra.mxu0 0.0
    %2425 = vmatprep.subr.mxu0 0.0
    %2426 = vmatpush1.xpose.msra.mxu0 0.0
    %2427 = vmatprep.subr.mxu0 0.0
    %2428 = vmatpush1.xpose.msra.mxu0 0.0
    %2429 = vmatprep.subr.mxu0 0.0
    %2430 = vmatpush1.xpose.msra.mxu0 0.0
    %2431 = vmatprep.subr.mxu0 0.0
    %2432 = vmatpush1.xpose.msra.mxu0 0.0
    %2433 = vmatprep.subr.mxu0 0.0
    %2434 = vmatpush1.xpose.msra.mxu0 0.0
    %2435 = vmatprep.subr.mxu0 0.0
    %2436 = vmatpush1.xpose.msra.mxu0 0.0
    %2437 = vmatprep.subr.mxu0 0.0
    %2438 = vmatpush1.xpose.msra.mxu0 0.0
    %2439 = vmatprep.subr.mxu0 0.0
    %2440 = vmatpush1.xpose.msra.mxu0 0.0
    %2441 = vmatprep.subr.mxu0 0.0
    %2442 = vmatpush1.xpose.msra.mxu0 0.0
    %2443 = vmatprep.subr.mxu0 0.0
    %2444 = vmatpush1.xpose.msra.mxu0 0.0
    %2445 = vmatprep.subr.mxu0 0.0
    %2446 = vmatpush1.xpose.msra.mxu0 0.0
    %2447 = vmatprep.subr.mxu0 0.0
    %2448 = vmatpush1.xpose.msra.mxu0 0.0
    %2449 = vmatprep.subr.mxu0 0.0
    %2450 = vmatpush1.xpose.msra.mxu0 0.0
    %2451 = vmatprep.subr.mxu0 0.0
    %2452 = vmatpush1.xpose.msra.mxu0 0.0
    %2453 = vmatprep.subr.mxu0 0.0
    %2454 = vmatpush1.xpose.msra.mxu0 0.0
    %2455 = vmatprep.subr.mxu0 0.0
    %2456 = vmatpush1.xpose.msra.mxu0 0.0
    %2457 = vmatprep.subr.mxu0 0.0
    %2458 = vmatpush1.xpose.msra.mxu0 0.0
    %2459 = vmatprep.mubr.f32.mxu0 0.0
    %2460 = vmatmul.mubr.f32.gmra.mrb[0].mxu0 %v2391
    %v2461 = vpop.f32.mrb[0].mxu0
    %v2462 = vadd.f32 0.0, %v2461
    %v2463 = vpop.f32.mrb[0].mxu0
    %2464 = vdwg.mxu0
    %2465 = vrot.lane.b32.xlu0 %v518, 96
    %v2466 = vpop.permute.xlu0 %2465
    %2467 = vrot.lane.b32.xlu0 %v520, 96
    %v2468 = vpop.permute.xlu0 %2467
    %v2469 = vsel %vm651, %v2466, 0
    %v2471 = vsel %vm651, %v2468, 0
    %2473 = vmatprep.subr.mxu0 0.0
    %2474 = vmatpush1.xpose.msra.mxu0 %v2471
    %2475 = vmatprep.subr.mxu0 0.0
    %2476 = vmatpush1.xpose.msra.mxu0 0.0
    %2477 = vmatprep.subr.mxu0 0.0
    %2478 = vmatpush1.xpose.msra.mxu0 0.0
    %2479 = vmatprep.subr.mxu0 0.0
    %2480 = vmatpush1.xpose.msra.mxu0 0.0
    %2481 = vmatprep.subr.mxu0 0.0
    %2482 = vmatpush1.xpose.msra.mxu0 0.0
    %2483 = vmatprep.subr.mxu0 0.0
    %2484 = vmatpush1.xpose.msra.mxu0 0.0
    %2485 = vmatprep.subr.mxu0 0.0
    %2486 = vmatpush1.xpose.msra.mxu0 0.0
    %2487 = vmatprep.subr.mxu0 0.0
    %2488 = vmatpush1.xpose.msra.mxu0 0.0
    %2489 = vmatprep.subr.mxu0 0.0
    %2490 = vmatpush1.xpose.msra.mxu0 0.0
    %2491 = vmatprep.subr.mxu0 0.0
    %2492 = vmatpush1.xpose.msra.mxu0 0.0
    %2493 = vmatprep.subr.mxu0 0.0
    %2494 = vmatpush1.xpose.msra.mxu0 0.0
    %2495 = vmatprep.subr.mxu0 0.0
    %2496 = vmatpush1.xpose.msra.mxu0 0.0
    %2497 = vmatprep.subr.mxu0 0.0
    %2498 = vmatpush1.xpose.msra.mxu0 0.0
    %2499 = vmatprep.subr.mxu0 0.0
    %2500 = vmatpush1.xpose.msra.mxu0 0.0
    %2501 = vmatprep.subr.mxu0 0.0
    %2502 = vmatpush1.xpose.msra.mxu0 0.0
    %2503 = vmatprep.subr.mxu0 0.0
    %2504 = vmatpush1.xpose.msra.mxu0 0.0
    %2505 = vmatprep.subr.mxu0 0.0
    %2506 = vmatpush1.xpose.msra.mxu0 0.0
    %2507 = vmatprep.subr.mxu0 0.0
    %2508 = vmatpush1.xpose.msra.mxu0 0.0
    %2509 = vmatprep.subr.mxu0 0.0
    %2510 = vmatpush1.xpose.msra.mxu0 0.0
    %2511 = vmatprep.subr.mxu0 0.0
    %2512 = vmatpush1.xpose.msra.mxu0 0.0
    %2513 = vmatprep.subr.mxu0 0.0
    %2514 = vmatpush1.xpose.msra.mxu0 0.0
    %2515 = vmatprep.subr.mxu0 0.0
    %2516 = vmatpush1.xpose.msra.mxu0 0.0
    %2517 = vmatprep.subr.mxu0 0.0
    %2518 = vmatpush1.xpose.msra.mxu0 0.0
    %2519 = vmatprep.subr.mxu0 0.0
    %2520 = vmatpush1.xpose.msra.mxu0 0.0
    %2521 = vmatprep.subr.mxu0 0.0
    %2522 = vmatpush1.xpose.msra.mxu0 0.0
    %2523 = vmatprep.subr.mxu0 0.0
    %2524 = vmatpush1.xpose.msra.mxu0 0.0
    %2525 = vmatprep.subr.mxu0 0.0
    %2526 = vmatpush1.xpose.msra.mxu0 0.0
    %2527 = vmatprep.subr.mxu0 0.0
    %2528 = vmatpush1.xpose.msra.mxu0 0.0
    %2529 = vmatprep.subr.mxu0 0.0
    %2530 = vmatpush1.xpose.msra.mxu0 0.0
    %2531 = vmatprep.subr.mxu0 0.0
    %2532 = vmatpush1.xpose.msra.mxu0 0.0
    %2533 = vmatprep.subr.mxu0 0.0
    %2534 = vmatpush1.xpose.msra.mxu0 0.0
    %2535 = vmatprep.subr.mxu0 0.0
    %2536 = vmatpush1.xpose.msra.mxu0 0.0
    %2537 = vmatprep.mubr.f32.mxu0 0.0
    %2538 = vmatmul.mubr.f32.gmra.mrb[0].mxu0 %v2469
    %v2539 = vpop.f32.mrb[0].mxu0
    %v2540 = vadd.f32 0.0, %v2539
    %v2541 = vpop.f32.mrb[0].mxu0
    %2542 = vdwg.mxu0
    %2543 = vrot.lane.b32.xlu0 %v522, 96
    %v2544 = vpop.permute.xlu0 %2543
    %2545 = vrot.lane.b32.xlu0 %v524, 96
    %v2546 = vpop.permute.xlu0 %2545
    %v2547 = vsel %vm651, %v2544, 0
    %v2549 = vsel %vm651, %v2546, 0
    %2551 = vmatprep.subr.mxu0 0.0
    %2552 = vmatpush1.xpose.msra.mxu0 %v2549
    %2553 = vmatprep.subr.mxu0 0.0
    %2554 = vmatpush1.xpose.msra.mxu0 0.0
    %2555 = vmatprep.subr.mxu0 0.0
    %2556 = vmatpush1.xpose.msra.mxu0 0.0
    %2557 = vmatprep.subr.mxu0 0.0
    %2558 = vmatpush1.xpose.msra.mxu0 0.0
    %2559 = vmatprep.subr.mxu0 0.0
    %2560 = vmatpush1.xpose.msra.mxu0 0.0
    %2561 = vmatprep.subr.mxu0 0.0
    %2562 = vmatpush1.xpose.msra.mxu0 0.0
    %2563 = vmatprep.subr.mxu0 0.0
    %2564 = vmatpush1.xpose.msra.mxu0 0.0
    %2565 = vmatprep.subr.mxu0 0.0
    %2566 = vmatpush1.xpose.msra.mxu0 0.0
    %2567 = vmatprep.subr.mxu0 0.0
    %2568 = vmatpush1.xpose.msra.mxu0 0.0
    %2569 = vmatprep.subr.mxu0 0.0
    %2570 = vmatpush1.xpose.msra.mxu0 0.0
    %2571 = vmatprep.subr.mxu0 0.0
    %2572 = vmatpush1.xpose.msra.mxu0 0.0
    %2573 = vmatprep.subr.mxu0 0.0
    %2574 = vmatpush1.xpose.msra.mxu0 0.0
    %2575 = vmatprep.subr.mxu0 0.0
    %2576 = vmatpush1.xpose.msra.mxu0 0.0
    %2577 = vmatprep.subr.mxu0 0.0
    %2578 = vmatpush1.xpose.msra.mxu0 0.0
    %2579 = vmatprep.subr.mxu0 0.0
    %2580 = vmatpush1.xpose.msra.mxu0 0.0
    %2581 = vmatprep.subr.mxu0 0.0
    %2582 = vmatpush1.xpose.msra.mxu0 0.0
    %2583 = vmatprep.subr.mxu0 0.0
    %2584 = vmatpush1.xpose.msra.mxu0 0.0
    %2585 = vmatprep.subr.mxu0 0.0
    %2586 = vmatpush1.xpose.msra.mxu0 0.0
    %2587 = vmatprep.subr.mxu0 0.0
    %2588 = vmatpush1.xpose.msra.mxu0 0.0
    %2589 = vmatprep.subr.mxu0 0.0
    %2590 = vmatpush1.xpose.msra.mxu0 0.0
    %2591 = vmatprep.subr.mxu0 0.0
    %2592 = vmatpush1.xpose.msra.mxu0 0.0
    %2593 = vmatprep.subr.mxu0 0.0
    %2594 = vmatpush1.xpose.msra.mxu0 0.0
    %2595 = vmatprep.subr.mxu0 0.0
    %2596 = vmatpush1.xpose.msra.mxu0 0.0
    %2597 = vmatprep.subr.mxu0 0.0
    %2598 = vmatpush1.xpose.msra.mxu0 0.0
    %2599 = vmatprep.subr.mxu0 0.0
    %2600 = vmatpush1.xpose.msra.mxu0 0.0
    %2601 = vmatprep.subr.mxu0 0.0
    %2602 = vmatpush1.xpose.msra.mxu0 0.0
    %2603 = vmatprep.subr.mxu0 0.0
    %2604 = vmatpush1.xpose.msra.mxu0 0.0
    %2605 = vmatprep.subr.mxu0 0.0
    %2606 = vmatpush1.xpose.msra.mxu0 0.0
    %2607 = vmatprep.subr.mxu0 0.0
    %2608 = vmatpush1.xpose.msra.mxu0 0.0
    %2609 = vmatprep.subr.mxu0 0.0
    %2610 = vmatpush1.xpose.msra.mxu0 0.0
    %2611 = vmatprep.subr.mxu0 0.0
    %2612 = vmatpush1.xpose.msra.mxu0 0.0
    %2613 = vmatprep.subr.mxu0 0.0
    %2614 = vmatpush1.xpose.msra.mxu0 0.0
    %2615 = vmatprep.mubr.f32.mxu0 0.0
    %2616 = vmatmul.mubr.f32.gmra.mrb[0].mxu0 %v2547
    %v2617 = vpop.f32.mrb[0].mxu0
    %v2618 = vadd.f32 0.0, %v2617
    %v2619 = vpop.f32.mrb[0].mxu0
    %2620 = vdwg.mxu0
    %v2621 = vmul.f32 %v2072, 0.03125
    %v2622 = vmul.f32 %v2150, 0.03125
    %v2623 = vmul.f32 %v2228, 0.03125
    %v2624 = vmul.f32 %v2306, 0.03125
    %v2625 = vmul.f32 %v2384, 0.03125
    %v2626 = vmul.f32 %v2462, 0.03125
    %v2627 = vmul.f32 %v2540, 0.03125
    %v2628 = vmul.f32 %v2618, 0.03125
    %v2629 = vsel %vm1308, -1e+09, %v2621
    %v2630 = vsel %vm1309, -1e+09, %v2622
    %v2631 = vsel %vm1310, -1e+09, %v2623
    %v2632 = vsel %vm1311, -1e+09, %v2624
    %v2633 = vsel %vm1312, -1e+09, %v2625
    %v2634 = vsel %vm1313, -1e+09, %v2626
    %v2635 = vsel %vm1314, -1e+09, %v2627
    %v2636 = vsel %vm1315, -1e+09, %v2628
    %v2637 = vsel %vm1324, %v2629, -inf
    %2638 = vmax.xlane.f32.xlu0 %v2637
    %v2639 = vpop.xlane.xlu0 %2638
    %v2640 = vsel %vm1324, %v2630, -inf
    %2641 = vmax.xlane.f32.xlu0 %v2640
    %v2642 = vpop.xlane.xlu0 %2641
    %v2643 = vsel %vm1324, %v2631, -inf
    %2644 = vmax.xlane.f32.xlu0 %v2643
    %v2645 = vpop.xlane.xlu0 %2644
    %v2646 = vsel %vm1324, %v2632, -inf
    %2647 = vmax.xlane.f32.xlu0 %v2646
    %v2648 = vpop.xlane.xlu0 %2647
    %v2649 = vsel %vm1324, %v2633, -inf
    %2650 = vmax.xlane.f32.xlu0 %v2649
    %v2651 = vpop.xlane.xlu0 %2650
    %v2652 = vsel %vm1324, %v2634, -inf
    %2653 = vmax.xlane.f32.xlu0 %v2652
    %v2654 = vpop.xlane.xlu0 %2653
    %v2655 = vsel %vm1324, %v2635, -inf
    %2656 = vmax.xlane.f32.xlu0 %v2655
    %v2657 = vpop.xlane.xlu0 %2656
    %v2658 = vsel %vm1324, %v2636, -inf
    %2659 = vmax.xlane.f32.xlu0 %v2658
    %v2660 = vpop.xlane.xlu0 %2659
    %v2661 = vsub.f32 %v2629, %v2639
    %v2662 = vsub.f32 %v2630, %v2642
    %v2663 = vsub.f32 %v2631, %v2645
    %v2664 = vsub.f32 %v2632, %v2648
    %v2665 = vsub.f32 %v2633, %v2651
    %v2666 = vsub.f32 %v2634, %v2654
    %v2667 = vsub.f32 %v2635, %v2657
    %v2668 = vsub.f32 %v2636, %v2660
    %v2669 = vmul.f32 %v2661, 1.442695
    %v2670 = vpow.pop %v2669
    %v2671 = vmul.f32 %v2662, 1.442695
    %v2672 = vpow.pop %v2671
    %v2673 = vmul.f32 %v2663, 1.442695
    %v2674 = vpow.pop %v2673
    %v2675 = vmul.f32 %v2664, 1.442695
    %v2676 = vpow.pop %v2675
    %v2677 = vmul.f32 %v2665, 1.442695
    %v2678 = vpow.pop %v2677
    %v2679 = vmul.f32 %v2666, 1.442695
    %v2680 = vpow.pop %v2679
    %v2681 = vmul.f32 %v2667, 1.442695
    %v2682 = vpow.pop %v2681
    %v2683 = vmul.f32 %v2668, 1.442695
    %v2684 = vpow.pop %v2683
    %v2685 = vsel %vm1324, %v2670, 0.0
    %2686 = vadd.xlane.f32.xlu0 %v2685
    %v2687 = vpop.xlane.xlu0 %2686
    %v2688 = vsel %vm1324, %v2672, 0.0
    %2689 = vadd.xlane.f32.xlu0 %v2688
    %v2690 = vpop.xlane.xlu0 %2689
    %v2691 = vsel %vm1324, %v2674, 0.0
    %2692 = vadd.xlane.f32.xlu0 %v2691
    %v2693 = vpop.xlane.xlu0 %2692
    %v2694 = vsel %vm1324, %v2676, 0.0
    %2695 = vadd.xlane.f32.xlu0 %v2694
    %v2696 = vpop.xlane.xlu0 %2695
    %v2697 = vsel %vm1324, %v2678, 0.0
    %2698 = vadd.xlane.f32.xlu0 %v2697
    %v2699 = vpop.xlane.xlu0 %2698
    %v2700 = vsel %vm1324, %v2680, 0.0
    %2701 = vadd.xlane.f32.xlu0 %v2700
    %v2702 = vpop.xlane.xlu0 %2701
    %v2703 = vsel %vm1324, %v2682, 0.0
    %2704 = vadd.xlane.f32.xlu0 %v2703
    %v2705 = vpop.xlane.xlu0 %2704
    %v2706 = vsel %vm1324, %v2684, 0.0
    %2707 = vadd.xlane.f32.xlu0 %v2706
    %v2708 = vpop.xlane.xlu0 %2707
    %v2709 = vrcp.pop %v2687
    %v2710 = vrcp.pop %v2690
    %v2711 = vrcp.pop %v2693
    %v2712 = vrcp.pop %v2696
    %v2713 = vrcp.pop %v2699
    %v2714 = vrcp.pop %v2702
    %v2715 = vrcp.pop %v2705
    %v2716 = vrcp.pop %v2708
    %v2717 = vmul.f32 %v2670, %v2709
    %v2718 = vmul.f32 %v2672, %v2710
    %v2719 = vmul.f32 %v2674, %v2711
    %v2720 = vmul.f32 %v2676, %v2712
    %v2721 = vmul.f32 %v2678, %v2713
    %v2722 = vmul.f32 %v2680, %v2714
    %v2723 = vmul.f32 %v2682, %v2715
    %v2724 = vmul.f32 %v2684, %v2716
    %2726 = vrot.lane.b32.xlu0 %v561, 96
    %v2727 = vpop.permute.xlu0 %2726
    %v2730 = vsel %vm1324, %v2717, 0
    %2732 = vmatprep.subr.mxu0 0.0
    %2733 = vmatpush1.msra.mxu0 %v2727
    %2734 = vmatprep.subr.mxu0 0.0
    %2735 = vmatpush1.msra.mxu0 0.0
    %2736 = vmatprep.subr.mxu0 0.0
    %2737 = vmatpush1.msra.mxu0 0.0
    %2738 = vmatprep.subr.mxu0 0.0
    %2739 = vmatpush1.msra.mxu0 0.0
    %2740 = vmatprep.subr.mxu0 0.0
    %2741 = vmatpush1.msra.mxu0 0.0
    %2742 = vmatprep.subr.mxu0 0.0
    %2743 = vmatpush1.msra.mxu0 0.0
    %2744 = vmatprep.subr.mxu0 0.0
    %2745 = vmatpush1.msra.mxu0 0.0
    %2746 = vmatprep.subr.mxu0 0.0
    %2747 = vmatpush1.msra.mxu0 0.0
    %2748 = vmatprep.subr.mxu0 0.0
    %2749 = vmatpush1.msra.mxu0 0.0
    %2750 = vmatprep.subr.mxu0 0.0
    %2751 = vmatpush1.msra.mxu0 0.0
    %2752 = vmatprep.subr.mxu0 0.0
    %2753 = vmatpush1.msra.mxu0 0.0
    %2754 = vmatprep.subr.mxu0 0.0
    %2755 = vmatpush1.msra.mxu0 0.0
    %2756 = vmatprep.subr.mxu0 0.0
    %2757 = vmatpush1.msra.mxu0 0.0
    %2758 = vmatprep.subr.mxu0 0.0
    %2759 = vmatpush1.msra.mxu0 0.0
    %2760 = vmatprep.subr.mxu0 0.0
    %2761 = vmatpush1.msra.mxu0 0.0
    %2762 = vmatprep.subr.mxu0 0.0
    %2763 = vmatpush1.msra.mxu0 0.0
    %2764 = vmatprep.subr.mxu0 0.0
    %2765 = vmatpush1.msra.mxu0 0.0
    %2766 = vmatprep.subr.mxu0 0.0
    %2767 = vmatpush1.msra.mxu0 0.0
    %2768 = vmatprep.subr.mxu0 0.0
    %2769 = vmatpush1.msra.mxu0 0.0
    %2770 = vmatprep.subr.mxu0 0.0
    %2771 = vmatpush1.msra.mxu0 0.0
    %2772 = vmatprep.subr.mxu0 0.0
    %2773 = vmatpush1.msra.mxu0 0.0
    %2774 = vmatprep.subr.mxu0 0.0
    %2775 = vmatpush1.msra.mxu0 0.0
    %2776 = vmatprep.subr.mxu0 0.0
    %2777 = vmatpush1.msra.mxu0 0.0
    %2778 = vmatprep.subr.mxu0 0.0
    %2779 = vmatpush1.msra.mxu0 0.0
    %2780 = vmatprep.subr.mxu0 0.0
    %2781 = vmatpush1.msra.mxu0 0.0
    %2782 = vmatprep.subr.mxu0 0.0
    %2783 = vmatpush1.msra.mxu0 0.0
    %2784 = vmatprep.subr.mxu0 0.0
    %2785 = vmatpush1.msra.mxu0 0.0
    %2786 = vmatprep.subr.mxu0 0.0
    %2787 = vmatpush1.msra.mxu0 0.0
    %2788 = vmatprep.subr.mxu0 0.0
    %2789 = vmatpush1.msra.mxu0 0.0
    %2790 = vmatprep.subr.mxu0 0.0
    %2791 = vmatpush1.msra.mxu0 0.0
    %2792 = vmatprep.subr.mxu0 0.0
    %2793 = vmatpush1.msra.mxu0 0.0
    %2794 = vmatprep.subr.mxu0 0.0
    %2795 = vmatpush1.msra.mxu0 0.0
    %2796 = vmatprep.mubr.f32.mxu0 0.0
    %2797 = vmatmul.mubr.f32.gmra.mrb[0].mxu0 %v2730
    %v2798 = vpop.f32.mrb[0].mxu0
    %v2799 = vadd.f32 0.0, %v2798
    %v2800 = vpop.f32.mrb[0].mxu0
    %2801 = vdwg.mxu0
    %2803 = vrot.lane.b32.xlu0 %v564, 96
    %v2804 = vpop.permute.xlu0 %2803
    %v2807 = vsel %vm1324, %v2718, 0
    %2809 = vmatprep.subr.mxu0 0.0
    %2810 = vmatpush1.msra.mxu0 %v2804
    %2811 = vmatprep.subr.mxu0 0.0
    %2812 = vmatpush1.msra.mxu0 0.0
    %2813 = vmatprep.subr.mxu0 0.0
    %2814 = vmatpush1.msra.mxu0 0.0
    %2815 = vmatprep.subr.mxu0 0.0
    %2816 = vmatpush1.msra.mxu0 0.0
    %2817 = vmatprep.subr.mxu0 0.0
    %2818 = vmatpush1.msra.mxu0 0.0
    %2819 = vmatprep.subr.mxu0 0.0
    %2820 = vmatpush1.msra.mxu0 0.0
    %2821 = vmatprep.subr.mxu0 0.0
    %2822 = vmatpush1.msra.mxu0 0.0
    %2823 = vmatprep.subr.mxu0 0.0
    %2824 = vmatpush1.msra.mxu0 0.0
    %2825 = vmatprep.subr.mxu0 0.0
    %2826 = vmatpush1.msra.mxu0 0.0
    %2827 = vmatprep.subr.mxu0 0.0
    %2828 = vmatpush1.msra.mxu0 0.0
    %2829 = vmatprep.subr.mxu0 0.0
    %2830 = vmatpush1.msra.mxu0 0.0
    %2831 = vmatprep.subr.mxu0 0.0
    %2832 = vmatpush1.msra.mxu0 0.0
    %2833 = vmatprep.subr.mxu0 0.0
    %2834 = vmatpush1.msra.mxu0 0.0
    %2835 = vmatprep.subr.mxu0 0.0
    %2836 = vmatpush1.msra.mxu0 0.0
    %2837 = vmatprep.subr.mxu0 0.0
    %2838 = vmatpush1.msra.mxu0 0.0
    %2839 = vmatprep.subr.mxu0 0.0
    %2840 = vmatpush1.msra.mxu0 0.0
    %2841 = vmatprep.subr.mxu0 0.0
    %2842 = vmatpush1.msra.mxu0 0.0
    %2843 = vmatprep.subr.mxu0 0.0
    %2844 = vmatpush1.msra.mxu0 0.0
    %2845 = vmatprep.subr.mxu0 0.0
    %2846 = vmatpush1.msra.mxu0 0.0
    %2847 = vmatprep.subr.mxu0 0.0
    %2848 = vmatpush1.msra.mxu0 0.0
    %2849 = vmatprep.subr.mxu0 0.0
    %2850 = vmatpush1.msra.mxu0 0.0
    %2851 = vmatprep.subr.mxu0 0.0
    %2852 = vmatpush1.msra.mxu0 0.0
    %2853 = vmatprep.subr.mxu0 0.0
    %2854 = vmatpush1.msra.mxu0 0.0
    %2855 = vmatprep.subr.mxu0 0.0
    %2856 = vmatpush1.msra.mxu0 0.0
    %2857 = vmatprep.subr.mxu0 0.0
    %2858 = vmatpush1.msra.mxu0 0.0
    %2859 = vmatprep.subr.mxu0 0.0
    %2860 = vmatpush1.msra.mxu0 0.0
    %2861 = vmatprep.subr.mxu0 0.0
    %2862 = vmatpush1.msra.mxu0 0.0
    %2863 = vmatprep.subr.mxu0 0.0
    %2864 = vmatpush1.msra.mxu0 0.0
    %2865 = vmatprep.subr.mxu0 0.0
    %2866 = vmatpush1.msra.mxu0 0.0
    %2867 = vmatprep.subr.mxu0 0.0
    %2868 = vmatpush1.msra.mxu0 0.0
    %2869 = vmatprep.subr.mxu0 0.0
    %2870 = vmatpush1.msra.mxu0 0.0
    %2871 = vmatprep.subr.mxu0 0.0
    %2872 = vmatpush1.msra.mxu0 0.0
    %2873 = vmatprep.mubr.f32.mxu0 0.0
    %2874 = vmatmul.mubr.f32.gmra.mrb[0].mxu0 %v2807
    %v2875 = vpop.f32.mrb[0].mxu0
    %v2876 = vadd.f32 0.0, %v2875
    %v2877 = vpop.f32.mrb[0].mxu0
    %2878 = vdwg.mxu0
    %2880 = vrot.lane.b32.xlu0 %v569, 96
    %v2881 = vpop.permute.xlu0 %2880
    %v2884 = vsel %vm1324, %v2719, 0
    %2886 = vmatprep.subr.mxu0 0.0
    %2887 = vmatpush1.msra.mxu0 %v2881
    %2888 = vmatprep.subr.mxu0 0.0
    %2889 = vmatpush1.msra.mxu0 0.0
    %2890 = vmatprep.subr.mxu0 0.0
    %2891 = vmatpush1.msra.mxu0 0.0
    %2892 = vmatprep.subr.mxu0 0.0
    %2893 = vmatpush1.msra.mxu0 0.0
    %2894 = vmatprep.subr.mxu0 0.0
    %2895 = vmatpush1.msra.mxu0 0.0
    %2896 = vmatprep.subr.mxu0 0.0
    %2897 = vmatpush1.msra.mxu0 0.0
    %2898 = vmatprep.subr.mxu0 0.0
    %2899 = vmatpush1.msra.mxu0 0.0
    %2900 = vmatprep.subr.mxu0 0.0
    %2901 = vmatpush1.msra.mxu0 0.0
    %2902 = vmatprep.subr.mxu0 0.0
    %2903 = vmatpush1.msra.mxu0 0.0
    %2904 = vmatprep.subr.mxu0 0.0
    %2905 = vmatpush1.msra.mxu0 0.0
    %2906 = vmatprep.subr.mxu0 0.0
    %2907 = vmatpush1.msra.mxu0 0.0
    %2908 = vmatprep.subr.mxu0 0.0
    %2909 = vmatpush1.msra.mxu0 0.0
    %2910 = vmatprep.subr.mxu0 0.0
    %2911 = vmatpush1.msra.mxu0 0.0
    %2912 = vmatprep.subr.mxu0 0.0
    %2913 = vmatpush1.msra.mxu0 0.0
    %2914 = vmatprep.subr.mxu0 0.0
    %2915 = vmatpush1.msra.mxu0 0.0
    %2916 = vmatprep.subr.mxu0 0.0
    %2917 = vmatpush1.msra.mxu0 0.0
    %2918 = vmatprep.subr.mxu0 0.0
    %2919 = vmatpush1.msra.mxu0 0.0
    %2920 = vmatprep.subr.mxu0 0.0
    %2921 = vmatpush1.msra.mxu0 0.0
    %2922 = vmatprep.subr.mxu0 0.0
    %2923 = vmatpush1.msra.mxu0 0.0
    %2924 = vmatprep.subr.mxu0 0.0
    %2925 = vmatpush1.msra.mxu0 0.0
    %2926 = vmatprep.subr.mxu0 0.0
    %2927 = vmatpush1.msra.mxu0 0.0
    %2928 = vmatprep.subr.mxu0 0.0
    %2929 = vmatpush1.msra.mxu0 0.0
    %2930 = vmatprep.subr.mxu0 0.0
    %2931 = vmatpush1.msra.mxu0 0.0
    %2932 = vmatprep.subr.mxu0 0.0
    %2933 = vmatpush1.msra.mxu0 0.0
    %2934 = vmatprep.subr.mxu0 0.0
    %2935 = vmatpush1.msra.mxu0 0.0
    %2936 = vmatprep.subr.mxu0 0.0
    %2937 = vmatpush1.msra.mxu0 0.0
    %2938 = vmatprep.subr.mxu0 0.0
    %2939 = vmatpush1.msra.mxu0 0.0
    %2940 = vmatprep.subr.mxu0 0.0
    %2941 = vmatpush1.msra.mxu0 0.0
    %2942 = vmatprep.subr.mxu0 0.0
    %2943 = vmatpush1.msra.mxu0 0.0
    %2944 = vmatprep.subr.mxu0 0.0
    %2945 = vmatpush1.msra.mxu0 0.0
    %2946 = vmatprep.subr.mxu0 0.0
    %2947 = vmatpush1.msra.mxu0 0.0
    %2948 = vmatprep.subr.mxu0 0.0
    %2949 = vmatpush1.msra.mxu0 0.0
    %2950 = vmatprep.mubr.f32.mxu0 0.0
    %2951 = vmatmul.mubr.f32.gmra.mrb[0].mxu0 %v2884
    %v2952 = vpop.f32.mrb[0].mxu0
    %v2953 = vadd.f32 0.0, %v2952
    %v2954 = vpop.f32.mrb[0].mxu0
    %2955 = vdwg.mxu0
    %2957 = vrot.lane.b32.xlu0 %v572, 96
    %v2958 = vpop.permute.xlu0 %2957
    %v2961 = vsel %vm1324, %v2720, 0
    %2963 = vmatprep.subr.mxu0 0.0
    %2964 = vmatpush1.msra.mxu0 %v2958
    %2965 = vmatprep.subr.mxu0 0.0
    %2966 = vmatpush1.msra.mxu0 0.0
    %2967 = vmatprep.subr.mxu0 0.0
    %2968 = vmatpush1.msra.mxu0 0.0
    %2969 = vmatprep.subr.mxu0 0.0
    %2970 = vmatpush1.msra.mxu0 0.0
    %2971 = vmatprep.subr.mxu0 0.0
    %2972 = vmatpush1.msra.mxu0 0.0
    %2973 = vmatprep.subr.mxu0 0.0
    %2974 = vmatpush1.msra.mxu0 0.0
    %2975 = vmatprep.subr.mxu0 0.0
    %2976 = vmatpush1.msra.mxu0 0.0
    %2977 = vmatprep.subr.mxu0 0.0
    %2978 = vmatpush1.msra.mxu0 0.0
    %2979 = vmatprep.subr.mxu0 0.0
    %2980 = vmatpush1.msra.mxu0 0.0
    %2981 = vmatprep.subr.mxu0 0.0
    %2982 = vmatpush1.msra.mxu0 0.0
    %2983 = vmatprep.subr.mxu0 0.0
    %2984 = vmatpush1.msra.mxu0 0.0
    %2985 = vmatprep.subr.mxu0 0.0
    %2986 = vmatpush1.msra.mxu0 0.0
    %2987 = vmatprep.subr.mxu0 0.0
    %2988 = vmatpush1.msra.mxu0 0.0
    %2989 = vmatprep.subr.mxu0 0.0
    %2990 = vmatpush1.msra.mxu0 0.0
    %2991 = vmatprep.subr.mxu0 0.0
    %2992 = vmatpush1.msra.mxu0 0.0
    %2993 = vmatprep.subr.mxu0 0.0
    %2994 = vmatpush1.msra.mxu0 0.0
    %2995 = vmatprep.subr.mxu0 0.0
    %2996 = vmatpush1.msra.mxu0 0.0
    %2997 = vmatprep.subr.mxu0 0.0
    %2998 = vmatpush1.msra.mxu0 0.0
    %2999 = vmatprep.subr.mxu0 0.0
    %3000 = vmatpush1.msra.mxu0 0.0
    %3001 = vmatprep.subr.mxu0 0.0
    %3002 = vmatpush1.msra.mxu0 0.0
    %3003 = vmatprep.subr.mxu0 0.0
    %3004 = vmatpush1.msra.mxu0 0.0
    %3005 = vmatprep.subr.mxu0 0.0
    %3006 = vmatpush1.msra.mxu0 0.0
    %3007 = vmatprep.subr.mxu0 0.0
    %3008 = vmatpush1.msra.mxu0 0.0
    %3009 = vmatprep.subr.mxu0 0.0
    %3010 = vmatpush1.msra.mxu0 0.0
    %3011 = vmatprep.subr.mxu0 0.0
    %3012 = vmatpush1.msra.mxu0 0.0
    %3013 = vmatprep.subr.mxu0 0.0
    %3014 = vmatpush1.msra.mxu0 0.0
    %3015 = vmatprep.subr.mxu0 0.0
    %3016 = vmatpush1.msra.mxu0 0.0
    %3017 = vmatprep.subr.mxu0 0.0
    %3018 = vmatpush1.msra.mxu0 0.0
    %3019 = vmatprep.subr.mxu0 0.0
    %3020 = vmatpush1.msra.mxu0 0.0
    %3021 = vmatprep.subr.mxu0 0.0
    %3022 = vmatpush1.msra.mxu0 0.0
    %3023 = vmatprep.subr.mxu0 0.0
    %3024 = vmatpush1.msra.mxu0 0.0
    %3025 = vmatprep.subr.mxu0 0.0
    %3026 = vmatpush1.msra.mxu0 0.0
    %3027 = vmatprep.mubr.f32.mxu0 0.0
    %3028 = vmatmul.mubr.f32.gmra.mrb[0].mxu0 %v2961
    %v3029 = vpop.f32.mrb[0].mxu0
    %v3030 = vadd.f32 0.0, %v3029
    %v3031 = vpop.f32.mrb[0].mxu0
    %3032 = vdwg.mxu0
    %3034 = vrot.lane.b32.xlu0 %v577, 96
    %v3035 = vpop.permute.xlu0 %3034
    %v3038 = vsel %vm1324, %v2721, 0
    %3040 = vmatprep.subr.mxu0 0.0
    %3041 = vmatpush1.msra.mxu0 %v3035
    %3042 = vmatprep.subr.mxu0 0.0
    %3043 = vmatpush1.msra.mxu0 0.0
    %3044 = vmatprep.subr.mxu0 0.0
    %3045 = vmatpush1.msra.mxu0 0.0
    %3046 = vmatprep.subr.mxu0 0.0
    %3047 = vmatpush1.msra.mxu0 0.0
    %3048 = vmatprep.subr.mxu0 0.0
    %3049 = vmatpush1.msra.mxu0 0.0
    %3050 = vmatprep.subr.mxu0 0.0
    %3051 = vmatpush1.msra.mxu0 0.0
    %3052 = vmatprep.subr.mxu0 0.0
    %3053 = vmatpush1.msra.mxu0 0.0
    %3054 = vmatprep.subr.mxu0 0.0
    %3055 = vmatpush1.msra.mxu0 0.0
    %3056 = vmatprep.subr.mxu0 0.0
    %3057 = vmatpush1.msra.mxu0 0.0
    %3058 = vmatprep.subr.mxu0 0.0
    %3059 = vmatpush1.msra.mxu0 0.0
    %3060 = vmatprep.subr.mxu0 0.0
    %3061 = vmatpush1.msra.mxu0 0.0
    %3062 = vmatprep.subr.mxu0 0.0
    %3063 = vmatpush1.msra.mxu0 0.0
    %3064 = vmatprep.subr.mxu0 0.0
    %3065 = vmatpush1.msra.mxu0 0.0
    %3066 = vmatprep.subr.mxu0 0.0
    %3067 = vmatpush1.msra.mxu0 0.0
    %3068 = vmatprep.subr.mxu0 0.0
    %3069 = vmatpush1.msra.mxu0 0.0
    %3070 = vmatprep.subr.mxu0 0.0
    %3071 = vmatpush1.msra.mxu0 0.0
    %3072 = vmatprep.subr.mxu0 0.0
    %3073 = vmatpush1.msra.mxu0 0.0
    %3074 = vmatprep.subr.mxu0 0.0
    %3075 = vmatpush1.msra.mxu0 0.0
    %3076 = vmatprep.subr.mxu0 0.0
    %3077 = vmatpush1.msra.mxu0 0.0
    %3078 = vmatprep.subr.mxu0 0.0
    %3079 = vmatpush1.msra.mxu0 0.0
    %3080 = vmatprep.subr.mxu0 0.0
    %3081 = vmatpush1.msra.mxu0 0.0
    %3082 = vmatprep.subr.mxu0 0.0
    %3083 = vmatpush1.msra.mxu0 0.0
    %3084 = vmatprep.subr.mxu0 0.0
    %3085 = vmatpush1.msra.mxu0 0.0
    %3086 = vmatprep.subr.mxu0 0.0
    %3087 = vmatpush1.msra.mxu0 0.0
    %3088 = vmatprep.subr.mxu0 0.0
    %3089 = vmatpush1.msra.mxu0 0.0
    %3090 = vmatprep.subr.mxu0 0.0
    %3091 = vmatpush1.msra.mxu0 0.0
    %3092 = vmatprep.subr.mxu0 0.0
    %3093 = vmatpush1.msra.mxu0 0.0
    %3094 = vmatprep.subr.mxu0 0.0
    %3095 = vmatpush1.msra.mxu0 0.0
    %3096 = vmatprep.subr.mxu0 0.0
    %3097 = vmatpush1.msra.mxu0 0.0
    %3098 = vmatprep.subr.mxu0 0.0
    %3099 = vmatpush1.msra.mxu0 0.0
    %3100 = vmatprep.subr.mxu0 0.0
    %3101 = vmatpush1.msra.mxu0 0.0
    %3102 = vmatprep.subr.mxu0 0.0
    %3103 = vmatpush1.msra.mxu0 0.0
    %3104 = vmatprep.mubr.f32.mxu0 0.0
    %3105 = vmatmul.mubr.f32.gmra.mrb[0].mxu0 %v3038
    %v3106 = vpop.f32.mrb[0].mxu0
    %v3107 = vadd.f32 0.0, %v3106
    %v3108 = vpop.f32.mrb[0].mxu0
    %3109 = vdwg.mxu0
    %3111 = vrot.lane.b32.xlu0 %v580, 96
    %v3112 = vpop.permute.xlu0 %3111
    %v3115 = vsel %vm1324, %v2722, 0
    %3117 = vmatprep.subr.mxu0 0.0
    %3118 = vmatpush1.msra.mxu0 %v3112
    %3119 = vmatprep.subr.mxu0 0.0
    %3120 = vmatpush1.msra.mxu0 0.0
    %3121 = vmatprep.subr.mxu0 0.0
    %3122 = vmatpush1.msra.mxu0 0.0
    %3123 = vmatprep.subr.mxu0 0.0
    %3124 = vmatpush1.msra.mxu0 0.0
    %3125 = vmatprep.subr.mxu0 0.0
    %3126 = vmatpush1.msra.mxu0 0.0
    %3127 = vmatprep.subr.mxu0 0.0
    %3128 = vmatpush1.msra.mxu0 0.0
    %3129 = vmatprep.subr.mxu0 0.0
    %3130 = vmatpush1.msra.mxu0 0.0
    %3131 = vmatprep.subr.mxu0 0.0
    %3132 = vmatpush1.msra.mxu0 0.0
    %3133 = vmatprep.subr.mxu0 0.0
    %3134 = vmatpush1.msra.mxu0 0.0
    %3135 = vmatprep.subr.mxu0 0.0
    %3136 = vmatpush1.msra.mxu0 0.0
    %3137 = vmatprep.subr.mxu0 0.0
    %3138 = vmatpush1.msra.mxu0 0.0
    %3139 = vmatprep.subr.mxu0 0.0
    %3140 = vmatpush1.msra.mxu0 0.0
    %3141 = vmatprep.subr.mxu0 0.0
    %3142 = vmatpush1.msra.mxu0 0.0
    %3143 = vmatprep.subr.mxu0 0.0
    %3144 = vmatpush1.msra.mxu0 0.0
    %3145 = vmatprep.subr.mxu0 0.0
    %3146 = vmatpush1.msra.mxu0 0.0
    %3147 = vmatprep.subr.mxu0 0.0
    %3148 = vmatpush1.msra.mxu0 0.0
    %3149 = vmatprep.subr.mxu0 0.0
    %3150 = vmatpush1.msra.mxu0 0.0
    %3151 = vmatprep.subr.mxu0 0.0
    %3152 = vmatpush1.msra.mxu0 0.0
    %3153 = vmatprep.subr.mxu0 0.0
    %3154 = vmatpush1.msra.mxu0 0.0
    %3155 = vmatprep.subr.mxu0 0.0
    %3156 = vmatpush1.msra.mxu0 0.0
    %3157 = vmatprep.subr.mxu0 0.0
    %3158 = vmatpush1.msra.mxu0 0.0
    %3159 = vmatprep.subr.mxu0 0.0
    %3160 = vmatpush1.msra.mxu0 0.0
    %3161 = vmatprep.subr.mxu0 0.0
    %3162 = vmatpush1.msra.mxu0 0.0
    %3163 = vmatprep.subr.mxu0 0.0
    %3164 = vmatpush1.msra.mxu0 0.0
    %3165 = vmatprep.subr.mxu0 0.0
    %3166 = vmatpush1.msra.mxu0 0.0
    %3167 = vmatprep.subr.mxu0 0.0
    %3168 = vmatpush1.msra.mxu0 0.0
    %3169 = vmatprep.subr.mxu0 0.0
    %3170 = vmatpush1.msra.mxu0 0.0
    %3171 = vmatprep.subr.mxu0 0.0
    %3172 = vmatpush1.msra.mxu0 0.0
    %3173 = vmatprep.subr.mxu0 0.0
    %3174 = vmatpush1.msra.mxu0 0.0
    %3175 = vmatprep.subr.mxu0 0.0
    %3176 = vmatpush1.msra.mxu0 0.0
    %3177 = vmatprep.subr.mxu0 0.0
    %3178 = vmatpush1.msra.mxu0 0.0
    %3179 = vmatprep.subr.mxu0 0.0
    %3180 = vmatpush1.msra.mxu0 0.0
    %3181 = vmatprep.mubr.f32.mxu0 0.0
    %3182 = vmatmul.mubr.f32.gmra.mrb[0].mxu0 %v3115
    %v3183 = vpop.f32.mrb[0].mxu0
    %v3184 = vadd.f32 0.0, %v3183
    %v3185 = vpop.f32.mrb[0].mxu0
    %3186 = vdwg.mxu0
    %3188 = vrot.lane.b32.xlu0 %v585, 96
    %v3189 = vpop.permute.xlu0 %3188
    %v3192 = vsel %vm1324, %v2723, 0
    %3194 = vmatprep.subr.mxu0 0.0
    %3195 = vmatpush1.msra.mxu0 %v3189
    %3196 = vmatprep.subr.mxu0 0.0
    %3197 = vmatpush1.msra.mxu0 0.0
    %3198 = vmatprep.subr.mxu0 0.0
    %3199 = vmatpush1.msra.mxu0 0.0
    %3200 = vmatprep.subr.mxu0 0.0
    %3201 = vmatpush1.msra.mxu0 0.0
    %3202 = vmatprep.subr.mxu0 0.0
    %3203 = vmatpush1.msra.mxu0 0.0
    %3204 = vmatprep.subr.mxu0 0.0
    %3205 = vmatpush1.msra.mxu0 0.0
    %3206 = vmatprep.subr.mxu0 0.0
    %3207 = vmatpush1.msra.mxu0 0.0
    %3208 = vmatprep.subr.mxu0 0.0
    %3209 = vmatpush1.msra.mxu0 0.0
    %3210 = vmatprep.subr.mxu0 0.0
    %3211 = vmatpush1.msra.mxu0 0.0
    %3212 = vmatprep.subr.mxu0 0.0
    %3213 = vmatpush1.msra.mxu0 0.0
    %3214 = vmatprep.subr.mxu0 0.0
    %3215 = vmatpush1.msra.mxu0 0.0
    %3216 = vmatprep.subr.mxu0 0.0
    %3217 = vmatpush1.msra.mxu0 0.0
    %3218 = vmatprep.subr.mxu0 0.0
    %3219 = vmatpush1.msra.mxu0 0.0
    %3220 = vmatprep.subr.mxu0 0.0
    %3221 = vmatpush1.msra.mxu0 0.0
    %3222 = vmatprep.subr.mxu0 0.0
    %3223 = vmatpush1.msra.mxu0 0.0
    %3224 = vmatprep.subr.mxu0 0.0
    %3225 = vmatpush1.msra.mxu0 0.0
    %3226 = vmatprep.subr.mxu0 0.0
    %3227 = vmatpush1.msra.mxu0 0.0
    %3228 = vmatprep.subr.mxu0 0.0
    %3229 = vmatpush1.msra.mxu0 0.0
    %3230 = vmatprep.subr.mxu0 0.0
    %3231 = vmatpush1.msra.mxu0 0.0
    %3232 = vmatprep.subr.mxu0 0.0
    %3233 = vmatpush1.msra.mxu0 0.0
    %3234 = vmatprep.subr.mxu0 0.0
    %3235 = vmatpush1.msra.mxu0 0.0
    %3236 = vmatprep.subr.mxu0 0.0
    %3237 = vmatpush1.msra.mxu0 0.0
    %3238 = vmatprep.subr.mxu0 0.0
    %3239 = vmatpush1.msra.mxu0 0.0
    %3240 = vmatprep.subr.mxu0 0.0
    %3241 = vmatpush1.msra.mxu0 0.0
    %3242 = vmatprep.subr.mxu0 0.0
    %3243 = vmatpush1.msra.mxu0 0.0
    %3244 = vmatprep.subr.mxu0 0.0
    %3245 = vmatpush1.msra.mxu0 0.0
    %3246 = vmatprep.subr.mxu0 0.0
    %3247 = vmatpush1.msra.mxu0 0.0
    %3248 = vmatprep.subr.mxu0 0.0
    %3249 = vmatpush1.msra.mxu0 0.0
    %3250 = vmatprep.subr.mxu0 0.0
    %3251 = vmatpush1.msra.mxu0 0.0
    %3252 = vmatprep.subr.mxu0 0.0
    %3253 = vmatpush1.msra.mxu0 0.0
    %3254 = vmatprep.subr.mxu0 0.0
    %3255 = vmatpush1.msra.mxu0 0.0
    %3256 = vmatprep.subr.mxu0 0.0
    %3257 = vmatpush1.msra.mxu0 0.0
    %3258 = vmatprep.mubr.f32.mxu0 0.0
    %3259 = vmatmul.mubr.f32.gmra.mrb[0].mxu0 %v3192
    %v3260 = vpop.f32.mrb[0].mxu0
    %v3261 = vadd.f32 0.0, %v3260
    %v3262 = vpop.f32.mrb[0].mxu0
    %3263 = vdwg.mxu0
    %3265 = vrot.lane.b32.xlu0 %v588, 96
    %v3266 = vpop.permute.xlu0 %3265
    %v3269 = vsel %vm1324, %v2724, 0
    %3271 = vmatprep.subr.mxu0 0.0
    %3272 = vmatpush1.msra.mxu0 %v3266
    %3273 = vmatprep.subr.mxu0 0.0
    %3274 = vmatpush1.msra.mxu0 0.0
    %3275 = vmatprep.subr.mxu0 0.0
    %3276 = vmatpush1.msra.mxu0 0.0
    %3277 = vmatprep.subr.mxu0 0.0
    %3278 = vmatpush1.msra.mxu0 0.0
    %3279 = vmatprep.subr.mxu0 0.0
    %3280 = vmatpush1.msra.mxu0 0.0
    %3281 = vmatprep.subr.mxu0 0.0
    %3282 = vmatpush1.msra.mxu0 0.0
    %3283 = vmatprep.subr.mxu0 0.0
    %3284 = vmatpush1.msra.mxu0 0.0
    %3285 = vmatprep.subr.mxu0 0.0
    %3286 = vmatpush1.msra.mxu0 0.0
    %3287 = vmatprep.subr.mxu0 0.0
    %3288 = vmatpush1.msra.mxu0 0.0
    %3289 = vmatprep.subr.mxu0 0.0
    %3290 = vmatpush1.msra.mxu0 0.0
    %3291 = vmatprep.subr.mxu0 0.0
    %3292 = vmatpush1.msra.mxu0 0.0
    %3293 = vmatprep.subr.mxu0 0.0
    %3294 = vmatpush1.msra.mxu0 0.0
    %3295 = vmatprep.subr.mxu0 0.0
    %3296 = vmatpush1.msra.mxu0 0.0
    %3297 = vmatprep.subr.mxu0 0.0
    %3298 = vmatpush1.msra.mxu0 0.0
    %3299 = vmatprep.subr.mxu0 0.0
    %3300 = vmatpush1.msra.mxu0 0.0
    %3301 = vmatprep.subr.mxu0 0.0
    %3302 = vmatpush1.msra.mxu0 0.0
    %3303 = vmatprep.subr.mxu0 0.0
    %3304 = vmatpush1.msra.mxu0 0.0
    %3305 = vmatprep.subr.mxu0 0.0
    %3306 = vmatpush1.msra.mxu0 0.0
    %3307 = vmatprep.subr.mxu0 0.0
    %3308 = vmatpush1.msra.mxu0 0.0
    %3309 = vmatprep.subr.mxu0 0.0
    %3310 = vmatpush1.msra.mxu0 0.0
    %3311 = vmatprep.subr.mxu0 0.0
    %3312 = vmatpush1.msra.mxu0 0.0
    %3313 = vmatprep.subr.mxu0 0.0
    %3314 = vmatpush1.msra.mxu0 0.0
    %3315 = vmatprep.subr.mxu0 0.0
    %3316 = vmatpush1.msra.mxu0 0.0
    %3317 = vmatprep.subr.mxu0 0.0
    %3318 = vmatpush1.msra.mxu0 0.0
    %3319 = vmatprep.subr.mxu0 0.0
    %3320 = vmatpush1.msra.mxu0 0.0
    %3321 = vmatprep.subr.mxu0 0.0
    %3322 = vmatpush1.msra.mxu0 0.0
    %3323 = vmatprep.subr.mxu0 0.0
    %3324 = vmatpush1.msra.mxu0 0.0
    %3325 = vmatprep.subr.mxu0 0.0
    %3326 = vmatpush1.msra.mxu0 0.0
    %3327 = vmatprep.subr.mxu0 0.0
    %3328 = vmatpush1.msra.mxu0 0.0
    %3329 = vmatprep.subr.mxu0 0.0
    %3330 = vmatpush1.msra.mxu0 0.0
    %3331 = vmatprep.subr.mxu0 0.0
    %3332 = vmatpush1.msra.mxu0 0.0
    %3333 = vmatprep.subr.mxu0 0.0
    %3334 = vmatpush1.msra.mxu0 0.0
    %3335 = vmatprep.mubr.f32.mxu0 0.0
    %3336 = vmatmul.mubr.f32.gmra.mrb[0].mxu0 %v3269
    %v3337 = vpop.f32.mrb[0].mxu0
    %v3338 = vadd.f32 0.0, %v3337
    %v3339 = vpop.f32.mrb[0].mxu0
    %3340 = vdwg.mxu0
    %3341 = vrot.lane.b32.xlu0 %v488, 64
    %v3342 = vpop.permute.xlu0 %3341
    %3343 = vrot.lane.b32.xlu0 %v490, 64
    %v3344 = vpop.permute.xlu0 %3343
    %v3345 = vsel %vm651, %v3342, 0
    %v3347 = vsel %vm651, %v3344, 0
    %3349 = vmatprep.subr.mxu0 0.0
    %3350 = vmatpush1.xpose.msra.mxu0 %v3347
    %3351 = vmatprep.subr.mxu0 0.0
    %3352 = vmatpush1.xpose.msra.mxu0 0.0
    %3353 = vmatprep.subr.mxu0 0.0
    %3354 = vmatpush1.xpose.msra.mxu0 0.0
    %3355 = vmatprep.subr.mxu0 0.0
    %3356 = vmatpush1.xpose.msra.mxu0 0.0
    %3357 = vmatprep.subr.mxu0 0.0
    %3358 = vmatpush1.xpose.msra.mxu0 0.0
    %3359 = vmatprep.subr.mxu0 0.0
    %3360 = vmatpush1.xpose.msra.mxu0 0.0
    %3361 = vmatprep.subr.mxu0 0.0
    %3362 = vmatpush1.xpose.msra.mxu0 0.0
    %3363 = vmatprep.subr.mxu0 0.0
    %3364 = vmatpush1.xpose.msra.mxu0 0.0
    %3365 = vmatprep.subr.mxu0 0.0
    %3366 = vmatpush1.xpose.msra.mxu0 0.0
    %3367 = vmatprep.subr.mxu0 0.0
    %3368 = vmatpush1.xpose.msra.mxu0 0.0
    %3369 = vmatprep.subr.mxu0 0.0
    %3370 = vmatpush1.xpose.msra.mxu0 0.0
    %3371 = vmatprep.subr.mxu0 0.0
    %3372 = vmatpush1.xpose.msra.mxu0 0.0
    %3373 = vmatprep.subr.mxu0 0.0
    %3374 = vmatpush1.xpose.msra.mxu0 0.0
    %3375 = vmatprep.subr.mxu0 0.0
    %3376 = vmatpush1.xpose.msra.mxu0 0.0
    %3377 = vmatprep.subr.mxu0 0.0
    %3378 = vmatpush1.xpose.msra.mxu0 0.0
    %3379 = vmatprep.subr.mxu0 0.0
    %3380 = vmatpush1.xpose.msra.mxu0 0.0
    %3381 = vmatprep.subr.mxu0 0.0
    %3382 = vmatpush1.xpose.msra.mxu0 0.0
    %3383 = vmatprep.subr.mxu0 0.0
    %3384 = vmatpush1.xpose.msra.mxu0 0.0
    %3385 = vmatprep.subr.mxu0 0.0
    %3386 = vmatpush1.xpose.msra.mxu0 0.0
    %3387 = vmatprep.subr.mxu0 0.0
    %3388 = vmatpush1.xpose.msra.mxu0 0.0
    %3389 = vmatprep.subr.mxu0 0.0
    %3390 = vmatpush1.xpose.msra.mxu0 0.0
    %3391 = vmatprep.subr.mxu0 0.0
    %3392 = vmatpush1.xpose.msra.mxu0 0.0
    %3393 = vmatprep.subr.mxu0 0.0
    %3394 = vmatpush1.xpose.msra.mxu0 0.0
    %3395 = vmatprep.subr.mxu0 0.0
    %3396 = vmatpush1.xpose.msra.mxu0 0.0
    %3397 = vmatprep.subr.mxu0 0.0
    %3398 = vmatpush1.xpose.msra.mxu0 0.0
    %3399 = vmatprep.subr.mxu0 0.0
    %3400 = vmatpush1.xpose.msra.mxu0 0.0
    %3401 = vmatprep.subr.mxu0 0.0
    %3402 = vmatpush1.xpose.msra.mxu0 0.0
    %3403 = vmatprep.subr.mxu0 0.0
    %3404 = vmatpush1.xpose.msra.mxu0 0.0
    %3405 = vmatprep.subr.mxu0 0.0
    %3406 = vmatpush1.xpose.msra.mxu0 0.0
    %3407 = vmatprep.subr.mxu0 0.0
    %3408 = vmatpush1.xpose.msra.mxu0 0.0
    %3409 = vmatprep.subr.mxu0 0.0
    %3410 = vmatpush1.xpose.msra.mxu0 0.0
    %3411 = vmatprep.subr.mxu0 0.0
    %3412 = vmatpush1.xpose.msra.mxu0 0.0
    %3413 = vmatprep.mubr.f32.mxu0 0.0
    %3414 = vmatmul.mubr.f32.gmra.mrb[0].mxu0 %v3345
    %v3415 = vpop.f32.mrb[0].mxu0
    %v3416 = vadd.f32 0.0, %v3415
    %v3417 = vpop.f32.mrb[0].mxu0
    %3418 = vdwg.mxu0
    %3419 = vrot.lane.b32.xlu0 %v492, 64
    %v3420 = vpop.permute.xlu0 %3419
    %3421 = vrot.lane.b32.xlu0 %v494, 64
    %v3422 = vpop.permute.xlu0 %3421
    %v3423 = vsel %vm651, %v3420, 0
    %v3425 = vsel %vm651, %v3422, 0
    %3427 = vmatprep.subr.mxu0 0.0
    %3428 = vmatpush1.xpose.msra.mxu0 %v3425
    %3429 = vmatprep.subr.mxu0 0.0
    %3430 = vmatpush1.xpose.msra.mxu0 0.0
    %3431 = vmatprep.subr.mxu0 0.0
    %3432 = vmatpush1.xpose.msra.mxu0 0.0
    %3433 = vmatprep.subr.mxu0 0.0
    %3434 = vmatpush1.xpose.msra.mxu0 0.0
    %3435 = vmatprep.subr.mxu0 0.0
    %3436 = vmatpush1.xpose.msra.mxu0 0.0
    %3437 = vmatprep.subr.mxu0 0.0
    %3438 = vmatpush1.xpose.msra.mxu0 0.0
    %3439 = vmatprep.subr.mxu0 0.0
    %3440 = vmatpush1.xpose.msra.mxu0 0.0
    %3441 = vmatprep.subr.mxu0 0.0
    %3442 = vmatpush1.xpose.msra.mxu0 0.0
    %3443 = vmatprep.subr.mxu0 0.0
    %3444 = vmatpush1.xpose.msra.mxu0 0.0
    %3445 = vmatprep.subr.mxu0 0.0
    %3446 = vmatpush1.xpose.msra.mxu0 0.0
    %3447 = vmatprep.subr.mxu0 0.0
    %3448 = vmatpush1.xpose.msra.mxu0 0.0
    %3449 = vmatprep.subr.mxu0 0.0
    %3450 = vmatpush1.xpose.msra.mxu0 0.0
    %3451 = vmatprep.subr.mxu0 0.0
    %3452 = vmatpush1.xpose.msra.mxu0 0.0
    %3453 = vmatprep.subr.mxu0 0.0
    %3454 = vmatpush1.xpose.msra.mxu0 0.0
    %3455 = vmatprep.subr.mxu0 0.0
    %3456 = vmatpush1.xpose.msra.mxu0 0.0
    %3457 = vmatprep.subr.mxu0 0.0
    %3458 = vmatpush1.xpose.msra.mxu0 0.0
    %3459 = vmatprep.subr.mxu0 0.0
    %3460 = vmatpush1.xpose.msra.mxu0 0.0
    %3461 = vmatprep.subr.mxu0 0.0
    %3462 = vmatpush1.xpose.msra.mxu0 0.0
    %3463 = vmatprep.subr.mxu0 0.0
    %3464 = vmatpush1.xpose.msra.mxu0 0.0
    %3465 = vmatprep.subr.mxu0 0.0
    %3466 = vmatpush1.xpose.msra.mxu0 0.0
    %3467 = vmatprep.subr.mxu0 0.0
    %3468 = vmatpush1.xpose.msra.mxu0 0.0
    %3469 = vmatprep.subr.mxu0 0.0
    %3470 = vmatpush1.xpose.msra.mxu0 0.0
    %3471 = vmatprep.subr.mxu0 0.0
    %3472 = vmatpush1.xpose.msra.mxu0 0.0
    %3473 = vmatprep.subr.mxu0 0.0
    %3474 = vmatpush1.xpose.msra.mxu0 0.0
    %3475 = vmatprep.subr.mxu0 0.0
    %3476 = vmatpush1.xpose.msra.mxu0 0.0
    %3477 = vmatprep.subr.mxu0 0.0
    %3478 = vmatpush1.xpose.msra.mxu0 0.0
    %3479 = vmatprep.subr.mxu0 0.0
    %3480 = vmatpush1.xpose.msra.mxu0 0.0
    %3481 = vmatprep.subr.mxu0 0.0
    %3482 = vmatpush1.xpose.msra.mxu0 0.0
    %3483 = vmatprep.subr.mxu0 0.0
    %3484 = vmatpush1.xpose.msra.mxu0 0.0
    %3485 = vmatprep.subr.mxu0 0.0
    %3486 = vmatpush1.xpose.msra.mxu0 0.0
    %3487 = vmatprep.subr.mxu0 0.0
    %3488 = vmatpush1.xpose.msra.mxu0 0.0
    %3489 = vmatprep.subr.mxu0 0.0
    %3490 = vmatpush1.xpose.msra.mxu0 0.0
    %3491 = vmatprep.mubr.f32.mxu0 0.0
    %3492 = vmatmul.mubr.f32.gmra.mrb[0].mxu0 %v3423
    %v3493 = vpop.f32.mrb[0].mxu0
    %v3494 = vadd.f32 0.0, %v3493
    %v3495 = vpop.f32.mrb[0].mxu0
    %3496 = vdwg.mxu0
    %3497 = vrot.lane.b32.xlu0 %v498, 64
    %v3498 = vpop.permute.xlu0 %3497
    %3499 = vrot.lane.b32.xlu0 %v500, 64
    %v3500 = vpop.permute.xlu0 %3499
    %v3501 = vsel %vm651, %v3498, 0
    %v3503 = vsel %vm651, %v3500, 0
    %3505 = vmatprep.subr.mxu0 0.0
    %3506 = vmatpush1.xpose.msra.mxu0 %v3503
    %3507 = vmatprep.subr.mxu0 0.0
    %3508 = vmatpush1.xpose.msra.mxu0 0.0
    %3509 = vmatprep.subr.mxu0 0.0
    %3510 = vmatpush1.xpose.msra.mxu0 0.0
    %3511 = vmatprep.subr.mxu0 0.0
    %3512 = vmatpush1.xpose.msra.mxu0 0.0
    %3513 = vmatprep.subr.mxu0 0.0
    %3514 = vmatpush1.xpose.msra.mxu0 0.0
    %3515 = vmatprep.subr.mxu0 0.0
    %3516 = vmatpush1.xpose.msra.mxu0 0.0
    %3517 = vmatprep.subr.mxu0 0.0
    %3518 = vmatpush1.xpose.msra.mxu0 0.0
    %3519 = vmatprep.subr.mxu0 0.0
    %3520 = vmatpush1.xpose.msra.mxu0 0.0
    %3521 = vmatprep.subr.mxu0 0.0
    %3522 = vmatpush1.xpose.msra.mxu0 0.0
    %3523 = vmatprep.subr.mxu0 0.0
    %3524 = vmatpush1.xpose.msra.mxu0 0.0
    %3525 = vmatprep.subr.mxu0 0.0
    %3526 = vmatpush1.xpose.msra.mxu0 0.0
    %3527 = vmatprep.subr.mxu0 0.0
    %3528 = vmatpush1.xpose.msra.mxu0 0.0
    %3529 = vmatprep.subr.mxu0 0.0
    %3530 = vmatpush1.xpose.msra.mxu0 0.0
    %3531 = vmatprep.subr.mxu0 0.0
    %3532 = vmatpush1.xpose.msra.mxu0 0.0
    %3533 = vmatprep.subr.mxu0 0.0
    %3534 = vmatpush1.xpose.msra.mxu0 0.0
    %3535 = vmatprep.subr.mxu0 0.0
    %3536 = vmatpush1.xpose.msra.mxu0 0.0
    %3537 = vmatprep.subr.mxu0 0.0
    %3538 = vmatpush1.xpose.msra.mxu0 0.0
    %3539 = vmatprep.subr.mxu0 0.0
    %3540 = vmatpush1.xpose.msra.mxu0 0.0
    %3541 = vmatprep.subr.mxu0 0.0
    %3542 = vmatpush1.xpose.msra.mxu0 0.0
    %3543 = vmatprep.subr.mxu0 0.0
    %3544 = vmatpush1.xpose.msra.mxu0 0.0
    %3545 = vmatprep.subr.mxu0 0.0
    %3546 = vmatpush1.xpose.msra.mxu0 0.0
    %3547 = vmatprep.subr.mxu0 0.0
    %3548 = vmatpush1.xpose.msra.mxu0 0.0
    %3549 = vmatprep.subr.mxu0 0.0
    %3550 = vmatpush1.xpose.msra.mxu0 0.0
    %3551 = vmatprep.subr.mxu0 0.0
    %3552 = vmatpush1.xpose.msra.mxu0 0.0
    %3553 = vmatprep.subr.mxu0 0.0
    %3554 = vmatpush1.xpose.msra.mxu0 0.0
    %3555 = vmatprep.subr.mxu0 0.0
    %3556 = vmatpush1.xpose.msra.mxu0 0.0
    %3557 = vmatprep.subr.mxu0 0.0
    %3558 = vmatpush1.xpose.msra.mxu0 0.0
    %3559 = vmatprep.subr.mxu0 0.0
    %3560 = vmatpush1.xpose.msra.mxu0 0.0
    %3561 = vmatprep.subr.mxu0 0.0
    %3562 = vmatpush1.xpose.msra.mxu0 0.0
    %3563 = vmatprep.subr.mxu0 0.0
    %3564 = vmatpush1.xpose.msra.mxu0 0.0
    %3565 = vmatprep.subr.mxu0 0.0
    %3566 = vmatpush1.xpose.msra.mxu0 0.0
    %3567 = vmatprep.subr.mxu0 0.0
    %3568 = vmatpush1.xpose.msra.mxu0 0.0
    %3569 = vmatprep.mubr.f32.mxu0 0.0
    %3570 = vmatmul.mubr.f32.gmra.mrb[0].mxu0 %v3501
    %v3571 = vpop.f32.mrb[0].mxu0
    %v3572 = vadd.f32 0.0, %v3571
    %v3573 = vpop.f32.mrb[0].mxu0
    %3574 = vdwg.mxu0
    %3575 = vrot.lane.b32.xlu0 %v502, 64
    %v3576 = vpop.permute.xlu0 %3575
    %3577 = vrot.lane.b32.xlu0 %v504, 64
    %v3578 = vpop.permute.xlu0 %3577
    %v3579 = vsel %vm651, %v3576, 0
    %v3581 = vsel %vm651, %v3578, 0
    %3583 = vmatprep.subr.mxu0 0.0
    %3584 = vmatpush1.xpose.msra.mxu0 %v3581
    %3585 = vmatprep.subr.mxu0 0.0
    %3586 = vmatpush1.xpose.msra.mxu0 0.0
    %3587 = vmatprep.subr.mxu0 0.0
    %3588 = vmatpush1.xpose.msra.mxu0 0.0
    %3589 = vmatprep.subr.mxu0 0.0
    %3590 = vmatpush1.xpose.msra.mxu0 0.0
    %3591 = vmatprep.subr.mxu0 0.0
    %3592 = vmatpush1.xpose.msra.mxu0 0.0
    %3593 = vmatprep.subr.mxu0 0.0
    %3594 = vmatpush1.xpose.msra.mxu0 0.0
    %3595 = vmatprep.subr.mxu0 0.0
    %3596 = vmatpush1.xpose.msra.mxu0 0.0
    %3597 = vmatprep.subr.mxu0 0.0
    %3598 = vmatpush1.xpose.msra.mxu0 0.0
    %3599 = vmatprep.subr.mxu0 0.0
    %3600 = vmatpush1.xpose.msra.mxu0 0.0
    %3601 = vmatprep.subr.mxu0 0.0
    %3602 = vmatpush1.xpose.msra.mxu0 0.0
    %3603 = vmatprep.subr.mxu0 0.0
    %3604 = vmatpush1.xpose.msra.mxu0 0.0
    %3605 = vmatprep.subr.mxu0 0.0
    %3606 = vmatpush1.xpose.msra.mxu0 0.0
    %3607 = vmatprep.subr.mxu0 0.0
    %3608 = vmatpush1.xpose.msra.mxu0 0.0
    %3609 = vmatprep.subr.mxu0 0.0
    %3610 = vmatpush1.xpose.msra.mxu0 0.0
    %3611 = vmatprep.subr.mxu0 0.0
    %3612 = vmatpush1.xpose.msra.mxu0 0.0
    %3613 = vmatprep.subr.mxu0 0.0
    %3614 = vmatpush1.xpose.msra.mxu0 0.0
    %3615 = vmatprep.subr.mxu0 0.0
    %3616 = vmatpush1.xpose.msra.mxu0 0.0
    %3617 = vmatprep.subr.mxu0 0.0
    %3618 = vmatpush1.xpose.msra.mxu0 0.0
    %3619 = vmatprep.subr.mxu0 0.0
    %3620 = vmatpush1.xpose.msra.mxu0 0.0
    %3621 = vmatprep.subr.mxu0 0.0
    %3622 = vmatpush1.xpose.msra.mxu0 0.0
    %3623 = vmatprep.subr.mxu0 0.0
    %3624 = vmatpush1.xpose.msra.mxu0 0.0
    %3625 = vmatprep.subr.mxu0 0.0
    %3626 = vmatpush1.xpose.msra.mxu0 0.0
    %3627 = vmatprep.subr.mxu0 0.0
    %3628 = vmatpush1.xpose.msra.mxu0 0.0
    %3629 = vmatprep.subr.mxu0 0.0
    %3630 = vmatpush1.xpose.msra.mxu0 0.0
    %3631 = vmatprep.subr.mxu0 0.0
    %3632 = vmatpush1.xpose.msra.mxu0 0.0
    %3633 = vmatprep.subr.mxu0 0.0
    %3634 = vmatpush1.xpose.msra.mxu0 0.0
    %3635 = vmatprep.subr.mxu0 0.0
    %3636 = vmatpush1.xpose.msra.mxu0 0.0
    %3637 = vmatprep.subr.mxu0 0.0
    %3638 = vmatpush1.xpose.msra.mxu0 0.0
    %3639 = vmatprep.subr.mxu0 0.0
    %3640 = vmatpush1.xpose.msra.mxu0 0.0
    %3641 = vmatprep.subr.mxu0 0.0
    %3642 = vmatpush1.xpose.msra.mxu0 0.0
    %3643 = vmatprep.subr.mxu0 0.0
    %3644 = vmatpush1.xpose.msra.mxu0 0.0
    %3645 = vmatprep.subr.mxu0 0.0
    %3646 = vmatpush1.xpose.msra.mxu0 0.0
    %3647 = vmatprep.mubr.f32.mxu0 0.0
    %3648 = vmatmul.mubr.f32.gmra.mrb[0].mxu0 %v3579
    %v3649 = vpop.f32.mrb[0].mxu0
    %v3650 = vadd.f32 0.0, %v3649
    %v3651 = vpop.f32.mrb[0].mxu0
    %3652 = vdwg.mxu0
    %3653 = vrot.lane.b32.xlu0 %v508, 64
    %v3654 = vpop.permute.xlu0 %3653
    %3655 = vrot.lane.b32.xlu0 %v510, 64
    %v3656 = vpop.permute.xlu0 %3655
    %v3657 = vsel %vm651, %v3654, 0
    %v3659 = vsel %vm651, %v3656, 0
    %3661 = vmatprep.subr.mxu0 0.0
    %3662 = vmatpush1.xpose.msra.mxu0 %v3659
    %3663 = vmatprep.subr.mxu0 0.0
    %3664 = vmatpush1.xpose.msra.mxu0 0.0
    %3665 = vmatprep.subr.mxu0 0.0
    %3666 = vmatpush1.xpose.msra.mxu0 0.0
    %3667 = vmatprep.subr.mxu0 0.0
    %3668 = vmatpush1.xpose.msra.mxu0 0.0
    %3669 = vmatprep.subr.mxu0 0.0
    %3670 = vmatpush1.xpose.msra.mxu0 0.0
    %3671 = vmatprep.subr.mxu0 0.0
    %3672 = vmatpush1.xpose.msra.mxu0 0.0
    %3673 = vmatprep.subr.mxu0 0.0
    %3674 = vmatpush1.xpose.msra.mxu0 0.0
    %3675 = vmatprep.subr.mxu0 0.0
    %3676 = vmatpush1.xpose.msra.mxu0 0.0
    %3677 = vmatprep.subr.mxu0 0.0
    %3678 = vmatpush1.xpose.msra.mxu0 0.0
    %3679 = vmatprep.subr.mxu0 0.0
    %3680 = vmatpush1.xpose.msra.mxu0 0.0
    %3681 = vmatprep.subr.mxu0 0.0
    %3682 = vmatpush1.xpose.msra.mxu0 0.0
    %3683 = vmatprep.subr.mxu0 0.0
    %3684 = vmatpush1.xpose.msra.mxu0 0.0
    %3685 = vmatprep.subr.mxu0 0.0
    %3686 = vmatpush1.xpose.msra.mxu0 0.0
    %3687 = vmatprep.subr.mxu0 0.0
    %3688 = vmatpush1.xpose.msra.mxu0 0.0
    %3689 = vmatprep.subr.mxu0 0.0
    %3690 = vmatpush1.xpose.msra.mxu0 0.0
    %3691 = vmatprep.subr.mxu0 0.0
    %3692 = vmatpush1.xpose.msra.mxu0 0.0
    %3693 = vmatprep.subr.mxu0 0.0
    %3694 = vmatpush1.xpose.msra.mxu0 0.0
    %3695 = vmatprep.subr.mxu0 0.0
    %3696 = vmatpush1.xpose.msra.mxu0 0.0
    %3697 = vmatprep.subr.mxu0 0.0
    %3698 = vmatpush1.xpose.msra.mxu0 0.0
    %3699 = vmatprep.subr.mxu0 0.0
    %3700 = vmatpush1.xpose.msra.mxu0 0.0
    %3701 = vmatprep.subr.mxu0 0.0
    %3702 = vmatpush1.xpose.msra.mxu0 0.0
    %3703 = vmatprep.subr.mxu0 0.0
    %3704 = vmatpush1.xpose.msra.mxu0 0.0
    %3705 = vmatprep.subr.mxu0 0.0
    %3706 = vmatpush1.xpose.msra.mxu0 0.0
    %3707 = vmatprep.subr.mxu0 0.0
    %3708 = vmatpush1.xpose.msra.mxu0 0.0
    %3709 = vmatprep.subr.mxu0 0.0
    %3710 = vmatpush1.xpose.msra.mxu0 0.0
    %3711 = vmatprep.subr.mxu0 0.0
    %3712 = vmatpush1.xpose.msra.mxu0 0.0
    %3713 = vmatprep.subr.mxu0 0.0
    %3714 = vmatpush1.xpose.msra.mxu0 0.0
    %3715 = vmatprep.subr.mxu0 0.0
    %3716 = vmatpush1.xpose.msra.mxu0 0.0
    %3717 = vmatprep.subr.mxu0 0.0
    %3718 = vmatpush1.xpose.msra.mxu0 0.0
    %3719 = vmatprep.subr.mxu0 0.0
    %3720 = vmatpush1.xpose.msra.mxu0 0.0
    %3721 = vmatprep.subr.mxu0 0.0
    %3722 = vmatpush1.xpose.msra.mxu0 0.0
    %3723 = vmatprep.subr.mxu0 0.0
    %3724 = vmatpush1.xpose.msra.mxu0 0.0
    %3725 = vmatprep.mubr.f32.mxu0 0.0
    %3726 = vmatmul.mubr.f32.gmra.mrb[0].mxu0 %v3657
    %v3727 = vpop.f32.mrb[0].mxu0
    %v3728 = vadd.f32 0.0, %v3727
    %v3729 = vpop.f32.mrb[0].mxu0
    %3730 = vdwg.mxu0
    %3731 = vrot.lane.b32.xlu0 %v512, 64
    %v3732 = vpop.permute.xlu0 %3731
    %3733 = vrot.lane.b32.xlu0 %v514, 64
    %v3734 = vpop.permute.xlu0 %3733
    %v3735 = vsel %vm651, %v3732, 0
    %v3737 = vsel %vm651, %v3734, 0
    %3739 = vmatprep.subr.mxu0 0.0
    %3740 = vmatpush1.xpose.msra.mxu0 %v3737
    %3741 = vmatprep.subr.mxu0 0.0
    %3742 = vmatpush1.xpose.msra.mxu0 0.0
    %3743 = vmatprep.subr.mxu0 0.0
    %3744 = vmatpush1.xpose.msra.mxu0 0.0
    %3745 = vmatprep.subr.mxu0 0.0
    %3746 = vmatpush1.xpose.msra.mxu0 0.0
    %3747 = vmatprep.subr.mxu0 0.0
    %3748 = vmatpush1.xpose.msra.mxu0 0.0
    %3749 = vmatprep.subr.mxu0 0.0
    %3750 = vmatpush1.xpose.msra.mxu0 0.0
    %3751 = vmatprep.subr.mxu0 0.0
    %3752 = vmatpush1.xpose.msra.mxu0 0.0
    %3753 = vmatprep.subr.mxu0 0.0
    %3754 = vmatpush1.xpose.msra.mxu0 0.0
    %3755 = vmatprep.subr.mxu0 0.0
    %3756 = vmatpush1.xpose.msra.mxu0 0.0
    %3757 = vmatprep.subr.mxu0 0.0
    %3758 = vmatpush1.xpose.msra.mxu0 0.0
    %3759 = vmatprep.subr.mxu0 0.0
    %3760 = vmatpush1.xpose.msra.mxu0 0.0
    %3761 = vmatprep.subr.mxu0 0.0
    %3762 = vmatpush1.xpose.msra.mxu0 0.0
    %3763 = vmatprep.subr.mxu0 0.0
    %3764 = vmatpush1.xpose.msra.mxu0 0.0
    %3765 = vmatprep.subr.mxu0 0.0
    %3766 = vmatpush1.xpose.msra.mxu0 0.0
    %3767 = vmatprep.subr.mxu0 0.0
    %3768 = vmatpush1.xpose.msra.mxu0 0.0
    %3769 = vmatprep.subr.mxu0 0.0
    %3770 = vmatpush1.xpose.msra.mxu0 0.0
    %3771 = vmatprep.subr.mxu0 0.0
    %3772 = vmatpush1.xpose.msra.mxu0 0.0
    %3773 = vmatprep.subr.mxu0 0.0
    %3774 = vmatpush1.xpose.msra.mxu0 0.0
    %3775 = vmatprep.subr.mxu0 0.0
    %3776 = vmatpush1.xpose.msra.mxu0 0.0
    %3777 = vmatprep.subr.mxu0 0.0
    %3778 = vmatpush1.xpose.msra.mxu0 0.0
    %3779 = vmatprep.subr.mxu0 0.0
    %3780 = vmatpush1.xpose.msra.mxu0 0.0
    %3781 = vmatprep.subr.mxu0 0.0
    %3782 = vmatpush1.xpose.msra.mxu0 0.0
    %3783 = vmatprep.subr.mxu0 0.0
    %3784 = vmatpush1.xpose.msra.mxu0 0.0
    %3785 = vmatprep.subr.mxu0 0.0
    %3786 = vmatpush1.xpose.msra.mxu0 0.0
    %3787 = vmatprep.subr.mxu0 0.0
    %3788 = vmatpush1.xpose.msra.mxu0 0.0
    %3789 = vmatprep.subr.mxu0 0.0
    %3790 = vmatpush1.xpose.msra.mxu0 0.0
    %3791 = vmatprep.subr.mxu0 0.0
    %3792 = vmatpush1.xpose.msra.mxu0 0.0
    %3793 = vmatprep.subr.mxu0 0.0
    %3794 = vmatpush1.xpose.msra.mxu0 0.0
    %3795 = vmatprep.subr.mxu0 0.0
    %3796 = vmatpush1.xpose.msra.mxu0 0.0
    %3797 = vmatprep.subr.mxu0 0.0
    %3798 = vmatpush1.xpose.msra.mxu0 0.0
    %3799 = vmatprep.subr.mxu0 0.0
    %3800 = vmatpush1.xpose.msra.mxu0 0.0
    %3801 = vmatprep.subr.mxu0 0.0
    %3802 = vmatpush1.xpose.msra.mxu0 0.0
    %3803 = vmatprep.mubr.f32.mxu0 0.0
    %3804 = vmatmul.mubr.f32.gmra.mrb[0].mxu0 %v3735
    %v3805 = vpop.f32.mrb[0].mxu0
    %v3806 = vadd.f32 0.0, %v3805
    %v3807 = vpop.f32.mrb[0].mxu0
    %3808 = vdwg.mxu0
    %3809 = vrot.lane.b32.xlu0 %v518, 64
    %v3810 = vpop.permute.xlu0 %3809
    %3811 = vrot.lane.b32.xlu0 %v520, 64
    %v3812 = vpop.permute.xlu0 %3811
    %v3813 = vsel %vm651, %v3810, 0
    %v3815 = vsel %vm651, %v3812, 0
    %3817 = vmatprep.subr.mxu0 0.0
    %3818 = vmatpush1.xpose.msra.mxu0 %v3815
    %3819 = vmatprep.subr.mxu0 0.0
    %3820 = vmatpush1.xpose.msra.mxu0 0.0
    %3821 = vmatprep.subr.mxu0 0.0
    %3822 = vmatpush1.xpose.msra.mxu0 0.0
    %3823 = vmatprep.subr.mxu0 0.0
    %3824 = vmatpush1.xpose.msra.mxu0 0.0
    %3825 = vmatprep.subr.mxu0 0.0
    %3826 = vmatpush1.xpose.msra.mxu0 0.0
    %3827 = vmatprep.subr.mxu0 0.0
    %3828 = vmatpush1.xpose.msra.mxu0 0.0
    %3829 = vmatprep.subr.mxu0 0.0
    %3830 = vmatpush1.xpose.msra.mxu0 0.0
    %3831 = vmatprep.subr.mxu0 0.0
    %3832 = vmatpush1.xpose.msra.mxu0 0.0
    %3833 = vmatprep.subr.mxu0 0.0
    %3834 = vmatpush1.xpose.msra.mxu0 0.0
    %3835 = vmatprep.subr.mxu0 0.0
    %3836 = vmatpush1.xpose.msra.mxu0 0.0
    %3837 = vmatprep.subr.mxu0 0.0
    %3838 = vmatpush1.xpose.msra.mxu0 0.0
    %3839 = vmatprep.subr.mxu0 0.0
    %3840 = vmatpush1.xpose.msra.mxu0 0.0
    %3841 = vmatprep.subr.mxu0 0.0
    %3842 = vmatpush1.xpose.msra.mxu0 0.0
    %3843 = vmatprep.subr.mxu0 0.0
    %3844 = vmatpush1.xpose.msra.mxu0 0.0
    %3845 = vmatprep.subr.mxu0 0.0
    %3846 = vmatpush1.xpose.msra.mxu0 0.0
    %3847 = vmatprep.subr.mxu0 0.0
    %3848 = vmatpush1.xpose.msra.mxu0 0.0
    %3849 = vmatprep.subr.mxu0 0.0
    %3850 = vmatpush1.xpose.msra.mxu0 0.0
    %3851 = vmatprep.subr.mxu0 0.0
    %3852 = vmatpush1.xpose.msra.mxu0 0.0
    %3853 = vmatprep.subr.mxu0 0.0
    %3854 = vmatpush1.xpose.msra.mxu0 0.0
    %3855 = vmatprep.subr.mxu0 0.0
    %3856 = vmatpush1.xpose.msra.mxu0 0.0
    %3857 = vmatprep.subr.mxu0 0.0
    %3858 = vmatpush1.xpose.msra.mxu0 0.0
    %3859 = vmatprep.subr.mxu0 0.0
    %3860 = vmatpush1.xpose.msra.mxu0 0.0
    %3861 = vmatprep.subr.mxu0 0.0
    %3862 = vmatpush1.xpose.msra.mxu0 0.0
    %3863 = vmatprep.subr.mxu0 0.0
    %3864 = vmatpush1.xpose.msra.mxu0 0.0
    %3865 = vmatprep.subr.mxu0 0.0
    %3866 = vmatpush1.xpose.msra.mxu0 0.0
    %3867 = vmatprep.subr.mxu0 0.0
    %3868 = vmatpush1.xpose.msra.mxu0 0.0
    %3869 = vmatprep.subr.mxu0 0.0
    %3870 = vmatpush1.xpose.msra.mxu0 0.0
    %3871 = vmatprep.subr.mxu0 0.0
    %3872 = vmatpush1.xpose.msra.mxu0 0.0
    %3873 = vmatprep.subr.mxu0 0.0
    %3874 = vmatpush1.xpose.msra.mxu0 0.0
    %3875 = vmatprep.subr.mxu0 0.0
    %3876 = vmatpush1.xpose.msra.mxu0 0.0
    %3877 = vmatprep.subr.mxu0 0.0
    %3878 = vmatpush1.xpose.msra.mxu0 0.0
    %3879 = vmatprep.subr.mxu0 0.0
    %3880 = vmatpush1.xpose.msra.mxu0 0.0
    %3881 = vmatprep.mubr.f32.mxu0 0.0
    %3882 = vmatmul.mubr.f32.gmra.mrb[0].mxu0 %v3813
    %v3883 = vpop.f32.mrb[0].mxu0
    %v3884 = vadd.f32 0.0, %v3883
    %v3885 = vpop.f32.mrb[0].mxu0
    %3886 = vdwg.mxu0
    %3887 = vrot.lane.b32.xlu0 %v522, 64
    %v3888 = vpop.permute.xlu0 %3887
    %3889 = vrot.lane.b32.xlu0 %v524, 64
    %v3890 = vpop.permute.xlu0 %3889
    %v3891 = vsel %vm651, %v3888, 0
    %v3893 = vsel %vm651, %v3890, 0
    %3895 = vmatprep.subr.mxu0 0.0
    %3896 = vmatpush1.xpose.msra.mxu0 %v3893
    %3897 = vmatprep.subr.mxu0 0.0
    %3898 = vmatpush1.xpose.msra.mxu0 0.0
    %3899 = vmatprep.subr.mxu0 0.0
    %3900 = vmatpush1.xpose.msra.mxu0 0.0
    %3901 = vmatprep.subr.mxu0 0.0
    %3902 = vmatpush1.xpose.msra.mxu0 0.0
    %3903 = vmatprep.subr.mxu0 0.0
    %3904 = vmatpush1.xpose.msra.mxu0 0.0
    %3905 = vmatprep.subr.mxu0 0.0
    %3906 = vmatpush1.xpose.msra.mxu0 0.0
    %3907 = vmatprep.subr.mxu0 0.0
    %3908 = vmatpush1.xpose.msra.mxu0 0.0
    %3909 = vmatprep.subr.mxu0 0.0
    %3910 = vmatpush1.xpose.msra.mxu0 0.0
    %3911 = vmatprep.subr.mxu0 0.0
    %3912 = vmatpush1.xpose.msra.mxu0 0.0
    %3913 = vmatprep.subr.mxu0 0.0
    %3914 = vmatpush1.xpose.msra.mxu0 0.0
    %3915 = vmatprep.subr.mxu0 0.0
    %3916 = vmatpush1.xpose.msra.mxu0 0.0
    %3917 = vmatprep.subr.mxu0 0.0
    %3918 = vmatpush1.xpose.msra.mxu0 0.0
    %3919 = vmatprep.subr.mxu0 0.0
    %3920 = vmatpush1.xpose.msra.mxu0 0.0
    %3921 = vmatprep.subr.mxu0 0.0
    %3922 = vmatpush1.xpose.msra.mxu0 0.0
    %3923 = vmatprep.subr.mxu0 0.0
    %3924 = vmatpush1.xpose.msra.mxu0 0.0
    %3925 = vmatprep.subr.mxu0 0.0
    %3926 = vmatpush1.xpose.msra.mxu0 0.0
    %3927 = vmatprep.subr.mxu0 0.0
    %3928 = vmatpush1.xpose.msra.mxu0 0.0
    %3929 = vmatprep.subr.mxu0 0.0
    %3930 = vmatpush1.xpose.msra.mxu0 0.0
    %3931 = vmatprep.subr.mxu0 0.0
    %3932 = vmatpush1.xpose.msra.mxu0 0.0
    %3933 = vmatprep.subr.mxu0 0.0
    %3934 = vmatpush1.xpose.msra.mxu0 0.0
    %3935 = vmatprep.subr.mxu0 0.0
    %3936 = vmatpush1.xpose.msra.mxu0 0.0
    %3937 = vmatprep.subr.mxu0 0.0
    %3938 = vmatpush1.xpose.msra.mxu0 0.0
    %3939 = vmatprep.subr.mxu0 0.0
    %3940 = vmatpush1.xpose.msra.mxu0 0.0
    %3941 = vmatprep.subr.mxu0 0.0
    %3942 = vmatpush1.xpose.msra.mxu0 0.0
    %3943 = vmatprep.subr.mxu0 0.0
    %3944 = vmatpush1.xpose.msra.mxu0 0.0
    %3945 = vmatprep.subr.mxu0 0.0
    %3946 = vmatpush1.xpose.msra.mxu0 0.0
    %3947 = vmatprep.subr.mxu0 0.0
    %3948 = vmatpush1.xpose.msra.mxu0 0.0
    %3949 = vmatprep.subr.mxu0 0.0
    %3950 = vmatpush1.xpose.msra.mxu0 0.0
    %3951 = vmatprep.subr.mxu0 0.0
    %3952 = vmatpush1.xpose.msra.mxu0 0.0
    %3953 = vmatprep.subr.mxu0 0.0
    %3954 = vmatpush1.xpose.msra.mxu0 0.0
    %3955 = vmatprep.subr.mxu0 0.0
    %3956 = vmatpush1.xpose.msra.mxu0 0.0
    %3957 = vmatprep.subr.mxu0 0.0
    %3958 = vmatpush1.xpose.msra.mxu0 0.0
    %3959 = vmatprep.mubr.f32.mxu0 0.0
    %3960 = vmatmul.mubr.f32.gmra.mrb[0].mxu0 %v3891
    %v3961 = vpop.f32.mrb[0].mxu0
    %v3962 = vadd.f32 0.0, %v3961
    %v3963 = vpop.f32.mrb[0].mxu0
    %3964 = vdwg.mxu0
    %v3965 = vmul.f32 %v3416, 0.03125
    %v3966 = vmul.f32 %v3494, 0.03125
    %v3967 = vmul.f32 %v3572, 0.03125
    %v3968 = vmul.f32 %v3650, 0.03125
    %v3969 = vmul.f32 %v3728, 0.03125
    %v3970 = vmul.f32 %v3806, 0.03125
    %v3971 = vmul.f32 %v3884, 0.03125
    %v3972 = vmul.f32 %v3962, 0.03125
    %v3973 = vsel %vm1308, -1e+09, %v3965
    %v3974 = vsel %vm1309, -1e+09, %v3966
    %v3975 = vsel %vm1310, -1e+09, %v3967
    %v3976 = vsel %vm1311, -1e+09, %v3968
    %v3977 = vsel %vm1312, -1e+09, %v3969
    %v3978 = vsel %vm1313, -1e+09, %v3970
    %v3979 = vsel %vm1314, -1e+09, %v3971
    %v3980 = vsel %vm1315, -1e+09, %v3972
    %v3981 = vsel %vm1324, %v3973, -inf
    %3982 = vmax.xlane.f32.xlu0 %v3981
    %v3983 = vpop.xlane.xlu0 %3982
    %v3984 = vsel %vm1324, %v3974, -inf
    %3985 = vmax.xlane.f32.xlu0 %v3984
    %v3986 = vpop.xlane.xlu0 %3985
    %v3987 = vsel %vm1324, %v3975, -inf
    %3988 = vmax.xlane.f32.xlu0 %v3987
    %v3989 = vpop.xlane.xlu0 %3988
    %v3990 = vsel %vm1324, %v3976, -inf
    %3991 = vmax.xlane.f32.xlu0 %v3990
    %v3992 = vpop.xlane.xlu0 %3991
    %v3993 = vsel %vm1324, %v3977, -inf
    %3994 = vmax.xlane.f32.xlu0 %v3993
    %v3995 = vpop.xlane.xlu0 %3994
    %v3996 = vsel %vm1324, %v3978, -inf
    %3997 = vmax.xlane.f32.xlu0 %v3996
    %v3998 = vpop.xlane.xlu0 %3997
    %v3999 = vsel %vm1324, %v3979, -inf
    %4000 = vmax.xlane.f32.xlu0 %v3999
    %v4001 = vpop.xlane.xlu0 %4000
    %v4002 = vsel %vm1324, %v3980, -inf
    %4003 = vmax.xlane.f32.xlu0 %v4002
    %v4004 = vpop.xlane.xlu0 %4003
    %v4005 = vsub.f32 %v3973, %v3983
    %v4006 = vsub.f32 %v3974, %v3986
    %v4007 = vsub.f32 %v3975, %v3989
    %v4008 = vsub.f32 %v3976, %v3992
    %v4009 = vsub.f32 %v3977, %v3995
    %v4010 = vsub.f32 %v3978, %v3998
    %v4011 = vsub.f32 %v3979, %v4001
    %v4012 = vsub.f32 %v3980, %v4004
    %v4013 = vmul.f32 %v4005, 1.442695
    %v4014 = vpow.pop %v4013
    %v4015 = vmul.f32 %v4006, 1.442695
    %v4016 = vpow.pop %v4015
    %v4017 = vmul.f32 %v4007, 1.442695
    %v4018 = vpow.pop %v4017
    %v4019 = vmul.f32 %v4008, 1.442695
    %v4020 = vpow.pop %v4019
    %v4021 = vmul.f32 %v4009, 1.442695
    %v4022 = vpow.pop %v4021
    %v4023 = vmul.f32 %v4010, 1.442695
    %v4024 = vpow.pop %v4023
    %v4025 = vmul.f32 %v4011, 1.442695
    %v4026 = vpow.pop %v4025
    %v4027 = vmul.f32 %v4012, 1.442695
    %v4028 = vpow.pop %v4027
    %v4029 = vsel %vm1324, %v4014, 0.0
    %4030 = vadd.xlane.f32.xlu0 %v4029
    %v4031 = vpop.xlane.xlu0 %4030
    %v4032 = vsel %vm1324, %v4016, 0.0
    %4033 = vadd.xlane.f32.xlu0 %v4032
    %v4034 = vpop.xlane.xlu0 %4033
    %v4035 = vsel %vm1324, %v4018, 0.0
    %4036 = vadd.xlane.f32.xlu0 %v4035
    %v4037 = vpop.xlane.xlu0 %4036
    %v4038 = vsel %vm1324, %v4020, 0.0
    %4039 = vadd.xlane.f32.xlu0 %v4038
    %v4040 = vpop.xlane.xlu0 %4039
    %v4041 = vsel %vm1324, %v4022, 0.0
    %4042 = vadd.xlane.f32.xlu0 %v4041
    %v4043 = vpop.xlane.xlu0 %4042
    %v4044 = vsel %vm1324, %v4024, 0.0
    %4045 = vadd.xlane.f32.xlu0 %v4044
    %v4046 = vpop.xlane.xlu0 %4045
    %v4047 = vsel %vm1324, %v4026, 0.0
    %4048 = vadd.xlane.f32.xlu0 %v4047
    %v4049 = vpop.xlane.xlu0 %4048
    %v4050 = vsel %vm1324, %v4028, 0.0
    %4051 = vadd.xlane.f32.xlu0 %v4050
    %v4052 = vpop.xlane.xlu0 %4051
    %v4053 = vrcp.pop %v4031
    %v4054 = vrcp.pop %v4034
    %v4055 = vrcp.pop %v4037
    %v4056 = vrcp.pop %v4040
    %v4057 = vrcp.pop %v4043
    %v4058 = vrcp.pop %v4046
    %v4059 = vrcp.pop %v4049
    %v4060 = vrcp.pop %v4052
    %v4061 = vmul.f32 %v4014, %v4053
    %v4062 = vmul.f32 %v4016, %v4054
    %v4063 = vmul.f32 %v4018, %v4055
    %v4064 = vmul.f32 %v4020, %v4056
    %v4065 = vmul.f32 %v4022, %v4057
    %v4066 = vmul.f32 %v4024, %v4058
    %v4067 = vmul.f32 %v4026, %v4059
    %v4068 = vmul.f32 %v4028, %v4060
    %4069 = vrot.lane.b32.xlu0 %v561, 64
    %v4070 = vpop.permute.xlu0 %4069
    %v4073 = vsel %vm1324, %v4061, 0
    %4075 = vmatprep.subr.mxu0 0.0
    %4076 = vmatpush1.msra.mxu0 %v4070
    %4077 = vmatprep.subr.mxu0 0.0
    %4078 = vmatpush1.msra.mxu0 0.0
    %4079 = vmatprep.subr.mxu0 0.0
    %4080 = vmatpush1.msra.mxu0 0.0
    %4081 = vmatprep.subr.mxu0 0.0
    %4082 = vmatpush1.msra.mxu0 0.0
    %4083 = vmatprep.subr.mxu0 0.0
    %4084 = vmatpush1.msra.mxu0 0.0
    %4085 = vmatprep.subr.mxu0 0.0
    %4086 = vmatpush1.msra.mxu0 0.0
    %4087 = vmatprep.subr.mxu0 0.0
    %4088 = vmatpush1.msra.mxu0 0.0
    %4089 = vmatprep.subr.mxu0 0.0
    %4090 = vmatpush1.msra.mxu0 0.0
    %4091 = vmatprep.subr.mxu0 0.0
    %4092 = vmatpush1.msra.mxu0 0.0
    %4093 = vmatprep.subr.mxu0 0.0
    %4094 = vmatpush1.msra.mxu0 0.0
    %4095 = vmatprep.subr.mxu0 0.0
    %4096 = vmatpush1.msra.mxu0 0.0
    %4097 = vmatprep.subr.mxu0 0.0
    %4098 = vmatpush1.msra.mxu0 0.0
    %4099 = vmatprep.subr.mxu0 0.0
    %4100 = vmatpush1.msra.mxu0 0.0
    %4101 = vmatprep.subr.mxu0 0.0
    %4102 = vmatpush1.msra.mxu0 0.0
    %4103 = vmatprep.subr.mxu0 0.0
    %4104 = vmatpush1.msra.mxu0 0.0
    %4105 = vmatprep.subr.mxu0 0.0
    %4106 = vmatpush1.msra.mxu0 0.0
    %4107 = vmatprep.subr.mxu0 0.0
    %4108 = vmatpush1.msra.mxu0 0.0
    %4109 = vmatprep.subr.mxu0 0.0
    %4110 = vmatpush1.msra.mxu0 0.0
    %4111 = vmatprep.subr.mxu0 0.0
    %4112 = vmatpush1.msra.mxu0 0.0
    %4113 = vmatprep.subr.mxu0 0.0
    %4114 = vmatpush1.msra.mxu0 0.0
    %4115 = vmatprep.subr.mxu0 0.0
    %4116 = vmatpush1.msra.mxu0 0.0
    %4117 = vmatprep.subr.mxu0 0.0
    %4118 = vmatpush1.msra.mxu0 0.0
    %4119 = vmatprep.subr.mxu0 0.0
    %4120 = vmatpush1.msra.mxu0 0.0
    %4121 = vmatprep.subr.mxu0 0.0
    %4122 = vmatpush1.msra.mxu0 0.0
    %4123 = vmatprep.subr.mxu0 0.0
    %4124 = vmatpush1.msra.mxu0 0.0
    %4125 = vmatprep.subr.mxu0 0.0
    %4126 = vmatpush1.msra.mxu0 0.0
    %4127 = vmatprep.subr.mxu0 0.0
    %4128 = vmatpush1.msra.mxu0 0.0
    %4129 = vmatprep.subr.mxu0 0.0
    %4130 = vmatpush1.msra.mxu0 0.0
    %4131 = vmatprep.subr.mxu0 0.0
    %4132 = vmatpush1.msra.mxu0 0.0
    %4133 = vmatprep.subr.mxu0 0.0
    %4134 = vmatpush1.msra.mxu0 0.0
    %4135 = vmatprep.subr.mxu0 0.0
    %4136 = vmatpush1.msra.mxu0 0.0
    %4137 = vmatprep.subr.mxu0 0.0
    %4138 = vmatpush1.msra.mxu0 0.0
    %4139 = vmatprep.mubr.f32.mxu0 0.0
    %4140 = vmatmul.mubr.f32.gmra.mrb[0].mxu0 %v4073
    %v4141 = vpop.f32.mrb[0].mxu0
    %v4142 = vadd.f32 0.0, %v4141
    %v4143 = vpop.f32.mrb[0].mxu0
    %4144 = vdwg.mxu0
    %4145 = vrot.lane.b32.xlu0 %v564, 64
    %v4146 = vpop.permute.xlu0 %4145
    %v4149 = vsel %vm1324, %v4062, 0
    %4151 = vmatprep.subr.mxu0 0.0
    %4152 = vmatpush1.msra.mxu0 %v4146
    %4153 = vmatprep.subr.mxu0 0.0
    %4154 = vmatpush1.msra.mxu0 0.0
    %4155 = vmatprep.subr.mxu0 0.0
    %4156 = vmatpush1.msra.mxu0 0.0
    %4157 = vmatprep.subr.mxu0 0.0
    %4158 = vmatpush1.msra.mxu0 0.0
    %4159 = vmatprep.subr.mxu0 0.0
    %4160 = vmatpush1.msra.mxu0 0.0
    %4161 = vmatprep.subr.mxu0 0.0
    %4162 = vmatpush1.msra.mxu0 0.0
    %4163 = vmatprep.subr.mxu0 0.0
    %4164 = vmatpush1.msra.mxu0 0.0
    %4165 = vmatprep.subr.mxu0 0.0
    %4166 = vmatpush1.msra.mxu0 0.0
    %4167 = vmatprep.subr.mxu0 0.0
    %4168 = vmatpush1.msra.mxu0 0.0
    %4169 = vmatprep.subr.mxu0 0.0
    %4170 = vmatpush1.msra.mxu0 0.0
    %4171 = vmatprep.subr.mxu0 0.0
    %4172 = vmatpush1.msra.mxu0 0.0
    %4173 = vmatprep.subr.mxu0 0.0
    %4174 = vmatpush1.msra.mxu0 0.0
    %4175 = vmatprep.subr.mxu0 0.0
    %4176 = vmatpush1.msra.mxu0 0.0
    %4177 = vmatprep.subr.mxu0 0.0
    %4178 = vmatpush1.msra.mxu0 0.0
    %4179 = vmatprep.subr.mxu0 0.0
    %4180 = vmatpush1.msra.mxu0 0.0
    %4181 = vmatprep.subr.mxu0 0.0
    %4182 = vmatpush1.msra.mxu0 0.0
    %4183 = vmatprep.subr.mxu0 0.0
    %4184 = vmatpush1.msra.mxu0 0.0
    %4185 = vmatprep.subr.mxu0 0.0
    %4186 = vmatpush1.msra.mxu0 0.0
    %4187 = vmatprep.subr.mxu0 0.0
    %4188 = vmatpush1.msra.mxu0 0.0
    %4189 = vmatprep.subr.mxu0 0.0
    %4190 = vmatpush1.msra.mxu0 0.0
    %4191 = vmatprep.subr.mxu0 0.0
    %4192 = vmatpush1.msra.mxu0 0.0
    %4193 = vmatprep.subr.mxu0 0.0
    %4194 = vmatpush1.msra.mxu0 0.0
    %4195 = vmatprep.subr.mxu0 0.0
    %4196 = vmatpush1.msra.mxu0 0.0
    %4197 = vmatprep.subr.mxu0 0.0
    %4198 = vmatpush1.msra.mxu0 0.0
    %4199 = vmatprep.subr.mxu0 0.0
    %4200 = vmatpush1.msra.mxu0 0.0
    %4201 = vmatprep.subr.mxu0 0.0
    %4202 = vmatpush1.msra.mxu0 0.0
    %4203 = vmatprep.subr.mxu0 0.0
    %4204 = vmatpush1.msra.mxu0 0.0
    %4205 = vmatprep.subr.mxu0 0.0
    %4206 = vmatpush1.msra.mxu0 0.0
    %4207 = vmatprep.subr.mxu0 0.0
    %4208 = vmatpush1.msra.mxu0 0.0
    %4209 = vmatprep.subr.mxu0 0.0
    %4210 = vmatpush1.msra.mxu0 0.0
    %4211 = vmatprep.subr.mxu0 0.0
    %4212 = vmatpush1.msra.mxu0 0.0
    %4213 = vmatprep.subr.mxu0 0.0
    %4214 = vmatpush1.msra.mxu0 0.0
    %4215 = vmatprep.mubr.f32.mxu0 0.0
    %4216 = vmatmul.mubr.f32.gmra.mrb[0].mxu0 %v4149
    %v4217 = vpop.f32.mrb[0].mxu0
    %v4218 = vadd.f32 0.0, %v4217
    %v4219 = vpop.f32.mrb[0].mxu0
    %4220 = vdwg.mxu0
    %4221 = vrot.lane.b32.xlu0 %v569, 64
    %v4222 = vpop.permute.xlu0 %4221
    %v4225 = vsel %vm1324, %v4063, 0
    %4227 = vmatprep.subr.mxu0 0.0
    %4228 = vmatpush1.msra.mxu0 %v4222
    %4229 = vmatprep.subr.mxu0 0.0
    %4230 = vmatpush1.msra.mxu0 0.0
    %4231 = vmatprep.subr.mxu0 0.0
    %4232 = vmatpush1.msra.mxu0 0.0
    %4233 = vmatprep.subr.mxu0 0.0
    %4234 = vmatpush1.msra.mxu0 0.0
    %4235 = vmatprep.subr.mxu0 0.0
    %4236 = vmatpush1.msra.mxu0 0.0
    %4237 = vmatprep.subr.mxu0 0.0
    %4238 = vmatpush1.msra.mxu0 0.0
    %4239 = vmatprep.subr.mxu0 0.0
    %4240 = vmatpush1.msra.mxu0 0.0
    %4241 = vmatprep.subr.mxu0 0.0
    %4242 = vmatpush1.msra.mxu0 0.0
    %4243 = vmatprep.subr.mxu0 0.0
    %4244 = vmatpush1.msra.mxu0 0.0
    %4245 = vmatprep.subr.mxu0 0.0
    %4246 = vmatpush1.msra.mxu0 0.0
    %4247 = vmatprep.subr.mxu0 0.0
    %4248 = vmatpush1.msra.mxu0 0.0
    %4249 = vmatprep.subr.mxu0 0.0
    %4250 = vmatpush1.msra.mxu0 0.0
    %4251 = vmatprep.subr.mxu0 0.0
    %4252 = vmatpush1.msra.mxu0 0.0
    %4253 = vmatprep.subr.mxu0 0.0
    %4254 = vmatpush1.msra.mxu0 0.0
    %4255 = vmatprep.subr.mxu0 0.0
    %4256 = vmatpush1.msra.mxu0 0.0
    %4257 = vmatprep.subr.mxu0 0.0
    %4258 = vmatpush1.msra.mxu0 0.0
    %4259 = vmatprep.subr.mxu0 0.0
    %4260 = vmatpush1.msra.mxu0 0.0
    %4261 = vmatprep.subr.mxu0 0.0
    %4262 = vmatpush1.msra.mxu0 0.0
    %4263 = vmatprep.subr.mxu0 0.0
    %4264 = vmatpush1.msra.mxu0 0.0
    %4265 = vmatprep.subr.mxu0 0.0
    %4266 = vmatpush1.msra.mxu0 0.0
    %4267 = vmatprep.subr.mxu0 0.0
    %4268 = vmatpush1.msra.mxu0 0.0
    %4269 = vmatprep.subr.mxu0 0.0
    %4270 = vmatpush1.msra.mxu0 0.0
    %4271 = vmatprep.subr.mxu0 0.0
    %4272 = vmatpush1.msra.mxu0 0.0
    %4273 = vmatprep.subr.mxu0 0.0
    %4274 = vmatpush1.msra.mxu0 0.0
    %4275 = vmatprep.subr.mxu0 0.0
    %4276 = vmatpush1.msra.mxu0 0.0
    %4277 = vmatprep.subr.mxu0 0.0
    %4278 = vmatpush1.msra.mxu0 0.0
    %4279 = vmatprep.subr.mxu0 0.0
    %4280 = vmatpush1.msra.mxu0 0.0
    %4281 = vmatprep.subr.mxu0 0.0
    %4282 = vmatpush1.msra.mxu0 0.0
    %4283 = vmatprep.subr.mxu0 0.0
    %4284 = vmatpush1.msra.mxu0 0.0
    %4285 = vmatprep.subr.mxu0 0.0
    %4286 = vmatpush1.msra.mxu0 0.0
    %4287 = vmatprep.subr.mxu0 0.0
    %4288 = vmatpush1.msra.mxu0 0.0
    %4289 = vmatprep.subr.mxu0 0.0
    %4290 = vmatpush1.msra.mxu0 0.0
    %4291 = vmatprep.mubr.f32.mxu0 0.0
    %4292 = vmatmul.mubr.f32.gmra.mrb[0].mxu0 %v4225
    %v4293 = vpop.f32.mrb[0].mxu0
    %v4294 = vadd.f32 0.0, %v4293
    %v4295 = vpop.f32.mrb[0].mxu0
    %4296 = vdwg.mxu0
    %4297 = vrot.lane.b32.xlu0 %v572, 64
    %v4298 = vpop.permute.xlu0 %4297
    %v4301 = vsel %vm1324, %v4064, 0
    %4303 = vmatprep.subr.mxu0 0.0
    %4304 = vmatpush1.msra.mxu0 %v4298
    %4305 = vmatprep.subr.mxu0 0.0
    %4306 = vmatpush1.msra.mxu0 0.0
    %4307 = vmatprep.subr.mxu0 0.0
    %4308 = vmatpush1.msra.mxu0 0.0
    %4309 = vmatprep.subr.mxu0 0.0
    %4310 = vmatpush1.msra.mxu0 0.0
    %4311 = vmatprep.subr.mxu0 0.0
    %4312 = vmatpush1.msra.mxu0 0.0
    %4313 = vmatprep.subr.mxu0 0.0
    %4314 = vmatpush1.msra.mxu0 0.0
    %4315 = vmatprep.subr.mxu0 0.0
    %4316 = vmatpush1.msra.mxu0 0.0
    %4317 = vmatprep.subr.mxu0 0.0
    %4318 = vmatpush1.msra.mxu0 0.0
    %4319 = vmatprep.subr.mxu0 0.0
    %4320 = vmatpush1.msra.mxu0 0.0
    %4321 = vmatprep.subr.mxu0 0.0
    %4322 = vmatpush1.msra.mxu0 0.0
    %4323 = vmatprep.subr.mxu0 0.0
    %4324 = vmatpush1.msra.mxu0 0.0
    %4325 = vmatprep.subr.mxu0 0.0
    %4326 = vmatpush1.msra.mxu0 0.0
    %4327 = vmatprep.subr.mxu0 0.0
    %4328 = vmatpush1.msra.mxu0 0.0
    %4329 = vmatprep.subr.mxu0 0.0
    %4330 = vmatpush1.msra.mxu0 0.0
    %4331 = vmatprep.subr.mxu0 0.0
    %4332 = vmatpush1.msra.mxu0 0.0
    %4333 = vmatprep.subr.mxu0 0.0
    %4334 = vmatpush1.msra.mxu0 0.0
    %4335 = vmatprep.subr.mxu0 0.0
    %4336 = vmatpush1.msra.mxu0 0.0
    %4337 = vmatprep.subr.mxu0 0.0
    %4338 = vmatpush1.msra.mxu0 0.0
    %4339 = vmatprep.subr.mxu0 0.0
    %4340 = vmatpush1.msra.mxu0 0.0
    %4341 = vmatprep.subr.mxu0 0.0
    %4342 = vmatpush1.msra.mxu0 0.0
    %4343 = vmatprep.subr.mxu0 0.0
    %4344 = vmatpush1.msra.mxu0 0.0
    %4345 = vmatprep.subr.mxu0 0.0
    %4346 = vmatpush1.msra.mxu0 0.0
    %4347 = vmatprep.subr.mxu0 0.0
    %4348 = vmatpush1.msra.mxu0 0.0
    %4349 = vmatprep.subr.mxu0 0.0
    %4350 = vmatpush1.msra.mxu0 0.0
    %4351 = vmatprep.subr.mxu0 0.0
    %4352 = vmatpush1.msra.mxu0 0.0
    %4353 = vmatprep.subr.mxu0 0.0
    %4354 = vmatpush1.msra.mxu0 0.0
    %4355 = vmatprep.subr.mxu0 0.0
    %4356 = vmatpush1.msra.mxu0 0.0
    %4357 = vmatprep.subr.mxu0 0.0
    %4358 = vmatpush1.msra.mxu0 0.0
    %4359 = vmatprep.subr.mxu0 0.0
    %4360 = vmatpush1.msra.mxu0 0.0
    %4361 = vmatprep.subr.mxu0 0.0
    %4362 = vmatpush1.msra.mxu0 0.0
    %4363 = vmatprep.subr.mxu0 0.0
    %4364 = vmatpush1.msra.mxu0 0.0
    %4365 = vmatprep.subr.mxu0 0.0
    %4366 = vmatpush1.msra.mxu0 0.0
    %4367 = vmatprep.mubr.f32.mxu0 0.0
    %4368 = vmatmul.mubr.f32.gmra.mrb[0].mxu0 %v4301
    %v4369 = vpop.f32.mrb[0].mxu0
    %v4370 = vadd.f32 0.0, %v4369
    %v4371 = vpop.f32.mrb[0].mxu0
    %4372 = vdwg.mxu0
    %4373 = vrot.lane.b32.xlu0 %v577, 64
    %v4374 = vpop.permute.xlu0 %4373
    %v4377 = vsel %vm1324, %v4065, 0
    %4379 = vmatprep.subr.mxu0 0.0
    %4380 = vmatpush1.msra.mxu0 %v4374
    %4381 = vmatprep.subr.mxu0 0.0
    %4382 = vmatpush1.msra.mxu0 0.0
    %4383 = vmatprep.subr.mxu0 0.0
    %4384 = vmatpush1.msra.mxu0 0.0
    %4385 = vmatprep.subr.mxu0 0.0
    %4386 = vmatpush1.msra.mxu0 0.0
    %4387 = vmatprep.subr.mxu0 0.0
    %4388 = vmatpush1.msra.mxu0 0.0
    %4389 = vmatprep.subr.mxu0 0.0
    %4390 = vmatpush1.msra.mxu0 0.0
    %4391 = vmatprep.subr.mxu0 0.0
    %4392 = vmatpush1.msra.mxu0 0.0
    %4393 = vmatprep.subr.mxu0 0.0
    %4394 = vmatpush1.msra.mxu0 0.0
    %4395 = vmatprep.subr.mxu0 0.0
    %4396 = vmatpush1.msra.mxu0 0.0
    %4397 = vmatprep.subr.mxu0 0.0
    %4398 = vmatpush1.msra.mxu0 0.0
    %4399 = vmatprep.subr.mxu0 0.0
    %4400 = vmatpush1.msra.mxu0 0.0
    %4401 = vmatprep.subr.mxu0 0.0
    %4402 = vmatpush1.msra.mxu0 0.0
    %4403 = vmatprep.subr.mxu0 0.0
    %4404 = vmatpush1.msra.mxu0 0.0
    %4405 = vmatprep.subr.mxu0 0.0
    %4406 = vmatpush1.msra.mxu0 0.0
    %4407 = vmatprep.subr.mxu0 0.0
    %4408 = vmatpush1.msra.mxu0 0.0
    %4409 = vmatprep.subr.mxu0 0.0
    %4410 = vmatpush1.msra.mxu0 0.0
    %4411 = vmatprep.subr.mxu0 0.0
    %4412 = vmatpush1.msra.mxu0 0.0
    %4413 = vmatprep.subr.mxu0 0.0
    %4414 = vmatpush1.msra.mxu0 0.0
    %4415 = vmatprep.subr.mxu0 0.0
    %4416 = vmatpush1.msra.mxu0 0.0
    %4417 = vmatprep.subr.mxu0 0.0
    %4418 = vmatpush1.msra.mxu0 0.0
    %4419 = vmatprep.subr.mxu0 0.0
    %4420 = vmatpush1.msra.mxu0 0.0
    %4421 = vmatprep.subr.mxu0 0.0
    %4422 = vmatpush1.msra.mxu0 0.0
    %4423 = vmatprep.subr.mxu0 0.0
    %4424 = vmatpush1.msra.mxu0 0.0
    %4425 = vmatprep.subr.mxu0 0.0
    %4426 = vmatpush1.msra.mxu0 0.0
    %4427 = vmatprep.subr.mxu0 0.0
    %4428 = vmatpush1.msra.mxu0 0.0
    %4429 = vmatprep.subr.mxu0 0.0
    %4430 = vmatpush1.msra.mxu0 0.0
    %4431 = vmatprep.subr.mxu0 0.0
    %4432 = vmatpush1.msra.mxu0 0.0
    %4433 = vmatprep.subr.mxu0 0.0
    %4434 = vmatpush1.msra.mxu0 0.0
    %4435 = vmatprep.subr.mxu0 0.0
    %4436 = vmatpush1.msra.mxu0 0.0
    %4437 = vmatprep.subr.mxu0 0.0
    %4438 = vmatpush1.msra.mxu0 0.0
    %4439 = vmatprep.subr.mxu0 0.0
    %4440 = vmatpush1.msra.mxu0 0.0
    %4441 = vmatprep.subr.mxu0 0.0
    %4442 = vmatpush1.msra.mxu0 0.0
    %4443 = vmatprep.mubr.f32.mxu0 0.0
    %4444 = vmatmul.mubr.f32.gmra.mrb[0].mxu0 %v4377
    %v4445 = vpop.f32.mrb[0].mxu0
    %v4446 = vadd.f32 0.0, %v4445
    %v4447 = vpop.f32.mrb[0].mxu0
    %4448 = vdwg.mxu0
    %4449 = vrot.lane.b32.xlu0 %v580, 64
    %v4450 = vpop.permute.xlu0 %4449
    %v4453 = vsel %vm1324, %v4066, 0
    %4455 = vmatprep.subr.mxu0 0.0
    %4456 = vmatpush1.msra.mxu0 %v4450
    %4457 = vmatprep.subr.mxu0 0.0
    %4458 = vmatpush1.msra.mxu0 0.0
    %4459 = vmatprep.subr.mxu0 0.0
    %4460 = vmatpush1.msra.mxu0 0.0
    %4461 = vmatprep.subr.mxu0 0.0
    %4462 = vmatpush1.msra.mxu0 0.0
    %4463 = vmatprep.subr.mxu0 0.0
    %4464 = vmatpush1.msra.mxu0 0.0
    %4465 = vmatprep.subr.mxu0 0.0
    %4466 = vmatpush1.msra.mxu0 0.0
    %4467 = vmatprep.subr.mxu0 0.0
    %4468 = vmatpush1.msra.mxu0 0.0
    %4469 = vmatprep.subr.mxu0 0.0
    %4470 = vmatpush1.msra.mxu0 0.0
    %4471 = vmatprep.subr.mxu0 0.0
    %4472 = vmatpush1.msra.mxu0 0.0
    %4473 = vmatprep.subr.mxu0 0.0
    %4474 = vmatpush1.msra.mxu0 0.0
    %4475 = vmatprep.subr.mxu0 0.0
    %4476 = vmatpush1.msra.mxu0 0.0
    %4477 = vmatprep.subr.mxu0 0.0
    %4478 = vmatpush1.msra.mxu0 0.0
    %4479 = vmatprep.subr.mxu0 0.0
    %4480 = vmatpush1.msra.mxu0 0.0
    %4481 = vmatprep.subr.mxu0 0.0
    %4482 = vmatpush1.msra.mxu0 0.0
    %4483 = vmatprep.subr.mxu0 0.0
    %4484 = vmatpush1.msra.mxu0 0.0
    %4485 = vmatprep.subr.mxu0 0.0
    %4486 = vmatpush1.msra.mxu0 0.0
    %4487 = vmatprep.subr.mxu0 0.0
    %4488 = vmatpush1.msra.mxu0 0.0
    %4489 = vmatprep.subr.mxu0 0.0
    %4490 = vmatpush1.msra.mxu0 0.0
    %4491 = vmatprep.subr.mxu0 0.0
    %4492 = vmatpush1.msra.mxu0 0.0
    %4493 = vmatprep.subr.mxu0 0.0
    %4494 = vmatpush1.msra.mxu0 0.0
    %4495 = vmatprep.subr.mxu0 0.0
    %4496 = vmatpush1.msra.mxu0 0.0
    %4497 = vmatprep.subr.mxu0 0.0
    %4498 = vmatpush1.msra.mxu0 0.0
    %4499 = vmatprep.subr.mxu0 0.0
    %4500 = vmatpush1.msra.mxu0 0.0
    %4501 = vmatprep.subr.mxu0 0.0
    %4502 = vmatpush1.msra.mxu0 0.0
    %4503 = vmatprep.subr.mxu0 0.0
    %4504 = vmatpush1.msra.mxu0 0.0
    %4505 = vmatprep.subr.mxu0 0.0
    %4506 = vmatpush1.msra.mxu0 0.0
    %4507 = vmatprep.subr.mxu0 0.0
    %4508 = vmatpush1.msra.mxu0 0.0
    %4509 = vmatprep.subr.mxu0 0.0
    %4510 = vmatpush1.msra.mxu0 0.0
    %4511 = vmatprep.subr.mxu0 0.0
    %4512 = vmatpush1.msra.mxu0 0.0
    %4513 = vmatprep.subr.mxu0 0.0
    %4514 = vmatpush1.msra.mxu0 0.0
    %4515 = vmatprep.subr.mxu0 0.0
    %4516 = vmatpush1.msra.mxu0 0.0
    %4517 = vmatprep.subr.mxu0 0.0
    %4518 = vmatpush1.msra.mxu0 0.0
    %4519 = vmatprep.mubr.f32.mxu0 0.0
    %4520 = vmatmul.mubr.f32.gmra.mrb[0].mxu0 %v4453
    %v4521 = vpop.f32.mrb[0].mxu0
    %v4522 = vadd.f32 0.0, %v4521
    %v4523 = vpop.f32.mrb[0].mxu0
    %4524 = vdwg.mxu0
    %4525 = vrot.lane.b32.xlu0 %v585, 64
    %v4526 = vpop.permute.xlu0 %4525
    %v4529 = vsel %vm1324, %v4067, 0
    %4531 = vmatprep.subr.mxu0 0.0
    %4532 = vmatpush1.msra.mxu0 %v4526
    %4533 = vmatprep.subr.mxu0 0.0
    %4534 = vmatpush1.msra.mxu0 0.0
    %4535 = vmatprep.subr.mxu0 0.0
    %4536 = vmatpush1.msra.mxu0 0.0
    %4537 = vmatprep.subr.mxu0 0.0
    %4538 = vmatpush1.msra.mxu0 0.0
    %4539 = vmatprep.subr.mxu0 0.0
    %4540 = vmatpush1.msra.mxu0 0.0
    %4541 = vmatprep.subr.mxu0 0.0
    %4542 = vmatpush1.msra.mxu0 0.0
    %4543 = vmatprep.subr.mxu0 0.0
    %4544 = vmatpush1.msra.mxu0 0.0
    %4545 = vmatprep.subr.mxu0 0.0
    %4546 = vmatpush1.msra.mxu0 0.0
    %4547 = vmatprep.subr.mxu0 0.0
    %4548 = vmatpush1.msra.mxu0 0.0
    %4549 = vmatprep.subr.mxu0 0.0
    %4550 = vmatpush1.msra.mxu0 0.0
    %4551 = vmatprep.subr.mxu0 0.0
    %4552 = vmatpush1.msra.mxu0 0.0
    %4553 = vmatprep.subr.mxu0 0.0
    %4554 = vmatpush1.msra.mxu0 0.0
    %4555 = vmatprep.subr.mxu0 0.0
    %4556 = vmatpush1.msra.mxu0 0.0
    %4557 = vmatprep.subr.mxu0 0.0
    %4558 = vmatpush1.msra.mxu0 0.0
    %4559 = vmatprep.subr.mxu0 0.0
    %4560 = vmatpush1.msra.mxu0 0.0
    %4561 = vmatprep.subr.mxu0 0.0
    %4562 = vmatpush1.msra.mxu0 0.0
    %4563 = vmatprep.subr.mxu0 0.0
    %4564 = vmatpush1.msra.mxu0 0.0
    %4565 = vmatprep.subr.mxu0 0.0
    %4566 = vmatpush1.msra.mxu0 0.0
    %4567 = vmatprep.subr.mxu0 0.0
    %4568 = vmatpush1.msra.mxu0 0.0
    %4569 = vmatprep.subr.mxu0 0.0
    %4570 = vmatpush1.msra.mxu0 0.0
    %4571 = vmatprep.subr.mxu0 0.0
    %4572 = vmatpush1.msra.mxu0 0.0
    %4573 = vmatprep.subr.mxu0 0.0
    %4574 = vmatpush1.msra.mxu0 0.0
    %4575 = vmatprep.subr.mxu0 0.0
    %4576 = vmatpush1.msra.mxu0 0.0
    %4577 = vmatprep.subr.mxu0 0.0
    %4578 = vmatpush1.msra.mxu0 0.0
    %4579 = vmatprep.subr.mxu0 0.0
    %4580 = vmatpush1.msra.mxu0 0.0
    %4581 = vmatprep.subr.mxu0 0.0
    %4582 = vmatpush1.msra.mxu0 0.0
    %4583 = vmatprep.subr.mxu0 0.0
    %4584 = vmatpush1.msra.mxu0 0.0
    %4585 = vmatprep.subr.mxu0 0.0
    %4586 = vmatpush1.msra.mxu0 0.0
    %4587 = vmatprep.subr.mxu0 0.0
    %4588 = vmatpush1.msra.mxu0 0.0
    %4589 = vmatprep.subr.mxu0 0.0
    %4590 = vmatpush1.msra.mxu0 0.0
    %4591 = vmatprep.subr.mxu0 0.0
    %4592 = vmatpush1.msra.mxu0 0.0
    %4593 = vmatprep.subr.mxu0 0.0
    %4594 = vmatpush1.msra.mxu0 0.0
    %4595 = vmatprep.mubr.f32.mxu0 0.0
    %4596 = vmatmul.mubr.f32.gmra.mrb[0].mxu0 %v4529
    %v4597 = vpop.f32.mrb[0].mxu0
    %v4598 = vadd.f32 0.0, %v4597
    %v4599 = vpop.f32.mrb[0].mxu0
    %4600 = vdwg.mxu0
    %4601 = vrot.lane.b32.xlu0 %v588, 64
    %v4602 = vpop.permute.xlu0 %4601
    %v4605 = vsel %vm1324, %v4068, 0
    %4607 = vmatprep.subr.mxu0 0.0
    %4608 = vmatpush1.msra.mxu0 %v4602
    %4609 = vmatprep.subr.mxu0 0.0
    %4610 = vmatpush1.msra.mxu0 0.0
    %4611 = vmatprep.subr.mxu0 0.0
    %4612 = vmatpush1.msra.mxu0 0.0
    %4613 = vmatprep.subr.mxu0 0.0
    %4614 = vmatpush1.msra.mxu0 0.0
    %4615 = vmatprep.subr.mxu0 0.0
    %4616 = vmatpush1.msra.mxu0 0.0
    %4617 = vmatprep.subr.mxu0 0.0
    %4618 = vmatpush1.msra.mxu0 0.0
    %4619 = vmatprep.subr.mxu0 0.0
    %4620 = vmatpush1.msra.mxu0 0.0
    %4621 = vmatprep.subr.mxu0 0.0
    %4622 = vmatpush1.msra.mxu0 0.0
    %4623 = vmatprep.subr.mxu0 0.0
    %4624 = vmatpush1.msra.mxu0 0.0
    %4625 = vmatprep.subr.mxu0 0.0
    %4626 = vmatpush1.msra.mxu0 0.0
    %4627 = vmatprep.subr.mxu0 0.0
    %4628 = vmatpush1.msra.mxu0 0.0
    %4629 = vmatprep.subr.mxu0 0.0
    %4630 = vmatpush1.msra.mxu0 0.0
    %4631 = vmatprep.subr.mxu0 0.0
    %4632 = vmatpush1.msra.mxu0 0.0
    %4633 = vmatprep.subr.mxu0 0.0
    %4634 = vmatpush1.msra.mxu0 0.0
    %4635 = vmatprep.subr.mxu0 0.0
    %4636 = vmatpush1.msra.mxu0 0.0
    %4637 = vmatprep.subr.mxu0 0.0
    %4638 = vmatpush1.msra.mxu0 0.0
    %4639 = vmatprep.subr.mxu0 0.0
    %4640 = vmatpush1.msra.mxu0 0.0
    %4641 = vmatprep.subr.mxu0 0.0
    %4642 = vmatpush1.msra.mxu0 0.0
    %4643 = vmatprep.subr.mxu0 0.0
    %4644 = vmatpush1.msra.mxu0 0.0
    %4645 = vmatprep.subr.mxu0 0.0
    %4646 = vmatpush1.msra.mxu0 0.0
    %4647 = vmatprep.subr.mxu0 0.0
    %4648 = vmatpush1.msra.mxu0 0.0
    %4649 = vmatprep.subr.mxu0 0.0
    %4650 = vmatpush1.msra.mxu0 0.0
    %4651 = vmatprep.subr.mxu0 0.0
    %4652 = vmatpush1.msra.mxu0 0.0
    %4653 = vmatprep.subr.mxu0 0.0
    %4654 = vmatpush1.msra.mxu0 0.0
    %4655 = vmatprep.subr.mxu0 0.0
    %4656 = vmatpush1.msra.mxu0 0.0
    %4657 = vmatprep.subr.mxu0 0.0
    %4658 = vmatpush1.msra.mxu0 0.0
    %4659 = vmatprep.subr.mxu0 0.0
    %4660 = vmatpush1.msra.mxu0 0.0
    %4661 = vmatprep.subr.mxu0 0.0
    %4662 = vmatpush1.msra.mxu0 0.0
    %4663 = vmatprep.subr.mxu0 0.0
    %4664 = vmatpush1.msra.mxu0 0.0
    %4665 = vmatprep.subr.mxu0 0.0
    %4666 = vmatpush1.msra.mxu0 0.0
    %4667 = vmatprep.subr.mxu0 0.0
    %4668 = vmatpush1.msra.mxu0 0.0
    %4669 = vmatprep.subr.mxu0 0.0
    %4670 = vmatpush1.msra.mxu0 0.0
    %4671 = vmatprep.mubr.f32.mxu0 0.0
    %4672 = vmatmul.mubr.f32.gmra.mrb[0].mxu0 %v4605
    %v4673 = vpop.f32.mrb[0].mxu0
    %v4674 = vadd.f32 0.0, %v4673
    %v4675 = vpop.f32.mrb[0].mxu0
    %4676 = vdwg.mxu0
    %4677 = vrot.lane.b32.xlu0 %v488, 32
    %v4678 = vpop.permute.xlu0 %4677
    %4679 = vrot.lane.b32.xlu0 %v490, 32
    %v4680 = vpop.permute.xlu0 %4679
    %v4681 = vsel %vm651, %v4678, 0
    %v4683 = vsel %vm651, %v4680, 0
    %4685 = vmatprep.subr.mxu0 0.0
    %4686 = vmatpush1.xpose.msra.mxu0 %v4683
    %4687 = vmatprep.subr.mxu0 0.0
    %4688 = vmatpush1.xpose.msra.mxu0 0.0
    %4689 = vmatprep.subr.mxu0 0.0
    %4690 = vmatpush1.xpose.msra.mxu0 0.0
    %4691 = vmatprep.subr.mxu0 0.0
    %4692 = vmatpush1.xpose.msra.mxu0 0.0
    %4693 = vmatprep.subr.mxu0 0.0
    %4694 = vmatpush1.xpose.msra.mxu0 0.0
    %4695 = vmatprep.subr.mxu0 0.0
    %4696 = vmatpush1.xpose.msra.mxu0 0.0
    %4697 = vmatprep.subr.mxu0 0.0
    %4698 = vmatpush1.xpose.msra.mxu0 0.0
    %4699 = vmatprep.subr.mxu0 0.0
    %4700 = vmatpush1.xpose.msra.mxu0 0.0
    %4701 = vmatprep.subr.mxu0 0.0
    %4702 = vmatpush1.xpose.msra.mxu0 0.0
    %4703 = vmatprep.subr.mxu0 0.0
    %4704 = vmatpush1.xpose.msra.mxu0 0.0
    %4705 = vmatprep.subr.mxu0 0.0
    %4706 = vmatpush1.xpose.msra.mxu0 0.0
    %4707 = vmatprep.subr.mxu0 0.0
    %4708 = vmatpush1.xpose.msra.mxu0 0.0
    %4709 = vmatprep.subr.mxu0 0.0
    %4710 = vmatpush1.xpose.msra.mxu0 0.0
    %4711 = vmatprep.subr.mxu0 0.0
    %4712 = vmatpush1.xpose.msra.mxu0 0.0
    %4713 = vmatprep.subr.mxu0 0.0
    %4714 = vmatpush1.xpose.msra.mxu0 0.0
    %4715 = vmatprep.subr.mxu0 0.0
    %4716 = vmatpush1.xpose.msra.mxu0 0.0
    %4717 = vmatprep.subr.mxu0 0.0
    %4718 = vmatpush1.xpose.msra.mxu0 0.0
    %4719 = vmatprep.subr.mxu0 0.0
    %4720 = vmatpush1.xpose.msra.mxu0 0.0
    %4721 = vmatprep.subr.mxu0 0.0
    %4722 = vmatpush1.xpose.msra.mxu0 0.0
    %4723 = vmatprep.subr.mxu0 0.0
    %4724 = vmatpush1.xpose.msra.mxu0 0.0
    %4725 = vmatprep.subr.mxu0 0.0
    %4726 = vmatpush1.xpose.msra.mxu0 0.0
    %4727 = vmatprep.subr.mxu0 0.0
    %4728 = vmatpush1.xpose.msra.mxu0 0.0
    %4729 = vmatprep.subr.mxu0 0.0
    %4730 = vmatpush1.xpose.msra.mxu0 0.0
    %4731 = vmatprep.subr.mxu0 0.0
    %4732 = vmatpush1.xpose.msra.mxu0 0.0
    %4733 = vmatprep.subr.mxu0 0.0
    %4734 = vmatpush1.xpose.msra.mxu0 0.0
    %4735 = vmatprep.subr.mxu0 0.0
    %4736 = vmatpush1.xpose.msra.mxu0 0.0
    %4737 = vmatprep.subr.mxu0 0.0
    %4738 = vmatpush1.xpose.msra.mxu0 0.0
    %4739 = vmatprep.subr.mxu0 0.0
    %4740 = vmatpush1.xpose.msra.mxu0 0.0
    %4741 = vmatprep.subr.mxu0 0.0
    %4742 = vmatpush1.xpose.msra.mxu0 0.0
    %4743 = vmatprep.subr.mxu0 0.0
    %4744 = vmatpush1.xpose.msra.mxu0 0.0
    %4745 = vmatprep.subr.mxu0 0.0
    %4746 = vmatpush1.xpose.msra.mxu0 0.0
    %4747 = vmatprep.subr.mxu0 0.0
    %4748 = vmatpush1.xpose.msra.mxu0 0.0
    %4749 = vmatprep.mubr.f32.mxu0 0.0
    %4750 = vmatmul.mubr.f32.gmra.mrb[0].mxu0 %v4681
    %v4751 = vpop.f32.mrb[0].mxu0
    %v4752 = vadd.f32 0.0, %v4751
    %v4753 = vpop.f32.mrb[0].mxu0
    %4754 = vdwg.mxu0
    %4755 = vrot.lane.b32.xlu0 %v492, 32
    %v4756 = vpop.permute.xlu0 %4755
    %4757 = vrot.lane.b32.xlu0 %v494, 32
    %v4758 = vpop.permute.xlu0 %4757
    %v4759 = vsel %vm651, %v4756, 0
    %v4761 = vsel %vm651, %v4758, 0
    %4763 = vmatprep.subr.mxu0 0.0
    %4764 = vmatpush1.xpose.msra.mxu0 %v4761
    %4765 = vmatprep.subr.mxu0 0.0
    %4766 = vmatpush1.xpose.msra.mxu0 0.0
    %4767 = vmatprep.subr.mxu0 0.0
    %4768 = vmatpush1.xpose.msra.mxu0 0.0
    %4769 = vmatprep.subr.mxu0 0.0
    %4770 = vmatpush1.xpose.msra.mxu0 0.0
    %4771 = vmatprep.subr.mxu0 0.0
    %4772 = vmatpush1.xpose.msra.mxu0 0.0
    %4773 = vmatprep.subr.mxu0 0.0
    %4774 = vmatpush1.xpose.msra.mxu0 0.0
    %4775 = vmatprep.subr.mxu0 0.0
    %4776 = vmatpush1.xpose.msra.mxu0 0.0
    %4777 = vmatprep.subr.mxu0 0.0
    %4778 = vmatpush1.xpose.msra.mxu0 0.0
    %4779 = vmatprep.subr.mxu0 0.0
    %4780 = vmatpush1.xpose.msra.mxu0 0.0
    %4781 = vmatprep.subr.mxu0 0.0
    %4782 = vmatpush1.xpose.msra.mxu0 0.0
    %4783 = vmatprep.subr.mxu0 0.0
    %4784 = vmatpush1.xpose.msra.mxu0 0.0
    %4785 = vmatprep.subr.mxu0 0.0
    %4786 = vmatpush1.xpose.msra.mxu0 0.0
    %4787 = vmatprep.subr.mxu0 0.0
    %4788 = vmatpush1.xpose.msra.mxu0 0.0
    %4789 = vmatprep.subr.mxu0 0.0
    %4790 = vmatpush1.xpose.msra.mxu0 0.0
    %4791 = vmatprep.subr.mxu0 0.0
    %4792 = vmatpush1.xpose.msra.mxu0 0.0
    %4793 = vmatprep.subr.mxu0 0.0
    %4794 = vmatpush1.xpose.msra.mxu0 0.0
    %4795 = vmatprep.subr.mxu0 0.0
    %4796 = vmatpush1.xpose.msra.mxu0 0.0
    %4797 = vmatprep.subr.mxu0 0.0
    %4798 = vmatpush1.xpose.msra.mxu0 0.0
    %4799 = vmatprep.subr.mxu0 0.0
    %4800 = vmatpush1.xpose.msra.mxu0 0.0
    %4801 = vmatprep.subr.mxu0 0.0
    %4802 = vmatpush1.xpose.msra.mxu0 0.0
    %4803 = vmatprep.subr.mxu0 0.0
    %4804 = vmatpush1.xpose.msra.mxu0 0.0
    %4805 = vmatprep.subr.mxu0 0.0
    %4806 = vmatpush1.xpose.msra.mxu0 0.0
    %4807 = vmatprep.subr.mxu0 0.0
    %4808 = vmatpush1.xpose.msra.mxu0 0.0
    %4809 = vmatprep.subr.mxu0 0.0
    %4810 = vmatpush1.xpose.msra.mxu0 0.0
    %4811 = vmatprep.subr.mxu0 0.0
    %4812 = vmatpush1.xpose.msra.mxu0 0.0
    %4813 = vmatprep.subr.mxu0 0.0
    %4814 = vmatpush1.xpose.msra.mxu0 0.0
    %4815 = vmatprep.subr.mxu0 0.0
    %4816 = vmatpush1.xpose.msra.mxu0 0.0
    %4817 = vmatprep.subr.mxu0 0.0
    %4818 = vmatpush1.xpose.msra.mxu0 0.0
    %4819 = vmatprep.subr.mxu0 0.0
    %4820 = vmatpush1.xpose.msra.mxu0 0.0
    %4821 = vmatprep.subr.mxu0 0.0
    %4822 = vmatpush1.xpose.msra.mxu0 0.0
    %4823 = vmatprep.subr.mxu0 0.0
    %4824 = vmatpush1.xpose.msra.mxu0 0.0
    %4825 = vmatprep.subr.mxu0 0.0
    %4826 = vmatpush1.xpose.msra.mxu0 0.0
    %4827 = vmatprep.mubr.f32.mxu0 0.0
    %4828 = vmatmul.mubr.f32.gmra.mrb[0].mxu0 %v4759
    %v4829 = vpop.f32.mrb[0].mxu0
    %v4830 = vadd.f32 0.0, %v4829
    %v4831 = vpop.f32.mrb[0].mxu0
    %4832 = vdwg.mxu0
    %4833 = vrot.lane.b32.xlu0 %v498, 32
    %v4834 = vpop.permute.xlu0 %4833
    %4835 = vrot.lane.b32.xlu0 %v500, 32
    %v4836 = vpop.permute.xlu0 %4835
    %v4837 = vsel %vm651, %v4834, 0
    %v4839 = vsel %vm651, %v4836, 0
    %4841 = vmatprep.subr.mxu0 0.0
    %4842 = vmatpush1.xpose.msra.mxu0 %v4839
    %4843 = vmatprep.subr.mxu0 0.0
    %4844 = vmatpush1.xpose.msra.mxu0 0.0
    %4845 = vmatprep.subr.mxu0 0.0
    %4846 = vmatpush1.xpose.msra.mxu0 0.0
    %4847 = vmatprep.subr.mxu0 0.0
    %4848 = vmatpush1.xpose.msra.mxu0 0.0
    %4849 = vmatprep.subr.mxu0 0.0
    %4850 = vmatpush1.xpose.msra.mxu0 0.0
    %4851 = vmatprep.subr.mxu0 0.0
    %4852 = vmatpush1.xpose.msra.mxu0 0.0
    %4853 = vmatprep.subr.mxu0 0.0
    %4854 = vmatpush1.xpose.msra.mxu0 0.0
    %4855 = vmatprep.subr.mxu0 0.0
    %4856 = vmatpush1.xpose.msra.mxu0 0.0
    %4857 = vmatprep.subr.mxu0 0.0
    %4858 = vmatpush1.xpose.msra.mxu0 0.0
    %4859 = vmatprep.subr.mxu0 0.0
    %4860 = vmatpush1.xpose.msra.mxu0 0.0
    %4861 = vmatprep.subr.mxu0 0.0
    %4862 = vmatpush1.xpose.msra.mxu0 0.0
    %4863 = vmatprep.subr.mxu0 0.0
    %4864 = vmatpush1.xpose.msra.mxu0 0.0
    %4865 = vmatprep.subr.mxu0 0.0
    %4866 = vmatpush1.xpose.msra.mxu0 0.0
    %4867 = vmatprep.subr.mxu0 0.0
    %4868 = vmatpush1.xpose.msra.mxu0 0.0
    %4869 = vmatprep.subr.mxu0 0.0
    %4870 = vmatpush1.xpose.msra.mxu0 0.0
    %4871 = vmatprep.subr.mxu0 0.0
    %4872 = vmatpush1.xpose.msra.mxu0 0.0
    %4873 = vmatprep.subr.mxu0 0.0
    %4874 = vmatpush1.xpose.msra.mxu0 0.0
    %4875 = vmatprep.subr.mxu0 0.0
    %4876 = vmatpush1.xpose.msra.mxu0 0.0
    %4877 = vmatprep.subr.mxu0 0.0
    %4878 = vmatpush1.xpose.msra.mxu0 0.0
    %4879 = vmatprep.subr.mxu0 0.0
    %4880 = vmatpush1.xpose.msra.mxu0 0.0
    %4881 = vmatprep.subr.mxu0 0.0
    %4882 = vmatpush1.xpose.msra.mxu0 0.0
    %4883 = vmatprep.subr.mxu0 0.0
    %4884 = vmatpush1.xpose.msra.mxu0 0.0
    %4885 = vmatprep.subr.mxu0 0.0
    %4886 = vmatpush1.xpose.msra.mxu0 0.0
    %4887 = vmatprep.subr.mxu0 0.0
    %4888 = vmatpush1.xpose.msra.mxu0 0.0
    %4889 = vmatprep.subr.mxu0 0.0
    %4890 = vmatpush1.xpose.msra.mxu0 0.0
    %4891 = vmatprep.subr.mxu0 0.0
    %4892 = vmatpush1.xpose.msra.mxu0 0.0
    %4893 = vmatprep.subr.mxu0 0.0
    %4894 = vmatpush1.xpose.msra.mxu0 0.0
    %4895 = vmatprep.subr.mxu0 0.0
    %4896 = vmatpush1.xpose.msra.mxu0 0.0
    %4897 = vmatprep.subr.mxu0 0.0
    %4898 = vmatpush1.xpose.msra.mxu0 0.0
    %4899 = vmatprep.subr.mxu0 0.0
    %4900 = vmatpush1.xpose.msra.mxu0 0.0
    %4901 = vmatprep.subr.mxu0 0.0
    %4902 = vmatpush1.xpose.msra.mxu0 0.0
    %4903 = vmatprep.subr.mxu0 0.0
    %4904 = vmatpush1.xpose.msra.mxu0 0.0
    %4905 = vmatprep.mubr.f32.mxu0 0.0
    %4906 = vmatmul.mubr.f32.gmra.mrb[0].mxu0 %v4837
    %v4907 = vpop.f32.mrb[0].mxu0
    %v4908 = vadd.f32 0.0, %v4907
    %v4909 = vpop.f32.mrb[0].mxu0
    %4910 = vdwg.mxu0
    %4911 = vrot.lane.b32.xlu0 %v502, 32
    %v4912 = vpop.permute.xlu0 %4911
    %4913 = vrot.lane.b32.xlu0 %v504, 32
    %v4914 = vpop.permute.xlu0 %4913
    %v4915 = vsel %vm651, %v4912, 0
    %v4917 = vsel %vm651, %v4914, 0
    %4919 = vmatprep.subr.mxu0 0.0
    %4920 = vmatpush1.xpose.msra.mxu0 %v4917
    %4921 = vmatprep.subr.mxu0 0.0
    %4922 = vmatpush1.xpose.msra.mxu0 0.0
    %4923 = vmatprep.subr.mxu0 0.0
    %4924 = vmatpush1.xpose.msra.mxu0 0.0
    %4925 = vmatprep.subr.mxu0 0.0
    %4926 = vmatpush1.xpose.msra.mxu0 0.0
    %4927 = vmatprep.subr.mxu0 0.0
    %4928 = vmatpush1.xpose.msra.mxu0 0.0
    %4929 = vmatprep.subr.mxu0 0.0
    %4930 = vmatpush1.xpose.msra.mxu0 0.0
    %4931 = vmatprep.subr.mxu0 0.0
    %4932 = vmatpush1.xpose.msra.mxu0 0.0
    %4933 = vmatprep.subr.mxu0 0.0
    %4934 = vmatpush1.xpose.msra.mxu0 0.0
    %4935 = vmatprep.subr.mxu0 0.0
    %4936 = vmatpush1.xpose.msra.mxu0 0.0
    %4937 = vmatprep.subr.mxu0 0.0
    %4938 = vmatpush1.xpose.msra.mxu0 0.0
    %4939 = vmatprep.subr.mxu0 0.0
    %4940 = vmatpush1.xpose.msra.mxu0 0.0
    %4941 = vmatprep.subr.mxu0 0.0
    %4942 = vmatpush1.xpose.msra.mxu0 0.0
    %4943 = vmatprep.subr.mxu0 0.0
    %4944 = vmatpush1.xpose.msra.mxu0 0.0
    %4945 = vmatprep.subr.mxu0 0.0
    %4946 = vmatpush1.xpose.msra.mxu0 0.0
    %4947 = vmatprep.subr.mxu0 0.0
    %4948 = vmatpush1.xpose.msra.mxu0 0.0
    %4949 = vmatprep.subr.mxu0 0.0
    %4950 = vmatpush1.xpose.msra.mxu0 0.0
    %4951 = vmatprep.subr.mxu0 0.0
    %4952 = vmatpush1.xpose.msra.mxu0 0.0
    %4953 = vmatprep.subr.mxu0 0.0
    %4954 = vmatpush1.xpose.msra.mxu0 0.0
    %4955 = vmatprep.subr.mxu0 0.0
    %4956 = vmatpush1.xpose.msra.mxu0 0.0
    %4957 = vmatprep.subr.mxu0 0.0
    %4958 = vmatpush1.xpose.msra.mxu0 0.0
    %4959 = vmatprep.subr.mxu0 0.0
    %4960 = vmatpush1.xpose.msra.mxu0 0.0
    %4961 = vmatprep.subr.mxu0 0.0
    %4962 = vmatpush1.xpose.msra.mxu0 0.0
    %4963 = vmatprep.subr.mxu0 0.0
    %4964 = vmatpush1.xpose.msra.mxu0 0.0
    %4965 = vmatprep.subr.mxu0 0.0
    %4966 = vmatpush1.xpose.msra.mxu0 0.0
    %4967 = vmatprep.subr.mxu0 0.0
    %4968 = vmatpush1.xpose.msra.mxu0 0.0
    %4969 = vmatprep.subr.mxu0 0.0
    %4970 = vmatpush1.xpose.msra.mxu0 0.0
    %4971 = vmatprep.subr.mxu0 0.0
    %4972 = vmatpush1.xpose.msra.mxu0 0.0
    %4973 = vmatprep.subr.mxu0 0.0
    %4974 = vmatpush1.xpose.msra.mxu0 0.0
    %4975 = vmatprep.subr.mxu0 0.0
    %4976 = vmatpush1.xpose.msra.mxu0 0.0
    %4977 = vmatprep.subr.mxu0 0.0
    %4978 = vmatpush1.xpose.msra.mxu0 0.0
    %4979 = vmatprep.subr.mxu0 0.0
    %4980 = vmatpush1.xpose.msra.mxu0 0.0
    %4981 = vmatprep.subr.mxu0 0.0
    %4982 = vmatpush1.xpose.msra.mxu0 0.0
    %4983 = vmatprep.mubr.f32.mxu0 0.0
    %4984 = vmatmul.mubr.f32.gmra.mrb[0].mxu0 %v4915
    %v4985 = vpop.f32.mrb[0].mxu0
    %v4986 = vadd.f32 0.0, %v4985
    %v4987 = vpop.f32.mrb[0].mxu0
    %4988 = vdwg.mxu0
    %4989 = vrot.lane.b32.xlu0 %v508, 32
    %v4990 = vpop.permute.xlu0 %4989
    %4991 = vrot.lane.b32.xlu0 %v510, 32
    %v4992 = vpop.permute.xlu0 %4991
    %v4993 = vsel %vm651, %v4990, 0
    %v4995 = vsel %vm651, %v4992, 0
    %4997 = vmatprep.subr.mxu0 0.0
    %4998 = vmatpush1.xpose.msra.mxu0 %v4995
    %4999 = vmatprep.subr.mxu0 0.0
    %5000 = vmatpush1.xpose.msra.mxu0 0.0
    %5001 = vmatprep.subr.mxu0 0.0
    %5002 = vmatpush1.xpose.msra.mxu0 0.0
    %5003 = vmatprep.subr.mxu0 0.0
    %5004 = vmatpush1.xpose.msra.mxu0 0.0
    %5005 = vmatprep.subr.mxu0 0.0
    %5006 = vmatpush1.xpose.msra.mxu0 0.0
    %5007 = vmatprep.subr.mxu0 0.0
    %5008 = vmatpush1.xpose.msra.mxu0 0.0
    %5009 = vmatprep.subr.mxu0 0.0
    %5010 = vmatpush1.xpose.msra.mxu0 0.0
    %5011 = vmatprep.subr.mxu0 0.0
    %5012 = vmatpush1.xpose.msra.mxu0 0.0
    %5013 = vmatprep.subr.mxu0 0.0
    %5014 = vmatpush1.xpose.msra.mxu0 0.0
    %5015 = vmatprep.subr.mxu0 0.0
    %5016 = vmatpush1.xpose.msra.mxu0 0.0
    %5017 = vmatprep.subr.mxu0 0.0
    %5018 = vmatpush1.xpose.msra.mxu0 0.0
    %5019 = vmatprep.subr.mxu0 0.0
    %5020 = vmatpush1.xpose.msra.mxu0 0.0
    %5021 = vmatprep.subr.mxu0 0.0
    %5022 = vmatpush1.xpose.msra.mxu0 0.0
    %5023 = vmatprep.subr.mxu0 0.0
    %5024 = vmatpush1.xpose.msra.mxu0 0.0
    %5025 = vmatprep.subr.mxu0 0.0
    %5026 = vmatpush1.xpose.msra.mxu0 0.0
    %5027 = vmatprep.subr.mxu0 0.0
    %5028 = vmatpush1.xpose.msra.mxu0 0.0
    %5029 = vmatprep.subr.mxu0 0.0
    %5030 = vmatpush1.xpose.msra.mxu0 0.0
    %5031 = vmatprep.subr.mxu0 0.0
    %5032 = vmatpush1.xpose.msra.mxu0 0.0
    %5033 = vmatprep.subr.mxu0 0.0
    %5034 = vmatpush1.xpose.msra.mxu0 0.0
    %5035 = vmatprep.subr.mxu0 0.0
    %5036 = vmatpush1.xpose.msra.mxu0 0.0
    %5037 = vmatprep.subr.mxu0 0.0
    %5038 = vmatpush1.xpose.msra.mxu0 0.0
    %5039 = vmatprep.subr.mxu0 0.0
    %5040 = vmatpush1.xpose.msra.mxu0 0.0
    %5041 = vmatprep.subr.mxu0 0.0
    %5042 = vmatpush1.xpose.msra.mxu0 0.0
    %5043 = vmatprep.subr.mxu0 0.0
    %5044 = vmatpush1.xpose.msra.mxu0 0.0
    %5045 = vmatprep.subr.mxu0 0.0
    %5046 = vmatpush1.xpose.msra.mxu0 0.0
    %5047 = vmatprep.subr.mxu0 0.0
    %5048 = vmatpush1.xpose.msra.mxu0 0.0
    %5049 = vmatprep.subr.mxu0 0.0
    %5050 = vmatpush1.xpose.msra.mxu0 0.0
    %5051 = vmatprep.subr.mxu0 0.0
    %5052 = vmatpush1.xpose.msra.mxu0 0.0
    %5053 = vmatprep.subr.mxu0 0.0
    %5054 = vmatpush1.xpose.msra.mxu0 0.0
    %5055 = vmatprep.subr.mxu0 0.0
    %5056 = vmatpush1.xpose.msra.mxu0 0.0
    %5057 = vmatprep.subr.mxu0 0.0
    %5058 = vmatpush1.xpose.msra.mxu0 0.0
    %5059 = vmatprep.subr.mxu0 0.0
    %5060 = vmatpush1.xpose.msra.mxu0 0.0
    %5061 = vmatprep.mubr.f32.mxu0 0.0
    %5062 = vmatmul.mubr.f32.gmra.mrb[0].mxu0 %v4993
    %v5063 = vpop.f32.mrb[0].mxu0
    %v5064 = vadd.f32 0.0, %v5063
    %v5065 = vpop.f32.mrb[0].mxu0
    %5066 = vdwg.mxu0
    %5067 = vrot.lane.b32.xlu0 %v512, 32
    %v5068 = vpop.permute.xlu0 %5067
    %5069 = vrot.lane.b32.xlu0 %v514, 32
    %v5070 = vpop.permute.xlu0 %5069
    %v5071 = vsel %vm651, %v5068, 0
    %v5073 = vsel %vm651, %v5070, 0
    %5075 = vmatprep.subr.mxu0 0.0
    %5076 = vmatpush1.xpose.msra.mxu0 %v5073
    %5077 = vmatprep.subr.mxu0 0.0
    %5078 = vmatpush1.xpose.msra.mxu0 0.0
    %5079 = vmatprep.subr.mxu0 0.0
    %5080 = vmatpush1.xpose.msra.mxu0 0.0
    %5081 = vmatprep.subr.mxu0 0.0
    %5082 = vmatpush1.xpose.msra.mxu0 0.0
    %5083 = vmatprep.subr.mxu0 0.0
    %5084 = vmatpush1.xpose.msra.mxu0 0.0
    %5085 = vmatprep.subr.mxu0 0.0
    %5086 = vmatpush1.xpose.msra.mxu0 0.0
    %5087 = vmatprep.subr.mxu0 0.0
    %5088 = vmatpush1.xpose.msra.mxu0 0.0
    %5089 = vmatprep.subr.mxu0 0.0
    %5090 = vmatpush1.xpose.msra.mxu0 0.0
    %5091 = vmatprep.subr.mxu0 0.0
    %5092 = vmatpush1.xpose.msra.mxu0 0.0
    %5093 = vmatprep.subr.mxu0 0.0
    %5094 = vmatpush1.xpose.msra.mxu0 0.0
    %5095 = vmatprep.subr.mxu0 0.0
    %5096 = vmatpush1.xpose.msra.mxu0 0.0
    %5097 = vmatprep.subr.mxu0 0.0
    %5098 = vmatpush1.xpose.msra.mxu0 0.0
    %5099 = vmatprep.subr.mxu0 0.0
    %5100 = vmatpush1.xpose.msra.mxu0 0.0
    %5101 = vmatprep.subr.mxu0 0.0
    %5102 = vmatpush1.xpose.msra.mxu0 0.0
    %5103 = vmatprep.subr.mxu0 0.0
    %5104 = vmatpush1.xpose.msra.mxu0 0.0
    %5105 = vmatprep.subr.mxu0 0.0
    %5106 = vmatpush1.xpose.msra.mxu0 0.0
    %5107 = vmatprep.subr.mxu0 0.0
    %5108 = vmatpush1.xpose.msra.mxu0 0.0
    %5109 = vmatprep.subr.mxu0 0.0
    %5110 = vmatpush1.xpose.msra.mxu0 0.0
    %5111 = vmatprep.subr.mxu0 0.0
    %5112 = vmatpush1.xpose.msra.mxu0 0.0
    %5113 = vmatprep.subr.mxu0 0.0
    %5114 = vmatpush1.xpose.msra.mxu0 0.0
    %5115 = vmatprep.subr.mxu0 0.0
    %5116 = vmatpush1.xpose.msra.mxu0 0.0
    %5117 = vmatprep.subr.mxu0 0.0
    %5118 = vmatpush1.xpose.msra.mxu0 0.0
    %5119 = vmatprep.subr.mxu0 0.0
    %5120 = vmatpush1.xpose.msra.mxu0 0.0
    %5121 = vmatprep.subr.mxu0 0.0
    %5122 = vmatpush1.xpose.msra.mxu0 0.0
    %5123 = vmatprep.subr.mxu0 0.0
    %5124 = vmatpush1.xpose.msra.mxu0 0.0
    %5125 = vmatprep.subr.mxu0 0.0
    %5126 = vmatpush1.xpose.msra.mxu0 0.0
    %5127 = vmatprep.subr.mxu0 0.0
    %5128 = vmatpush1.xpose.msra.mxu0 0.0
    %5129 = vmatprep.subr.mxu0 0.0
    %5130 = vmatpush1.xpose.msra.mxu0 0.0
    %5131 = vmatprep.subr.mxu0 0.0
    %5132 = vmatpush1.xpose.msra.mxu0 0.0
    %5133 = vmatprep.subr.mxu0 0.0
    %5134 = vmatpush1.xpose.msra.mxu0 0.0
    %5135 = vmatprep.subr.mxu0 0.0
    %5136 = vmatpush1.xpose.msra.mxu0 0.0
    %5137 = vmatprep.subr.mxu0 0.0
    %5138 = vmatpush1.xpose.msra.mxu0 0.0
    %5139 = vmatprep.mubr.f32.mxu0 0.0
    %5140 = vmatmul.mubr.f32.gmra.mrb[0].mxu0 %v5071
    %v5141 = vpop.f32.mrb[0].mxu0
    %v5142 = vadd.f32 0.0, %v5141
    %v5143 = vpop.f32.mrb[0].mxu0
    %5144 = vdwg.mxu0
    %5145 = vrot.lane.b32.xlu0 %v518, 32
    %v5146 = vpop.permute.xlu0 %5145
    %5147 = vrot.lane.b32.xlu0 %v520, 32
    %v5148 = vpop.permute.xlu0 %5147
    %v5149 = vsel %vm651, %v5146, 0
    %v5151 = vsel %vm651, %v5148, 0
    %5153 = vmatprep.subr.mxu0 0.0
    %5154 = vmatpush1.xpose.msra.mxu0 %v5151
    %5155 = vmatprep.subr.mxu0 0.0
    %5156 = vmatpush1.xpose.msra.mxu0 0.0
    %5157 = vmatprep.subr.mxu0 0.0
    %5158 = vmatpush1.xpose.msra.mxu0 0.0
    %5159 = vmatprep.subr.mxu0 0.0
    %5160 = vmatpush1.xpose.msra.mxu0 0.0
    %5161 = vmatprep.subr.mxu0 0.0
    %5162 = vmatpush1.xpose.msra.mxu0 0.0
    %5163 = vmatprep.subr.mxu0 0.0
    %5164 = vmatpush1.xpose.msra.mxu0 0.0
    %5165 = vmatprep.subr.mxu0 0.0
    %5166 = vmatpush1.xpose.msra.mxu0 0.0
    %5167 = vmatprep.subr.mxu0 0.0
    %5168 = vmatpush1.xpose.msra.mxu0 0.0
    %5169 = vmatprep.subr.mxu0 0.0
    %5170 = vmatpush1.xpose.msra.mxu0 0.0
    %5171 = vmatprep.subr.mxu0 0.0
    %5172 = vmatpush1.xpose.msra.mxu0 0.0
    %5173 = vmatprep.subr.mxu0 0.0
    %5174 = vmatpush1.xpose.msra.mxu0 0.0
    %5175 = vmatprep.subr.mxu0 0.0
    %5176 = vmatpush1.xpose.msra.mxu0 0.0
    %5177 = vmatprep.subr.mxu0 0.0
    %5178 = vmatpush1.xpose.msra.mxu0 0.0
    %5179 = vmatprep.subr.mxu0 0.0
    %5180 = vmatpush1.xpose.msra.mxu0 0.0
    %5181 = vmatprep.subr.mxu0 0.0
    %5182 = vmatpush1.xpose.msra.mxu0 0.0
    %5183 = vmatprep.subr.mxu0 0.0
    %5184 = vmatpush1.xpose.msra.mxu0 0.0
    %5185 = vmatprep.subr.mxu0 0.0
    %5186 = vmatpush1.xpose.msra.mxu0 0.0
    %5187 = vmatprep.subr.mxu0 0.0
    %5188 = vmatpush1.xpose.msra.mxu0 0.0
    %5189 = vmatprep.subr.mxu0 0.0
    %5190 = vmatpush1.xpose.msra.mxu0 0.0
    %5191 = vmatprep.subr.mxu0 0.0
    %5192 = vmatpush1.xpose.msra.mxu0 0.0
    %5193 = vmatprep.subr.mxu0 0.0
    %5194 = vmatpush1.xpose.msra.mxu0 0.0
    %5195 = vmatprep.subr.mxu0 0.0
    %5196 = vmatpush1.xpose.msra.mxu0 0.0
    %5197 = vmatprep.subr.mxu0 0.0
    %5198 = vmatpush1.xpose.msra.mxu0 0.0
    %5199 = vmatprep.subr.mxu0 0.0
    %5200 = vmatpush1.xpose.msra.mxu0 0.0
    %5201 = vmatprep.subr.mxu0 0.0
    %5202 = vmatpush1.xpose.msra.mxu0 0.0
    %5203 = vmatprep.subr.mxu0 0.0
    %5204 = vmatpush1.xpose.msra.mxu0 0.0
    %5205 = vmatprep.subr.mxu0 0.0
    %5206 = vmatpush1.xpose.msra.mxu0 0.0
    %5207 = vmatprep.subr.mxu0 0.0
    %5208 = vmatpush1.xpose.msra.mxu0 0.0
    %5209 = vmatprep.subr.mxu0 0.0
    %5210 = vmatpush1.xpose.msra.mxu0 0.0
    %5211 = vmatprep.subr.mxu0 0.0
    %5212 = vmatpush1.xpose.msra.mxu0 0.0
    %5213 = vmatprep.subr.mxu0 0.0
    %5214 = vmatpush1.xpose.msra.mxu0 0.0
    %5215 = vmatprep.subr.mxu0 0.0
    %5216 = vmatpush1.xpose.msra.mxu0 0.0
    %5217 = vmatprep.mubr.f32.mxu0 0.0
    %5218 = vmatmul.mubr.f32.gmra.mrb[0].mxu0 %v5149
    %v5219 = vpop.f32.mrb[0].mxu0
    %v5220 = vadd.f32 0.0, %v5219
    %v5221 = vpop.f32.mrb[0].mxu0
    %5222 = vdwg.mxu0
    %5223 = vrot.lane.b32.xlu0 %v522, 32
    %v5224 = vpop.permute.xlu0 %5223
    %5225 = vrot.lane.b32.xlu0 %v524, 32
    %v5226 = vpop.permute.xlu0 %5225
    %v5227 = vsel %vm651, %v5224, 0
    %v5229 = vsel %vm651, %v5226, 0
    %5231 = vmatprep.subr.mxu0 0.0
    %5232 = vmatpush1.xpose.msra.mxu0 %v5229
    %5233 = vmatprep.subr.mxu0 0.0
    %5234 = vmatpush1.xpose.msra.mxu0 0.0
    %5235 = vmatprep.subr.mxu0 0.0
    %5236 = vmatpush1.xpose.msra.mxu0 0.0
    %5237 = vmatprep.subr.mxu0 0.0
    %5238 = vmatpush1.xpose.msra.mxu0 0.0
    %5239 = vmatprep.subr.mxu0 0.0
    %5240 = vmatpush1.xpose.msra.mxu0 0.0
    %5241 = vmatprep.subr.mxu0 0.0
    %5242 = vmatpush1.xpose.msra.mxu0 0.0
    %5243 = vmatprep.subr.mxu0 0.0
    %5244 = vmatpush1.xpose.msra.mxu0 0.0
    %5245 = vmatprep.subr.mxu0 0.0
    %5246 = vmatpush1.xpose.msra.mxu0 0.0
    %5247 = vmatprep.subr.mxu0 0.0
    %5248 = vmatpush1.xpose.msra.mxu0 0.0
    %5249 = vmatprep.subr.mxu0 0.0
    %5250 = vmatpush1.xpose.msra.mxu0 0.0
    %5251 = vmatprep.subr.mxu0 0.0
    %5252 = vmatpush1.xpose.msra.mxu0 0.0
    %5253 = vmatprep.subr.mxu0 0.0
    %5254 = vmatpush1.xpose.msra.mxu0 0.0
    %5255 = vmatprep.subr.mxu0 0.0
    %5256 = vmatpush1.xpose.msra.mxu0 0.0
    %5257 = vmatprep.subr.mxu0 0.0
    %5258 = vmatpush1.xpose.msra.mxu0 0.0
    %5259 = vmatprep.subr.mxu0 0.0
    %5260 = vmatpush1.xpose.msra.mxu0 0.0
    %5261 = vmatprep.subr.mxu0 0.0
    %5262 = vmatpush1.xpose.msra.mxu0 0.0
    %5263 = vmatprep.subr.mxu0 0.0
    %5264 = vmatpush1.xpose.msra.mxu0 0.0
    %5265 = vmatprep.subr.mxu0 0.0
    %5266 = vmatpush1.xpose.msra.mxu0 0.0
    %5267 = vmatprep.subr.mxu0 0.0
    %5268 = vmatpush1.xpose.msra.mxu0 0.0
    %5269 = vmatprep.subr.mxu0 0.0
    %5270 = vmatpush1.xpose.msra.mxu0 0.0
    %5271 = vmatprep.subr.mxu0 0.0
    %5272 = vmatpush1.xpose.msra.mxu0 0.0
    %5273 = vmatprep.subr.mxu0 0.0
    %5274 = vmatpush1.xpose.msra.mxu0 0.0
    %5275 = vmatprep.subr.mxu0 0.0
    %5276 = vmatpush1.xpose.msra.mxu0 0.0
    %5277 = vmatprep.subr.mxu0 0.0
    %5278 = vmatpush1.xpose.msra.mxu0 0.0
    %5279 = vmatprep.subr.mxu0 0.0
    %5280 = vmatpush1.xpose.msra.mxu0 0.0
    %5281 = vmatprep.subr.mxu0 0.0
    %5282 = vmatpush1.xpose.msra.mxu0 0.0
    %5283 = vmatprep.subr.mxu0 0.0
    %5284 = vmatpush1.xpose.msra.mxu0 0.0
    %5285 = vmatprep.subr.mxu0 0.0
    %5286 = vmatpush1.xpose.msra.mxu0 0.0
    %5287 = vmatprep.subr.mxu0 0.0
    %5288 = vmatpush1.xpose.msra.mxu0 0.0
    %5289 = vmatprep.subr.mxu0 0.0
    %5290 = vmatpush1.xpose.msra.mxu0 0.0
    %5291 = vmatprep.subr.mxu0 0.0
    %5292 = vmatpush1.xpose.msra.mxu0 0.0
    %5293 = vmatprep.subr.mxu0 0.0
    %5294 = vmatpush1.xpose.msra.mxu0 0.0
    %5295 = vmatprep.mubr.f32.mxu0 0.0
    %5296 = vmatmul.mubr.f32.gmra.mrb[0].mxu0 %v5227
    %v5297 = vpop.f32.mrb[0].mxu0
    %v5298 = vadd.f32 0.0, %v5297
    %v5299 = vpop.f32.mrb[0].mxu0
    %5300 = vdwg.mxu0
    %v5301 = vmul.f32 %v4752, 0.03125
    %v5302 = vmul.f32 %v4830, 0.03125
    %v5303 = vmul.f32 %v4908, 0.03125
    %v5304 = vmul.f32 %v4986, 0.03125
    %v5305 = vmul.f32 %v5064, 0.03125
    %v5306 = vmul.f32 %v5142, 0.03125
    %v5307 = vmul.f32 %v5220, 0.03125
    %v5308 = vmul.f32 %v5298, 0.03125
    %v5309 = vsel %vm1308, -1e+09, %v5301
    %v5310 = vsel %vm1309, -1e+09, %v5302
    %v5311 = vsel %vm1310, -1e+09, %v5303
    %v5312 = vsel %vm1311, -1e+09, %v5304
    %v5313 = vsel %vm1312, -1e+09, %v5305
    %v5314 = vsel %vm1313, -1e+09, %v5306
    %v5315 = vsel %vm1314, -1e+09, %v5307
    %v5316 = vsel %vm1315, -1e+09, %v5308
    %v5317 = vsel %vm1324, %v5309, -inf
    %5318 = vmax.xlane.f32.xlu0 %v5317
    %v5319 = vpop.xlane.xlu0 %5318
    %v5320 = vsel %vm1324, %v5310, -inf
    %5321 = vmax.xlane.f32.xlu0 %v5320
    %v5322 = vpop.xlane.xlu0 %5321
    %v5323 = vsel %vm1324, %v5311, -inf
    %5324 = vmax.xlane.f32.xlu0 %v5323
    %v5325 = vpop.xlane.xlu0 %5324
    %v5326 = vsel %vm1324, %v5312, -inf
    %5327 = vmax.xlane.f32.xlu0 %v5326
    %v5328 = vpop.xlane.xlu0 %5327
    %v5329 = vsel %vm1324, %v5313, -inf
    %5330 = vmax.xlane.f32.xlu0 %v5329
    %v5331 = vpop.xlane.xlu0 %5330
    %v5332 = vsel %vm1324, %v5314, -inf
    %5333 = vmax.xlane.f32.xlu0 %v5332
    %v5334 = vpop.xlane.xlu0 %5333
    %v5335 = vsel %vm1324, %v5315, -inf
    %5336 = vmax.xlane.f32.xlu0 %v5335
    %v5337 = vpop.xlane.xlu0 %5336
    %v5338 = vsel %vm1324, %v5316, -inf
    %5339 = vmax.xlane.f32.xlu0 %v5338
    %v5340 = vpop.xlane.xlu0 %5339
    %v5341 = vsub.f32 %v5309, %v5319
    %v5342 = vsub.f32 %v5310, %v5322
    %v5343 = vsub.f32 %v5311, %v5325
    %v5344 = vsub.f32 %v5312, %v5328
    %v5345 = vsub.f32 %v5313, %v5331
    %v5346 = vsub.f32 %v5314, %v5334
    %v5347 = vsub.f32 %v5315, %v5337
    %v5348 = vsub.f32 %v5316, %v5340
    %v5349 = vmul.f32 %v5341, 1.442695
    %v5350 = vpow.pop %v5349
    %v5351 = vmul.f32 %v5342, 1.442695
    %v5352 = vpow.pop %v5351
    %v5353 = vmul.f32 %v5343, 1.442695
    %v5354 = vpow.pop %v5353
    %v5355 = vmul.f32 %v5344, 1.442695
    %v5356 = vpow.pop %v5355
    %v5357 = vmul.f32 %v5345, 1.442695
    %v5358 = vpow.pop %v5357
    %v5359 = vmul.f32 %v5346, 1.442695
    %v5360 = vpow.pop %v5359
    %v5361 = vmul.f32 %v5347, 1.442695
    %v5362 = vpow.pop %v5361
    %v5363 = vmul.f32 %v5348, 1.442695
    %v5364 = vpow.pop %v5363
    %v5365 = vsel %vm1324, %v5350, 0.0
    %5366 = vadd.xlane.f32.xlu0 %v5365
    %v5367 = vpop.xlane.xlu0 %5366
    %v5368 = vsel %vm1324, %v5352, 0.0
    %5369 = vadd.xlane.f32.xlu0 %v5368
    %v5370 = vpop.xlane.xlu0 %5369
    %v5371 = vsel %vm1324, %v5354, 0.0
    %5372 = vadd.xlane.f32.xlu0 %v5371
    %v5373 = vpop.xlane.xlu0 %5372
    %v5374 = vsel %vm1324, %v5356, 0.0
    %5375 = vadd.xlane.f32.xlu0 %v5374
    %v5376 = vpop.xlane.xlu0 %5375
    %v5377 = vsel %vm1324, %v5358, 0.0
    %5378 = vadd.xlane.f32.xlu0 %v5377
    %v5379 = vpop.xlane.xlu0 %5378
    %v5380 = vsel %vm1324, %v5360, 0.0
    %5381 = vadd.xlane.f32.xlu0 %v5380
    %v5382 = vpop.xlane.xlu0 %5381
    %v5383 = vsel %vm1324, %v5362, 0.0
    %5384 = vadd.xlane.f32.xlu0 %v5383
    %v5385 = vpop.xlane.xlu0 %5384
    %v5386 = vsel %vm1324, %v5364, 0.0
    %5387 = vadd.xlane.f32.xlu0 %v5386
    %v5388 = vpop.xlane.xlu0 %5387
    %v5389 = vrcp.pop %v5367
    %v5390 = vrcp.pop %v5370
    %v5391 = vrcp.pop %v5373
    %v5392 = vrcp.pop %v5376
    %v5393 = vrcp.pop %v5379
    %v5394 = vrcp.pop %v5382
    %v5395 = vrcp.pop %v5385
    %v5396 = vrcp.pop %v5388
    %v5397 = vmul.f32 %v5350, %v5389
    %v5398 = vmul.f32 %v5352, %v5390
    %v5399 = vmul.f32 %v5354, %v5391
    %v5400 = vmul.f32 %v5356, %v5392
    %v5401 = vmul.f32 %v5358, %v5393
    %v5402 = vmul.f32 %v5360, %v5394
    %v5403 = vmul.f32 %v5362, %v5395
    %v5404 = vmul.f32 %v5364, %v5396
    %5405 = vrot.lane.b32.xlu0 %v561, 32
    %v5406 = vpop.permute.xlu0 %5405
    %v5409 = vsel %vm1324, %v5397, 0
    %5411 = vmatprep.subr.mxu0 0.0
    %5412 = vmatpush1.msra.mxu0 %v5406
    %5413 = vmatprep.subr.mxu0 0.0
    %5414 = vmatpush1.msra.mxu0 0.0
    %5415 = vmatprep.subr.mxu0 0.0
    %5416 = vmatpush1.msra.mxu0 0.0
    %5417 = vmatprep.subr.mxu0 0.0
    %5418 = vmatpush1.msra.mxu0 0.0
    %5419 = vmatprep.subr.mxu0 0.0
    %5420 = vmatpush1.msra.mxu0 0.0
    %5421 = vmatprep.subr.mxu0 0.0
    %5422 = vmatpush1.msra.mxu0 0.0
    %5423 = vmatprep.subr.mxu0 0.0
    %5424 = vmatpush1.msra.mxu0 0.0
    %5425 = vmatprep.subr.mxu0 0.0
    %5426 = vmatpush1.msra.mxu0 0.0
    %5427 = vmatprep.subr.mxu0 0.0
    %5428 = vmatpush1.msra.mxu0 0.0
    %5429 = vmatprep.subr.mxu0 0.0
    %5430 = vmatpush1.msra.mxu0 0.0
    %5431 = vmatprep.subr.mxu0 0.0
    %5432 = vmatpush1.msra.mxu0 0.0
    %5433 = vmatprep.subr.mxu0 0.0
    %5434 = vmatpush1.msra.mxu0 0.0
    %5435 = vmatprep.subr.mxu0 0.0
    %5436 = vmatpush1.msra.mxu0 0.0
    %5437 = vmatprep.subr.mxu0 0.0
    %5438 = vmatpush1.msra.mxu0 0.0
    %5439 = vmatprep.subr.mxu0 0.0
    %5440 = vmatpush1.msra.mxu0 0.0
    %5441 = vmatprep.subr.mxu0 0.0
    %5442 = vmatpush1.msra.mxu0 0.0
    %5443 = vmatprep.subr.mxu0 0.0
    %5444 = vmatpush1.msra.mxu0 0.0
    %5445 = vmatprep.subr.mxu0 0.0
    %5446 = vmatpush1.msra.mxu0 0.0
    %5447 = vmatprep.subr.mxu0 0.0
    %5448 = vmatpush1.msra.mxu0 0.0
    %5449 = vmatprep.subr.mxu0 0.0
    %5450 = vmatpush1.msra.mxu0 0.0
    %5451 = vmatprep.subr.mxu0 0.0
    %5452 = vmatpush1.msra.mxu0 0.0
    %5453 = vmatprep.subr.mxu0 0.0
    %5454 = vmatpush1.msra.mxu0 0.0
    %5455 = vmatprep.subr.mxu0 0.0
    %5456 = vmatpush1.msra.mxu0 0.0
    %5457 = vmatprep.subr.mxu0 0.0
    %5458 = vmatpush1.msra.mxu0 0.0
    %5459 = vmatprep.subr.mxu0 0.0
    %5460 = vmatpush1.msra.mxu0 0.0
    %5461 = vmatprep.subr.mxu0 0.0
    %5462 = vmatpush1.msra.mxu0 0.0
    %5463 = vmatprep.subr.mxu0 0.0
    %5464 = vmatpush1.msra.mxu0 0.0
    %5465 = vmatprep.subr.mxu0 0.0
    %5466 = vmatpush1.msra.mxu0 0.0
    %5467 = vmatprep.subr.mxu0 0.0
    %5468 = vmatpush1.msra.mxu0 0.0
    %5469 = vmatprep.subr.mxu0 0.0
    %5470 = vmatpush1.msra.mxu0 0.0
    %5471 = vmatprep.subr.mxu0 0.0
    %5472 = vmatpush1.msra.mxu0 0.0
    %5473 = vmatprep.subr.mxu0 0.0
    %5474 = vmatpush1.msra.mxu0 0.0
    %5475 = vmatprep.mubr.f32.mxu0 0.0
    %5476 = vmatmul.mubr.f32.gmra.mrb[0].mxu0 %v5409
    %v5477 = vpop.f32.mrb[0].mxu0
    %v5478 = vadd.f32 0.0, %v5477
    %v5479 = vpop.f32.mrb[0].mxu0
    %5480 = vdwg.mxu0
    %5481 = vrot.lane.b32.xlu0 %v564, 32
    %v5482 = vpop.permute.xlu0 %5481
    %v5485 = vsel %vm1324, %v5398, 0
    %5487 = vmatprep.subr.mxu0 0.0
    %5488 = vmatpush1.msra.mxu0 %v5482
    %5489 = vmatprep.subr.mxu0 0.0
    %5490 = vmatpush1.msra.mxu0 0.0
    %5491 = vmatprep.subr.mxu0 0.0
    %5492 = vmatpush1.msra.mxu0 0.0
    %5493 = vmatprep.subr.mxu0 0.0
    %5494 = vmatpush1.msra.mxu0 0.0
    %5495 = vmatprep.subr.mxu0 0.0
    %5496 = vmatpush1.msra.mxu0 0.0
    %5497 = vmatprep.subr.mxu0 0.0
    %5498 = vmatpush1.msra.mxu0 0.0
    %5499 = vmatprep.subr.mxu0 0.0
    %5500 = vmatpush1.msra.mxu0 0.0
    %5501 = vmatprep.subr.mxu0 0.0
    %5502 = vmatpush1.msra.mxu0 0.0
    %5503 = vmatprep.subr.mxu0 0.0
    %5504 = vmatpush1.msra.mxu0 0.0
    %5505 = vmatprep.subr.mxu0 0.0
    %5506 = vmatpush1.msra.mxu0 0.0
    %5507 = vmatprep.subr.mxu0 0.0
    %5508 = vmatpush1.msra.mxu0 0.0
    %5509 = vmatprep.subr.mxu0 0.0
    %5510 = vmatpush1.msra.mxu0 0.0
    %5511 = vmatprep.subr.mxu0 0.0
    %5512 = vmatpush1.msra.mxu0 0.0
    %5513 = vmatprep.subr.mxu0 0.0
    %5514 = vmatpush1.msra.mxu0 0.0
    %5515 = vmatprep.subr.mxu0 0.0
    %5516 = vmatpush1.msra.mxu0 0.0
    %5517 = vmatprep.subr.mxu0 0.0
    %5518 = vmatpush1.msra.mxu0 0.0
    %5519 = vmatprep.subr.mxu0 0.0
    %5520 = vmatpush1.msra.mxu0 0.0
    %5521 = vmatprep.subr.mxu0 0.0
    %5522 = vmatpush1.msra.mxu0 0.0
    %5523 = vmatprep.subr.mxu0 0.0
    %5524 = vmatpush1.msra.mxu0 0.0
    %5525 = vmatprep.subr.mxu0 0.0
    %5526 = vmatpush1.msra.mxu0 0.0
    %5527 = vmatprep.subr.mxu0 0.0
    %5528 = vmatpush1.msra.mxu0 0.0
    %5529 = vmatprep.subr.mxu0 0.0
    %5530 = vmatpush1.msra.mxu0 0.0
    %5531 = vmatprep.subr.mxu0 0.0
    %5532 = vmatpush1.msra.mxu0 0.0
    %5533 = vmatprep.subr.mxu0 0.0
    %5534 = vmatpush1.msra.mxu0 0.0
    %5535 = vmatprep.subr.mxu0 0.0
    %5536 = vmatpush1.msra.mxu0 0.0
    %5537 = vmatprep.subr.mxu0 0.0
    %5538 = vmatpush1.msra.mxu0 0.0
    %5539 = vmatprep.subr.mxu0 0.0
    %5540 = vmatpush1.msra.mxu0 0.0
    %5541 = vmatprep.subr.mxu0 0.0
    %5542 = vmatpush1.msra.mxu0 0.0
    %5543 = vmatprep.subr.mxu0 0.0
    %5544 = vmatpush1.msra.mxu0 0.0
    %5545 = vmatprep.subr.mxu0 0.0
    %5546 = vmatpush1.msra.mxu0 0.0
    %5547 = vmatprep.subr.mxu0 0.0
    %5548 = vmatpush1.msra.mxu0 0.0
    %5549 = vmatprep.subr.mxu0 0.0
    %5550 = vmatpush1.msra.mxu0 0.0
    %5551 = vmatprep.mubr.f32.mxu0 0.0
    %5552 = vmatmul.mubr.f32.gmra.mrb[0].mxu0 %v5485
    %v5553 = vpop.f32.mrb[0].mxu0
    %v5554 = vadd.f32 0.0, %v5553
    %v5555 = vpop.f32.mrb[0].mxu0
    %5556 = vdwg.mxu0
    %5557 = vrot.lane.b32.xlu0 %v569, 32
    %v5558 = vpop.permute.xlu0 %5557
    %v5561 = vsel %vm1324, %v5399, 0
    %5563 = vmatprep.subr.mxu0 0.0
    %5564 = vmatpush1.msra.mxu0 %v5558
    %5565 = vmatprep.subr.mxu0 0.0
    %5566 = vmatpush1.msra.mxu0 0.0
    %5567 = vmatprep.subr.mxu0 0.0
    %5568 = vmatpush1.msra.mxu0 0.0
    %5569 = vmatprep.subr.mxu0 0.0
    %5570 = vmatpush1.msra.mxu0 0.0
    %5571 = vmatprep.subr.mxu0 0.0
    %5572 = vmatpush1.msra.mxu0 0.0
    %5573 = vmatprep.subr.mxu0 0.0
    %5574 = vmatpush1.msra.mxu0 0.0
    %5575 = vmatprep.subr.mxu0 0.0
    %5576 = vmatpush1.msra.mxu0 0.0
    %5577 = vmatprep.subr.mxu0 0.0
    %5578 = vmatpush1.msra.mxu0 0.0
    %5579 = vmatprep.subr.mxu0 0.0
    %5580 = vmatpush1.msra.mxu0 0.0
    %5581 = vmatprep.subr.mxu0 0.0
    %5582 = vmatpush1.msra.mxu0 0.0
    %5583 = vmatprep.subr.mxu0 0.0
    %5584 = vmatpush1.msra.mxu0 0.0
    %5585 = vmatprep.subr.mxu0 0.0
    %5586 = vmatpush1.msra.mxu0 0.0
    %5587 = vmatprep.subr.mxu0 0.0
    %5588 = vmatpush1.msra.mxu0 0.0
    %5589 = vmatprep.subr.mxu0 0.0
    %5590 = vmatpush1.msra.mxu0 0.0
    %5591 = vmatprep.subr.mxu0 0.0
    %5592 = vmatpush1.msra.mxu0 0.0
    %5593 = vmatprep.subr.mxu0 0.0
    %5594 = vmatpush1.msra.mxu0 0.0
    %5595 = vmatprep.subr.mxu0 0.0
    %5596 = vmatpush1.msra.mxu0 0.0
    %5597 = vmatprep.subr.mxu0 0.0
    %5598 = vmatpush1.msra.mxu0 0.0
    %5599 = vmatprep.subr.mxu0 0.0
    %5600 = vmatpush1.msra.mxu0 0.0
    %5601 = vmatprep.subr.mxu0 0.0
    %5602 = vmatpush1.msra.mxu0 0.0
    %5603 = vmatprep.subr.mxu0 0.0
    %5604 = vmatpush1.msra.mxu0 0.0
    %5605 = vmatprep.subr.mxu0 0.0
    %5606 = vmatpush1.msra.mxu0 0.0
    %5607 = vmatprep.subr.mxu0 0.0
    %5608 = vmatpush1.msra.mxu0 0.0
    %5609 = vmatprep.subr.mxu0 0.0
    %5610 = vmatpush1.msra.mxu0 0.0
    %5611 = vmatprep.subr.mxu0 0.0
    %5612 = vmatpush1.msra.mxu0 0.0
    %5613 = vmatprep.subr.mxu0 0.0
    %5614 = vmatpush1.msra.mxu0 0.0
    %5615 = vmatprep.subr.mxu0 0.0
    %5616 = vmatpush1.msra.mxu0 0.0
    %5617 = vmatprep.subr.mxu0 0.0
    %5618 = vmatpush1.msra.mxu0 0.0
    %5619 = vmatprep.subr.mxu0 0.0
    %5620 = vmatpush1.msra.mxu0 0.0
    %5621 = vmatprep.subr.mxu0 0.0
    %5622 = vmatpush1.msra.mxu0 0.0
    %5623 = vmatprep.subr.mxu0 0.0
    %5624 = vmatpush1.msra.mxu0 0.0
    %5625 = vmatprep.subr.mxu0 0.0
    %5626 = vmatpush1.msra.mxu0 0.0
    %5627 = vmatprep.mubr.f32.mxu0 0.0
    %5628 = vmatmul.mubr.f32.gmra.mrb[0].mxu0 %v5561
    %v5629 = vpop.f32.mrb[0].mxu0
    %v5630 = vadd.f32 0.0, %v5629
    %v5631 = vpop.f32.mrb[0].mxu0
    %5632 = vdwg.mxu0
    %5633 = vrot.lane.b32.xlu0 %v572, 32
    %v5634 = vpop.permute.xlu0 %5633
    %v5637 = vsel %vm1324, %v5400, 0
    %5639 = vmatprep.subr.mxu0 0.0
    %5640 = vmatpush1.msra.mxu0 %v5634
    %5641 = vmatprep.subr.mxu0 0.0
    %5642 = vmatpush1.msra.mxu0 0.0
    %5643 = vmatprep.subr.mxu0 0.0
    %5644 = vmatpush1.msra.mxu0 0.0
    %5645 = vmatprep.subr.mxu0 0.0
    %5646 = vmatpush1.msra.mxu0 0.0
    %5647 = vmatprep.subr.mxu0 0.0
    %5648 = vmatpush1.msra.mxu0 0.0
    %5649 = vmatprep.subr.mxu0 0.0
    %5650 = vmatpush1.msra.mxu0 0.0
    %5651 = vmatprep.subr.mxu0 0.0
    %5652 = vmatpush1.msra.mxu0 0.0
    %5653 = vmatprep.subr.mxu0 0.0
    %5654 = vmatpush1.msra.mxu0 0.0
    %5655 = vmatprep.subr.mxu0 0.0
    %5656 = vmatpush1.msra.mxu0 0.0
    %5657 = vmatprep.subr.mxu0 0.0
    %5658 = vmatpush1.msra.mxu0 0.0
    %5659 = vmatprep.subr.mxu0 0.0
    %5660 = vmatpush1.msra.mxu0 0.0
    %5661 = vmatprep.subr.mxu0 0.0
    %5662 = vmatpush1.msra.mxu0 0.0
    %5663 = vmatprep.subr.mxu0 0.0
    %5664 = vmatpush1.msra.mxu0 0.0
    %5665 = vmatprep.subr.mxu0 0.0
    %5666 = vmatpush1.msra.mxu0 0.0
    %5667 = vmatprep.subr.mxu0 0.0
    %5668 = vmatpush1.msra.mxu0 0.0
    %5669 = vmatprep.subr.mxu0 0.0
    %5670 = vmatpush1.msra.mxu0 0.0
    %5671 = vmatprep.subr.mxu0 0.0
    %5672 = vmatpush1.msra.mxu0 0.0
    %5673 = vmatprep.subr.mxu0 0.0
    %5674 = vmatpush1.msra.mxu0 0.0
    %5675 = vmatprep.subr.mxu0 0.0
    %5676 = vmatpush1.msra.mxu0 0.0
    %5677 = vmatprep.subr.mxu0 0.0
    %5678 = vmatpush1.msra.mxu0 0.0
    %5679 = vmatprep.subr.mxu0 0.0
    %5680 = vmatpush1.msra.mxu0 0.0
    %5681 = vmatprep.subr.mxu0 0.0
    %5682 = vmatpush1.msra.mxu0 0.0
    %5683 = vmatprep.subr.mxu0 0.0
    %5684 = vmatpush1.msra.mxu0 0.0
    %5685 = vmatprep.subr.mxu0 0.0
    %5686 = vmatpush1.msra.mxu0 0.0
    %5687 = vmatprep.subr.mxu0 0.0
    %5688 = vmatpush1.msra.mxu0 0.0
    %5689 = vmatprep.subr.mxu0 0.0
    %5690 = vmatpush1.msra.mxu0 0.0
    %5691 = vmatprep.subr.mxu0 0.0
    %5692 = vmatpush1.msra.mxu0 0.0
    %5693 = vmatprep.subr.mxu0 0.0
    %5694 = vmatpush1.msra.mxu0 0.0
    %5695 = vmatprep.subr.mxu0 0.0
    %5696 = vmatpush1.msra.mxu0 0.0
    %5697 = vmatprep.subr.mxu0 0.0
    %5698 = vmatpush1.msra.mxu0 0.0
    %5699 = vmatprep.subr.mxu0 0.0
    %5700 = vmatpush1.msra.mxu0 0.0
    %5701 = vmatprep.subr.mxu0 0.0
    %5702 = vmatpush1.msra.mxu0 0.0
    %5703 = vmatprep.mubr.f32.mxu0 0.0
    %5704 = vmatmul.mubr.f32.gmra.mrb[0].mxu0 %v5637
    %v5705 = vpop.f32.mrb[0].mxu0
    %v5706 = vadd.f32 0.0, %v5705
    %v5707 = vpop.f32.mrb[0].mxu0
    %5708 = vdwg.mxu0
    %5709 = vrot.lane.b32.xlu0 %v577, 32
    %v5710 = vpop.permute.xlu0 %5709
    %v5713 = vsel %vm1324, %v5401, 0
    %5715 = vmatprep.subr.mxu0 0.0
    %5716 = vmatpush1.msra.mxu0 %v5710
    %5717 = vmatprep.subr.mxu0 0.0
    %5718 = vmatpush1.msra.mxu0 0.0
    %5719 = vmatprep.subr.mxu0 0.0
    %5720 = vmatpush1.msra.mxu0 0.0
    %5721 = vmatprep.subr.mxu0 0.0
    %5722 = vmatpush1.msra.mxu0 0.0
    %5723 = vmatprep.subr.mxu0 0.0
    %5724 = vmatpush1.msra.mxu0 0.0
    %5725 = vmatprep.subr.mxu0 0.0
    %5726 = vmatpush1.msra.mxu0 0.0
    %5727 = vmatprep.subr.mxu0 0.0
    %5728 = vmatpush1.msra.mxu0 0.0
    %5729 = vmatprep.subr.mxu0 0.0
    %5730 = vmatpush1.msra.mxu0 0.0
    %5731 = vmatprep.subr.mxu0 0.0
    %5732 = vmatpush1.msra.mxu0 0.0
    %5733 = vmatprep.subr.mxu0 0.0
    %5734 = vmatpush1.msra.mxu0 0.0
    %5735 = vmatprep.subr.mxu0 0.0
    %5736 = vmatpush1.msra.mxu0 0.0
    %5737 = vmatprep.subr.mxu0 0.0
    %5738 = vmatpush1.msra.mxu0 0.0
    %5739 = vmatprep.subr.mxu0 0.0
    %5740 = vmatpush1.msra.mxu0 0.0
    %5741 = vmatprep.subr.mxu0 0.0
    %5742 = vmatpush1.msra.mxu0 0.0
    %5743 = vmatprep.subr.mxu0 0.0
    %5744 = vmatpush1.msra.mxu0 0.0
    %5745 = vmatprep.subr.mxu0 0.0
    %5746 = vmatpush1.msra.mxu0 0.0
    %5747 = vmatprep.subr.mxu0 0.0
    %5748 = vmatpush1.msra.mxu0 0.0
    %5749 = vmatprep.subr.mxu0 0.0
    %5750 = vmatpush1.msra.mxu0 0.0
    %5751 = vmatprep.subr.mxu0 0.0
    %5752 = vmatpush1.msra.mxu0 0.0
    %5753 = vmatprep.subr.mxu0 0.0
    %5754 = vmatpush1.msra.mxu0 0.0
    %5755 = vmatprep.subr.mxu0 0.0
    %5756 = vmatpush1.msra.mxu0 0.0
    %5757 = vmatprep.subr.mxu0 0.0
    %5758 = vmatpush1.msra.mxu0 0.0
    %5759 = vmatprep.subr.mxu0 0.0
    %5760 = vmatpush1.msra.mxu0 0.0
    %5761 = vmatprep.subr.mxu0 0.0
    %5762 = vmatpush1.msra.mxu0 0.0
    %5763 = vmatprep.subr.mxu0 0.0
    %5764 = vmatpush1.msra.mxu0 0.0
    %5765 = vmatprep.subr.mxu0 0.0
    %5766 = vmatpush1.msra.mxu0 0.0
    %5767 = vmatprep.subr.mxu0 0.0
    %5768 = vmatpush1.msra.mxu0 0.0
    %5769 = vmatprep.subr.mxu0 0.0
    %5770 = vmatpush1.msra.mxu0 0.0
    %5771 = vmatprep.subr.mxu0 0.0
    %5772 = vmatpush1.msra.mxu0 0.0
    %5773 = vmatprep.subr.mxu0 0.0
    %5774 = vmatpush1.msra.mxu0 0.0
    %5775 = vmatprep.subr.mxu0 0.0
    %5776 = vmatpush1.msra.mxu0 0.0
    %5777 = vmatprep.subr.mxu0 0.0
    %5778 = vmatpush1.msra.mxu0 0.0
    %5779 = vmatprep.mubr.f32.mxu0 0.0
    %5780 = vmatmul.mubr.f32.gmra.mrb[0].mxu0 %v5713
    %v5781 = vpop.f32.mrb[0].mxu0
    %v5782 = vadd.f32 0.0, %v5781
    %v5783 = vpop.f32.mrb[0].mxu0
    %5784 = vdwg.mxu0
    %5785 = vrot.lane.b32.xlu0 %v580, 32
    %v5786 = vpop.permute.xlu0 %5785
    %v5789 = vsel %vm1324, %v5402, 0
    %5791 = vmatprep.subr.mxu0 0.0
    %5792 = vmatpush1.msra.mxu0 %v5786
    %5793 = vmatprep.subr.mxu0 0.0
    %5794 = vmatpush1.msra.mxu0 0.0
    %5795 = vmatprep.subr.mxu0 0.0
    %5796 = vmatpush1.msra.mxu0 0.0
    %5797 = vmatprep.subr.mxu0 0.0
    %5798 = vmatpush1.msra.mxu0 0.0
    %5799 = vmatprep.subr.mxu0 0.0
    %5800 = vmatpush1.msra.mxu0 0.0
    %5801 = vmatprep.subr.mxu0 0.0
    %5802 = vmatpush1.msra.mxu0 0.0
    %5803 = vmatprep.subr.mxu0 0.0
    %5804 = vmatpush1.msra.mxu0 0.0
    %5805 = vmatprep.subr.mxu0 0.0
    %5806 = vmatpush1.msra.mxu0 0.0
    %5807 = vmatprep.subr.mxu0 0.0
    %5808 = vmatpush1.msra.mxu0 0.0
    %5809 = vmatprep.subr.mxu0 0.0
    %5810 = vmatpush1.msra.mxu0 0.0
    %5811 = vmatprep.subr.mxu0 0.0
    %5812 = vmatpush1.msra.mxu0 0.0
    %5813 = vmatprep.subr.mxu0 0.0
    %5814 = vmatpush1.msra.mxu0 0.0
    %5815 = vmatprep.subr.mxu0 0.0
    %5816 = vmatpush1.msra.mxu0 0.0
    %5817 = vmatprep.subr.mxu0 0.0
    %5818 = vmatpush1.msra.mxu0 0.0
    %5819 = vmatprep.subr.mxu0 0.0
    %5820 = vmatpush1.msra.mxu0 0.0
    %5821 = vmatprep.subr.mxu0 0.0
    %5822 = vmatpush1.msra.mxu0 0.0
    %5823 = vmatprep.subr.mxu0 0.0
    %5824 = vmatpush1.msra.mxu0 0.0
    %5825 = vmatprep.subr.mxu0 0.0
    %5826 = vmatpush1.msra.mxu0 0.0
    %5827 = vmatprep.subr.mxu0 0.0
    %5828 = vmatpush1.msra.mxu0 0.0
    %5829 = vmatprep.subr.mxu0 0.0
    %5830 = vmatpush1.msra.mxu0 0.0
    %5831 = vmatprep.subr.mxu0 0.0
    %5832 = vmatpush1.msra.mxu0 0.0
    %5833 = vmatprep.subr.mxu0 0.0
    %5834 = vmatpush1.msra.mxu0 0.0
    %5835 = vmatprep.subr.mxu0 0.0
    %5836 = vmatpush1.msra.mxu0 0.0
    %5837 = vmatprep.subr.mxu0 0.0
    %5838 = vmatpush1.msra.mxu0 0.0
    %5839 = vmatprep.subr.mxu0 0.0
    %5840 = vmatpush1.msra.mxu0 0.0
    %5841 = vmatprep.subr.mxu0 0.0
    %5842 = vmatpush1.msra.mxu0 0.0
    %5843 = vmatprep.subr.mxu0 0.0
    %5844 = vmatpush1.msra.mxu0 0.0
    %5845 = vmatprep.subr.mxu0 0.0
    %5846 = vmatpush1.msra.mxu0 0.0
    %5847 = vmatprep.subr.mxu0 0.0
    %5848 = vmatpush1.msra.mxu0 0.0
    %5849 = vmatprep.subr.mxu0 0.0
    %5850 = vmatpush1.msra.mxu0 0.0
    %5851 = vmatprep.subr.mxu0 0.0
    %5852 = vmatpush1.msra.mxu0 0.0
    %5853 = vmatprep.subr.mxu0 0.0
    %5854 = vmatpush1.msra.mxu0 0.0
    %5855 = vmatprep.mubr.f32.mxu0 0.0
    %5856 = vmatmul.mubr.f32.gmra.mrb[0].mxu0 %v5789
    %v5857 = vpop.f32.mrb[0].mxu0
    %v5858 = vadd.f32 0.0, %v5857
    %v5859 = vpop.f32.mrb[0].mxu0
    %5860 = vdwg.mxu0
    %5861 = vrot.lane.b32.xlu0 %v585, 32
    %v5862 = vpop.permute.xlu0 %5861
    %v5865 = vsel %vm1324, %v5403, 0
    %5867 = vmatprep.subr.mxu0 0.0
    %5868 = vmatpush1.msra.mxu0 %v5862
    %5869 = vmatprep.subr.mxu0 0.0
    %5870 = vmatpush1.msra.mxu0 0.0
    %5871 = vmatprep.subr.mxu0 0.0
    %5872 = vmatpush1.msra.mxu0 0.0
    %5873 = vmatprep.subr.mxu0 0.0
    %5874 = vmatpush1.msra.mxu0 0.0
    %5875 = vmatprep.subr.mxu0 0.0
    %5876 = vmatpush1.msra.mxu0 0.0
    %5877 = vmatprep.subr.mxu0 0.0
    %5878 = vmatpush1.msra.mxu0 0.0
    %5879 = vmatprep.subr.mxu0 0.0
    %5880 = vmatpush1.msra.mxu0 0.0
    %5881 = vmatprep.subr.mxu0 0.0
    %5882 = vmatpush1.msra.mxu0 0.0
    %5883 = vmatprep.subr.mxu0 0.0
    %5884 = vmatpush1.msra.mxu0 0.0
    %5885 = vmatprep.subr.mxu0 0.0
    %5886 = vmatpush1.msra.mxu0 0.0
    %5887 = vmatprep.subr.mxu0 0.0
    %5888 = vmatpush1.msra.mxu0 0.0
    %5889 = vmatprep.subr.mxu0 0.0
    %5890 = vmatpush1.msra.mxu0 0.0
    %5891 = vmatprep.subr.mxu0 0.0
    %5892 = vmatpush1.msra.mxu0 0.0
    %5893 = vmatprep.subr.mxu0 0.0
    %5894 = vmatpush1.msra.mxu0 0.0
    %5895 = vmatprep.subr.mxu0 0.0
    %5896 = vmatpush1.msra.mxu0 0.0
    %5897 = vmatprep.subr.mxu0 0.0
    %5898 = vmatpush1.msra.mxu0 0.0
    %5899 = vmatprep.subr.mxu0 0.0
    %5900 = vmatpush1.msra.mxu0 0.0
    %5901 = vmatprep.subr.mxu0 0.0
    %5902 = vmatpush1.msra.mxu0 0.0
    %5903 = vmatprep.subr.mxu0 0.0
    %5904 = vmatpush1.msra.mxu0 0.0
    %5905 = vmatprep.subr.mxu0 0.0
    %5906 = vmatpush1.msra.mxu0 0.0
    %5907 = vmatprep.subr.mxu0 0.0
    %5908 = vmatpush1.msra.mxu0 0.0
    %5909 = vmatprep.subr.mxu0 0.0
    %5910 = vmatpush1.msra.mxu0 0.0
    %5911 = vmatprep.subr.mxu0 0.0
    %5912 = vmatpush1.msra.mxu0 0.0
    %5913 = vmatprep.subr.mxu0 0.0
    %5914 = vmatpush1.msra.mxu0 0.0
    %5915 = vmatprep.subr.mxu0 0.0
    %5916 = vmatpush1.msra.mxu0 0.0
    %5917 = vmatprep.subr.mxu0 0.0
    %5918 = vmatpush1.msra.mxu0 0.0
    %5919 = vmatprep.subr.mxu0 0.0
    %5920 = vmatpush1.msra.mxu0 0.0
    %5921 = vmatprep.subr.mxu0 0.0
    %5922 = vmatpush1.msra.mxu0 0.0
    %5923 = vmatprep.subr.mxu0 0.0
    %5924 = vmatpush1.msra.mxu0 0.0
    %5925 = vmatprep.subr.mxu0 0.0
    %5926 = vmatpush1.msra.mxu0 0.0
    %5927 = vmatprep.subr.mxu0 0.0
    %5928 = vmatpush1.msra.mxu0 0.0
    %5929 = vmatprep.subr.mxu0 0.0
    %5930 = vmatpush1.msra.mxu0 0.0
    %5931 = vmatprep.mubr.f32.mxu0 0.0
    %5932 = vmatmul.mubr.f32.gmra.mrb[0].mxu0 %v5865
    %v5933 = vpop.f32.mrb[0].mxu0
    %v5934 = vadd.f32 0.0, %v5933
    %v5935 = vpop.f32.mrb[0].mxu0
    %5936 = vdwg.mxu0
    %5937 = vrot.lane.b32.xlu0 %v588, 32
    %v5938 = vpop.permute.xlu0 %5937
    %v5941 = vsel %vm1324, %v5404, 0
    %5943 = vmatprep.subr.mxu0 0.0
    %5944 = vmatpush1.msra.mxu0 %v5938
    %5945 = vmatprep.subr.mxu0 0.0
    %5946 = vmatpush1.msra.mxu0 0.0
    %5947 = vmatprep.subr.mxu0 0.0
    %5948 = vmatpush1.msra.mxu0 0.0
    %5949 = vmatprep.subr.mxu0 0.0
    %5950 = vmatpush1.msra.mxu0 0.0
    %5951 = vmatprep.subr.mxu0 0.0
    %5952 = vmatpush1.msra.mxu0 0.0
    %5953 = vmatprep.subr.mxu0 0.0
    %5954 = vmatpush1.msra.mxu0 0.0
    %5955 = vmatprep.subr.mxu0 0.0
    %5956 = vmatpush1.msra.mxu0 0.0
    %5957 = vmatprep.subr.mxu0 0.0
    %5958 = vmatpush1.msra.mxu0 0.0
    %5959 = vmatprep.subr.mxu0 0.0
    %5960 = vmatpush1.msra.mxu0 0.0
    %5961 = vmatprep.subr.mxu0 0.0
    %5962 = vmatpush1.msra.mxu0 0.0
    %5963 = vmatprep.subr.mxu0 0.0
    %5964 = vmatpush1.msra.mxu0 0.0
    %5965 = vmatprep.subr.mxu0 0.0
    %5966 = vmatpush1.msra.mxu0 0.0
    %5967 = vmatprep.subr.mxu0 0.0
    %5968 = vmatpush1.msra.mxu0 0.0
    %5969 = vmatprep.subr.mxu0 0.0
    %5970 = vmatpush1.msra.mxu0 0.0
    %5971 = vmatprep.subr.mxu0 0.0
    %5972 = vmatpush1.msra.mxu0 0.0
    %5973 = vmatprep.subr.mxu0 0.0
    %5974 = vmatpush1.msra.mxu0 0.0
    %5975 = vmatprep.subr.mxu0 0.0
    %5976 = vmatpush1.msra.mxu0 0.0
    %5977 = vmatprep.subr.mxu0 0.0
    %5978 = vmatpush1.msra.mxu0 0.0
    %5979 = vmatprep.subr.mxu0 0.0
    %5980 = vmatpush1.msra.mxu0 0.0
    %5981 = vmatprep.subr.mxu0 0.0
    %5982 = vmatpush1.msra.mxu0 0.0
    %5983 = vmatprep.subr.mxu0 0.0
    %5984 = vmatpush1.msra.mxu0 0.0
    %5985 = vmatprep.subr.mxu0 0.0
    %5986 = vmatpush1.msra.mxu0 0.0
    %5987 = vmatprep.subr.mxu0 0.0
    %5988 = vmatpush1.msra.mxu0 0.0
    %5989 = vmatprep.subr.mxu0 0.0
    %5990 = vmatpush1.msra.mxu0 0.0
    %5991 = vmatprep.subr.mxu0 0.0
    %5992 = vmatpush1.msra.mxu0 0.0
    %5993 = vmatprep.subr.mxu0 0.0
    %5994 = vmatpush1.msra.mxu0 0.0
    %5995 = vmatprep.subr.mxu0 0.0
    %5996 = vmatpush1.msra.mxu0 0.0
    %5997 = vmatprep.subr.mxu0 0.0
    %5998 = vmatpush1.msra.mxu0 0.0
    %5999 = vmatprep.subr.mxu0 0.0
    %6000 = vmatpush1.msra.mxu0 0.0
    %6001 = vmatprep.subr.mxu0 0.0
    %6002 = vmatpush1.msra.mxu0 0.0
    %6003 = vmatprep.subr.mxu0 0.0
    %6004 = vmatpush1.msra.mxu0 0.0
    %6005 = vmatprep.subr.mxu0 0.0
    %6006 = vmatpush1.msra.mxu0 0.0
    %6007 = vmatprep.mubr.f32.mxu0 0.0
    %6008 = vmatmul.mubr.f32.gmra.mrb[0].mxu0 %v5941
    %v6009 = vpop.f32.mrb[0].mxu0
    %v6010 = vadd.f32 0.0, %v6009
    %v6011 = vpop.f32.mrb[0].mxu0
    %6012 = vdwg.mxu0
    %6021 = vrot.lane.b32.xlu0 %v2799, 32
    %v6022 = vpop.permute.xlu0 %6021
    %6023 = vrot.lane.b32.xlu0 %v2876, 32
    %v6024 = vpop.permute.xlu0 %6023
    %6025 = vrot.lane.b32.xlu0 %v2953, 32
    %v6026 = vpop.permute.xlu0 %6025
    %6027 = vrot.lane.b32.xlu0 %v3030, 32
    %v6028 = vpop.permute.xlu0 %6027
    %6029 = vrot.lane.b32.xlu0 %v3107, 32
    %v6030 = vpop.permute.xlu0 %6029
    %6031 = vrot.lane.b32.xlu0 %v3184, 32
    %v6032 = vpop.permute.xlu0 %6031
    %6033 = vrot.lane.b32.xlu0 %v3261, 32
    %v6034 = vpop.permute.xlu0 %6033
    %6035 = vrot.lane.b32.xlu0 %v3338, 32
    %v6036 = vpop.permute.xlu0 %6035
    %6053 = vrot.lane.b32.xlu0 %v4142, 64
    %v6054 = vpop.permute.xlu0 %6053
    %6055 = vrot.lane.b32.xlu0 %v4218, 64
    %v6056 = vpop.permute.xlu0 %6055
    %6057 = vrot.lane.b32.xlu0 %v4294, 64
    %v6058 = vpop.permute.xlu0 %6057
    %6059 = vrot.lane.b32.xlu0 %v4370, 64
    %v6060 = vpop.permute.xlu0 %6059
    %6061 = vrot.lane.b32.xlu0 %v4446, 64
    %v6062 = vpop.permute.xlu0 %6061
    %6063 = vrot.lane.b32.xlu0 %v4522, 64
    %v6064 = vpop.permute.xlu0 %6063
    %6065 = vrot.lane.b32.xlu0 %v4598, 64
    %v6066 = vpop.permute.xlu0 %6065
    %6067 = vrot.lane.b32.xlu0 %v4674, 64
    %v6068 = vpop.permute.xlu0 %6067
    %6085 = vrot.lane.b32.xlu0 %v5478, 96
    %v6086 = vpop.permute.xlu0 %6085
    %6087 = vrot.lane.b32.xlu0 %v5554, 96
    %v6088 = vpop.permute.xlu0 %6087
    %6089 = vrot.lane.b32.xlu0 %v5630, 96
    %v6090 = vpop.permute.xlu0 %6089
    %6091 = vrot.lane.b32.xlu0 %v5706, 96
    %v6092 = vpop.permute.xlu0 %6091
    %6093 = vrot.lane.b32.xlu0 %v5782, 96
    %v6094 = vpop.permute.xlu0 %6093
    %6095 = vrot.lane.b32.xlu0 %v5858, 96
    %v6096 = vpop.permute.xlu0 %6095
    %6097 = vrot.lane.b32.xlu0 %v5934, 96
    %v6098 = vpop.permute.xlu0 %6097
    %6099 = vrot.lane.b32.xlu0 %v6010, 96
    %v6100 = vpop.permute.xlu0 %6099
    %v6109 = vsel %vm651, %v1483, %v6022
    %v6110 = vsel %vm651, %v1556, %v6024
    %v6111 = vsel %vm651, %v1629, %v6026
    %v6112 = vsel %vm651, %v1702, %v6028
    %v6113 = vsel %vm651, %v1775, %v6030
    %v6114 = vsel %vm651, %v1848, %v6032
    %v6115 = vsel %vm651, %v1921, %v6034
    %v6116 = vsel %vm651, %v1994, %v6036
    %vm6117 = vcmask 523264
    %v6118 = vsel %vm6117, %v6109, %v6054
    %v6119 = vsel %vm6117, %v6110, %v6056
    %v6120 = vsel %vm6117, %v6111, %v6058
    %v6121 = vsel %vm6117, %v6112, %v6060
    %v6122 = vsel %vm6117, %v6113, %v6062
    %v6123 = vsel %vm6117, %v6114, %v6064
    %v6124 = vsel %vm6117, %v6115, %v6066
    %v6125 = vsel %vm6117, %v6116, %v6068
    %vm6126 = vcmask 785408
    %v6127 = vsel %vm6126, %v6118, %v6086
    %v6128 = vsel %vm6126, %v6119, %v6088
    %v6129 = vsel %vm6126, %v6120, %v6090
    %v6130 = vsel %vm6126, %v6121, %v6092
    %v6131 = vsel %vm6126, %v6122, %v6094
    %v6132 = vsel %vm6126, %v6123, %v6096
    %v6133 = vsel %vm6126, %v6124, %v6098
    %v6134 = vsel %vm6126, %v6125, %v6100
    %v6135 = vpack.c.bf16 %v6128, %v6127
    %v6136 = vpack.c.bf16 %v6130, %v6129
    %v6137 = vpack.c.bf16 %v6132, %v6131
    %v6138 = vpack.c.bf16 %v6134, %v6133
    %v6139 = vld [vmem:[#allocation8] sm:$0xf]
    %v6140 = vld [vmem:[#allocation8 + $0x4] sm:$0xf]
    %v6141 = vld [vmem:[#allocation8 + $0x8] sm:$0xf]
    %v6142 = vld [vmem:[#allocation8 + $0xc] sm:$0xf]
    %v6143 = vld [vmem:[#allocation8 + $0x10] sm:$0xf]
    %v6144 = vld [vmem:[#allocation8 + $0x14] sm:$0xf]
    %v6145 = vld [vmem:[#allocation8 + $0x18] sm:$0xf]
    %v6146 = vld [vmem:[#allocation8 + $0x1c] sm:$0xf]
    %v6147 = vld [vmem:[#allocation8 + $0x20] sm:$0xf]
    %v6148 = vld [vmem:[#allocation8 + $0x24] sm:$0xf]
    %v6149 = vld [vmem:[#allocation8 + $0x28] sm:$0xf]
    %v6150 = vld [vmem:[#allocation8 + $0x2c] sm:$0xf]
    %v6151 = vld [vmem:[#allocation8 + $0x30] sm:$0xf]
    %v6152 = vld [vmem:[#allocation8 + $0x34] sm:$0xf]
    %v6153 = vld [vmem:[#allocation8 + $0x38] sm:$0xf]
    %v6154 = vld [vmem:[#allocation8 + $0x3c] sm:$0xf]
    %v6155 = vlaneseq
    %v6156 = vshrl.u32 %v6155, 7
    %v6157 = vsub.s32 0, %v6156
    %v6158 = vrot.slane %v102, %v6157
    %v6175 = vunpack.c.l.b16 %v6139
    %v6176 = vunpack.c.l.b16 %v6140
    %v6177 = vunpack.c.l.b16 %v6141
    %v6178 = vunpack.c.l.b16 %v6142
    %v6179 = vunpack.c.l.b16 %v6143
    %v6180 = vunpack.c.l.b16 %v6144
    %v6181 = vunpack.c.l.b16 %v6145
    %v6182 = vunpack.c.l.b16 %v6146
    %v6183 = vunpack.c.l.b16 %v6147
    %v6184 = vunpack.c.l.b16 %v6148
    %v6185 = vunpack.c.l.b16 %v6149
    %v6186 = vunpack.c.l.b16 %v6150
    %v6187 = vunpack.c.l.b16 %v6151
    %v6188 = vunpack.c.l.b16 %v6152
    %v6189 = vunpack.c.l.b16 %v6153
    %v6190 = vunpack.c.l.b16 %v6154
    %v6191 = vpack.c.b16 %v6176, %v6175
    %v6192 = vpack.c.b16 %v6178, %v6177
    %v6193 = vpack.c.b16 %v6180, %v6179
    %v6194 = vpack.c.b16 %v6182, %v6181
    %v6195 = vpack.c.b16 %v6184, %v6183
    %v6196 = vpack.c.b16 %v6186, %v6185
    %v6197 = vpack.c.b16 %v6188, %v6187
    %v6198 = vpack.c.b16 %v6190, %v6189
    %6207 = vmatprep.subr.bf16.mxu0 0
    %6208 = vmatpush1.bf16.msra.mxu0 %v6191
    %6209 = vmatprep.subr.bf16.mxu0 0
    %6210 = vmatpush1.bf16.msra.mxu0 %v6192
    %6211 = vmatprep.subr.bf16.mxu0 0
    %6212 = vmatpush1.bf16.msra.mxu0 %v6193
    %6213 = vmatprep.subr.bf16.mxu0 0
    %6214 = vmatpush1.bf16.msra.mxu0 %v6194
    %6215 = vmatprep.subr.bf16.mxu0 0
    %6216 = vmatpush1.bf16.msra.mxu0 %v6195
    %6217 = vmatprep.subr.bf16.mxu0 0
    %6218 = vmatpush1.bf16.msra.mxu0 %v6196
    %6219 = vmatprep.subr.bf16.mxu0 0
    %6220 = vmatpush1.bf16.msra.mxu0 %v6197
    %6221 = vmatprep.subr.bf16.mxu0 0
    %6222 = vmatpush1.bf16.msra.mxu0 %v6198
    %6223 = vmatprep.subr.bf16.mxu0 0
    %6224 = vmatpush1.bf16.msra.mxu0 0
    %6225 = vmatprep.subr.bf16.mxu0 0
    %6226 = vmatpush1.bf16.msra.mxu0 0
    %6227 = vmatprep.subr.bf16.mxu0 0
    %6228 = vmatpush1.bf16.msra.mxu0 0
    %6229 = vmatprep.subr.bf16.mxu0 0
    %6230 = vmatpush1.bf16.msra.mxu0 0
    %6231 = vmatprep.subr.bf16.mxu0 0
    %6232 = vmatpush1.bf16.msra.mxu0 0
    %6233 = vmatprep.subr.bf16.mxu0 0
    %6234 = vmatpush1.bf16.msra.mxu0 0
    %6235 = vmatprep.subr.bf16.mxu0 0
    %6236 = vmatpush1.bf16.msra.mxu0 0
    %6237 = vmatprep.subr.bf16.mxu0 0
    %6238 = vmatpush1.bf16.msra.mxu0 0
    %6239 = vmatprep.mubr.bf16.mxu0 0
    %6240 = vmatmul.mubr.bf16.gmra.mrb[0].mxu0 %v6135
    %v6241 = vpop.f32.mrb[0].mxu0
    %v6242 = vadd.f32 %v6158, %v6241
    %v6243 = vpop.f32.mrb[0].mxu0
    %v6244 = vpop.f32.mrb[0].mxu0
    %v6245 = vadd.f32 %v6158, %v6244
    %v6246 = vpop.f32.mrb[0].mxu0
    %6247 = vmatprep.mubr.bf16.mxu0 0
    %6248 = vmatmul.mubr.bf16.gmra.mrb[0].mxu0 %v6136
    %v6249 = vpop.f32.mrb[0].mxu0
    %v6250 = vadd.f32 %v6158, %v6249
    %v6251 = vpop.f32.mrb[0].mxu0
    %v6252 = vpop.f32.mrb[0].mxu0
    %v6253 = vadd.f32 %v6158, %v6252
    %v6254 = vpop.f32.mrb[0].mxu0
    %6255 = vmatprep.mubr.bf16.mxu0 0
    %6256 = vmatmul.mubr.bf16.gmra.mrb[0].mxu0 %v6137
    %v6257 = vpop.f32.mrb[0].mxu0
    %v6258 = vadd.f32 %v6158, %v6257
    %v6259 = vpop.f32.mrb[0].mxu0
    %v6260 = vpop.f32.mrb[0].mxu0
    %v6261 = vadd.f32 %v6158, %v6260
    %v6262 = vpop.f32.mrb[0].mxu0
    %6263 = vmatprep.mubr.bf16.mxu0 0
    %6264 = vmatmul.mubr.bf16.gmra.mrb[0].mxu0 %v6138
    %v6265 = vpop.f32.mrb[0].mxu0
    %v6266 = vadd.f32 %v6158, %v6265
    %v6267 = vpop.f32.mrb[0].mxu0
    %v6268 = vpop.f32.mrb[0].mxu0
    %v6269 = vadd.f32 %v6158, %v6268
    %v6270 = vpop.f32.mrb[0].mxu0
    %6271 = vdwg.mxu0
    %v6272 = vadd.f32 %v94, %v6242
    %v6273 = vadd.f32 %v95, %v6245
    %v6274 = vadd.f32 %v96, %v6250
    %v6275 = vadd.f32 %v97, %v6253
    %v6276 = vadd.f32 %v98, %v6258
    %v6277 = vadd.f32 %v99, %v6261
    %v6278 = vadd.f32 %v100, %v6266
    %v6279 = vadd.f32 %v101, %v6269
    %6280 = vadd.xlane.f32.xlu0 %v6272
    %v6281 = vpop.xlane.xlu0 %6280
    %6282 = vadd.xlane.f32.xlu0 %v6273
    %v6283 = vpop.xlane.xlu0 %6282
    %6284 = vadd.xlane.f32.xlu0 %v6274
    %v6285 = vpop.xlane.xlu0 %6284
    %6286 = vadd.xlane.f32.xlu0 %v6275
    %v6287 = vpop.xlane.xlu0 %6286
    %6288 = vadd.xlane.f32.xlu0 %v6276
    %v6289 = vpop.xlane.xlu0 %6288
    %6290 = vadd.xlane.f32.xlu0 %v6277
    %v6291 = vpop.xlane.xlu0 %6290
    %6292 = vadd.xlane.f32.xlu0 %v6278
    %v6293 = vpop.xlane.xlu0 %6292
    %6294 = vadd.xlane.f32.xlu0 %v6279
    %v6295 = vpop.xlane.xlu0 %6294
    %v6296 = vmul.f32 %v6281, %v119
    %v6297 = vmul.f32 %v6283, %v119
    %v6298 = vmul.f32 %v6285, %v119
    %v6299 = vmul.f32 %v6287, %v119
    %v6300 = vmul.f32 %v6289, %v119
    %v6301 = vmul.f32 %v6291, %v119
    %v6302 = vmul.f32 %v6293, %v119
    %v6303 = vmul.f32 %v6295, %v119
    %v6304 = vsub.f32 %v6272, %v6296
    %v6305 = vsub.f32 %v6273, %v6297
    %v6306 = vsub.f32 %v6274, %v6298
    %v6307 = vsub.f32 %v6275, %v6299
    %v6308 = vsub.f32 %v6276, %v6300
    %v6309 = vsub.f32 %v6277, %v6301
    %v6310 = vsub.f32 %v6278, %v6302
    %v6311 = vsub.f32 %v6279, %v6303
    %v6312 = vmul.f32 %v6304, %v6304
    %v6313 = vmul.f32 %v6305, %v6305
    %v6314 = vmul.f32 %v6306, %v6306
    %v6315 = vmul.f32 %v6307, %v6307
    %v6316 = vmul.f32 %v6308, %v6308
    %v6317 = vmul.f32 %v6309, %v6309
    %v6318 = vmul.f32 %v6310, %v6310
    %v6319 = vmul.f32 %v6311, %v6311
    %6320 = vadd.xlane.f32.xlu0 %v6312
    %v6321 = vpop.xlane.xlu0 %6320
    %6322 = vadd.xlane.f32.xlu0 %v6313
    %v6323 = vpop.xlane.xlu0 %6322
    %6324 = vadd.xlane.f32.xlu0 %v6314
    %v6325 = vpop.xlane.xlu0 %6324
    %6326 = vadd.xlane.f32.xlu0 %v6315
    %v6327 = vpop.xlane.xlu0 %6326
    %6328 = vadd.xlane.f32.xlu0 %v6316
    %v6329 = vpop.xlane.xlu0 %6328
    %6330 = vadd.xlane.f32.xlu0 %v6317
    %v6331 = vpop.xlane.xlu0 %6330
    %6332 = vadd.xlane.f32.xlu0 %v6318
    %v6333 = vpop.xlane.xlu0 %6332
    %6334 = vadd.xlane.f32.xlu0 %v6319
    %v6335 = vpop.xlane.xlu0 %6334
    %v6336 = vmul.f32 %v6321, 0.007874016
    %v6337 = vmul.f32 %v6323, 0.007874016
    %v6338 = vmul.f32 %v6325, 0.007874016
    %v6339 = vmul.f32 %v6327, 0.007874016
    %v6340 = vmul.f32 %v6329, 0.007874016
    %v6341 = vmul.f32 %v6331, 0.007874016
    %v6342 = vmul.f32 %v6333, 0.007874016
    %v6343 = vmul.f32 %v6335, 0.007874016
    %v6344 = vrsqrt.pop %v6336
    %v6345 = vmul.f32 %v6336, %v6344
    %vm6346 = vcmp.eq.f32.partialorder %v6336, inf
    %v6347 = vsel %vm6346, %v6336, %v6345
    %vm6348 = vcmp.eq.f32.partialorder %v6336, 0.0
    %v6349 = vand.u32 %v6336, 2147483648
    %v6350 = vsel %vm6348, %v6349, %v6347
    %v6351 = vrsqrt.pop %v6337
    %v6352 = vmul.f32 %v6337, %v6351
    %vm6353 = vcmp.eq.f32.partialorder %v6337, inf
    %v6354 = vsel %vm6353, %v6337, %v6352
    %vm6355 = vcmp.eq.f32.partialorder %v6337, 0.0
    %v6356 = vand.u32 %v6337, 2147483648
    %v6357 = vsel %vm6355, %v6356, %v6354
    %v6358 = vrsqrt.pop %v6338
    %v6359 = vmul.f32 %v6338, %v6358
    %vm6360 = vcmp.eq.f32.partialorder %v6338, inf
    %v6361 = vsel %vm6360, %v6338, %v6359
    %vm6362 = vcmp.eq.f32.partialorder %v6338, 0.0
    %v6363 = vand.u32 %v6338, 2147483648
    %v6364 = vsel %vm6362, %v6363, %v6361
    %v6365 = vrsqrt.pop %v6339
    %v6366 = vmul.f32 %v6339, %v6365
    %vm6367 = vcmp.eq.f32.partialorder %v6339, inf
    %v6368 = vsel %vm6367, %v6339, %v6366
    %vm6369 = vcmp.eq.f32.partialorder %v6339, 0.0
    %v6370 = vand.u32 %v6339, 2147483648
    %v6371 = vsel %vm6369, %v6370, %v6368
    %v6372 = vrsqrt.pop %v6340
    %v6373 = vmul.f32 %v6340, %v6372
    %vm6374 = vcmp.eq.f32.partialorder %v6340, inf
    %v6375 = vsel %vm6374, %v6340, %v6373
    %vm6376 = vcmp.eq.f32.partialorder %v6340, 0.0
    %v6377 = vand.u32 %v6340, 2147483648
    %v6378 = vsel %vm6376, %v6377, %v6375
    %v6379 = vrsqrt.pop %v6341
    %v6380 = vmul.f32 %v6341, %v6379
    %vm6381 = vcmp.eq.f32.partialorder %v6341, inf
    %v6382 = vsel %vm6381, %v6341, %v6380
    %vm6383 = vcmp.eq.f32.partialorder %v6341, 0.0
    %v6384 = vand.u32 %v6341, 2147483648
    %v6385 = vsel %vm6383, %v6384, %v6382
    %v6386 = vrsqrt.pop %v6342
    %v6387 = vmul.f32 %v6342, %v6386
    %vm6388 = vcmp.eq.f32.partialorder %v6342, inf
    %v6389 = vsel %vm6388, %v6342, %v6387
    %vm6390 = vcmp.eq.f32.partialorder %v6342, 0.0
    %v6391 = vand.u32 %v6342, 2147483648
    %v6392 = vsel %vm6390, %v6391, %v6389
    %v6393 = vrsqrt.pop %v6343
    %v6394 = vmul.f32 %v6343, %v6393
    %vm6395 = vcmp.eq.f32.partialorder %v6343, inf
    %v6396 = vsel %vm6395, %v6343, %v6394
    %vm6397 = vcmp.eq.f32.partialorder %v6343, 0.0
    %v6398 = vand.u32 %v6343, 2147483648
    %v6399 = vsel %vm6397, %v6398, %v6396
    %v6400 = vadd.f32 %v6350, 1e-06
    %v6401 = vadd.f32 %v6357, 1e-06
    %v6402 = vadd.f32 %v6364, 1e-06
    %v6403 = vadd.f32 %v6371, 1e-06
    %v6404 = vadd.f32 %v6378, 1e-06
    %v6405 = vadd.f32 %v6385, 1e-06
    %v6406 = vadd.f32 %v6392, 1e-06
    %v6407 = vadd.f32 %v6399, 1e-06
    %v6408 = vrcp.pop %v6400
    %v6409 = vrcp.pop %v6401
    %v6410 = vrcp.pop %v6402
    %v6411 = vrcp.pop %v6403
    %v6412 = vrcp.pop %v6404
    %v6413 = vrcp.pop %v6405
    %v6414 = vrcp.pop %v6406
    %v6415 = vrcp.pop %v6407
    %v6416 = vmul.f32 %v6304, %v6408
    %v6417 = vmul.f32 %v6305, %v6409
    %v6418 = vmul.f32 %v6306, %v6410
    %v6419 = vmul.f32 %v6307, %v6411
    %v6420 = vmul.f32 %v6308, %v6412
    %v6421 = vmul.f32 %v6309, %v6413
    %v6422 = vmul.f32 %v6310, %v6414
    %v6423 = vmul.f32 %v6311, %v6415
    %v6424 = vlaneseq
    %v6425 = vshrl.u32 %v6424, 7
    %v6426 = vsub.s32 3, %v6425
    %v6427 = vrot.slane %v102, %v6426
    %v6428 = vmul.f32 %v6427, %v6416
    %v6429 = vmul.f32 %v6427, %v6417
    %v6430 = vmul.f32 %v6427, %v6418
    %v6431 = vmul.f32 %v6427, %v6419
    %v6432 = vmul.f32 %v6427, %v6420
    %v6433 = vmul.f32 %v6427, %v6421
    %v6434 = vmul.f32 %v6427, %v6422
    %v6435 = vmul.f32 %v6427, %v6423
    %v6436 = vlaneseq
    %v6437 = vshrl.u32 %v6436, 7
    %v6438 = vsub.s32 4, %v6437
    %v6439 = vrot.slane %v102, %v6438
    %v6440 = vadd.f32 %v6428, %v6439
    %v6441 = vadd.f32 %v6429, %v6439
    %v6442 = vadd.f32 %v6430, %v6439
    %v6443 = vadd.f32 %v6431, %v6439
    %v6444 = vadd.f32 %v6432, %v6439
    %v6445 = vadd.f32 %v6433, %v6439
    %v6446 = vadd.f32 %v6434, %v6439
    %v6447 = vadd.f32 %v6435, %v6439
    %v6448 = vpack.c.bf16 %v6441, %v6440
    %v6449 = vpack.c.bf16 %v6443, %v6442
    %v6450 = vpack.c.bf16 %v6445, %v6444
    %v6451 = vpack.c.bf16 %v6447, %v6446
    %v6452 = vld [vmem:[#allocation10] sm:$0xf]
    %v6453 = vld [vmem:[#allocation10 + $0x4] sm:$0xf]
    %v6454 = vld [vmem:[#allocation10 + $0x8] sm:$0xf]
    %v6455 = vld [vmem:[#allocation10 + $0xc] sm:$0xf]
    %v6456 = vld [vmem:[#allocation10 + $0x10] sm:$0xf]
    %v6457 = vld [vmem:[#allocation10 + $0x14] sm:$0xf]
    %v6458 = vld [vmem:[#allocation10 + $0x18] sm:$0xf]
    %v6459 = vld [vmem:[#allocation10 + $0x1c] sm:$0xf]
    %v6460 = vld [vmem:[#allocation10 + $0x20] sm:$0xf]
    %v6461 = vld [vmem:[#allocation10 + $0x24] sm:$0xf]
    %v6462 = vld [vmem:[#allocation10 + $0x28] sm:$0xf]
    %v6463 = vld [vmem:[#allocation10 + $0x2c] sm:$0xf]
    %v6464 = vld [vmem:[#allocation10 + $0x30] sm:$0xf]
    %v6465 = vld [vmem:[#allocation10 + $0x34] sm:$0xf]
    %v6466 = vld [vmem:[#allocation10 + $0x38] sm:$0xf]
    %v6467 = vld [vmem:[#allocation10 + $0x3c] sm:$0xf]
    %v6468 = vlaneseq
    %v6469 = vshrl.u32 %v6468, 7
    %v6470 = vsub.s32 5, %v6469
    %v6471 = vrot.slane %v102, %v6470
    %v6488 = vunpack.c.l.b16 %v6452
    %v6489 = vunpack.c.l.b16 %v6453
    %v6490 = vunpack.c.l.b16 %v6454
    %v6491 = vunpack.c.l.b16 %v6455
    %v6492 = vunpack.c.l.b16 %v6456
    %v6493 = vunpack.c.l.b16 %v6457
    %v6494 = vunpack.c.l.b16 %v6458
    %v6495 = vunpack.c.l.b16 %v6459
    %v6496 = vunpack.c.l.b16 %v6460
    %v6497 = vunpack.c.l.b16 %v6461
    %v6498 = vunpack.c.l.b16 %v6462
    %v6499 = vunpack.c.l.b16 %v6463
    %v6500 = vunpack.c.l.b16 %v6464
    %v6501 = vunpack.c.l.b16 %v6465
    %v6502 = vunpack.c.l.b16 %v6466
    %v6503 = vunpack.c.l.b16 %v6467
    %v6504 = vpack.c.b16 %v6489, %v6488
    %v6505 = vpack.c.b16 %v6491, %v6490
    %v6506 = vpack.c.b16 %v6493, %v6492
    %v6507 = vpack.c.b16 %v6495, %v6494
    %v6508 = vpack.c.b16 %v6497, %v6496
    %v6509 = vpack.c.b16 %v6499, %v6498
    %v6510 = vpack.c.b16 %v6501, %v6500
    %v6511 = vpack.c.b16 %v6503, %v6502
    %6520 = vmatprep.subr.bf16.mxu0 0
    %6521 = vmatpush1.bf16.msra.mxu0 %v6504
    %6522 = vmatprep.subr.bf16.mxu0 0
    %6523 = vmatpush1.bf16.msra.mxu0 %v6505
    %6524 = vmatprep.subr.bf16.mxu0 0
    %6525 = vmatpush1.bf16.msra.mxu0 %v6506
    %6526 = vmatprep.subr.bf16.mxu0 0
    %6527 = vmatpush1.bf16.msra.mxu0 %v6507
    %6528 = vmatprep.subr.bf16.mxu0 0
    %6529 = vmatpush1.bf16.msra.mxu0 %v6508
    %6530 = vmatprep.subr.bf16.mxu0 0
    %6531 = vmatpush1.bf16.msra.mxu0 %v6509
    %6532 = vmatprep.subr.bf16.mxu0 0
    %6533 = vmatpush1.bf16.msra.mxu0 %v6510
    %6534 = vmatprep.subr.bf16.mxu0 0
    %6535 = vmatpush1.bf16.msra.mxu0 %v6511
    %6536 = vmatprep.subr.bf16.mxu0 0
    %6537 = vmatpush1.bf16.msra.mxu0 0
    %6538 = vmatprep.subr.bf16.mxu0 0
    %6539 = vmatpush1.bf16.msra.mxu0 0
    %6540 = vmatprep.subr.bf16.mxu0 0
    %6541 = vmatpush1.bf16.msra.mxu0 0
    %6542 = vmatprep.subr.bf16.mxu0 0
    %6543 = vmatpush1.bf16.msra.mxu0 0
    %6544 = vmatprep.subr.bf16.mxu0 0
    %6545 = vmatpush1.bf16.msra.mxu0 0
    %6546 = vmatprep.subr.bf16.mxu0 0
    %6547 = vmatpush1.bf16.msra.mxu0 0
    %6548 = vmatprep.subr.bf16.mxu0 0
    %6549 = vmatpush1.bf16.msra.mxu0 0
    %6550 = vmatprep.subr.bf16.mxu0 0
    %6551 = vmatpush1.bf16.msra.mxu0 0
    %6552 = vmatprep.mubr.bf16.mxu0 0
    %6553 = vmatmul.mubr.bf16.gmra.mrb[0].mxu0 %v6448
    %v6554 = vpop.f32.mrb[0].mxu0
    %v6555 = vadd.f32 %v6471, %v6554
    %v6556 = vpop.f32.mrb[0].mxu0
    %v6557 = vpop.f32.mrb[0].mxu0
    %v6558 = vadd.f32 %v6471, %v6557
    %v6559 = vpop.f32.mrb[0].mxu0
    %6560 = vmatprep.mubr.bf16.mxu0 0
    %6561 = vmatmul.mubr.bf16.gmra.mrb[0].mxu0 %v6449
    %v6562 = vpop.f32.mrb[0].mxu0
    %v6563 = vadd.f32 %v6471, %v6562
    %v6564 = vpop.f32.mrb[0].mxu0
    %v6565 = vpop.f32.mrb[0].mxu0
    %v6566 = vadd.f32 %v6471, %v6565
    %v6567 = vpop.f32.mrb[0].mxu0
    %6568 = vmatprep.mubr.bf16.mxu0 0
    %6569 = vmatmul.mubr.bf16.gmra.mrb[0].mxu0 %v6450
    %v6570 = vpop.f32.mrb[0].mxu0
    %v6571 = vadd.f32 %v6471, %v6570
    %v6572 = vpop.f32.mrb[0].mxu0
    %v6573 = vpop.f32.mrb[0].mxu0
    %v6574 = vadd.f32 %v6471, %v6573
    %v6575 = vpop.f32.mrb[0].mxu0
    %6576 = vmatprep.mubr.bf16.mxu0 0
    %6577 = vmatmul.mubr.bf16.gmra.mrb[0].mxu0 %v6451
    %v6578 = vpop.f32.mrb[0].mxu0
    %v6579 = vadd.f32 %v6471, %v6578
    %v6580 = vpop.f32.mrb[0].mxu0
    %v6581 = vpop.f32.mrb[0].mxu0
    %v6582 = vadd.f32 %v6471, %v6581
    %v6583 = vpop.f32.mrb[0].mxu0
    %6584 = vdwg.mxu0
    %v6585 = vadd.f32 %v6272, %v6555
    %v6586 = vadd.f32 %v6273, %v6558
    %v6587 = vadd.f32 %v6274, %v6563
    %v6588 = vadd.f32 %v6275, %v6566
    %v6589 = vadd.f32 %v6276, %v6571
    %v6590 = vadd.f32 %v6277, %v6574
    %v6591 = vadd.f32 %v6278, %v6579
    %v6592 = vadd.f32 %v6279, %v6582
    %6593 = vst [vmem:[#allocation11] sm:$0xff] %v6585
    %6594 = vst [vmem:[#allocation11 + $0x8] sm:$0xff] %v6586
    %6595 = vst [vmem:[#allocation11 + $0x10] sm:$0xff] %v6587
    %6596 = vst [vmem:[#allocation11 + $0x18] sm:$0xff] %v6588
    %6597 = vst [vmem:[#allocation11 + $0x20] sm:$0xff] %v6589
    %6598 = vst [vmem:[#allocation11 + $0x28] sm:$0xff] %v6590
    %6599 = vst [vmem:[#allocation11 + $0x30] sm:$0xff] %v6591
    %6600 = vst [vmem:[#allocation11 + $0x38] sm:$0xff] %v6592
    // Predicated region
    $region50: #{tpu_custom_call.1} parent=1 // pred_check
      _
    $region51: #{tpu_custom_call.1} parent=1 // pred_check_branch
      %6602 = sbr.rel (0) target = $region53
    $region52: #{tpu_custom_call.1} parent=1 // pred_region
      %s6604 = ssub.s32 1024, 1024
      %6605 = vsyncadd [#allocation4], %s6604
      %s6606 = sshll.u32 [#allocation11], 4
      %s6607 = int_to_ptr.vmem [resolvable:$true] %s6606
      %6612 = dma.vmem_to_hbm [thread:$0]  %s6607, 1024, %s7, [#allocation4], 128, 128, 8
    $region53: #{tpu_custom_call.1} parent=1 // pred_fallthru
      _
    // Predicated region
    $region54: #{tpu_custom_call.1} parent=1 // pred_check
      _
    $region55: #{tpu_custom_call.1} parent=1 // pred_check_branch
      %6614 = sbr.rel (0) target = $region57
    $region56: #{tpu_custom_call.1} parent=1 // pred_region
      %6615 = dma.done [#allocation4], 1024
    $region57: #{tpu_custom_call.1} parent=1 // pred_fallthru
      _
    %6616 = vsyncpa [#allocation3], 1
    %6617 = vsyncpa [#allocation6], 1
    %6618 = vsyncpa [#allocation9], 1
    %6619 = vsyncpa [#allocation4], 1

</llo_original>
